<compile_context>
chip_gen: v6e
topology: v6e:2x2x1
jax: 0.10.0
libtpu: 0.0.40
codegen_flags: <defaults>
</compile_context>

<pallas_src>
import functools

import jax
import jax.numpy as jnp
from jax import lax
from jax.experimental import pallas as pl
from jax.experimental.pallas import tpu as pltpu

CFG = [32, 64, 64, 128]           # defaultcfg
POOLS = [(2, 4), (3, 4), (2, 5)]  # pooling_sizes
BN_EPS = 1e-5


# ---------------------------------------------------------------------------
# Pallas kernels
# ---------------------------------------------------------------------------

def conv_bn_scale_elu_pool_kernel(p_ref, w_ref, a_ref, b_ref, o_ref, *,
                                  win, out_rows):
    """Fused Conv3x3 (im2col matmul) + BN(eval)+Scale affine + MaxPool + ELU.

    p_ref rows are ordered (window_elem, pooled_row): window element j owns the
    contiguous row range [j*out_rows, (j+1)*out_rows), so max-pooling is a chain of
    contiguous-slice maxima on the VPU. ELU is applied after the max (ELU is
    monotone, so ELU(max(x)) == max(ELU(x)), matching the PyTorch ELU -> MaxPool
    order) so the EUP only touches the pooled block.
    """
    y = jnp.dot(p_ref[...], w_ref[...], preferred_element_type=jnp.float32)
    y = y * a_ref[...] + b_ref[...]               # folded BN(eval) + ScaleLayer
    m = y[0:out_rows, :]
    for j in range(1, win):                        # static unroll over ph*pw elems
        m = jnp.maximum(m, y[j * out_rows:(j + 1) * out_rows, :])
    # ELU(alpha=1). tanh(x/2)*(exp(x)+1) == expm1(x) but stays accurate near 0
    # while using only ops guaranteed to lower to the EUP (exp, tanh).
    em1 = jnp.tanh(m * 0.5) * (jnp.exp(m) + 1.0)
    o_ref[...] = jnp.where(m > 0.0, m, em1)


def gram_div_all_kernel(*refs):
    # Diversity penalty accumulated over every Conv/Linear weight matrix W (n, k):
    #   Wn = W / (||W_row||_2 + 1e-9);  G = Wn @ Wn^T
    #   penalty = (sum|G| - n) / (n * (n - 1));  output = mean over layers
    *w_refs, o_ref = refs
    acc = jnp.zeros((), jnp.float32)
    for w_ref in w_refs:
        w = w_ref[...]
        n = w.shape[0]
        norms = jnp.sqrt(jnp.sum(w * w, axis=1, keepdims=True))
        wn = w / (norms + 1e-9)
        g = lax.dot_general(wn, wn, dimension_numbers=(((1,), (1,)), ((), ())),
                            preferred_element_type=jnp.float32)
        acc = acc + (jnp.sum(jnp.abs(g)) - n) / (n * (n - 1))
    o_ref[0, 0] = acc / float(len(w_refs))


def predict_kernel(x_ref, w1_ref, b1_ref, s_ref, w2_ref, b2_ref, o_ref):
    # Linear(384,128) -> ScaleLayer(128, 0.5, dim=2) -> Linear(128, 8)
    # Weights arrive in PyTorch (out, in) layout; contract over their dim 1.
    h = lax.dot_general(x_ref[...], w1_ref[...],
                        dimension_numbers=(((1,), (1,)), ((), ())),
                        preferred_element_type=jnp.float32) + b1_ref[...]
    h = h * s_ref[...]
    o_ref[...] = lax.dot_general(h, w2_ref[...],
                                 dimension_numbers=(((1,), (1,)), ((), ())),
                                 preferred_element_type=jnp.float32) + b2_ref[...]


# ---------------------------------------------------------------------------
# Wrappers around pallas_call
# ---------------------------------------------------------------------------

def _choose_group_tile(groups, rows_per_group, out_rows_per_group, target_blocks=4):
    """How many pooled (n, ho) row-groups each grid step handles.

    Non-full blocks must keep both the patch-block and output-block sublane dims
    divisible by 8; a single full-array step is always legal. Aim for ~4 steps so
    v7x megacore gets >=2 parallel steps without paying per-step overhead.
    """
    candidates = []
    for gr in range(1, groups + 1):
        if groups % gr:
            continue
        if gr != groups and ((gr * rows_per_group) % 8 or
                             (gr * out_rows_per_group) % 8):
            continue
        candidates.append(gr)
    return min(candidates, key=lambda g: abs(groups // g - target_blocks))


def conv_block(x_nhwc, w_oihw, gamma, beta, mean, var, scale, pool):
    """Conv2d(3x3, pad=1, no bias) + BN(eval) + ScaleLayer + ELU + MaxPool, fused."""
    N, H, W, Cin = x_nhwc.shape
    Cout = w_oihw.shape[0]
    ph, pw = pool
    assert H % ph == 0 and W % pw == 0
    Ho, Wo = H // ph, W // pw
    K = 9 * Cin
    win = ph * pw
    groups = N * Ho                    # pooled (n, ho) row-groups
    rows_per_group = ph * W            # conv-output rows feeding one group

    gr = _choose_group_tile(groups, rows_per_group, Wo)
    nblk = groups // gr
    tm = gr * rows_per_group           # patch rows per grid step (divides M exactly)
    out_rows = gr * Wo                 # pooled rows per grid step

    # im2col glue (plain JAX, bf16): feature index k = (dy*3+dx)*Cin + cin. Rows are
    # ordered (block, py, px, group, wo) so that inside a block each pooling-window
    # element is one contiguous chunk of `out_rows` rows.
    xb = x_nhwc.astype(jnp.bfloat16)
    xp = jnp.pad(xb, ((0, 0), (1, 1), (1, 1), (0, 0)))
    patches = jnp.stack([xp[:, dy:dy + H, dx:dx + W, :]
                         for dy in range(3) for dx in range(3)], axis=3)
    patches = patches.reshape(N, H, W, K)
    patches = patches.reshape(nblk, gr, ph, Wo, pw, K).transpose(0, 2, 4, 1, 3, 5)
    P = patches.reshape(N * H * W, K)

    W2 = jnp.transpose(w_oihw, (2, 3, 1, 0)).reshape(K, Cout).astype(jnp.bfloat16)
    inv = 1.0 / jnp.sqrt(var + BN_EPS)
    a = (gamma * inv * scale).reshape(1, Cout)
    b = ((beta - mean * gamma * inv) * scale).reshape(1, Cout)

    kern = functools.partial(conv_bn_scale_elu_pool_kernel,
                             win=win, out_rows=out_rows)
    y = pl.pallas_call(
        kern,
        out_shape=jax.ShapeDtypeStruct((N * Ho * Wo, Cout), jnp.float32),
        grid=(nblk,),
        in_specs=[pl.BlockSpec((tm, K), lambda i: (i, 0)),
                  pl.BlockSpec((K, Cout), lambda i: (0, 0)),
                  pl.BlockSpec((1, Cout), lambda i: (0, 0)),
                  pl.BlockSpec((1, Cout), lambda i: (0, 0))],
        out_specs=pl.BlockSpec((out_rows, Cout), lambda i: (i, 0)),
        compiler_params=pltpu.CompilerParams(dimension_semantics=("parallel",)),
    )(P, W2, a, b)
    return y.reshape(N, Ho, Wo, Cout)


def gram_div_all(weights):
    """Single launch computing the averaged diversity penalty over all weights."""
    return pl.pallas_call(
        gram_div_all_kernel,
        out_shape=jax.ShapeDtypeStruct((1, 1), jnp.float32),
        in_specs=[pl.BlockSpec(memory_space=pltpu.MemorySpace.VMEM)] * len(weights),
        out_specs=pl.BlockSpec(memory_space=pltpu.MemorySpace.SMEM),
    )(*weights)


def predict_head(xf, w1, b1, s, w2, b2):
    N = xf.shape[0]
    return pl.pallas_call(
        predict_kernel,
        out_shape=jax.ShapeDtypeStruct((N, w2.shape[0]), jnp.float32),
        in_specs=[pl.BlockSpec(memory_space=pltpu.MemorySpace.VMEM)] * 6,
        out_specs=pl.BlockSpec(memory_space=pltpu.MemorySpace.VMEM),
    )(xf, w1, b1, s, w2, b2)


# ---------------------------------------------------------------------------
# Parameter init (deterministic, mirrors a freshly-initialized module)
# ---------------------------------------------------------------------------

def init_params(key):
    keys = jax.random.split(key, 8)
    params = {}
    # Input BatchNorm2d(1): fresh stats
    params["bn0"] = dict(gamma=jnp.ones((1,), jnp.float32), beta=jnp.zeros((1,), jnp.float32),
                         mean=jnp.zeros((1,), jnp.float32), var=jnp.ones((1,), jnp.float32))
    convs = []
    in_planes = 1
    for idx, v in enumerate(CFG[:-1]):
        w = jax.random.normal(keys[idx], (v, in_planes, 3, 3), jnp.float32) * 0.1
        convs.append(dict(
            w=w,
            gamma=jnp.ones((v,), jnp.float32), beta=jnp.zeros((v,), jnp.float32),
            mean=jnp.zeros((v,), jnp.float32), var=jnp.ones((v,), jnp.float32),
            scale=jnp.full((v,), 0.5, jnp.float32),          # ScaleLayer(v, 0.5)
        ))
        in_planes = v
    params["convs"] = convs

    d_in = 6 * CFG[-2]   # 384
    params["fc"] = dict(
        w1=jax.random.normal(keys[4], (CFG[-1], d_in), jnp.float32) * 0.05,   # Linear(384,128)
        b1=jax.random.normal(keys[5], (CFG[-1],), jnp.float32) * 0.01,
        scale=jnp.full((CFG[-1],), 0.5, jnp.float32),                         # ScaleLayer(128,0.5,dim=2)
        w2=jax.random.normal(keys[6], (8, CFG[-1]), jnp.float32) * 0.05,      # Linear(128,8)
        b2=jax.random.normal(keys[7], (8,), jnp.float32) * 0.01,
    )
    return params


# ---------------------------------------------------------------------------
# Forward
# ---------------------------------------------------------------------------

def forward(params, x_nchw, pruning_rate=0, is_training=True, filter_percent=0.0):
    x = jnp.transpose(x_nchw.astype(jnp.float32), (0, 2, 3, 1))   # NCHW -> NHWC

    if is_training:
        # Diversity loss: one fused kernel over all Conv/Linear weights (all out>1).
        ws = [c["w"].reshape(c["w"].shape[0], -1) for c in params["convs"]]
        ws += [params["fc"]["w1"], params["fc"]["w2"]]
        div_loss = gram_div_all(ws)
        pr_loss = jnp.zeros((1, 1), jnp.float32)
        if filter_percent > 0 and pruning_rate > 0:
            # TODO(synk): in-place ScaleLayer magnitude pruning (sort + threshold +
            # param mutation) is a stateful side effect with no clean Pallas
            # equivalent; not executed here (filter_percent=0 path).
            pass
    else:
        div_loss = jnp.zeros((1, 1), jnp.float32)
        pr_loss = jnp.zeros((1, 1), jnp.float32)

    # Feature extractor: BN(1) -> 3x fused [Conv+BN+Scale+ELU+MaxPool]
    bn0 = params["bn0"]
    x = (x - bn0["mean"]) / jnp.sqrt(bn0["var"] + BN_EPS) * bn0["gamma"] + bn0["beta"]
    for idx, c in enumerate(params["convs"]):
        x = conv_block(x, c["w"], c["gamma"], c["beta"], c["mean"], c["var"],
                       c["scale"], POOLS[idx])

    # torch.flatten(x, start_dim=1) flattens NCHW order -> transpose back first
    # (tiny (N,384) relayout).
    N, Ho, Wo, C = x.shape
    xf = jnp.transpose(x, (0, 3, 1, 2)).reshape(N, C * Ho * Wo)

    # Dropout(p=0.2) is identity in eval mode (deterministic forward).
    fc = params["fc"]
    out = predict_head(xf, fc["w1"], fc["b1"].reshape(1, -1),
                       fc["scale"].reshape(1, -1), fc["w2"], fc["b2"].reshape(1, -1))
    return out, div_loss, pr_loss


if __name__ == "__main__":
    key = jax.random.PRNGKey(0)
    pkey, xkey = jax.random.split(key)
    params = init_params(pkey)
    # Input (N, 1, 24, 240): pools (2,4),(3,4),(2,5) -> final spatial (2,3), so the
    # flattened feature is 64*2*3 = 384 = 6*cfg[-2], matching Linear(6*cfg[-2], cfg[-1]).
    x = jax.random.normal(xkey, (2, 1, 24, 240), jnp.float32)
    fwd = jax.jit(functools.partial(forward, pruning_rate=0,
                                    is_training=True, filter_percent=0.0))
    out, div_loss, pr_loss = fwd(params, x)
    jax.block_until_ready((out, div_loss, pr_loss))
    assert out.shape == (2, 8)
    assert div_loss.shape == (1, 1) and pr_loss.shape == (1, 1)
    print("KERNEL_OK")
</pallas_src>

<mosaic_0001>
module attributes {stable_mosaic.version = 11 : i64} {
  func.func @conv_bn_scale_elu_pool_kernel(%arg0: i32, %arg1: memref<2880x9xbf16, #tpu.memory_space<vmem>>, %arg2: memref<9x32xbf16, #tpu.memory_space<vmem>>, %arg3: memref<1x32xf32, #tpu.memory_space<vmem>>, %arg4: memref<1x32xf32, #tpu.memory_space<vmem>>, %arg5: memref<360x32xf32, #tpu.memory_space<vmem>>) attributes {dimension_semantics = [#tpu.dimension_semantics<parallel>], iteration_bounds = array<i64: 4>, scalar_prefetch = 0 : i64, scratch_operands = 0 : i64, tpu.core_type = #tpu.core_type<tc>, window_params = [{transform_indices = @transform_0, window_bounds = array<i64: 2880, 9>}, {pipeline_mode = #tpu.pipeline_mode<synchronous>, transform_indices = @transform_1, window_bounds = array<i64: 9, 32>}, {pipeline_mode = #tpu.pipeline_mode<synchronous>, transform_indices = @transform_2, window_bounds = array<i64: 1, 32>}, {pipeline_mode = #tpu.pipeline_mode<synchronous>, transform_indices = @transform_3, window_bounds = array<i64: 1, 32>}, {transform_indices = @transform_4, window_bounds = array<i64: 360, 32>}]} {
    %c0 = arith.constant 0 : index
    %c0_0 = arith.constant 0 : index
    %0 = vector.load %arg1[%c0, %c0_0] : memref<2880x9xbf16, #tpu.memory_space<vmem>>, vector<2880x9xbf16>
    %c0_1 = arith.constant 0 : index
    %c0_2 = arith.constant 0 : index
    %1 = vector.load %arg2[%c0_1, %c0_2] : memref<9x32xbf16, #tpu.memory_space<vmem>>, vector<9x32xbf16>
    %cst = arith.constant dense<0.000000e+00> : vector<2880x32xf32>
    %2 = tpu.matmul %0, %1, %cst {dimension_numbers = #tpu.dot_dimension_numbers<[1], [0], [0], [1], [0, 0, 1, 1], [], []>} : vector<2880x9xbf16>, vector<9x32xbf16>, vector<2880x32xf32> -> vector<2880x32xf32>
    %c0_3 = arith.constant 0 : index
    %c0_4 = arith.constant 0 : index
    %3 = vector.load %arg3[%c0_3, %c0_4] : memref<1x32xf32, #tpu.memory_space<vmem>>, vector<1x32xf32>
    %4 = vector.broadcast %3 : vector<1x32xf32> to vector<2880x32xf32>
    %5 = arith.mulf %2, %4 : vector<2880x32xf32>
    %c0_5 = arith.constant 0 : index
    %c0_6 = arith.constant 0 : index
    %6 = vector.load %arg4[%c0_5, %c0_6] : memref<1x32xf32, #tpu.memory_space<vmem>>, vector<1x32xf32>
    %7 = vector.broadcast %6 : vector<1x32xf32> to vector<2880x32xf32>
    %8 = arith.addf %5, %7 : vector<2880x32xf32>
    %9 = vector.extract_strided_slice %8 {offsets = [0, 0], sizes = [360, 32], strides = [1, 1]} : vector<2880x32xf32> to vector<360x32xf32>
    %10 = vector.extract_strided_slice %8 {offsets = [360, 0], sizes = [360, 32], strides = [1, 1]} : vector<2880x32xf32> to vector<360x32xf32>
    %11 = arith.maximumf %9, %10 : vector<360x32xf32>
    %12 = vector.extract_strided_slice %8 {offsets = [720, 0], sizes = [360, 32], strides = [1, 1]} : vector<2880x32xf32> to vector<360x32xf32>
    %13 = arith.maximumf %11, %12 : vector<360x32xf32>
    %14 = vector.extract_strided_slice %8 {offsets = [1080, 0], sizes = [360, 32], strides = [1, 1]} : vector<2880x32xf32> to vector<360x32xf32>
    %15 = arith.maximumf %13, %14 : vector<360x32xf32>
    %16 = vector.extract_strided_slice %8 {offsets = [1440, 0], sizes = [360, 32], strides = [1, 1]} : vector<2880x32xf32> to vector<360x32xf32>
    %17 = arith.maximumf %15, %16 : vector<360x32xf32>
    %18 = vector.extract_strided_slice %8 {offsets = [1800, 0], sizes = [360, 32], strides = [1, 1]} : vector<2880x32xf32> to vector<360x32xf32>
    %19 = arith.maximumf %17, %18 : vector<360x32xf32>
    %20 = vector.extract_strided_slice %8 {offsets = [2160, 0], sizes = [360, 32], strides = [1, 1]} : vector<2880x32xf32> to vector<360x32xf32>
    %21 = arith.maximumf %19, %20 : vector<360x32xf32>
    %22 = vector.extract_strided_slice %8 {offsets = [2520, 0], sizes = [360, 32], strides = [1, 1]} : vector<2880x32xf32> to vector<360x32xf32>
    %23 = arith.maximumf %21, %22 : vector<360x32xf32>
    %cst_7 = arith.constant 5.000000e-01 : f32
    %24 = vector.broadcast %cst_7 : f32 to vector<360x32xf32>
    %25 = arith.mulf %23, %24 : vector<360x32xf32>
    %26 = math.tanh %25 : vector<360x32xf32>
    %27 = math.exp %23 : vector<360x32xf32>
    %cst_8 = arith.constant 1.000000e+00 : f32
    %28 = vector.broadcast %cst_8 : f32 to vector<360x32xf32>
    %29 = arith.addf %27, %28 : vector<360x32xf32>
    %30 = arith.mulf %26, %29 : vector<360x32xf32>
    %cst_9 = arith.constant 0.000000e+00 : f32
    %31 = vector.broadcast %cst_9 : f32 to vector<360x32xf32>
    %32 = arith.cmpf ogt, %23, %31 : vector<360x32xf32>
    %33 = arith.select %32, %23, %30 : vector<360x32xi1>, vector<360x32xf32>
    %c0_10 = arith.constant 0 : index
    %c0_11 = arith.constant 0 : index
    %34 = vector.load %arg5[%c0_10, %c0_11] : memref<360x32xf32, #tpu.memory_space<vmem>>, vector<360x32xf32>
    tpu.vector_store %arg5[%c0_10, %c0_11], %33 {strides = array<i32>} : memref<360x32xf32, #tpu.memory_space<vmem>>, vector<360x32xf32>,
    return
  }
  func.func @transform_0(%arg0: i32) -> (i32, i32) {
    %c0_i32 = arith.constant 0 : i32
    %c0_i32_0 = arith.constant 0 : i32
    return %arg0, %c0_i32 : i32, i32
  }
  func.func @transform_1(%arg0: i32) -> (i32, i32) {
    %c0_i32 = arith.constant 0 : i32
    %c0_i32_0 = arith.constant 0 : i32
    %c0_i32_1 = arith.constant 0 : i32
    return %c0_i32, %c0_i32_0 : i32, i32
  }
  func.func @transform_2(%arg0: i32) -> (i32, i32) {
    %c0_i32 = arith.constant 0 : i32
    %c0_i32_0 = arith.constant 0 : i32
    %c0_i32_1 = arith.constant 0 : i32
    return %c0_i32, %c0_i32_0 : i32, i32
  }
  func.func @transform_3(%arg0: i32) -> (i32, i32) {
    %c0_i32 = arith.constant 0 : i32
    %c0_i32_0 = arith.constant 0 : i32
    %c0_i32_1 = arith.constant 0 : i32
    return %c0_i32, %c0_i32_0 : i32, i32
  }
  func.func @transform_4(%arg0: i32) -> (i32, i32) {
    %c0_i32 = arith.constant 0 : i32
    %c0_i32_0 = arith.constant 0 : i32
    return %arg0, %c0_i32 : i32, i32
  }
}

module attributes {stable_mosaic.version = 11 : i64} {
  func.func @conv_bn_scale_elu_pool_kernel(%arg0: i32, %arg1: memref<1440x288xbf16, #tpu.memory_space<vmem>>, %arg2: memref<288x64xbf16, #tpu.memory_space<vmem>>, %arg3: memref<1x64xf32, #tpu.memory_space<vmem>>, %arg4: memref<1x64xf32, #tpu.memory_space<vmem>>, %arg5: memref<120x64xf32, #tpu.memory_space<vmem>>) attributes {dimension_semantics = [#tpu.dimension_semantics<parallel>], iteration_bounds = array<i64: 1>, scalar_prefetch = 0 : i64, scratch_operands = 0 : i64, tpu.core_type = #tpu.core_type<tc>, window_params = [{transform_indices = @transform_0, window_bounds = array<i64: 1440, 288>}, {pipeline_mode = #tpu.pipeline_mode<synchronous>, transform_indices = @transform_1, window_bounds = array<i64: 288, 64>}, {pipeline_mode = #tpu.pipeline_mode<synchronous>, transform_indices = @transform_2, window_bounds = array<i64: 1, 64>}, {pipeline_mode = #tpu.pipeline_mode<synchronous>, transform_indices = @transform_3, window_bounds = array<i64: 1, 64>}, {transform_indices = @transform_4, window_bounds = array<i64: 120, 64>}]} {
    %c0 = arith.constant 0 : index
    %c0_0 = arith.constant 0 : index
    %0 = vector.load %arg1[%c0, %c0_0] : memref<1440x288xbf16, #tpu.memory_space<vmem>>, vector<1440x288xbf16>
    %c0_1 = arith.constant 0 : index
    %c0_2 = arith.constant 0 : index
    %1 = vector.load %arg2[%c0_1, %c0_2] : memref<288x64xbf16, #tpu.memory_space<vmem>>, vector<288x64xbf16>
    %cst = arith.constant dense<0.000000e+00> : vector<1440x64xf32>
    %2 = tpu.matmul %0, %1, %cst {dimension_numbers = #tpu.dot_dimension_numbers<[1], [0], [0], [1], [0, 0, 1, 1], [], []>} : vector<1440x288xbf16>, vector<288x64xbf16>, vector<1440x64xf32> -> vector<1440x64xf32>
    %c0_3 = arith.constant 0 : index
    %c0_4 = arith.constant 0 : index
    %3 = vector.load %arg3[%c0_3, %c0_4] : memref<1x64xf32, #tpu.memory_space<vmem>>, vector<1x64xf32>
    %4 = vector.broadcast %3 : vector<1x64xf32> to vector<1440x64xf32>
    %5 = arith.mulf %2, %4 : vector<1440x64xf32>
    %c0_5 = arith.constant 0 : index
    %c0_6 = arith.constant 0 : index
    %6 = vector.load %arg4[%c0_5, %c0_6] : memref<1x64xf32, #tpu.memory_space<vmem>>, vector<1x64xf32>
    %7 = vector.broadcast %6 : vector<1x64xf32> to vector<1440x64xf32>
    %8 = arith.addf %5, %7 : vector<1440x64xf32>
    %9 = vector.extract_strided_slice %8 {offsets = [0, 0], sizes = [120, 64], strides = [1, 1]} : vector<1440x64xf32> to vector<120x64xf32>
    %10 = vector.extract_strided_slice %8 {offsets = [120, 0], sizes = [120, 64], strides = [1, 1]} : vector<1440x64xf32> to vector<120x64xf32>
    %11 = arith.maximumf %9, %10 : vector<120x64xf32>
    %12 = vector.extract_strided_slice %8 {offsets = [240, 0], sizes = [120, 64], strides = [1, 1]} : vector<1440x64xf32> to vector<120x64xf32>
    %13 = arith.maximumf %11, %12 : vector<120x64xf32>
    %14 = vector.extract_strided_slice %8 {offsets = [360, 0], sizes = [120, 64], strides = [1, 1]} : vector<1440x64xf32> to vector<120x64xf32>
    %15 = arith.maximumf %13, %14 : vector<120x64xf32>
    %16 = vector.extract_strided_slice %8 {offsets = [480, 0], sizes = [120, 64], strides = [1, 1]} : vector<1440x64xf32> to vector<120x64xf32>
    %17 = arith.maximumf %15, %16 : vector<120x64xf32>
    %18 = vector.extract_strided_slice %8 {offsets = [600, 0], sizes = [120, 64], strides = [1, 1]} : vector<1440x64xf32> to vector<120x64xf32>
    %19 = arith.maximumf %17, %18 : vector<120x64xf32>
    %20 = vector.extract_strided_slice %8 {offsets = [720, 0], sizes = [120, 64], strides = [1, 1]} : vector<1440x64xf32> to vector<120x64xf32>
    %21 = arith.maximumf %19, %20 : vector<120x64xf32>
    %22 = vector.extract_strided_slice %8 {offsets = [840, 0], sizes = [120, 64], strides = [1, 1]} : vector<1440x64xf32> to vector<120x64xf32>
    %23 = arith.maximumf %21, %22 : vector<120x64xf32>
    %24 = vector.extract_strided_slice %8 {offsets = [960, 0], sizes = [120, 64], strides = [1, 1]} : vector<1440x64xf32> to vector<120x64xf32>
    %25 = arith.maximumf %23, %24 : vector<120x64xf32>
    %26 = vector.extract_strided_slice %8 {offsets = [1080, 0], sizes = [120, 64], strides = [1, 1]} : vector<1440x64xf32> to vector<120x64xf32>
    %27 = arith.maximumf %25, %26 : vector<120x64xf32>
    %28 = vector.extract_strided_slice %8 {offsets = [1200, 0], sizes = [120, 64], strides = [1, 1]} : vector<1440x64xf32> to vector<120x64xf32>
    %29 = arith.maximumf %27, %28 : vector<120x64xf32>
    %30 = vector.extract_strided_slice %8 {offsets = [1320, 0], sizes = [120, 64], strides = [1, 1]} : vector<1440x64xf32> to vector<120x64xf32>
    %31 = arith.maximumf %29, %30 : vector<120x64xf32>
    %cst_7 = arith.constant 5.000000e-01 : f32
    %32 = vector.broadcast %cst_7 : f32 to vector<120x64xf32>
    %33 = arith.mulf %31, %32 : vector<120x64xf32>
    %34 = math.tanh %33 : vector<120x64xf32>
    %35 = math.exp %31 : vector<120x64xf32>
    %cst_8 = arith.constant 1.000000e+00 : f32
    %36 = vector.broadcast %cst_8 : f32 to vector<120x64xf32>
    %37 = arith.addf %35, %36 : vector<120x64xf32>
    %38 = arith.mulf %34, %37 : vector<120x64xf32>
    %cst_9 = arith.constant 0.000000e+00 : f32
    %39 = vector.broadcast %cst_9 : f32 to vector<120x64xf32>
    %40 = arith.cmpf ogt, %31, %39 : vector<120x64xf32>
    %41 = arith.select %40, %31, %38 : vector<120x64xi1>, vector<120x64xf32>
    %c0_10 = arith.constant 0 : index
    %c0_11 = arith.constant 0 : index
    %42 = vector.load %arg5[%c0_10, %c0_11] : memref<120x64xf32, #tpu.memory_space<vmem>>, vector<120x64xf32>
    tpu.vector_store %arg5[%c0_10, %c0_11], %41 {strides = array<i32>} : memref<120x64xf32, #tpu.memory_space<vmem>>, vector<120x64xf32>,
    return
  }
  func.func @transform_0(%arg0: i32) -> (i32, i32) {
    %c0_i32 = arith.constant 0 : i32
    %c0_i32_0 = arith.constant 0 : i32
    return %arg0, %c0_i32 : i32, i32
  }
  func.func @transform_1(%arg0: i32) -> (i32, i32) {
    %c0_i32 = arith.constant 0 : i32
    %c0_i32_0 = arith.constant 0 : i32
    %c0_i32_1 = arith.constant 0 : i32
    return %c0_i32, %c0_i32_0 : i32, i32
  }
  func.func @transform_2(%arg0: i32) -> (i32, i32) {
    %c0_i32 = arith.constant 0 : i32
    %c0_i32_0 = arith.constant 0 : i32
    %c0_i32_1 = arith.constant 0 : i32
    return %c0_i32, %c0_i32_0 : i32, i32
  }
  func.func @transform_3(%arg0: i32) -> (i32, i32) {
    %c0_i32 = arith.constant 0 : i32
    %c0_i32_0 = arith.constant 0 : i32
    %c0_i32_1 = arith.constant 0 : i32
    return %c0_i32, %c0_i32_0 : i32, i32
  }
  func.func @transform_4(%arg0: i32) -> (i32, i32) {
    %c0_i32 = arith.constant 0 : i32
    %c0_i32_0 = arith.constant 0 : i32
    return %arg0, %c0_i32 : i32, i32
  }
}

module attributes {stable_mosaic.version = 11 : i64} {
  func.func @conv_bn_scale_elu_pool_kernel(%arg0: i32, %arg1: memref<120x576xbf16, #tpu.memory_space<vmem>>, %arg2: memref<576x64xbf16, #tpu.memory_space<vmem>>, %arg3: memref<1x64xf32, #tpu.memory_space<vmem>>, %arg4: memref<1x64xf32, #tpu.memory_space<vmem>>, %arg5: memref<12x64xf32, #tpu.memory_space<vmem>>) attributes {dimension_semantics = [#tpu.dimension_semantics<parallel>], iteration_bounds = array<i64: 1>, scalar_prefetch = 0 : i64, scratch_operands = 0 : i64, tpu.core_type = #tpu.core_type<tc>, window_params = [{transform_indices = @transform_0, window_bounds = array<i64: 120, 576>}, {pipeline_mode = #tpu.pipeline_mode<synchronous>, transform_indices = @transform_1, window_bounds = array<i64: 576, 64>}, {pipeline_mode = #tpu.pipeline_mode<synchronous>, transform_indices = @transform_2, window_bounds = array<i64: 1, 64>}, {pipeline_mode = #tpu.pipeline_mode<synchronous>, transform_indices = @transform_3, window_bounds = array<i64: 1, 64>}, {transform_indices = @transform_4, window_bounds = array<i64: 12, 64>}]} {
    %c0 = arith.constant 0 : index
    %c0_0 = arith.constant 0 : index
    %0 = vector.load %arg1[%c0, %c0_0] : memref<120x576xbf16, #tpu.memory_space<vmem>>, vector<120x576xbf16>
    %c0_1 = arith.constant 0 : index
    %c0_2 = arith.constant 0 : index
    %1 = vector.load %arg2[%c0_1, %c0_2] : memref<576x64xbf16, #tpu.memory_space<vmem>>, vector<576x64xbf16>
    %cst = arith.constant dense<0.000000e+00> : vector<120x64xf32>
    %2 = tpu.matmul %0, %1, %cst {dimension_numbers = #tpu.dot_dimension_numbers<[1], [0], [0], [1], [0, 0, 1, 1], [], []>} : vector<120x576xbf16>, vector<576x64xbf16>, vector<120x64xf32> -> vector<120x64xf32>
    %c0_3 = arith.constant 0 : index
    %c0_4 = arith.constant 0 : index
    %3 = vector.load %arg3[%c0_3, %c0_4] : memref<1x64xf32, #tpu.memory_space<vmem>>, vector<1x64xf32>
    %4 = vector.broadcast %3 : vector<1x64xf32> to vector<120x64xf32>
    %5 = arith.mulf %2, %4 : vector<120x64xf32>
    %c0_5 = arith.constant 0 : index
    %c0_6 = arith.constant 0 : index
    %6 = vector.load %arg4[%c0_5, %c0_6] : memref<1x64xf32, #tpu.memory_space<vmem>>, vector<1x64xf32>
    %7 = vector.broadcast %6 : vector<1x64xf32> to vector<120x64xf32>
    %8 = arith.addf %5, %7 : vector<120x64xf32>
    %9 = vector.extract_strided_slice %8 {offsets = [0, 0], sizes = [12, 64], strides = [1, 1]} : vector<120x64xf32> to vector<12x64xf32>
    %10 = vector.extract_strided_slice %8 {offsets = [12, 0], sizes = [12, 64], strides = [1, 1]} : vector<120x64xf32> to vector<12x64xf32>
    %11 = arith.maximumf %9, %10 : vector<12x64xf32>
    %12 = vector.extract_strided_slice %8 {offsets = [24, 0], sizes = [12, 64], strides = [1, 1]} : vector<120x64xf32> to vector<12x64xf32>
    %13 = arith.maximumf %11, %12 : vector<12x64xf32>
    %14 = vector.extract_strided_slice %8 {offsets = [36, 0], sizes = [12, 64], strides = [1, 1]} : vector<120x64xf32> to vector<12x64xf32>
    %15 = arith.maximumf %13, %14 : vector<12x64xf32>
    %16 = vector.extract_strided_slice %8 {offsets = [48, 0], sizes = [12, 64], strides = [1, 1]} : vector<120x64xf32> to vector<12x64xf32>
    %17 = arith.maximumf %15, %16 : vector<12x64xf32>
    %18 = vector.extract_strided_slice %8 {offsets = [60, 0], sizes = [12, 64], strides = [1, 1]} : vector<120x64xf32> to vector<12x64xf32>
    %19 = arith.maximumf %17, %18 : vector<12x64xf32>
    %20 = vector.extract_strided_slice %8 {offsets = [72, 0], sizes = [12, 64], strides = [1, 1]} : vector<120x64xf32> to vector<12x64xf32>
    %21 = arith.maximumf %19, %20 : vector<12x64xf32>
    %22 = vector.extract_strided_slice %8 {offsets = [84, 0], sizes = [12, 64], strides = [1, 1]} : vector<120x64xf32> to vector<12x64xf32>
    %23 = arith.maximumf %21, %22 : vector<12x64xf32>
    %24 = vector.extract_strided_slice %8 {offsets = [96, 0], sizes = [12, 64], strides = [1, 1]} : vector<120x64xf32> to vector<12x64xf32>
    %25 = arith.maximumf %23, %24 : vector<12x64xf32>
    %26 = vector.extract_strided_slice %8 {offsets = [108, 0], sizes = [12, 64], strides = [1, 1]} : vector<120x64xf32> to vector<12x64xf32>
    %27 = arith.maximumf %25, %26 : vector<12x64xf32>
    %cst_7 = arith.constant 5.000000e-01 : f32
    %28 = vector.broadcast %cst_7 : f32 to vector<12x64xf32>
    %29 = arith.mulf %27, %28 : vector<12x64xf32>
    %30 = math.tanh %29 : vector<12x64xf32>
    %31 = math.exp %27 : vector<12x64xf32>
    %cst_8 = arith.constant 1.000000e+00 : f32
    %32 = vector.broadcast %cst_8 : f32 to vector<12x64xf32>
    %33 = arith.addf %31, %32 : vector<12x64xf32>
    %34 = arith.mulf %30, %33 : vector<12x64xf32>
    %cst_9 = arith.constant 0.000000e+00 : f32
    %35 = vector.broadcast %cst_9 : f32 to vector<12x64xf32>
    %36 = arith.cmpf ogt, %27, %35 : vector<12x64xf32>
    %37 = arith.select %36, %27, %34 : vector<12x64xi1>, vector<12x64xf32>
    %c0_10 = arith.constant 0 : index
    %c0_11 = arith.constant 0 : index
    %38 = vector.load %arg5[%c0_10, %c0_11] : memref<12x64xf32, #tpu.memory_space<vmem>>, vector<12x64xf32>
    tpu.vector_store %arg5[%c0_10, %c0_11], %37 {strides = array<i32>} : memref<12x64xf32, #tpu.memory_space<vmem>>, vector<12x64xf32>,
    return
  }
  func.func @transform_0(%arg0: i32) -> (i32, i32) {
    %c0_i32 = arith.constant 0 : i32
    %c0_i32_0 = arith.constant 0 : i32
    return %arg0, %c0_i32 : i32, i32
  }
  func.func @transform_1(%arg0: i32) -> (i32, i32) {
    %c0_i32 = arith.constant 0 : i32
    %c0_i32_0 = arith.constant 0 : i32
    %c0_i32_1 = arith.constant 0 : i32
    return %c0_i32, %c0_i32_0 : i32, i32
  }
  func.func @transform_2(%arg0: i32) -> (i32, i32) {
    %c0_i32 = arith.constant 0 : i32
    %c0_i32_0 = arith.constant 0 : i32
    %c0_i32_1 = arith.constant 0 : i32
    return %c0_i32, %c0_i32_0 : i32, i32
  }
  func.func @transform_3(%arg0: i32) -> (i32, i32) {
    %c0_i32 = arith.constant 0 : i32
    %c0_i32_0 = arith.constant 0 : i32
    %c0_i32_1 = arith.constant 0 : i32
    return %c0_i32, %c0_i32_0 : i32, i32
  }
  func.func @transform_4(%arg0: i32) -> (i32, i32) {
    %c0_i32 = arith.constant 0 : i32
    %c0_i32_0 = arith.constant 0 : i32
    return %arg0, %c0_i32 : i32, i32
  }
}

module attributes {stable_mosaic.version = 11 : i64} {
  func.func @predict_kernel(%arg0: memref<2x384xf32, #tpu.memory_space<vmem>>, %arg1: memref<128x384xf32, #tpu.memory_space<vmem>>, %arg2: memref<1x128xf32, #tpu.memory_space<vmem>>, %arg3: memref<1x128xf32, #tpu.memory_space<vmem>>, %arg4: memref<8x128xf32, #tpu.memory_space<vmem>>, %arg5: memref<1x8xf32, #tpu.memory_space<vmem>>, %arg6: memref<2x8xf32, #tpu.memory_space<vmem>>) attributes {dimension_semantics = [], scalar_prefetch = 0 : i64, scratch_operands = 0 : i64, tpu.core_type = #tpu.core_type<tc>} {
    %c0 = arith.constant 0 : index
    %c0_0 = arith.constant 0 : index
    %0 = vector.load %arg0[%c0, %c0_0] : memref<2x384xf32, #tpu.memory_space<vmem>>, vector<2x384xf32>
    %c0_1 = arith.constant 0 : index
    %c0_2 = arith.constant 0 : index
    %1 = vector.load %arg1[%c0_1, %c0_2] : memref<128x384xf32, #tpu.memory_space<vmem>>, vector<128x384xf32>
    %cst = arith.constant dense<0.000000e+00> : vector<2x128xf32>
    %2 = tpu.matmul %0, %1, %cst {dimension_numbers = #tpu.dot_dimension_numbers<[1], [1], [0], [0], [0, 0, 1, 0], [], []>} : vector<2x384xf32>, vector<128x384xf32>, vector<2x128xf32> -> vector<2x128xf32>
    %c0_3 = arith.constant 0 : index
    %c0_4 = arith.constant 0 : index
    %3 = vector.load %arg2[%c0_3, %c0_4] : memref<1x128xf32, #tpu.memory_space<vmem>>, vector<1x128xf32>
    %4 = vector.broadcast %3 : vector<1x128xf32> to vector<2x128xf32>
    %5 = arith.addf %2, %4 : vector<2x128xf32>
    %c0_5 = arith.constant 0 : index
    %c0_6 = arith.constant 0 : index
    %6 = vector.load %arg3[%c0_5, %c0_6] : memref<1x128xf32, #tpu.memory_space<vmem>>, vector<1x128xf32>
    %7 = vector.broadcast %6 : vector<1x128xf32> to vector<2x128xf32>
    %8 = arith.mulf %5, %7 : vector<2x128xf32>
    %c0_7 = arith.constant 0 : index
    %c0_8 = arith.constant 0 : index
    %9 = vector.load %arg4[%c0_7, %c0_8] : memref<8x128xf32, #tpu.memory_space<vmem>>, vector<8x128xf32>
    %cst_9 = arith.constant dense<0.000000e+00> : vector<2x8xf32>
    %10 = tpu.matmul %8, %9, %cst_9 {dimension_numbers = #tpu.dot_dimension_numbers<[1], [1], [0], [0], [0, 0, 1, 0], [], []>} : vector<2x128xf32>, vector<8x128xf32>, vector<2x8xf32> -> vector<2x8xf32>
    %c0_10 = arith.constant 0 : index
    %c0_11 = arith.constant 0 : index
    %11 = vector.load %arg5[%c0_10, %c0_11] : memref<1x8xf32, #tpu.memory_space<vmem>>, vector<1x8xf32>
    %12 = vector.broadcast %11 : vector<1x8xf32> to vector<2x8xf32>
    %13 = arith.addf %10, %12 : vector<2x8xf32>
    %c0_12 = arith.constant 0 : index
    %c0_13 = arith.constant 0 : index
    %14 = vector.load %arg6[%c0_12, %c0_13] : memref<2x8xf32, #tpu.memory_space<vmem>>, vector<2x8xf32>
    tpu.vector_store %arg6[%c0_12, %c0_13], %13 {strides = array<i32>} : memref<2x8xf32, #tpu.memory_space<vmem>>, vector<2x8xf32>,
    return
  }
}

module attributes {stable_mosaic.version = 11 : i64} {
  func.func @gram_div_all_kernel(%arg0: memref<32x9xf32, #tpu.memory_space<vmem>>, %arg1: memref<64x288xf32, #tpu.memory_space<vmem>>, %arg2: memref<64x576xf32, #tpu.memory_space<vmem>>, %arg3: memref<128x384xf32, #tpu.memory_space<vmem>>, %arg4: memref<8x128xf32, #tpu.memory_space<vmem>>, %arg5: memref<1x1xf32, #tpu.memory_space<smem>>) attributes {dimension_semantics = [], scalar_prefetch = 0 : i64, scratch_operands = 0 : i64, tpu.core_type = #tpu.core_type<tc>} {
    %c0 = arith.constant 0 : index
    %c0_0 = arith.constant 0 : index
    %0 = vector.load %arg0[%c0, %c0_0] : memref<32x9xf32, #tpu.memory_space<vmem>>, vector<32x9xf32>
    %1 = arith.mulf %0, %0 : vector<32x9xf32>
    %cst = arith.constant dense<0.000000e+00> : vector<32xf32>
    %2 = vector.multi_reduction <add>, %1, %cst [1] : vector<32x9xf32> to vector<32xf32>
    %3 = vector.shape_cast %2 : vector<32xf32> to vector<32x1xf32>
    %4 = math.sqrt %3 : vector<32x1xf32>
    %cst_1 = arith.constant 9.99999971E-10 : f32
    %5 = vector.broadcast %cst_1 : f32 to vector<32x1xf32>
    %6 = arith.addf %4, %5 : vector<32x1xf32>
    %7 = vector.broadcast %6 : vector<32x1xf32> to vector<32x9xf32>
    %8 = arith.divf %0, %7 : vector<32x9xf32>
    %cst_2 = arith.constant dense<0.000000e+00> : vector<32x32xf32>
    %9 = tpu.matmul %8, %8, %cst_2 {dimension_numbers = #tpu.dot_dimension_numbers<[1], [1], [0], [0], [0, 0, 1, 0], [], []>} : vector<32x9xf32>, vector<32x9xf32>, vector<32x32xf32> -> vector<32x32xf32>
    %10 = math.absf %9 : vector<32x32xf32>
    %11 = vector.shape_cast %10 : vector<32x32xf32> to vector<1x32x32xf32>
    %cst_3 = arith.constant dense<0.000000e+00> : vector<1xf32>
    %12 = vector.multi_reduction <add>, %11, %cst_3 [1, 2] : vector<1x32x32xf32> to vector<1xf32>
    %13 = vector.shape_cast %12 : vector<1xf32> to vector<1x1x1xf32>
    %14 = vector.extract %13[0, 0, 0] : f32 from vector<1x1x1xf32>
    %cst_4 = arith.constant 3.200000e+01 : f32
    %15 = arith.subf %14, %cst_4 : f32
    %cst_5 = arith.constant 9.920000e+02 : f32
    %16 = arith.divf %15, %cst_5 : f32
    %cst_6 = arith.constant 0.000000e+00 : f32
    %17 = arith.addf %cst_6, %16 : f32
    %c0_7 = arith.constant 0 : index
    %c0_8 = arith.constant 0 : index
    %18 = vector.load %arg1[%c0_7, %c0_8] : memref<64x288xf32, #tpu.memory_space<vmem>>, vector<64x288xf32>
    %19 = arith.mulf %18, %18 : vector<64x288xf32>
    %cst_9 = arith.constant dense<0.000000e+00> : vector<64xf32>
    %20 = vector.multi_reduction <add>, %19, %cst_9 [1] : vector<64x288xf32> to vector<64xf32>
    %21 = vector.shape_cast %20 : vector<64xf32> to vector<64x1xf32>
    %22 = math.sqrt %21 : vector<64x1xf32>
    %cst_10 = arith.constant 9.99999971E-10 : f32
    %23 = vector.broadcast %cst_10 : f32 to vector<64x1xf32>
    %24 = arith.addf %22, %23 : vector<64x1xf32>
    %25 = vector.broadcast %24 : vector<64x1xf32> to vector<64x288xf32>
    %26 = arith.divf %18, %25 : vector<64x288xf32>
    %cst_11 = arith.constant dense<0.000000e+00> : vector<64x64xf32>
    %27 = tpu.matmul %26, %26, %cst_11 {dimension_numbers = #tpu.dot_dimension_numbers<[1], [1], [0], [0], [0, 0, 1, 0], [], []>} : vector<64x288xf32>, vector<64x288xf32>, vector<64x64xf32> -> vector<64x64xf32>
    %28 = math.absf %27 : vector<64x64xf32>
    %29 = vector.shape_cast %28 : vector<64x64xf32> to vector<1x64x64xf32>
    %cst_12 = arith.constant dense<0.000000e+00> : vector<1xf32>
    %30 = vector.multi_reduction <add>, %29, %cst_12 [1, 2] : vector<1x64x64xf32> to vector<1xf32>
    %31 = vector.shape_cast %30 : vector<1xf32> to vector<1x1x1xf32>
    %32 = vector.extract %31[0, 0, 0] : f32 from vector<1x1x1xf32>
    %cst_13 = arith.constant 6.400000e+01 : f32
    %33 = arith.subf %32, %cst_13 : f32
    %cst_14 = arith.constant 4.032000e+03 : f32
    %34 = arith.divf %33, %cst_14 : f32
    %35 = arith.addf %17, %34 : f32
    %c0_15 = arith.constant 0 : index
    %c0_16 = arith.constant 0 : index
    %36 = vector.load %arg2[%c0_15, %c0_16] : memref<64x576xf32, #tpu.memory_space<vmem>>, vector<64x576xf32>
    %37 = arith.mulf %36, %36 : vector<64x576xf32>
    %cst_17 = arith.constant dense<0.000000e+00> : vector<64xf32>
    %38 = vector.multi_reduction <add>, %37, %cst_17 [1] : vector<64x576xf32> to vector<64xf32>
    %39 = vector.shape_cast %38 : vector<64xf32> to vector<64x1xf32>
    %40 = math.sqrt %39 : vector<64x1xf32>
    %cst_18 = arith.constant 9.99999971E-10 : f32
    %41 = vector.broadcast %cst_18 : f32 to vector<64x1xf32>
    %42 = arith.addf %40, %41 : vector<64x1xf32>
    %43 = vector.broadcast %42 : vector<64x1xf32> to vector<64x576xf32>
    %44 = arith.divf %36, %43 : vector<64x576xf32>
    %cst_19 = arith.constant dense<0.000000e+00> : vector<64x64xf32>
    %45 = tpu.matmul %44, %44, %cst_19 {dimension_numbers = #tpu.dot_dimension_numbers<[1], [1], [0], [0], [0, 0, 1, 0], [], []>} : vector<64x576xf32>, vector<64x576xf32>, vector<64x64xf32> -> vector<64x64xf32>
    %46 = math.absf %45 : vector<64x64xf32>
    %47 = vector.shape_cast %46 : vector<64x64xf32> to vector<1x64x64xf32>
    %cst_20 = arith.constant dense<0.000000e+00> : vector<1xf32>
    %48 = vector.multi_reduction <add>, %47, %cst_20 [1, 2] : vector<1x64x64xf32> to vector<1xf32>
    %49 = vector.shape_cast %48 : vector<1xf32> to vector<1x1x1xf32>
    %50 = vector.extract %49[0, 0, 0] : f32 from vector<1x1x1xf32>
    %cst_21 = arith.constant 6.400000e+01 : f32
    %51 = arith.subf %50, %cst_21 : f32
    %cst_22 = arith.constant 4.032000e+03 : f32
    %52 = arith.divf %51, %cst_22 : f32
    %53 = arith.addf %35, %52 : f32
    %c0_23 = arith.constant 0 : index
    %c0_24 = arith.constant 0 : index
    %54 = vector.load %arg3[%c0_23, %c0_24] : memref<128x384xf32, #tpu.memory_space<vmem>>, vector<128x384xf32>
    %55 = arith.mulf %54, %54 : vector<128x384xf32>
    %cst_25 = arith.constant dense<0.000000e+00> : vector<128xf32>
    %56 = vector.multi_reduction <add>, %55, %cst_25 [1] : vector<128x384xf32> to vector<128xf32>
    %57 = vector.shape_cast %56 : vector<128xf32> to vector<128x1xf32>
    %58 = math.sqrt %57 : vector<128x1xf32>
    %cst_26 = arith.constant 9.99999971E-10 : f32
    %59 = vector.broadcast %cst_26 : f32 to vector<128x1xf32>
    %60 = arith.addf %58, %59 : vector<128x1xf32>
    %61 = vector.broadcast %60 : vector<128x1xf32> to vector<128x384xf32>
    %62 = arith.divf %54, %61 : vector<128x384xf32>
    %cst_27 = arith.constant dense<0.000000e+00> : vector<128x128xf32>
    %63 = tpu.matmul %62, %62, %cst_27 {dimension_numbers = #tpu.dot_dimension_numbers<[1], [1], [0], [0], [0, 0, 1, 0], [], []>} : vector<128x384xf32>, vector<128x384xf32>, vector<128x128xf32> -> vector<128x128xf32>
    %64 = math.absf %63 : vector<128x128xf32>
    %65 = vector.shape_cast %64 : vector<128x128xf32> to vector<1x128x128xf32>
    %cst_28 = arith.constant dense<0.000000e+00> : vector<1xf32>
    %66 = vector.multi_reduction <add>, %65, %cst_28 [1, 2] : vector<1x128x128xf32> to vector<1xf32>
    %67 = vector.shape_cast %66 : vector<1xf32> to vector<1x1x1xf32>
    %68 = vector.extract %67[0, 0, 0] : f32 from vector<1x1x1xf32>
    %cst_29 = arith.constant 1.280000e+02 : f32
    %69 = arith.subf %68, %cst_29 : f32
    %cst_30 = arith.constant 1.625600e+04 : f32
    %70 = arith.divf %69, %cst_30 : f32
    %71 = arith.addf %53, %70 : f32
    %c0_31 = arith.constant 0 : index
    %c0_32 = arith.constant 0 : index
    %72 = vector.load %arg4[%c0_31, %c0_32] : memref<8x128xf32, #tpu.memory_space<vmem>>, vector<8x128xf32>
    %73 = arith.mulf %72, %72 : vector<8x128xf32>
    %cst_33 = arith.constant dense<0.000000e+00> : vector<8xf32>
    %74 = vector.multi_reduction <add>, %73, %cst_33 [1] : vector<8x128xf32> to vector<8xf32>
    %75 = vector.shape_cast %74 : vector<8xf32> to vector<8x1xf32>
    %76 = math.sqrt %75 : vector<8x1xf32>
    %cst_34 = arith.constant 9.99999971E-10 : f32
    %77 = vector.broadcast %cst_34 : f32 to vector<8x1xf32>
    %78 = arith.addf %76, %77 : vector<8x1xf32>
    %79 = vector.broadcast %78 : vector<8x1xf32> to vector<8x128xf32>
    %80 = arith.divf %72, %79 : vector<8x128xf32>
    %cst_35 = arith.constant dense<0.000000e+00> : vector<8x8xf32>
    %81 = tpu.matmul %80, %80, %cst_35 {dimension_numbers = #tpu.dot_dimension_numbers<[1], [1], [0], [0], [0, 0, 1, 0], [], []>} : vector<8x128xf32>, vector<8x128xf32>, vector<8x8xf32> -> vector<8x8xf32>
    %82 = math.absf %81 : vector<8x8xf32>
    %83 = vector.shape_cast %82 : vector<8x8xf32> to vector<1x8x8xf32>
    %cst_36 = arith.constant dense<0.000000e+00> : vector<1xf32>
    %84 = vector.multi_reduction <add>, %83, %cst_36 [1, 2] : vector<1x8x8xf32> to vector<1xf32>
    %85 = vector.shape_cast %84 : vector<1xf32> to vector<1x1x1xf32>
    %86 = vector.extract %85[0, 0, 0] : f32 from vector<1x1x1xf32>
    %cst_37 = arith.constant 8.000000e+00 : f32
    %87 = arith.subf %86, %cst_37 : f32
    %cst_38 = arith.constant 5.600000e+01 : f32
    %88 = arith.divf %87, %cst_38 : f32
    %89 = arith.addf %71, %88 : f32
    %cst_39 = arith.constant 5.000000e+00 : f32
    %90 = arith.divf %89, %cst_39 : f32
    %c0_40 = arith.constant 0 : index
    %c0_41 = arith.constant 0 : index
    %91 = memref.load %arg5[%c0_40, %c0_41] : memref<1x1xf32, #tpu.memory_space<smem>>
    memref.store %90, %arg5[%c0_40, %c0_41] : memref<1x1xf32, #tpu.memory_space<smem>>
    return
  }
}

</mosaic_0001>

<llo_original>
// kernel: forward.6
$region0: #{forward.6}
  #allocation0 [shape = 'u32[]', space=smem, size = 0x4, offset = 0x4, fixed_abs, tag = 'smem constant byte address 0x4 - core index']
  #allocation1 [shape = 'u32[144,128]{1,0:T(1,128)}', space=vmem, size = 0x12000, scoped, tag = 'internal scratch']
  %s0 = inlined_call_operand.vmem [shape: bf16[11520,9], index: 0, kind: input, shape index: {}]
  %s1 = inlined_call_operand.vmem [shape: bf16[9,32], index: 1, kind: input, shape index: {}]
  %s2 = inlined_call_operand.vmem [shape: f32[1,32], index: 2, kind: input, shape index: {}]
  %s3 = inlined_call_operand.vmem [shape: f32[1,32], index: 3, kind: input, shape index: {}]
  %s4 = inlined_call_operand.vmem [shape: f32[1440,32], index: 4, kind: output, shape index: {}]
  %s5 = sld [smem:[#allocation0]]
  $region49: #{forward.6} parent=0
    _
  %s7 = ssub.s32 1, %s5
  %s8 = scalar_select 0, %s7, %s5
  loop: start=0, step=1, limit=6
  $region2: #{forward.6} parent=0 // loop_pre_header
    _
  $region3: #{forward.6} parent=0 // loop_header
    %s10 = sphi 0, %s14
    %p11 = scmp.ge.s32.totalorder %s10, 6
    %s20 = sphi 0, %s22
    %s23 = sphi 0, %s20
    %s24 = sphi 0, %s23
    %s40 = sphi 0, %s24
    %s44 = sphi 0, %s44
    %s46 = sphi 0, %s44
    %s47 = sphi 0, %s46
    %s61 = sphi 0, %s47
    %s65 = sphi 0, %s65
    %s67 = sphi 0, %s65
    %s68 = sphi 0, %s67
    %s82 = sphi 0, %s68
    %s86 = sphi 0, %s86
    %s88 = sphi 0, %s86
    %s89 = sphi 0, %s88
    %s103 = sphi 0, %s89
    %s109 = sphi 0, %s111
    %s112 = sphi 0, %s109
    %s113 = sphi 0, %s112
    %s129 = sphi 0, %s113
  $region4: #{forward.6} parent=0 // loop_header_branch
    %13 = sbr.rel (%p11) target = $region8
  $region5: #{forward.6} parent=0 // loop_body
    %s15 = ssub.s32 %s10, 1
    %s16 = ssub.s32 %s10, 2
    %s17 = sadd.s32 %s10, 1
    %s18 = ssub.s32 %s10, %s17
    %p19 = scmp.eq.s32.totalorder %s18, 0
    %s21 = sadd.s32 %s20, 1
    %s22 = scalar_select %p19, %s20, %s21
    %p25 = pneg %p19
    %p26 = scmp.eq.s32.totalorder %s10, 3
    %p27 = por %p25, %p26
    %p28 = scmp.ne.s32.totalorder %s20, %s23
    %p29 = scmp.eq.s32.totalorder %s10, 0
    %p30 = por %p28, %p29
    %p31 = scmp.ne.s32.totalorder %s20, %s23
    %p32 = scmp.eq.s32.totalorder %s15, 3
    %p33 = por %p31, %p32
    %p34 = scmp.ne.s32.totalorder %s23, %s24
    %p35 = scmp.eq.s32.totalorder %s15, 0
    %p36 = por %p34, %p35
    %p37 = scmp.ne.s32.totalorder %s23, %s24
    %p38 = scmp.eq.s32.totalorder %s16, 3
    %p39 = por %p37, %p38
    %p41 = scmp.ne.s32.totalorder %s24, %s40
    %p42 = scmp.eq.s32.totalorder %s16, 0
    %p43 = por %p41, %p42
    %s45 = sadd.s32 %s44, 1
    %p48 = scmp.eq.s32.totalorder %s10, 3
    %p49 = scmp.ne.s32.totalorder %s44, %s46
    %p50 = scmp.eq.s32.totalorder %s10, 0
    %p51 = por %p49, %p50
    %p52 = scmp.ne.s32.totalorder %s44, %s46
    %p53 = scmp.eq.s32.totalorder %s15, 3
    %p54 = por %p52, %p53
    %p55 = scmp.ne.s32.totalorder %s46, %s47
    %p56 = scmp.eq.s32.totalorder %s15, 0
    %p57 = por %p55, %p56
    %p58 = scmp.ne.s32.totalorder %s46, %s47
    %p59 = scmp.eq.s32.totalorder %s16, 3
    %p60 = por %p58, %p59
    %p62 = scmp.ne.s32.totalorder %s47, %s61
    %p63 = scmp.eq.s32.totalorder %s16, 0
    %p64 = por %p62, %p63
    %s66 = sadd.s32 %s65, 1
    %p69 = scmp.eq.s32.totalorder %s10, 3
    %p70 = scmp.ne.s32.totalorder %s65, %s67
    %p71 = scmp.eq.s32.totalorder %s10, 0
    %p72 = por %p70, %p71
    %p73 = scmp.ne.s32.totalorder %s65, %s67
    %p74 = scmp.eq.s32.totalorder %s15, 3
    %p75 = por %p73, %p74
    %p76 = scmp.ne.s32.totalorder %s67, %s68
    %p77 = scmp.eq.s32.totalorder %s15, 0
    %p78 = por %p76, %p77
    %p79 = scmp.ne.s32.totalorder %s67, %s68
    %p80 = scmp.eq.s32.totalorder %s16, 3
    %p81 = por %p79, %p80
    %p83 = scmp.ne.s32.totalorder %s68, %s82
    %p84 = scmp.eq.s32.totalorder %s16, 0
    %p85 = por %p83, %p84
    %s87 = sadd.s32 %s86, 1
    %p90 = scmp.eq.s32.totalorder %s10, 3
    %p91 = scmp.ne.s32.totalorder %s86, %s88
    %p92 = scmp.eq.s32.totalorder %s10, 0
    %p93 = por %p91, %p92
    %p94 = scmp.ne.s32.totalorder %s86, %s88
    %p95 = scmp.eq.s32.totalorder %s15, 3
    %p96 = por %p94, %p95
    %p97 = scmp.ne.s32.totalorder %s88, %s89
    %p98 = scmp.eq.s32.totalorder %s15, 0
    %p99 = por %p97, %p98
    %p100 = scmp.ne.s32.totalorder %s88, %s89
    %p101 = scmp.eq.s32.totalorder %s16, 3
    %p102 = por %p100, %p101
    %p104 = scmp.ne.s32.totalorder %s89, %s103
    %p105 = scmp.eq.s32.totalorder %s16, 0
    %p106 = por %p104, %p105
    %s107 = ssub.s32 %s10, %s17
    %p108 = scmp.eq.s32.totalorder %s107, 0
    %s110 = sadd.s32 %s109, 1
    %s111 = scalar_select %p108, %s109, %s110
    %p114 = pneg %p108
    %p115 = scmp.eq.s32.totalorder %s10, 3
    %p116 = por %p114, %p115
    %p117 = scmp.ne.s32.totalorder %s109, %s112
    %p118 = scmp.eq.s32.totalorder %s10, 0
    %p119 = por %p117, %p118
    %p120 = scmp.ne.s32.totalorder %s109, %s112
    %p121 = scmp.eq.s32.totalorder %s15, 3
    %p122 = por %p120, %p121
    %p123 = scmp.ne.s32.totalorder %s112, %s113
    %p124 = scmp.eq.s32.totalorder %s15, 0
    %p125 = por %p123, %p124
    %p126 = scmp.ne.s32.totalorder %s112, %s113
    %p127 = scmp.eq.s32.totalorder %s16, 3
    %p128 = por %p126, %p127
    %p130 = scmp.ne.s32.totalorder %s113, %s129
    %p131 = scmp.eq.s32.totalorder %s16, 0
    %p132 = por %p130, %p131
    %p133 = scmp.le.s32.totalorder 1, %s10
    %p134 = scmp.lt.s32.totalorder %s10, 5
    %p135 = pnand %p133, %p134
    %p136 = pneg %p135
    // Predicated region
    $region9: #{forward.6} parent=5 // pred_check
      _
    $region10: #{forward.6} parent=5 // pred_check_branch
      %138 = sbr.rel (%p135) target = $region12
    $region11: #{forward.6} parent=5 // pred_region
      %s139 = ssub.s32 %s10, 1
      // Predicated region
      $region13: #{forward.6} parent=11 // pred_check
        %p140 = pneg %p57
      $region14: #{forward.6} parent=11 // pred_check_branch
        %142 = sbr.rel (%p140) target = $region16
      $region15: #{forward.6} parent=11 // pred_region
        _
      $region16: #{forward.6} parent=11 // pred_fallthru
        _
      // Predicated region
      $region17: #{forward.6} parent=11 // pred_check
        %p143 = pneg %p78
      $region18: #{forward.6} parent=11 // pred_check_branch
        %145 = sbr.rel (%p143) target = $region20
      $region19: #{forward.6} parent=11 // pred_region
        _
      $region20: #{forward.6} parent=11 // pred_fallthru
        _
      // Predicated region
      $region21: #{forward.6} parent=11 // pred_check
        %p146 = pneg %p99
      $region22: #{forward.6} parent=11 // pred_check_branch
        %148 = sbr.rel (%p146) target = $region24
      $region23: #{forward.6} parent=11 // pred_region
        _
      $region24: #{forward.6} parent=11 // pred_fallthru
        _
    $region12: #{forward.6} parent=5 // pred_fallthru
      _
    %p149 = scmp.lt.s32.totalorder %s10, 4
    // Predicated region
    $region25: #{forward.6} parent=5 // pred_check
      %p150 = pneg %p149
    $region26: #{forward.6} parent=5 // pred_check_branch
      %152 = sbr.rel (%p150) target = $region28
    $region27: #{forward.6} parent=5 // pred_region
      // Predicated region
      $region29: #{forward.6} parent=27 // pred_check
        %p153 = pneg %p30
      $region30: #{forward.6} parent=27 // pred_check_branch
        %155 = sbr.rel (%p153) target = $region32
      $region31: #{forward.6} parent=27 // pred_region
        %s156 = smul.u32 360, %s10
        %p157 = scmp.lt.s32.totalorder %s156, 1439
        %s158 = scalar_select %p157, %s156, 1439
        %s159 = smul.addr %s158, 4
        %s160 = scalar_lea.vmem %s0, %s159
        %s161 = smul.u32 360, %s10
      $region32: #{forward.6} parent=27 // pred_fallthru
        _
    $region28: #{forward.6} parent=5 // pred_fallthru
      _
    %p162 = scmp.le.s32.totalorder 1, %s10
    %p163 = scmp.lt.s32.totalorder %s10, 5
    %p164 = pnand %p162, %p163
    %p165 = pneg %p164
    // Predicated region
    $region33: #{forward.6} parent=5 // pred_check
      _
    $region34: #{forward.6} parent=5 // pred_check_branch
      %167 = sbr.rel (%p164) target = $region36
    $region35: #{forward.6} parent=5 // pred_region
      %s168 = ssub.s32 %s10, 1
      %s169 = smul.u32 360, %s15
      %p170 = scmp.lt.s32.totalorder %s169, 1439
      %s171 = scalar_select %p170, %s169, 1439
      %s172 = smul.addr %s171, 4
      %s173 = scalar_lea.vmem %s0, %s172
      %p174 = pneg %p36
      %p175 = pneg %p33
      %p176 = pneg %p57
      %p177 = pneg %p54
      %p178 = pneg %p78
      %p179 = pneg %p75
      %p180 = pneg %p99
      %p181 = pneg %p96
      %p182 = pneg %p125
      %p183 = pneg %p122
      %s184 = smul.u32 45, %s15
      %p185 = scmp.lt.s32.totalorder %s184, 179
      %s186 = scalar_select %p185, %s184, 179
      %s187 = smul.addr %s186, 8
      %s188 = scalar_lea.vmem %s4, %s187
      %s189 = smul.u32 360, %s15
      %p190 = scmp.lt.s32.totalorder %s189, 1439
      %s191 = scalar_select %p190, %s189, 1439
      %s192 = smul.addr %s191, 4
      %s193 = scalar_lea.vmem %s0, %s192
      %s194 = smul.u32 360, %s15
      %s195 = smul.u32 45, %s15
      %p196 = scmp.lt.s32.totalorder %s195, 179
      %s197 = scalar_select %p196, %s195, 179
      %s198 = smul.addr %s197, 8
      %s199 = scalar_lea.vmem %s4, %s198
      %s200 = smul.u32 45, %s15
      %v202 = vld [vmem:[%s193] sm:$0xf]
      %v203 = vld [vmem:[%s193 + $0x4] sm:$0xf]
      %v204 = vld [vmem:[%s193 + $0x8] sm:$0xf]
      %v205 = vld [vmem:[%s193 + $0xc] sm:$0xf]
      %v206 = vld [vmem:[%s193 + $0x10] sm:$0xf]
      %v207 = vld [vmem:[%s193 + $0x14] sm:$0xf]
      %v208 = vld [vmem:[%s193 + $0x18] sm:$0xf]
      %v209 = vld [vmem:[%s193 + $0x1c] sm:$0xf]
      %v210 = vld [vmem:[%s193 + $0x20] sm:$0xf]
      %v211 = vld [vmem:[%s193 + $0x24] sm:$0xf]
      %v212 = vld [vmem:[%s193 + $0x28] sm:$0xf]
      %v213 = vld [vmem:[%s193 + $0x2c] sm:$0xf]
      %v214 = vld [vmem:[%s193 + $0x30] sm:$0xf]
      %v215 = vld [vmem:[%s193 + $0x34] sm:$0xf]
      %v216 = vld [vmem:[%s193 + $0x38] sm:$0xf]
      %v217 = vld [vmem:[%s193 + $0x3c] sm:$0xf]
      %v218 = vld [vmem:[%s193 + $0x40] sm:$0xf]
      %v219 = vld [vmem:[%s193 + $0x44] sm:$0xf]
      %v220 = vld [vmem:[%s193 + $0x48] sm:$0xf]
      %v221 = vld [vmem:[%s193 + $0x4c] sm:$0xf]
      %v222 = vld [vmem:[%s193 + $0x50] sm:$0xf]
      %v223 = vld [vmem:[%s193 + $0x54] sm:$0xf]
      %v224 = vld [vmem:[%s193 + $0x58] sm:$0xf]
      %v225 = vld [vmem:[%s193 + $0x5c] sm:$0xf]
      %v226 = vld [vmem:[%s193 + $0x60] sm:$0xf]
      %v227 = vld [vmem:[%s193 + $0x64] sm:$0xf]
      %v228 = vld [vmem:[%s193 + $0x68] sm:$0xf]
      %v229 = vld [vmem:[%s193 + $0x6c] sm:$0xf]
      %v230 = vld [vmem:[%s193 + $0x70] sm:$0xf]
      %v231 = vld [vmem:[%s193 + $0x74] sm:$0xf]
      %v232 = vld [vmem:[%s193 + $0x78] sm:$0xf]
      %v233 = vld [vmem:[%s193 + $0x7c] sm:$0xf]
      %v234 = vld [vmem:[%s193 + $0x80] sm:$0xf]
      %v235 = vld [vmem:[%s193 + $0x84] sm:$0xf]
      %v236 = vld [vmem:[%s193 + $0x88] sm:$0xf]
      %v237 = vld [vmem:[%s193 + $0x8c] sm:$0xf]
      %v238 = vld [vmem:[%s193 + $0x90] sm:$0xf]
      %v239 = vld [vmem:[%s193 + $0x94] sm:$0xf]
      %v240 = vld [vmem:[%s193 + $0x98] sm:$0xf]
      %v241 = vld [vmem:[%s193 + $0x9c] sm:$0xf]
      %v242 = vld [vmem:[%s193 + $0xa0] sm:$0xf]
      %v243 = vld [vmem:[%s193 + $0xa4] sm:$0xf]
      %v244 = vld [vmem:[%s193 + $0xa8] sm:$0xf]
      %v245 = vld [vmem:[%s193 + $0xac] sm:$0xf]
      %v246 = vld [vmem:[%s193 + $0xb0] sm:$0xf]
      %v247 = vld [vmem:[%s193 + $0xb4] sm:$0xf]
      %v248 = vld [vmem:[%s193 + $0xb8] sm:$0xf]
      %v249 = vld [vmem:[%s193 + $0xbc] sm:$0xf]
      %v250 = vld [vmem:[%s193 + $0xc0] sm:$0xf]
      %v251 = vld [vmem:[%s193 + $0xc4] sm:$0xf]
      %v252 = vld [vmem:[%s193 + $0xc8] sm:$0xf]
      %v253 = vld [vmem:[%s193 + $0xcc] sm:$0xf]
      %v254 = vld [vmem:[%s193 + $0xd0] sm:$0xf]
      %v255 = vld [vmem:[%s193 + $0xd4] sm:$0xf]
      %v256 = vld [vmem:[%s193 + $0xd8] sm:$0xf]
      %v257 = vld [vmem:[%s193 + $0xdc] sm:$0xf]
      %v258 = vld [vmem:[%s193 + $0xe0] sm:$0xf]
      %v259 = vld [vmem:[%s193 + $0xe4] sm:$0xf]
      %v260 = vld [vmem:[%s193 + $0xe8] sm:$0xf]
      %v261 = vld [vmem:[%s193 + $0xec] sm:$0xf]
      %v262 = vld [vmem:[%s193 + $0xf0] sm:$0xf]
      %v263 = vld [vmem:[%s193 + $0xf4] sm:$0xf]
      %v264 = vld [vmem:[%s193 + $0xf8] sm:$0xf]
      %v265 = vld [vmem:[%s193 + $0xfc] sm:$0xf]
      %v266 = vld [vmem:[%s193 + $0x100] sm:$0xf]
      %v267 = vld [vmem:[%s193 + $0x104] sm:$0xf]
      %v268 = vld [vmem:[%s193 + $0x108] sm:$0xf]
      %v269 = vld [vmem:[%s193 + $0x10c] sm:$0xf]
      %v270 = vld [vmem:[%s193 + $0x110] sm:$0xf]
      %v271 = vld [vmem:[%s193 + $0x114] sm:$0xf]
      %v272 = vld [vmem:[%s193 + $0x118] sm:$0xf]
      %v273 = vld [vmem:[%s193 + $0x11c] sm:$0xf]
      %v274 = vld [vmem:[%s193 + $0x120] sm:$0xf]
      %v275 = vld [vmem:[%s193 + $0x124] sm:$0xf]
      %v276 = vld [vmem:[%s193 + $0x128] sm:$0xf]
      %v277 = vld [vmem:[%s193 + $0x12c] sm:$0xf]
      %v278 = vld [vmem:[%s193 + $0x130] sm:$0xf]
      %v279 = vld [vmem:[%s193 + $0x134] sm:$0xf]
      %v280 = vld [vmem:[%s193 + $0x138] sm:$0xf]
      %v281 = vld [vmem:[%s193 + $0x13c] sm:$0xf]
      %v282 = vld [vmem:[%s193 + $0x140] sm:$0xf]
      %v283 = vld [vmem:[%s193 + $0x144] sm:$0xf]
      %v284 = vld [vmem:[%s193 + $0x148] sm:$0xf]
      %v285 = vld [vmem:[%s193 + $0x14c] sm:$0xf]
      %v286 = vld [vmem:[%s193 + $0x150] sm:$0xf]
      %v287 = vld [vmem:[%s193 + $0x154] sm:$0xf]
      %v288 = vld [vmem:[%s193 + $0x158] sm:$0xf]
      %v289 = vld [vmem:[%s193 + $0x15c] sm:$0xf]
      %v290 = vld [vmem:[%s193 + $0x160] sm:$0xf]
      %v291 = vld [vmem:[%s193 + $0x164] sm:$0xf]
      %v292 = vld [vmem:[%s193 + $0x168] sm:$0xf]
      %v293 = vld [vmem:[%s193 + $0x16c] sm:$0xf]
      %v294 = vld [vmem:[%s193 + $0x170] sm:$0xf]
      %v295 = vld [vmem:[%s193 + $0x174] sm:$0xf]
      %v296 = vld [vmem:[%s193 + $0x178] sm:$0xf]
      %v297 = vld [vmem:[%s193 + $0x17c] sm:$0xf]
      %v298 = vld [vmem:[%s193 + $0x180] sm:$0xf]
      %v299 = vld [vmem:[%s193 + $0x184] sm:$0xf]
      %v300 = vld [vmem:[%s193 + $0x188] sm:$0xf]
      %v301 = vld [vmem:[%s193 + $0x18c] sm:$0xf]
      %v302 = vld [vmem:[%s193 + $0x190] sm:$0xf]
      %v303 = vld [vmem:[%s193 + $0x194] sm:$0xf]
      %v304 = vld [vmem:[%s193 + $0x198] sm:$0xf]
      %v305 = vld [vmem:[%s193 + $0x19c] sm:$0xf]
      %v306 = vld [vmem:[%s193 + $0x1a0] sm:$0xf]
      %v307 = vld [vmem:[%s193 + $0x1a4] sm:$0xf]
      %v308 = vld [vmem:[%s193 + $0x1a8] sm:$0xf]
      %v309 = vld [vmem:[%s193 + $0x1ac] sm:$0xf]
      %v310 = vld [vmem:[%s193 + $0x1b0] sm:$0xf]
      %v311 = vld [vmem:[%s193 + $0x1b4] sm:$0xf]
      %v312 = vld [vmem:[%s193 + $0x1b8] sm:$0xf]
      %v313 = vld [vmem:[%s193 + $0x1bc] sm:$0xf]
      %v314 = vld [vmem:[%s193 + $0x1c0] sm:$0xf]
      %v315 = vld [vmem:[%s193 + $0x1c4] sm:$0xf]
      %v316 = vld [vmem:[%s193 + $0x1c8] sm:$0xf]
      %v317 = vld [vmem:[%s193 + $0x1cc] sm:$0xf]
      %v318 = vld [vmem:[%s193 + $0x1d0] sm:$0xf]
      %v319 = vld [vmem:[%s193 + $0x1d4] sm:$0xf]
      %v320 = vld [vmem:[%s193 + $0x1d8] sm:$0xf]
      %v321 = vld [vmem:[%s193 + $0x1dc] sm:$0xf]
      %v322 = vld [vmem:[%s193 + $0x1e0] sm:$0xf]
      %v323 = vld [vmem:[%s193 + $0x1e4] sm:$0xf]
      %v324 = vld [vmem:[%s193 + $0x1e8] sm:$0xf]
      %v325 = vld [vmem:[%s193 + $0x1ec] sm:$0xf]
      %v326 = vld [vmem:[%s193 + $0x1f0] sm:$0xf]
      %v327 = vld [vmem:[%s193 + $0x1f4] sm:$0xf]
      %v328 = vld [vmem:[%s193 + $0x1f8] sm:$0xf]
      %v329 = vld [vmem:[%s193 + $0x1fc] sm:$0xf]
      %v330 = vld [vmem:[%s193 + $0x200] sm:$0xf]
      %v331 = vld [vmem:[%s193 + $0x204] sm:$0xf]
      %v332 = vld [vmem:[%s193 + $0x208] sm:$0xf]
      %v333 = vld [vmem:[%s193 + $0x20c] sm:$0xf]
      %v334 = vld [vmem:[%s193 + $0x210] sm:$0xf]
      %v335 = vld [vmem:[%s193 + $0x214] sm:$0xf]
      %v336 = vld [vmem:[%s193 + $0x218] sm:$0xf]
      %v337 = vld [vmem:[%s193 + $0x21c] sm:$0xf]
      %v338 = vld [vmem:[%s193 + $0x220] sm:$0xf]
      %v339 = vld [vmem:[%s193 + $0x224] sm:$0xf]
      %v340 = vld [vmem:[%s193 + $0x228] sm:$0xf]
      %v341 = vld [vmem:[%s193 + $0x22c] sm:$0xf]
      %v342 = vld [vmem:[%s193 + $0x230] sm:$0xf]
      %v343 = vld [vmem:[%s193 + $0x234] sm:$0xf]
      %v344 = vld [vmem:[%s193 + $0x238] sm:$0xf]
      %v345 = vld [vmem:[%s193 + $0x23c] sm:$0xf]
      %v346 = vld [vmem:[%s193 + $0x240] sm:$0xf]
      %v347 = vld [vmem:[%s193 + $0x244] sm:$0xf]
      %v348 = vld [vmem:[%s193 + $0x248] sm:$0xf]
      %v349 = vld [vmem:[%s193 + $0x24c] sm:$0xf]
      %v350 = vld [vmem:[%s193 + $0x250] sm:$0xf]
      %v351 = vld [vmem:[%s193 + $0x254] sm:$0xf]
      %v352 = vld [vmem:[%s193 + $0x258] sm:$0xf]
      %v353 = vld [vmem:[%s193 + $0x25c] sm:$0xf]
      %v354 = vld [vmem:[%s193 + $0x260] sm:$0xf]
      %v355 = vld [vmem:[%s193 + $0x264] sm:$0xf]
      %v356 = vld [vmem:[%s193 + $0x268] sm:$0xf]
      %v357 = vld [vmem:[%s193 + $0x26c] sm:$0xf]
      %v358 = vld [vmem:[%s193 + $0x270] sm:$0xf]
      %v359 = vld [vmem:[%s193 + $0x274] sm:$0xf]
      %v360 = vld [vmem:[%s193 + $0x278] sm:$0xf]
      %v361 = vld [vmem:[%s193 + $0x27c] sm:$0xf]
      %v362 = vld [vmem:[%s193 + $0x280] sm:$0xf]
      %v363 = vld [vmem:[%s193 + $0x284] sm:$0xf]
      %v364 = vld [vmem:[%s193 + $0x288] sm:$0xf]
      %v365 = vld [vmem:[%s193 + $0x28c] sm:$0xf]
      %v366 = vld [vmem:[%s193 + $0x290] sm:$0xf]
      %v367 = vld [vmem:[%s193 + $0x294] sm:$0xf]
      %v368 = vld [vmem:[%s193 + $0x298] sm:$0xf]
      %v369 = vld [vmem:[%s193 + $0x29c] sm:$0xf]
      %v370 = vld [vmem:[%s193 + $0x2a0] sm:$0xf]
      %v371 = vld [vmem:[%s193 + $0x2a4] sm:$0xf]
      %v372 = vld [vmem:[%s193 + $0x2a8] sm:$0xf]
      %v373 = vld [vmem:[%s193 + $0x2ac] sm:$0xf]
      %v374 = vld [vmem:[%s193 + $0x2b0] sm:$0xf]
      %v375 = vld [vmem:[%s193 + $0x2b4] sm:$0xf]
      %v376 = vld [vmem:[%s193 + $0x2b8] sm:$0xf]
      %v377 = vld [vmem:[%s193 + $0x2bc] sm:$0xf]
      %v378 = vld [vmem:[%s193 + $0x2c0] sm:$0xf]
      %v379 = vld [vmem:[%s193 + $0x2c4] sm:$0xf]
      %v380 = vld [vmem:[%s193 + $0x2c8] sm:$0xf]
      %v381 = vld [vmem:[%s193 + $0x2cc] sm:$0xf]
      %v382 = vld [vmem:[%s193 + $0x2d0] sm:$0xf]
      %v383 = vld [vmem:[%s193 + $0x2d4] sm:$0xf]
      %v384 = vld [vmem:[%s193 + $0x2d8] sm:$0xf]
      %v385 = vld [vmem:[%s193 + $0x2dc] sm:$0xf]
      %v386 = vld [vmem:[%s193 + $0x2e0] sm:$0xf]
      %v387 = vld [vmem:[%s193 + $0x2e4] sm:$0xf]
      %v388 = vld [vmem:[%s193 + $0x2e8] sm:$0xf]
      %v389 = vld [vmem:[%s193 + $0x2ec] sm:$0xf]
      %v390 = vld [vmem:[%s193 + $0x2f0] sm:$0xf]
      %v391 = vld [vmem:[%s193 + $0x2f4] sm:$0xf]
      %v392 = vld [vmem:[%s193 + $0x2f8] sm:$0xf]
      %v393 = vld [vmem:[%s193 + $0x2fc] sm:$0xf]
      %v394 = vld [vmem:[%s193 + $0x300] sm:$0xf]
      %v395 = vld [vmem:[%s193 + $0x304] sm:$0xf]
      %v396 = vld [vmem:[%s193 + $0x308] sm:$0xf]
      %v397 = vld [vmem:[%s193 + $0x30c] sm:$0xf]
      %v398 = vld [vmem:[%s193 + $0x310] sm:$0xf]
      %v399 = vld [vmem:[%s193 + $0x314] sm:$0xf]
      %v400 = vld [vmem:[%s193 + $0x318] sm:$0xf]
      %v401 = vld [vmem:[%s193 + $0x31c] sm:$0xf]
      %v402 = vld [vmem:[%s193 + $0x320] sm:$0xf]
      %v403 = vld [vmem:[%s193 + $0x324] sm:$0xf]
      %v404 = vld [vmem:[%s193 + $0x328] sm:$0xf]
      %v405 = vld [vmem:[%s193 + $0x32c] sm:$0xf]
      %v406 = vld [vmem:[%s193 + $0x330] sm:$0xf]
      %v407 = vld [vmem:[%s193 + $0x334] sm:$0xf]
      %v408 = vld [vmem:[%s193 + $0x338] sm:$0xf]
      %v409 = vld [vmem:[%s193 + $0x33c] sm:$0xf]
      %v410 = vld [vmem:[%s193 + $0x340] sm:$0xf]
      %v411 = vld [vmem:[%s193 + $0x344] sm:$0xf]
      %v412 = vld [vmem:[%s193 + $0x348] sm:$0xf]
      %v413 = vld [vmem:[%s193 + $0x34c] sm:$0xf]
      %v414 = vld [vmem:[%s193 + $0x350] sm:$0xf]
      %v415 = vld [vmem:[%s193 + $0x354] sm:$0xf]
      %v416 = vld [vmem:[%s193 + $0x358] sm:$0xf]
      %v417 = vld [vmem:[%s193 + $0x35c] sm:$0xf]
      %v418 = vld [vmem:[%s193 + $0x360] sm:$0xf]
      %v419 = vld [vmem:[%s193 + $0x364] sm:$0xf]
      %v420 = vld [vmem:[%s193 + $0x368] sm:$0xf]
      %v421 = vld [vmem:[%s193 + $0x36c] sm:$0xf]
      %v422 = vld [vmem:[%s193 + $0x370] sm:$0xf]
      %v423 = vld [vmem:[%s193 + $0x374] sm:$0xf]
      %v424 = vld [vmem:[%s193 + $0x378] sm:$0xf]
      %v425 = vld [vmem:[%s193 + $0x37c] sm:$0xf]
      %v426 = vld [vmem:[%s193 + $0x380] sm:$0xf]
      %v427 = vld [vmem:[%s193 + $0x384] sm:$0xf]
      %v428 = vld [vmem:[%s193 + $0x388] sm:$0xf]
      %v429 = vld [vmem:[%s193 + $0x38c] sm:$0xf]
      %v430 = vld [vmem:[%s193 + $0x390] sm:$0xf]
      %v431 = vld [vmem:[%s193 + $0x394] sm:$0xf]
      %v432 = vld [vmem:[%s193 + $0x398] sm:$0xf]
      %v433 = vld [vmem:[%s193 + $0x39c] sm:$0xf]
      %v434 = vld [vmem:[%s193 + $0x3a0] sm:$0xf]
      %v435 = vld [vmem:[%s193 + $0x3a4] sm:$0xf]
      %v436 = vld [vmem:[%s193 + $0x3a8] sm:$0xf]
      %v437 = vld [vmem:[%s193 + $0x3ac] sm:$0xf]
      %v438 = vld [vmem:[%s193 + $0x3b0] sm:$0xf]
      %v439 = vld [vmem:[%s193 + $0x3b4] sm:$0xf]
      %v440 = vld [vmem:[%s193 + $0x3b8] sm:$0xf]
      %v441 = vld [vmem:[%s193 + $0x3bc] sm:$0xf]
      %v442 = vld [vmem:[%s193 + $0x3c0] sm:$0xf]
      %v443 = vld [vmem:[%s193 + $0x3c4] sm:$0xf]
      %v444 = vld [vmem:[%s193 + $0x3c8] sm:$0xf]
      %v445 = vld [vmem:[%s193 + $0x3cc] sm:$0xf]
      %v446 = vld [vmem:[%s193 + $0x3d0] sm:$0xf]
      %v447 = vld [vmem:[%s193 + $0x3d4] sm:$0xf]
      %v448 = vld [vmem:[%s193 + $0x3d8] sm:$0xf]
      %v449 = vld [vmem:[%s193 + $0x3dc] sm:$0xf]
      %v450 = vld [vmem:[%s193 + $0x3e0] sm:$0xf]
      %v451 = vld [vmem:[%s193 + $0x3e4] sm:$0xf]
      %v452 = vld [vmem:[%s193 + $0x3e8] sm:$0xf]
      %v453 = vld [vmem:[%s193 + $0x3ec] sm:$0xf]
      %v454 = vld [vmem:[%s193 + $0x3f0] sm:$0xf]
      %v455 = vld [vmem:[%s193 + $0x3f4] sm:$0xf]
      %v456 = vld [vmem:[%s193 + $0x3f8] sm:$0xf]
      %v457 = vld [vmem:[%s193 + $0x3fc] sm:$0xf]
      %v458 = vld [vmem:[%s193 + $0x400] sm:$0xf]
      %v459 = vld [vmem:[%s193 + $0x404] sm:$0xf]
      %v460 = vld [vmem:[%s193 + $0x408] sm:$0xf]
      %v461 = vld [vmem:[%s193 + $0x40c] sm:$0xf]
      %v462 = vld [vmem:[%s193 + $0x410] sm:$0xf]
      %v463 = vld [vmem:[%s193 + $0x414] sm:$0xf]
      %v464 = vld [vmem:[%s193 + $0x418] sm:$0xf]
      %v465 = vld [vmem:[%s193 + $0x41c] sm:$0xf]
      %v466 = vld [vmem:[%s193 + $0x420] sm:$0xf]
      %v467 = vld [vmem:[%s193 + $0x424] sm:$0xf]
      %v468 = vld [vmem:[%s193 + $0x428] sm:$0xf]
      %v469 = vld [vmem:[%s193 + $0x42c] sm:$0xf]
      %v470 = vld [vmem:[%s193 + $0x430] sm:$0xf]
      %v471 = vld [vmem:[%s193 + $0x434] sm:$0xf]
      %v472 = vld [vmem:[%s193 + $0x438] sm:$0xf]
      %v473 = vld [vmem:[%s193 + $0x43c] sm:$0xf]
      %v474 = vld [vmem:[%s193 + $0x440] sm:$0xf]
      %v475 = vld [vmem:[%s193 + $0x444] sm:$0xf]
      %v476 = vld [vmem:[%s193 + $0x448] sm:$0xf]
      %v477 = vld [vmem:[%s193 + $0x44c] sm:$0xf]
      %v478 = vld [vmem:[%s193 + $0x450] sm:$0xf]
      %v479 = vld [vmem:[%s193 + $0x454] sm:$0xf]
      %v480 = vld [vmem:[%s193 + $0x458] sm:$0xf]
      %v481 = vld [vmem:[%s193 + $0x45c] sm:$0xf]
      %v482 = vld [vmem:[%s193 + $0x460] sm:$0xf]
      %v483 = vld [vmem:[%s193 + $0x464] sm:$0xf]
      %v484 = vld [vmem:[%s193 + $0x468] sm:$0xf]
      %v485 = vld [vmem:[%s193 + $0x46c] sm:$0xf]
      %v486 = vld [vmem:[%s193 + $0x470] sm:$0xf]
      %v487 = vld [vmem:[%s193 + $0x474] sm:$0xf]
      %v488 = vld [vmem:[%s193 + $0x478] sm:$0xf]
      %v489 = vld [vmem:[%s193 + $0x47c] sm:$0xf]
      %v490 = vld [vmem:[%s193 + $0x480] sm:$0xf]
      %v491 = vld [vmem:[%s193 + $0x484] sm:$0xf]
      %v492 = vld [vmem:[%s193 + $0x488] sm:$0xf]
      %v493 = vld [vmem:[%s193 + $0x48c] sm:$0xf]
      %v494 = vld [vmem:[%s193 + $0x490] sm:$0xf]
      %v495 = vld [vmem:[%s193 + $0x494] sm:$0xf]
      %v496 = vld [vmem:[%s193 + $0x498] sm:$0xf]
      %v497 = vld [vmem:[%s193 + $0x49c] sm:$0xf]
      %v498 = vld [vmem:[%s193 + $0x4a0] sm:$0xf]
      %v499 = vld [vmem:[%s193 + $0x4a4] sm:$0xf]
      %v500 = vld [vmem:[%s193 + $0x4a8] sm:$0xf]
      %v501 = vld [vmem:[%s193 + $0x4ac] sm:$0xf]
      %v502 = vld [vmem:[%s193 + $0x4b0] sm:$0xf]
      %v503 = vld [vmem:[%s193 + $0x4b4] sm:$0xf]
      %v504 = vld [vmem:[%s193 + $0x4b8] sm:$0xf]
      %v505 = vld [vmem:[%s193 + $0x4bc] sm:$0xf]
      %v506 = vld [vmem:[%s193 + $0x4c0] sm:$0xf]
      %v507 = vld [vmem:[%s193 + $0x4c4] sm:$0xf]
      %v508 = vld [vmem:[%s193 + $0x4c8] sm:$0xf]
      %v509 = vld [vmem:[%s193 + $0x4cc] sm:$0xf]
      %v510 = vld [vmem:[%s193 + $0x4d0] sm:$0xf]
      %v511 = vld [vmem:[%s193 + $0x4d4] sm:$0xf]
      %v512 = vld [vmem:[%s193 + $0x4d8] sm:$0xf]
      %v513 = vld [vmem:[%s193 + $0x4dc] sm:$0xf]
      %v514 = vld [vmem:[%s193 + $0x4e0] sm:$0xf]
      %v515 = vld [vmem:[%s193 + $0x4e4] sm:$0xf]
      %v516 = vld [vmem:[%s193 + $0x4e8] sm:$0xf]
      %v517 = vld [vmem:[%s193 + $0x4ec] sm:$0xf]
      %v518 = vld [vmem:[%s193 + $0x4f0] sm:$0xf]
      %v519 = vld [vmem:[%s193 + $0x4f4] sm:$0xf]
      %v520 = vld [vmem:[%s193 + $0x4f8] sm:$0xf]
      %v521 = vld [vmem:[%s193 + $0x4fc] sm:$0xf]
      %v522 = vld [vmem:[%s193 + $0x500] sm:$0xf]
      %v523 = vld [vmem:[%s193 + $0x504] sm:$0xf]
      %v524 = vld [vmem:[%s193 + $0x508] sm:$0xf]
      %v525 = vld [vmem:[%s193 + $0x50c] sm:$0xf]
      %v526 = vld [vmem:[%s193 + $0x510] sm:$0xf]
      %v527 = vld [vmem:[%s193 + $0x514] sm:$0xf]
      %v528 = vld [vmem:[%s193 + $0x518] sm:$0xf]
      %v529 = vld [vmem:[%s193 + $0x51c] sm:$0xf]
      %v530 = vld [vmem:[%s193 + $0x520] sm:$0xf]
      %v531 = vld [vmem:[%s193 + $0x524] sm:$0xf]
      %v532 = vld [vmem:[%s193 + $0x528] sm:$0xf]
      %v533 = vld [vmem:[%s193 + $0x52c] sm:$0xf]
      %v534 = vld [vmem:[%s193 + $0x530] sm:$0xf]
      %v535 = vld [vmem:[%s193 + $0x534] sm:$0xf]
      %v536 = vld [vmem:[%s193 + $0x538] sm:$0xf]
      %v537 = vld [vmem:[%s193 + $0x53c] sm:$0xf]
      %v538 = vld [vmem:[%s193 + $0x540] sm:$0xf]
      %v539 = vld [vmem:[%s193 + $0x544] sm:$0xf]
      %v540 = vld [vmem:[%s193 + $0x548] sm:$0xf]
      %v541 = vld [vmem:[%s193 + $0x54c] sm:$0xf]
      %v542 = vld [vmem:[%s193 + $0x550] sm:$0xf]
      %v543 = vld [vmem:[%s193 + $0x554] sm:$0xf]
      %v544 = vld [vmem:[%s193 + $0x558] sm:$0xf]
      %v545 = vld [vmem:[%s193 + $0x55c] sm:$0xf]
      %v546 = vld [vmem:[%s193 + $0x560] sm:$0xf]
      %v547 = vld [vmem:[%s193 + $0x564] sm:$0xf]
      %v548 = vld [vmem:[%s193 + $0x568] sm:$0xf]
      %v549 = vld [vmem:[%s193 + $0x56c] sm:$0xf]
      %v550 = vld [vmem:[%s193 + $0x570] sm:$0xf]
      %v551 = vld [vmem:[%s193 + $0x574] sm:$0xf]
      %v552 = vld [vmem:[%s193 + $0x578] sm:$0xf]
      %v553 = vld [vmem:[%s193 + $0x57c] sm:$0xf]
      %v554 = vld [vmem:[%s193 + $0x580] sm:$0xf]
      %v555 = vld [vmem:[%s193 + $0x584] sm:$0xf]
      %v556 = vld [vmem:[%s193 + $0x588] sm:$0xf]
      %v557 = vld [vmem:[%s193 + $0x58c] sm:$0xf]
      %v558 = vld [vmem:[%s193 + $0x590] sm:$0xf]
      %v559 = vld [vmem:[%s193 + $0x594] sm:$0xf]
      %v560 = vld [vmem:[%s193 + $0x598] sm:$0xf]
      %v561 = vld [vmem:[%s193 + $0x59c] sm:$0xf]
      %v562 = vld [vmem:[%s1] sm:$0xf]
      %v563 = vld [vmem:[%s1 + $0x4] sm:$0x1]
      %v924 = vunpack.c.l.b16 %v202
      %v925 = vunpack.c.l.b16 %v203
      %v926 = vunpack.c.l.b16 %v204
      %v927 = vunpack.c.l.b16 %v205
      %v928 = vunpack.c.l.b16 %v206
      %v929 = vunpack.c.l.b16 %v207
      %v930 = vunpack.c.l.b16 %v208
      %v931 = vunpack.c.l.b16 %v209
      %v932 = vunpack.c.l.b16 %v210
      %v933 = vunpack.c.l.b16 %v211
      %v934 = vunpack.c.l.b16 %v212
      %v935 = vunpack.c.l.b16 %v213
      %v936 = vunpack.c.l.b16 %v214
      %v937 = vunpack.c.l.b16 %v215
      %v938 = vunpack.c.l.b16 %v216
      %v939 = vunpack.c.l.b16 %v217
      %v940 = vunpack.c.l.b16 %v218
      %v941 = vunpack.c.l.b16 %v219
      %v942 = vunpack.c.l.b16 %v220
      %v943 = vunpack.c.l.b16 %v221
      %v944 = vunpack.c.l.b16 %v222
      %v945 = vunpack.c.l.b16 %v223
      %v946 = vunpack.c.l.b16 %v224
      %v947 = vunpack.c.l.b16 %v225
      %v948 = vunpack.c.l.b16 %v226
      %v949 = vunpack.c.l.b16 %v227
      %v950 = vunpack.c.l.b16 %v228
      %v951 = vunpack.c.l.b16 %v229
      %v952 = vunpack.c.l.b16 %v230
      %v953 = vunpack.c.l.b16 %v231
      %v954 = vunpack.c.l.b16 %v232
      %v955 = vunpack.c.l.b16 %v233
      %v956 = vunpack.c.l.b16 %v234
      %v957 = vunpack.c.l.b16 %v235
      %v958 = vunpack.c.l.b16 %v236
      %v959 = vunpack.c.l.b16 %v237
      %v960 = vunpack.c.l.b16 %v238
      %v961 = vunpack.c.l.b16 %v239
      %v962 = vunpack.c.l.b16 %v240
      %v963 = vunpack.c.l.b16 %v241
      %v964 = vunpack.c.l.b16 %v242
      %v965 = vunpack.c.l.b16 %v243
      %v966 = vunpack.c.l.b16 %v244
      %v967 = vunpack.c.l.b16 %v245
      %v968 = vunpack.c.l.b16 %v246
      %v969 = vunpack.c.l.b16 %v247
      %v970 = vunpack.c.l.b16 %v248
      %v971 = vunpack.c.l.b16 %v249
      %v972 = vunpack.c.l.b16 %v250
      %v973 = vunpack.c.l.b16 %v251
      %v974 = vunpack.c.l.b16 %v252
      %v975 = vunpack.c.l.b16 %v253
      %v976 = vunpack.c.l.b16 %v254
      %v977 = vunpack.c.l.b16 %v255
      %v978 = vunpack.c.l.b16 %v256
      %v979 = vunpack.c.l.b16 %v257
      %v980 = vunpack.c.l.b16 %v258
      %v981 = vunpack.c.l.b16 %v259
      %v982 = vunpack.c.l.b16 %v260
      %v983 = vunpack.c.l.b16 %v261
      %v984 = vunpack.c.l.b16 %v262
      %v985 = vunpack.c.l.b16 %v263
      %v986 = vunpack.c.l.b16 %v264
      %v987 = vunpack.c.l.b16 %v265
      %v988 = vunpack.c.l.b16 %v266
      %v989 = vunpack.c.l.b16 %v267
      %v990 = vunpack.c.l.b16 %v268
      %v991 = vunpack.c.l.b16 %v269
      %v992 = vunpack.c.l.b16 %v270
      %v993 = vunpack.c.l.b16 %v271
      %v994 = vunpack.c.l.b16 %v272
      %v995 = vunpack.c.l.b16 %v273
      %v996 = vunpack.c.l.b16 %v274
      %v997 = vunpack.c.l.b16 %v275
      %v998 = vunpack.c.l.b16 %v276
      %v999 = vunpack.c.l.b16 %v277
      %v1000 = vunpack.c.l.b16 %v278
      %v1001 = vunpack.c.l.b16 %v279
      %v1002 = vunpack.c.l.b16 %v280
      %v1003 = vunpack.c.l.b16 %v281
      %v1004 = vunpack.c.l.b16 %v282
      %v1005 = vunpack.c.l.b16 %v283
      %v1006 = vunpack.c.l.b16 %v284
      %v1007 = vunpack.c.l.b16 %v285
      %v1008 = vunpack.c.l.b16 %v286
      %v1009 = vunpack.c.l.b16 %v287
      %v1010 = vunpack.c.l.b16 %v288
      %v1011 = vunpack.c.l.b16 %v289
      %v1012 = vunpack.c.l.b16 %v290
      %v1013 = vunpack.c.l.b16 %v291
      %v1014 = vunpack.c.l.b16 %v292
      %v1015 = vunpack.c.l.b16 %v293
      %v1016 = vunpack.c.l.b16 %v294
      %v1017 = vunpack.c.l.b16 %v295
      %v1018 = vunpack.c.l.b16 %v296
      %v1019 = vunpack.c.l.b16 %v297
      %v1020 = vunpack.c.l.b16 %v298
      %v1021 = vunpack.c.l.b16 %v299
      %v1022 = vunpack.c.l.b16 %v300
      %v1023 = vunpack.c.l.b16 %v301
      %v1024 = vunpack.c.l.b16 %v302
      %v1025 = vunpack.c.l.b16 %v303
      %v1026 = vunpack.c.l.b16 %v304
      %v1027 = vunpack.c.l.b16 %v305
      %v1028 = vunpack.c.l.b16 %v306
      %v1029 = vunpack.c.l.b16 %v307
      %v1030 = vunpack.c.l.b16 %v308
      %v1031 = vunpack.c.l.b16 %v309
      %v1032 = vunpack.c.l.b16 %v310
      %v1033 = vunpack.c.l.b16 %v311
      %v1034 = vunpack.c.l.b16 %v312
      %v1035 = vunpack.c.l.b16 %v313
      %v1036 = vunpack.c.l.b16 %v314
      %v1037 = vunpack.c.l.b16 %v315
      %v1038 = vunpack.c.l.b16 %v316
      %v1039 = vunpack.c.l.b16 %v317
      %v1040 = vunpack.c.l.b16 %v318
      %v1041 = vunpack.c.l.b16 %v319
      %v1042 = vunpack.c.l.b16 %v320
      %v1043 = vunpack.c.l.b16 %v321
      %v1044 = vunpack.c.l.b16 %v322
      %v1045 = vunpack.c.l.b16 %v323
      %v1046 = vunpack.c.l.b16 %v324
      %v1047 = vunpack.c.l.b16 %v325
      %v1048 = vunpack.c.l.b16 %v326
      %v1049 = vunpack.c.l.b16 %v327
      %v1050 = vunpack.c.l.b16 %v328
      %v1051 = vunpack.c.l.b16 %v329
      %v1052 = vunpack.c.l.b16 %v330
      %v1053 = vunpack.c.l.b16 %v331
      %v1054 = vunpack.c.l.b16 %v332
      %v1055 = vunpack.c.l.b16 %v333
      %v1056 = vunpack.c.l.b16 %v334
      %v1057 = vunpack.c.l.b16 %v335
      %v1058 = vunpack.c.l.b16 %v336
      %v1059 = vunpack.c.l.b16 %v337
      %v1060 = vunpack.c.l.b16 %v338
      %v1061 = vunpack.c.l.b16 %v339
      %v1062 = vunpack.c.l.b16 %v340
      %v1063 = vunpack.c.l.b16 %v341
      %v1064 = vunpack.c.l.b16 %v342
      %v1065 = vunpack.c.l.b16 %v343
      %v1066 = vunpack.c.l.b16 %v344
      %v1067 = vunpack.c.l.b16 %v345
      %v1068 = vunpack.c.l.b16 %v346
      %v1069 = vunpack.c.l.b16 %v347
      %v1070 = vunpack.c.l.b16 %v348
      %v1071 = vunpack.c.l.b16 %v349
      %v1072 = vunpack.c.l.b16 %v350
      %v1073 = vunpack.c.l.b16 %v351
      %v1074 = vunpack.c.l.b16 %v352
      %v1075 = vunpack.c.l.b16 %v353
      %v1076 = vunpack.c.l.b16 %v354
      %v1077 = vunpack.c.l.b16 %v355
      %v1078 = vunpack.c.l.b16 %v356
      %v1079 = vunpack.c.l.b16 %v357
      %v1080 = vunpack.c.l.b16 %v358
      %v1081 = vunpack.c.l.b16 %v359
      %v1082 = vunpack.c.l.b16 %v360
      %v1083 = vunpack.c.l.b16 %v361
      %v1084 = vunpack.c.l.b16 %v362
      %v1085 = vunpack.c.l.b16 %v363
      %v1086 = vunpack.c.l.b16 %v364
      %v1087 = vunpack.c.l.b16 %v365
      %v1088 = vunpack.c.l.b16 %v366
      %v1089 = vunpack.c.l.b16 %v367
      %v1090 = vunpack.c.l.b16 %v368
      %v1091 = vunpack.c.l.b16 %v369
      %v1092 = vunpack.c.l.b16 %v370
      %v1093 = vunpack.c.l.b16 %v371
      %v1094 = vunpack.c.l.b16 %v372
      %v1095 = vunpack.c.l.b16 %v373
      %v1096 = vunpack.c.l.b16 %v374
      %v1097 = vunpack.c.l.b16 %v375
      %v1098 = vunpack.c.l.b16 %v376
      %v1099 = vunpack.c.l.b16 %v377
      %v1100 = vunpack.c.l.b16 %v378
      %v1101 = vunpack.c.l.b16 %v379
      %v1102 = vunpack.c.l.b16 %v380
      %v1103 = vunpack.c.l.b16 %v381
      %v1104 = vunpack.c.l.b16 %v382
      %v1105 = vunpack.c.l.b16 %v383
      %v1106 = vunpack.c.l.b16 %v384
      %v1107 = vunpack.c.l.b16 %v385
      %v1108 = vunpack.c.l.b16 %v386
      %v1109 = vunpack.c.l.b16 %v387
      %v1110 = vunpack.c.l.b16 %v388
      %v1111 = vunpack.c.l.b16 %v389
      %v1112 = vunpack.c.l.b16 %v390
      %v1113 = vunpack.c.l.b16 %v391
      %v1114 = vunpack.c.l.b16 %v392
      %v1115 = vunpack.c.l.b16 %v393
      %v1116 = vunpack.c.l.b16 %v394
      %v1117 = vunpack.c.l.b16 %v395
      %v1118 = vunpack.c.l.b16 %v396
      %v1119 = vunpack.c.l.b16 %v397
      %v1120 = vunpack.c.l.b16 %v398
      %v1121 = vunpack.c.l.b16 %v399
      %v1122 = vunpack.c.l.b16 %v400
      %v1123 = vunpack.c.l.b16 %v401
      %v1124 = vunpack.c.l.b16 %v402
      %v1125 = vunpack.c.l.b16 %v403
      %v1126 = vunpack.c.l.b16 %v404
      %v1127 = vunpack.c.l.b16 %v405
      %v1128 = vunpack.c.l.b16 %v406
      %v1129 = vunpack.c.l.b16 %v407
      %v1130 = vunpack.c.l.b16 %v408
      %v1131 = vunpack.c.l.b16 %v409
      %v1132 = vunpack.c.l.b16 %v410
      %v1133 = vunpack.c.l.b16 %v411
      %v1134 = vunpack.c.l.b16 %v412
      %v1135 = vunpack.c.l.b16 %v413
      %v1136 = vunpack.c.l.b16 %v414
      %v1137 = vunpack.c.l.b16 %v415
      %v1138 = vunpack.c.l.b16 %v416
      %v1139 = vunpack.c.l.b16 %v417
      %v1140 = vunpack.c.l.b16 %v418
      %v1141 = vunpack.c.l.b16 %v419
      %v1142 = vunpack.c.l.b16 %v420
      %v1143 = vunpack.c.l.b16 %v421
      %v1144 = vunpack.c.l.b16 %v422
      %v1145 = vunpack.c.l.b16 %v423
      %v1146 = vunpack.c.l.b16 %v424
      %v1147 = vunpack.c.l.b16 %v425
      %v1148 = vunpack.c.l.b16 %v426
      %v1149 = vunpack.c.l.b16 %v427
      %v1150 = vunpack.c.l.b16 %v428
      %v1151 = vunpack.c.l.b16 %v429
      %v1152 = vunpack.c.l.b16 %v430
      %v1153 = vunpack.c.l.b16 %v431
      %v1154 = vunpack.c.l.b16 %v432
      %v1155 = vunpack.c.l.b16 %v433
      %v1156 = vunpack.c.l.b16 %v434
      %v1157 = vunpack.c.l.b16 %v435
      %v1158 = vunpack.c.l.b16 %v436
      %v1159 = vunpack.c.l.b16 %v437
      %v1160 = vunpack.c.l.b16 %v438
      %v1161 = vunpack.c.l.b16 %v439
      %v1162 = vunpack.c.l.b16 %v440
      %v1163 = vunpack.c.l.b16 %v441
      %v1164 = vunpack.c.l.b16 %v442
      %v1165 = vunpack.c.l.b16 %v443
      %v1166 = vunpack.c.l.b16 %v444
      %v1167 = vunpack.c.l.b16 %v445
      %v1168 = vunpack.c.l.b16 %v446
      %v1169 = vunpack.c.l.b16 %v447
      %v1170 = vunpack.c.l.b16 %v448
      %v1171 = vunpack.c.l.b16 %v449
      %v1172 = vunpack.c.l.b16 %v450
      %v1173 = vunpack.c.l.b16 %v451
      %v1174 = vunpack.c.l.b16 %v452
      %v1175 = vunpack.c.l.b16 %v453
      %v1176 = vunpack.c.l.b16 %v454
      %v1177 = vunpack.c.l.b16 %v455
      %v1178 = vunpack.c.l.b16 %v456
      %v1179 = vunpack.c.l.b16 %v457
      %v1180 = vunpack.c.l.b16 %v458
      %v1181 = vunpack.c.l.b16 %v459
      %v1182 = vunpack.c.l.b16 %v460
      %v1183 = vunpack.c.l.b16 %v461
      %v1184 = vunpack.c.l.b16 %v462
      %v1185 = vunpack.c.l.b16 %v463
      %v1186 = vunpack.c.l.b16 %v464
      %v1187 = vunpack.c.l.b16 %v465
      %v1188 = vunpack.c.l.b16 %v466
      %v1189 = vunpack.c.l.b16 %v467
      %v1190 = vunpack.c.l.b16 %v468
      %v1191 = vunpack.c.l.b16 %v469
      %v1192 = vunpack.c.l.b16 %v470
      %v1193 = vunpack.c.l.b16 %v471
      %v1194 = vunpack.c.l.b16 %v472
      %v1195 = vunpack.c.l.b16 %v473
      %v1196 = vunpack.c.l.b16 %v474
      %v1197 = vunpack.c.l.b16 %v475
      %v1198 = vunpack.c.l.b16 %v476
      %v1199 = vunpack.c.l.b16 %v477
      %v1200 = vunpack.c.l.b16 %v478
      %v1201 = vunpack.c.l.b16 %v479
      %v1202 = vunpack.c.l.b16 %v480
      %v1203 = vunpack.c.l.b16 %v481
      %v1204 = vunpack.c.l.b16 %v482
      %v1205 = vunpack.c.l.b16 %v483
      %v1206 = vunpack.c.l.b16 %v484
      %v1207 = vunpack.c.l.b16 %v485
      %v1208 = vunpack.c.l.b16 %v486
      %v1209 = vunpack.c.l.b16 %v487
      %v1210 = vunpack.c.l.b16 %v488
      %v1211 = vunpack.c.l.b16 %v489
      %v1212 = vunpack.c.l.b16 %v490
      %v1213 = vunpack.c.l.b16 %v491
      %v1214 = vunpack.c.l.b16 %v492
      %v1215 = vunpack.c.l.b16 %v493
      %v1216 = vunpack.c.l.b16 %v494
      %v1217 = vunpack.c.l.b16 %v495
      %v1218 = vunpack.c.l.b16 %v496
      %v1219 = vunpack.c.l.b16 %v497
      %v1220 = vunpack.c.l.b16 %v498
      %v1221 = vunpack.c.l.b16 %v499
      %v1222 = vunpack.c.l.b16 %v500
      %v1223 = vunpack.c.l.b16 %v501
      %v1224 = vunpack.c.l.b16 %v502
      %v1225 = vunpack.c.l.b16 %v503
      %v1226 = vunpack.c.l.b16 %v504
      %v1227 = vunpack.c.l.b16 %v505
      %v1228 = vunpack.c.l.b16 %v506
      %v1229 = vunpack.c.l.b16 %v507
      %v1230 = vunpack.c.l.b16 %v508
      %v1231 = vunpack.c.l.b16 %v509
      %v1232 = vunpack.c.l.b16 %v510
      %v1233 = vunpack.c.l.b16 %v511
      %v1234 = vunpack.c.l.b16 %v512
      %v1235 = vunpack.c.l.b16 %v513
      %v1236 = vunpack.c.l.b16 %v514
      %v1237 = vunpack.c.l.b16 %v515
      %v1238 = vunpack.c.l.b16 %v516
      %v1239 = vunpack.c.l.b16 %v517
      %v1240 = vunpack.c.l.b16 %v518
      %v1241 = vunpack.c.l.b16 %v519
      %v1242 = vunpack.c.l.b16 %v520
      %v1243 = vunpack.c.l.b16 %v521
      %v1244 = vunpack.c.l.b16 %v522
      %v1245 = vunpack.c.l.b16 %v523
      %v1246 = vunpack.c.l.b16 %v524
      %v1247 = vunpack.c.l.b16 %v525
      %v1248 = vunpack.c.l.b16 %v526
      %v1249 = vunpack.c.l.b16 %v527
      %v1250 = vunpack.c.l.b16 %v528
      %v1251 = vunpack.c.l.b16 %v529
      %v1252 = vunpack.c.l.b16 %v530
      %v1253 = vunpack.c.l.b16 %v531
      %v1254 = vunpack.c.l.b16 %v532
      %v1255 = vunpack.c.l.b16 %v533
      %v1256 = vunpack.c.l.b16 %v534
      %v1257 = vunpack.c.l.b16 %v535
      %v1258 = vunpack.c.l.b16 %v536
      %v1259 = vunpack.c.l.b16 %v537
      %v1260 = vunpack.c.l.b16 %v538
      %v1261 = vunpack.c.l.b16 %v539
      %v1262 = vunpack.c.l.b16 %v540
      %v1263 = vunpack.c.l.b16 %v541
      %v1264 = vunpack.c.l.b16 %v542
      %v1265 = vunpack.c.l.b16 %v543
      %v1266 = vunpack.c.l.b16 %v544
      %v1267 = vunpack.c.l.b16 %v545
      %v1268 = vunpack.c.l.b16 %v546
      %v1269 = vunpack.c.l.b16 %v547
      %v1270 = vunpack.c.l.b16 %v548
      %v1271 = vunpack.c.l.b16 %v549
      %v1272 = vunpack.c.l.b16 %v550
      %v1273 = vunpack.c.l.b16 %v551
      %v1274 = vunpack.c.l.b16 %v552
      %v1275 = vunpack.c.l.b16 %v553
      %v1276 = vunpack.c.l.b16 %v554
      %v1277 = vunpack.c.l.b16 %v555
      %v1278 = vunpack.c.l.b16 %v556
      %v1279 = vunpack.c.l.b16 %v557
      %v1280 = vunpack.c.l.b16 %v558
      %v1281 = vunpack.c.l.b16 %v559
      %v1282 = vunpack.c.l.b16 %v560
      %v1283 = vunpack.c.l.b16 %v561
      %v1284 = vpack.c.b16 %v925, %v924
      %v1285 = vpack.c.b16 %v927, %v926
      %v1286 = vpack.c.b16 %v929, %v928
      %v1287 = vpack.c.b16 %v931, %v930
      %v1288 = vpack.c.b16 %v933, %v932
      %v1289 = vpack.c.b16 %v935, %v934
      %v1290 = vpack.c.b16 %v937, %v936
      %v1291 = vpack.c.b16 %v939, %v938
      %v1292 = vpack.c.b16 %v941, %v940
      %v1293 = vpack.c.b16 %v943, %v942
      %v1294 = vpack.c.b16 %v945, %v944
      %v1295 = vpack.c.b16 %v947, %v946
      %v1296 = vpack.c.b16 %v949, %v948
      %v1297 = vpack.c.b16 %v951, %v950
      %v1298 = vpack.c.b16 %v953, %v952
      %v1299 = vpack.c.b16 %v955, %v954
      %v1300 = vpack.c.b16 %v957, %v956
      %v1301 = vpack.c.b16 %v959, %v958
      %v1302 = vpack.c.b16 %v961, %v960
      %v1303 = vpack.c.b16 %v963, %v962
      %v1304 = vpack.c.b16 %v965, %v964
      %v1305 = vpack.c.b16 %v967, %v966
      %v1306 = vpack.c.b16 %v969, %v968
      %v1307 = vpack.c.b16 %v971, %v970
      %v1308 = vpack.c.b16 %v973, %v972
      %v1309 = vpack.c.b16 %v975, %v974
      %v1310 = vpack.c.b16 %v977, %v976
      %v1311 = vpack.c.b16 %v979, %v978
      %v1312 = vpack.c.b16 %v981, %v980
      %v1313 = vpack.c.b16 %v983, %v982
      %v1314 = vpack.c.b16 %v985, %v984
      %v1315 = vpack.c.b16 %v987, %v986
      %v1316 = vpack.c.b16 %v989, %v988
      %v1317 = vpack.c.b16 %v991, %v990
      %v1318 = vpack.c.b16 %v993, %v992
      %v1319 = vpack.c.b16 %v995, %v994
      %v1320 = vpack.c.b16 %v997, %v996
      %v1321 = vpack.c.b16 %v999, %v998
      %v1322 = vpack.c.b16 %v1001, %v1000
      %v1323 = vpack.c.b16 %v1003, %v1002
      %v1324 = vpack.c.b16 %v1005, %v1004
      %v1325 = vpack.c.b16 %v1007, %v1006
      %v1326 = vpack.c.b16 %v1009, %v1008
      %v1327 = vpack.c.b16 %v1011, %v1010
      %v1328 = vpack.c.b16 %v1013, %v1012
      %v1329 = vpack.c.b16 %v1015, %v1014
      %v1330 = vpack.c.b16 %v1017, %v1016
      %v1331 = vpack.c.b16 %v1019, %v1018
      %v1332 = vpack.c.b16 %v1021, %v1020
      %v1333 = vpack.c.b16 %v1023, %v1022
      %v1334 = vpack.c.b16 %v1025, %v1024
      %v1335 = vpack.c.b16 %v1027, %v1026
      %v1336 = vpack.c.b16 %v1029, %v1028
      %v1337 = vpack.c.b16 %v1031, %v1030
      %v1338 = vpack.c.b16 %v1033, %v1032
      %v1339 = vpack.c.b16 %v1035, %v1034
      %v1340 = vpack.c.b16 %v1037, %v1036
      %v1341 = vpack.c.b16 %v1039, %v1038
      %v1342 = vpack.c.b16 %v1041, %v1040
      %v1343 = vpack.c.b16 %v1043, %v1042
      %v1344 = vpack.c.b16 %v1045, %v1044
      %v1345 = vpack.c.b16 %v1047, %v1046
      %v1346 = vpack.c.b16 %v1049, %v1048
      %v1347 = vpack.c.b16 %v1051, %v1050
      %v1348 = vpack.c.b16 %v1053, %v1052
      %v1349 = vpack.c.b16 %v1055, %v1054
      %v1350 = vpack.c.b16 %v1057, %v1056
      %v1351 = vpack.c.b16 %v1059, %v1058
      %v1352 = vpack.c.b16 %v1061, %v1060
      %v1353 = vpack.c.b16 %v1063, %v1062
      %v1354 = vpack.c.b16 %v1065, %v1064
      %v1355 = vpack.c.b16 %v1067, %v1066
      %v1356 = vpack.c.b16 %v1069, %v1068
      %v1357 = vpack.c.b16 %v1071, %v1070
      %v1358 = vpack.c.b16 %v1073, %v1072
      %v1359 = vpack.c.b16 %v1075, %v1074
      %v1360 = vpack.c.b16 %v1077, %v1076
      %v1361 = vpack.c.b16 %v1079, %v1078
      %v1362 = vpack.c.b16 %v1081, %v1080
      %v1363 = vpack.c.b16 %v1083, %v1082
      %v1364 = vpack.c.b16 %v1085, %v1084
      %v1365 = vpack.c.b16 %v1087, %v1086
      %v1366 = vpack.c.b16 %v1089, %v1088
      %v1367 = vpack.c.b16 %v1091, %v1090
      %v1368 = vpack.c.b16 %v1093, %v1092
      %v1369 = vpack.c.b16 %v1095, %v1094
      %v1370 = vpack.c.b16 %v1097, %v1096
      %v1371 = vpack.c.b16 %v1099, %v1098
      %v1372 = vpack.c.b16 %v1101, %v1100
      %v1373 = vpack.c.b16 %v1103, %v1102
      %v1374 = vpack.c.b16 %v1105, %v1104
      %v1375 = vpack.c.b16 %v1107, %v1106
      %v1376 = vpack.c.b16 %v1109, %v1108
      %v1377 = vpack.c.b16 %v1111, %v1110
      %v1378 = vpack.c.b16 %v1113, %v1112
      %v1379 = vpack.c.b16 %v1115, %v1114
      %v1380 = vpack.c.b16 %v1117, %v1116
      %v1381 = vpack.c.b16 %v1119, %v1118
      %v1382 = vpack.c.b16 %v1121, %v1120
      %v1383 = vpack.c.b16 %v1123, %v1122
      %v1384 = vpack.c.b16 %v1125, %v1124
      %v1385 = vpack.c.b16 %v1127, %v1126
      %v1386 = vpack.c.b16 %v1129, %v1128
      %v1387 = vpack.c.b16 %v1131, %v1130
      %v1388 = vpack.c.b16 %v1133, %v1132
      %v1389 = vpack.c.b16 %v1135, %v1134
      %v1390 = vpack.c.b16 %v1137, %v1136
      %v1391 = vpack.c.b16 %v1139, %v1138
      %v1392 = vpack.c.b16 %v1141, %v1140
      %v1393 = vpack.c.b16 %v1143, %v1142
      %v1394 = vpack.c.b16 %v1145, %v1144
      %v1395 = vpack.c.b16 %v1147, %v1146
      %v1396 = vpack.c.b16 %v1149, %v1148
      %v1397 = vpack.c.b16 %v1151, %v1150
      %v1398 = vpack.c.b16 %v1153, %v1152
      %v1399 = vpack.c.b16 %v1155, %v1154
      %v1400 = vpack.c.b16 %v1157, %v1156
      %v1401 = vpack.c.b16 %v1159, %v1158
      %v1402 = vpack.c.b16 %v1161, %v1160
      %v1403 = vpack.c.b16 %v1163, %v1162
      %v1404 = vpack.c.b16 %v1165, %v1164
      %v1405 = vpack.c.b16 %v1167, %v1166
      %v1406 = vpack.c.b16 %v1169, %v1168
      %v1407 = vpack.c.b16 %v1171, %v1170
      %v1408 = vpack.c.b16 %v1173, %v1172
      %v1409 = vpack.c.b16 %v1175, %v1174
      %v1410 = vpack.c.b16 %v1177, %v1176
      %v1411 = vpack.c.b16 %v1179, %v1178
      %v1412 = vpack.c.b16 %v1181, %v1180
      %v1413 = vpack.c.b16 %v1183, %v1182
      %v1414 = vpack.c.b16 %v1185, %v1184
      %v1415 = vpack.c.b16 %v1187, %v1186
      %v1416 = vpack.c.b16 %v1189, %v1188
      %v1417 = vpack.c.b16 %v1191, %v1190
      %v1418 = vpack.c.b16 %v1193, %v1192
      %v1419 = vpack.c.b16 %v1195, %v1194
      %v1420 = vpack.c.b16 %v1197, %v1196
      %v1421 = vpack.c.b16 %v1199, %v1198
      %v1422 = vpack.c.b16 %v1201, %v1200
      %v1423 = vpack.c.b16 %v1203, %v1202
      %v1424 = vpack.c.b16 %v1205, %v1204
      %v1425 = vpack.c.b16 %v1207, %v1206
      %v1426 = vpack.c.b16 %v1209, %v1208
      %v1427 = vpack.c.b16 %v1211, %v1210
      %v1428 = vpack.c.b16 %v1213, %v1212
      %v1429 = vpack.c.b16 %v1215, %v1214
      %v1430 = vpack.c.b16 %v1217, %v1216
      %v1431 = vpack.c.b16 %v1219, %v1218
      %v1432 = vpack.c.b16 %v1221, %v1220
      %v1433 = vpack.c.b16 %v1223, %v1222
      %v1434 = vpack.c.b16 %v1225, %v1224
      %v1435 = vpack.c.b16 %v1227, %v1226
      %v1436 = vpack.c.b16 %v1229, %v1228
      %v1437 = vpack.c.b16 %v1231, %v1230
      %v1438 = vpack.c.b16 %v1233, %v1232
      %v1439 = vpack.c.b16 %v1235, %v1234
      %v1440 = vpack.c.b16 %v1237, %v1236
      %v1441 = vpack.c.b16 %v1239, %v1238
      %v1442 = vpack.c.b16 %v1241, %v1240
      %v1443 = vpack.c.b16 %v1243, %v1242
      %v1444 = vpack.c.b16 %v1245, %v1244
      %v1445 = vpack.c.b16 %v1247, %v1246
      %v1446 = vpack.c.b16 %v1249, %v1248
      %v1447 = vpack.c.b16 %v1251, %v1250
      %v1448 = vpack.c.b16 %v1253, %v1252
      %v1449 = vpack.c.b16 %v1255, %v1254
      %v1450 = vpack.c.b16 %v1257, %v1256
      %v1451 = vpack.c.b16 %v1259, %v1258
      %v1452 = vpack.c.b16 %v1261, %v1260
      %v1453 = vpack.c.b16 %v1263, %v1262
      %v1454 = vpack.c.b16 %v1265, %v1264
      %v1455 = vpack.c.b16 %v1267, %v1266
      %v1456 = vpack.c.b16 %v1269, %v1268
      %v1457 = vpack.c.b16 %v1271, %v1270
      %v1458 = vpack.c.b16 %v1273, %v1272
      %v1459 = vpack.c.b16 %v1275, %v1274
      %v1460 = vpack.c.b16 %v1277, %v1276
      %v1461 = vpack.c.b16 %v1279, %v1278
      %v1462 = vpack.c.b16 %v1281, %v1280
      %v1463 = vpack.c.b16 %v1283, %v1282
      %v1466 = vunpack.c.l.b16 %v562
      %v1467 = vunpack.c.l.b16 %v563
      %v1468 = vpack.c.b16 %v1467, %v1466
      %vm1469 = vcmask 72704
      %v1471 = vsel %vm1469, %v1284, 0
      %v1474 = vsel %vm1469, %v1285, 0
      %v1477 = vsel %vm1469, %v1286, 0
      %v1480 = vsel %vm1469, %v1287, 0
      %v1483 = vsel %vm1469, %v1288, 0
      %v1486 = vsel %vm1469, %v1289, 0
      %v1489 = vsel %vm1469, %v1290, 0
      %v1492 = vsel %vm1469, %v1291, 0
      %v1495 = vsel %vm1469, %v1292, 0
      %v1498 = vsel %vm1469, %v1293, 0
      %v1501 = vsel %vm1469, %v1294, 0
      %v1504 = vsel %vm1469, %v1295, 0
      %v1507 = vsel %vm1469, %v1296, 0
      %v1510 = vsel %vm1469, %v1297, 0
      %v1513 = vsel %vm1469, %v1298, 0
      %v1516 = vsel %vm1469, %v1299, 0
      %v1519 = vsel %vm1469, %v1300, 0
      %v1522 = vsel %vm1469, %v1301, 0
      %v1525 = vsel %vm1469, %v1302, 0
      %v1528 = vsel %vm1469, %v1303, 0
      %v1531 = vsel %vm1469, %v1304, 0
      %v1534 = vsel %vm1469, %v1305, 0
      %v1537 = vsel %vm1469, %v1306, 0
      %v1540 = vsel %vm1469, %v1307, 0
      %v1543 = vsel %vm1469, %v1308, 0
      %v1546 = vsel %vm1469, %v1309, 0
      %v1549 = vsel %vm1469, %v1310, 0
      %v1552 = vsel %vm1469, %v1311, 0
      %v1555 = vsel %vm1469, %v1312, 0
      %v1558 = vsel %vm1469, %v1313, 0
      %v1561 = vsel %vm1469, %v1314, 0
      %v1564 = vsel %vm1469, %v1315, 0
      %v1567 = vsel %vm1469, %v1316, 0
      %v1570 = vsel %vm1469, %v1317, 0
      %v1573 = vsel %vm1469, %v1318, 0
      %v1576 = vsel %vm1469, %v1319, 0
      %v1579 = vsel %vm1469, %v1320, 0
      %v1582 = vsel %vm1469, %v1321, 0
      %v1585 = vsel %vm1469, %v1322, 0
      %v1588 = vsel %vm1469, %v1323, 0
      %v1591 = vsel %vm1469, %v1324, 0
      %v1594 = vsel %vm1469, %v1325, 0
      %v1597 = vsel %vm1469, %v1326, 0
      %v1600 = vsel %vm1469, %v1327, 0
      %v1603 = vsel %vm1469, %v1328, 0
      %v1606 = vsel %vm1469, %v1329, 0
      %v1609 = vsel %vm1469, %v1330, 0
      %v1612 = vsel %vm1469, %v1331, 0
      %v1615 = vsel %vm1469, %v1332, 0
      %v1618 = vsel %vm1469, %v1333, 0
      %v1621 = vsel %vm1469, %v1334, 0
      %v1624 = vsel %vm1469, %v1335, 0
      %v1627 = vsel %vm1469, %v1336, 0
      %v1630 = vsel %vm1469, %v1337, 0
      %v1633 = vsel %vm1469, %v1338, 0
      %v1636 = vsel %vm1469, %v1339, 0
      %v1639 = vsel %vm1469, %v1340, 0
      %v1642 = vsel %vm1469, %v1341, 0
      %v1645 = vsel %vm1469, %v1342, 0
      %v1648 = vsel %vm1469, %v1343, 0
      %v1651 = vsel %vm1469, %v1344, 0
      %v1654 = vsel %vm1469, %v1345, 0
      %v1657 = vsel %vm1469, %v1346, 0
      %v1660 = vsel %vm1469, %v1347, 0
      %v1663 = vsel %vm1469, %v1348, 0
      %v1666 = vsel %vm1469, %v1349, 0
      %v1669 = vsel %vm1469, %v1350, 0
      %v1672 = vsel %vm1469, %v1351, 0
      %v1675 = vsel %vm1469, %v1352, 0
      %v1678 = vsel %vm1469, %v1353, 0
      %v1681 = vsel %vm1469, %v1354, 0
      %v1684 = vsel %vm1469, %v1355, 0
      %v1687 = vsel %vm1469, %v1356, 0
      %v1690 = vsel %vm1469, %v1357, 0
      %v1693 = vsel %vm1469, %v1358, 0
      %v1696 = vsel %vm1469, %v1359, 0
      %v1699 = vsel %vm1469, %v1360, 0
      %v1702 = vsel %vm1469, %v1361, 0
      %v1705 = vsel %vm1469, %v1362, 0
      %v1708 = vsel %vm1469, %v1363, 0
      %v1711 = vsel %vm1469, %v1364, 0
      %v1714 = vsel %vm1469, %v1365, 0
      %v1717 = vsel %vm1469, %v1366, 0
      %v1720 = vsel %vm1469, %v1367, 0
      %v1723 = vsel %vm1469, %v1368, 0
      %v1726 = vsel %vm1469, %v1369, 0
      %v1729 = vsel %vm1469, %v1370, 0
      %v1732 = vsel %vm1469, %v1371, 0
      %v1735 = vsel %vm1469, %v1372, 0
      %v1738 = vsel %vm1469, %v1373, 0
      %v1741 = vsel %vm1469, %v1374, 0
      %v1744 = vsel %vm1469, %v1375, 0
      %v1747 = vsel %vm1469, %v1376, 0
      %v1750 = vsel %vm1469, %v1377, 0
      %v1753 = vsel %vm1469, %v1378, 0
      %v1756 = vsel %vm1469, %v1379, 0
      %v1759 = vsel %vm1469, %v1380, 0
      %v1762 = vsel %vm1469, %v1381, 0
      %v1765 = vsel %vm1469, %v1382, 0
      %v1768 = vsel %vm1469, %v1383, 0
      %v1771 = vsel %vm1469, %v1384, 0
      %v1774 = vsel %vm1469, %v1385, 0
      %v1777 = vsel %vm1469, %v1386, 0
      %v1780 = vsel %vm1469, %v1387, 0
      %v1783 = vsel %vm1469, %v1388, 0
      %v1786 = vsel %vm1469, %v1389, 0
      %v1789 = vsel %vm1469, %v1390, 0
      %v1792 = vsel %vm1469, %v1391, 0
      %v1795 = vsel %vm1469, %v1392, 0
      %v1798 = vsel %vm1469, %v1393, 0
      %v1801 = vsel %vm1469, %v1394, 0
      %v1804 = vsel %vm1469, %v1395, 0
      %v1807 = vsel %vm1469, %v1396, 0
      %v1810 = vsel %vm1469, %v1397, 0
      %v1813 = vsel %vm1469, %v1398, 0
      %v1816 = vsel %vm1469, %v1399, 0
      %v1819 = vsel %vm1469, %v1400, 0
      %v1822 = vsel %vm1469, %v1401, 0
      %v1825 = vsel %vm1469, %v1402, 0
      %v1828 = vsel %vm1469, %v1403, 0
      %v1831 = vsel %vm1469, %v1404, 0
      %v1834 = vsel %vm1469, %v1405, 0
      %v1837 = vsel %vm1469, %v1406, 0
      %v1840 = vsel %vm1469, %v1407, 0
      %v1843 = vsel %vm1469, %v1408, 0
      %v1846 = vsel %vm1469, %v1409, 0
      %v1849 = vsel %vm1469, %v1410, 0
      %v1852 = vsel %vm1469, %v1411, 0
      %v1855 = vsel %vm1469, %v1412, 0
      %v1858 = vsel %vm1469, %v1413, 0
      %v1861 = vsel %vm1469, %v1414, 0
      %v1864 = vsel %vm1469, %v1415, 0
      %v1867 = vsel %vm1469, %v1416, 0
      %v1870 = vsel %vm1469, %v1417, 0
      %v1873 = vsel %vm1469, %v1418, 0
      %v1876 = vsel %vm1469, %v1419, 0
      %v1879 = vsel %vm1469, %v1420, 0
      %v1882 = vsel %vm1469, %v1421, 0
      %v1885 = vsel %vm1469, %v1422, 0
      %v1888 = vsel %vm1469, %v1423, 0
      %v1891 = vsel %vm1469, %v1424, 0
      %v1894 = vsel %vm1469, %v1425, 0
      %v1897 = vsel %vm1469, %v1426, 0
      %v1900 = vsel %vm1469, %v1427, 0
      %v1903 = vsel %vm1469, %v1428, 0
      %v1906 = vsel %vm1469, %v1429, 0
      %v1909 = vsel %vm1469, %v1430, 0
      %v1912 = vsel %vm1469, %v1431, 0
      %v1915 = vsel %vm1469, %v1432, 0
      %v1918 = vsel %vm1469, %v1433, 0
      %v1921 = vsel %vm1469, %v1434, 0
      %v1924 = vsel %vm1469, %v1435, 0
      %v1927 = vsel %vm1469, %v1436, 0
      %v1930 = vsel %vm1469, %v1437, 0
      %v1933 = vsel %vm1469, %v1438, 0
      %v1936 = vsel %vm1469, %v1439, 0
      %v1939 = vsel %vm1469, %v1440, 0
      %v1942 = vsel %vm1469, %v1441, 0
      %v1945 = vsel %vm1469, %v1442, 0
      %v1948 = vsel %vm1469, %v1443, 0
      %v1951 = vsel %vm1469, %v1444, 0
      %v1954 = vsel %vm1469, %v1445, 0
      %v1957 = vsel %vm1469, %v1446, 0
      %v1960 = vsel %vm1469, %v1447, 0
      %v1963 = vsel %vm1469, %v1448, 0
      %v1966 = vsel %vm1469, %v1449, 0
      %v1969 = vsel %vm1469, %v1450, 0
      %v1972 = vsel %vm1469, %v1451, 0
      %v1975 = vsel %vm1469, %v1452, 0
      %v1978 = vsel %vm1469, %v1453, 0
      %v1981 = vsel %vm1469, %v1454, 0
      %v1984 = vsel %vm1469, %v1455, 0
      %v1987 = vsel %vm1469, %v1456, 0
      %v1990 = vsel %vm1469, %v1457, 0
      %v1993 = vsel %vm1469, %v1458, 0
      %v1996 = vsel %vm1469, %v1459, 0
      %v1999 = vsel %vm1469, %v1460, 0
      %v2002 = vsel %vm1469, %v1461, 0
      %v2005 = vsel %vm1469, %v1462, 0
      %v2008 = vsel %vm1469, %v1463, 0
      %vm2010 = vcmask 1043456
      %vm2011 = vcmask 1044480
      %v2012 = vsel %vm2010, 4294967295, 65535
      %v2013 = vsel %vm2011, %v2012, 0
      %v2015 = vand.u32 %v1468, %v2013
      %2017 = vmatprep.subr.bf16.mxu0 0
      %2018 = vmatpush1.bf16.msra.mxu0 0
      %2019 = vmatprep.subr.bf16.mxu0 0
      %2020 = vmatpush1.bf16.msra.mxu0 0
      %2021 = vmatprep.subr.bf16.mxu0 0
      %2022 = vmatpush1.bf16.msra.mxu0 0
      %2023 = vmatprep.subr.bf16.mxu0 0
      %2024 = vmatpush1.bf16.msra.mxu0 0
      %2025 = vmatprep.subr.bf16.mxu0 0
      %2026 = vmatpush1.bf16.msra.mxu0 0
      %2027 = vmatprep.subr.bf16.mxu0 0
      %2028 = vmatpush1.bf16.msra.mxu0 0
      %2029 = vmatprep.subr.bf16.mxu0 0
      %2030 = vmatpush1.bf16.msra.mxu0 0
      %2031 = vmatprep.subr.bf16.mxu0 0
      %2032 = vmatpush1.bf16.msra.mxu0 %v2015
      %2033 = vmatprep.subr.bf16.mxu0 0
      %2034 = vmatpush2.bf16.msra.mxu0 0
      %2035 = vmatprep.subr.bf16.mxu0 0
      %2036 = vmatpush2.bf16.msra.mxu0 0
      %2037 = vmatprep.subr.bf16.mxu0 0
      %2038 = vmatpush2.bf16.msra.mxu0 0
      %2039 = vmatprep.subr.bf16.mxu0 0
      %2040 = vmatpush2.bf16.msra.mxu0 0
      %2041 = vmatprep.subr.bf16.mxu0 0
      %2042 = vmatpush2.bf16.msra.mxu0 0
      %2043 = vmatprep.subr.bf16.mxu0 0
      %2044 = vmatpush2.bf16.msra.mxu0 0
      %2045 = vmatprep.subr.bf16.mxu0 0
      %2046 = vmatpush2.bf16.msra.mxu0 0
      %2047 = vmatprep.subr.bf16.mxu0 0
      %2048 = vmatpush2.bf16.msra.mxu0 0
      %2049 = vmatprep.mubr.bf16.mxu0 0
      %2050 = vmatmul.mubr.bf16.gmra.mxu0 %v1471
      %v2051 = vpop.f32.mrf.mxu0
      %v2052 = vadd.f32 0.0, %v2051
      %v2053 = vpop.f32.mrf.mxu0
      %v2054 = vpop.f32.mrf.mxu0
      %v2055 = vadd.f32 0.0, %v2054
      %v2056 = vpop.f32.mrf.mxu0
      %2057 = vmatprep.mubr.bf16.mxu0 0
      %2058 = vmatmul.mubr.bf16.gmra.mxu0 %v1474
      %v2059 = vpop.f32.mrf.mxu0
      %v2060 = vadd.f32 0.0, %v2059
      %v2061 = vpop.f32.mrf.mxu0
      %v2062 = vpop.f32.mrf.mxu0
      %v2063 = vadd.f32 0.0, %v2062
      %v2064 = vpop.f32.mrf.mxu0
      %2065 = vmatprep.mubr.bf16.mxu0 0
      %2066 = vmatmul.mubr.bf16.gmra.mxu0 %v1477
      %v2067 = vpop.f32.mrf.mxu0
      %v2068 = vadd.f32 0.0, %v2067
      %v2069 = vpop.f32.mrf.mxu0
      %v2070 = vpop.f32.mrf.mxu0
      %v2071 = vadd.f32 0.0, %v2070
      %v2072 = vpop.f32.mrf.mxu0
      %2073 = vmatprep.mubr.bf16.mxu0 0
      %2074 = vmatmul.mubr.bf16.gmra.mxu0 %v1480
      %v2075 = vpop.f32.mrf.mxu0
      %v2076 = vadd.f32 0.0, %v2075
      %v2077 = vpop.f32.mrf.mxu0
      %v2078 = vpop.f32.mrf.mxu0
      %v2079 = vadd.f32 0.0, %v2078
      %v2080 = vpop.f32.mrf.mxu0
      %2081 = vmatprep.mubr.bf16.mxu0 0
      %2082 = vmatmul.mubr.bf16.gmra.mxu0 %v1483
      %v2083 = vpop.f32.mrf.mxu0
      %v2084 = vadd.f32 0.0, %v2083
      %v2085 = vpop.f32.mrf.mxu0
      %v2086 = vpop.f32.mrf.mxu0
      %v2087 = vadd.f32 0.0, %v2086
      %v2088 = vpop.f32.mrf.mxu0
      %2089 = vmatprep.mubr.bf16.mxu0 0
      %2090 = vmatmul.mubr.bf16.gmra.mxu0 %v1486
      %v2091 = vpop.f32.mrf.mxu0
      %v2092 = vadd.f32 0.0, %v2091
      %v2093 = vpop.f32.mrf.mxu0
      %v2094 = vpop.f32.mrf.mxu0
      %v2095 = vadd.f32 0.0, %v2094
      %v2096 = vpop.f32.mrf.mxu0
      %2097 = vmatprep.mubr.bf16.mxu0 0
      %2098 = vmatmul.mubr.bf16.gmra.mxu0 %v1489
      %v2099 = vpop.f32.mrf.mxu0
      %v2100 = vadd.f32 0.0, %v2099
      %v2101 = vpop.f32.mrf.mxu0
      %v2102 = vpop.f32.mrf.mxu0
      %v2103 = vadd.f32 0.0, %v2102
      %v2104 = vpop.f32.mrf.mxu0
      %2105 = vmatprep.mubr.bf16.mxu0 0
      %2106 = vmatmul.mubr.bf16.gmra.mxu0 %v1492
      %v2107 = vpop.f32.mrf.mxu0
      %v2108 = vadd.f32 0.0, %v2107
      %v2109 = vpop.f32.mrf.mxu0
      %v2110 = vpop.f32.mrf.mxu0
      %v2111 = vadd.f32 0.0, %v2110
      %v2112 = vpop.f32.mrf.mxu0
      %2113 = vmatprep.mubr.bf16.mxu0 0
      %2114 = vmatmul.mubr.bf16.gmra.mxu0 %v1495
      %v2115 = vpop.f32.mrf.mxu0
      %v2116 = vadd.f32 0.0, %v2115
      %v2117 = vpop.f32.mrf.mxu0
      %v2118 = vpop.f32.mrf.mxu0
      %v2119 = vadd.f32 0.0, %v2118
      %v2120 = vpop.f32.mrf.mxu0
      %2121 = vmatprep.mubr.bf16.mxu0 0
      %2122 = vmatmul.mubr.bf16.gmra.mxu0 %v1498
      %v2123 = vpop.f32.mrf.mxu0
      %v2124 = vadd.f32 0.0, %v2123
      %v2125 = vpop.f32.mrf.mxu0
      %v2126 = vpop.f32.mrf.mxu0
      %v2127 = vadd.f32 0.0, %v2126
      %v2128 = vpop.f32.mrf.mxu0
      %2129 = vmatprep.mubr.bf16.mxu0 0
      %2130 = vmatmul.mubr.bf16.gmra.mxu0 %v1501
      %v2131 = vpop.f32.mrf.mxu0
      %v2132 = vadd.f32 0.0, %v2131
      %v2133 = vpop.f32.mrf.mxu0
      %v2134 = vpop.f32.mrf.mxu0
      %v2135 = vadd.f32 0.0, %v2134
      %v2136 = vpop.f32.mrf.mxu0
      %2137 = vmatprep.mubr.bf16.mxu0 0
      %2138 = vmatmul.mubr.bf16.gmra.mxu0 %v1504
      %v2139 = vpop.f32.mrf.mxu0
      %v2140 = vadd.f32 0.0, %v2139
      %v2141 = vpop.f32.mrf.mxu0
      %v2142 = vpop.f32.mrf.mxu0
      %v2143 = vadd.f32 0.0, %v2142
      %v2144 = vpop.f32.mrf.mxu0
      %2145 = vmatprep.mubr.bf16.mxu0 0
      %2146 = vmatmul.mubr.bf16.gmra.mxu0 %v1507
      %v2147 = vpop.f32.mrf.mxu0
      %v2148 = vadd.f32 0.0, %v2147
      %v2149 = vpop.f32.mrf.mxu0
      %v2150 = vpop.f32.mrf.mxu0
      %v2151 = vadd.f32 0.0, %v2150
      %v2152 = vpop.f32.mrf.mxu0
      %2153 = vmatprep.mubr.bf16.mxu0 0
      %2154 = vmatmul.mubr.bf16.gmra.mxu0 %v1510
      %v2155 = vpop.f32.mrf.mxu0
      %v2156 = vadd.f32 0.0, %v2155
      %v2157 = vpop.f32.mrf.mxu0
      %v2158 = vpop.f32.mrf.mxu0
      %v2159 = vadd.f32 0.0, %v2158
      %v2160 = vpop.f32.mrf.mxu0
      %2161 = vmatprep.mubr.bf16.mxu0 0
      %2162 = vmatmul.mubr.bf16.gmra.mxu0 %v1513
      %v2163 = vpop.f32.mrf.mxu0
      %v2164 = vadd.f32 0.0, %v2163
      %v2165 = vpop.f32.mrf.mxu0
      %v2166 = vpop.f32.mrf.mxu0
      %v2167 = vadd.f32 0.0, %v2166
      %v2168 = vpop.f32.mrf.mxu0
      %2169 = vmatprep.mubr.bf16.mxu0 0
      %2170 = vmatmul.mubr.bf16.gmra.mxu0 %v1516
      %v2171 = vpop.f32.mrf.mxu0
      %v2172 = vadd.f32 0.0, %v2171
      %v2173 = vpop.f32.mrf.mxu0
      %v2174 = vpop.f32.mrf.mxu0
      %v2175 = vadd.f32 0.0, %v2174
      %v2176 = vpop.f32.mrf.mxu0
      %2177 = vmatprep.mubr.bf16.mxu0 0
      %2178 = vmatmul.mubr.bf16.gmra.mxu0 %v1519
      %v2179 = vpop.f32.mrf.mxu0
      %v2180 = vadd.f32 0.0, %v2179
      %v2181 = vpop.f32.mrf.mxu0
      %v2182 = vpop.f32.mrf.mxu0
      %v2183 = vadd.f32 0.0, %v2182
      %v2184 = vpop.f32.mrf.mxu0
      %2185 = vmatprep.mubr.bf16.mxu0 0
      %2186 = vmatmul.mubr.bf16.gmra.mxu0 %v1522
      %v2187 = vpop.f32.mrf.mxu0
      %v2188 = vadd.f32 0.0, %v2187
      %v2189 = vpop.f32.mrf.mxu0
      %v2190 = vpop.f32.mrf.mxu0
      %v2191 = vadd.f32 0.0, %v2190
      %v2192 = vpop.f32.mrf.mxu0
      %2193 = vmatprep.mubr.bf16.mxu0 0
      %2194 = vmatmul.mubr.bf16.gmra.mxu0 %v1525
      %v2195 = vpop.f32.mrf.mxu0
      %v2196 = vadd.f32 0.0, %v2195
      %v2197 = vpop.f32.mrf.mxu0
      %v2198 = vpop.f32.mrf.mxu0
      %v2199 = vadd.f32 0.0, %v2198
      %v2200 = vpop.f32.mrf.mxu0
      %2201 = vmatprep.mubr.bf16.mxu0 0
      %2202 = vmatmul.mubr.bf16.gmra.mxu0 %v1528
      %v2203 = vpop.f32.mrf.mxu0
      %v2204 = vadd.f32 0.0, %v2203
      %v2205 = vpop.f32.mrf.mxu0
      %v2206 = vpop.f32.mrf.mxu0
      %v2207 = vadd.f32 0.0, %v2206
      %v2208 = vpop.f32.mrf.mxu0
      %2209 = vmatprep.mubr.bf16.mxu0 0
      %2210 = vmatmul.mubr.bf16.gmra.mxu0 %v1531
      %v2211 = vpop.f32.mrf.mxu0
      %v2212 = vadd.f32 0.0, %v2211
      %v2213 = vpop.f32.mrf.mxu0
      %v2214 = vpop.f32.mrf.mxu0
      %v2215 = vadd.f32 0.0, %v2214
      %v2216 = vpop.f32.mrf.mxu0
      %2217 = vmatprep.mubr.bf16.mxu0 0
      %2218 = vmatmul.mubr.bf16.gmra.mxu0 %v1534
      %v2219 = vpop.f32.mrf.mxu0
      %v2220 = vadd.f32 0.0, %v2219
      %v2221 = vpop.f32.mrf.mxu0
      %v2222 = vpop.f32.mrf.mxu0
      %v2223 = vadd.f32 0.0, %v2222
      %v2224 = vpop.f32.mrf.mxu0
      %2225 = vmatprep.mubr.bf16.mxu0 0
      %2226 = vmatmul.mubr.bf16.gmra.mxu0 %v1537
      %v2227 = vpop.f32.mrf.mxu0
      %v2228 = vadd.f32 0.0, %v2227
      %v2229 = vpop.f32.mrf.mxu0
      %v2230 = vpop.f32.mrf.mxu0
      %v2231 = vadd.f32 0.0, %v2230
      %v2232 = vpop.f32.mrf.mxu0
      %2233 = vmatprep.mubr.bf16.mxu0 0
      %2234 = vmatmul.mubr.bf16.gmra.mxu0 %v1540
      %v2235 = vpop.f32.mrf.mxu0
      %v2236 = vadd.f32 0.0, %v2235
      %v2237 = vpop.f32.mrf.mxu0
      %v2238 = vpop.f32.mrf.mxu0
      %v2239 = vadd.f32 0.0, %v2238
      %v2240 = vpop.f32.mrf.mxu0
      %2241 = vmatprep.mubr.bf16.mxu0 0
      %2242 = vmatmul.mubr.bf16.gmra.mxu0 %v1543
      %v2243 = vpop.f32.mrf.mxu0
      %v2244 = vadd.f32 0.0, %v2243
      %v2245 = vpop.f32.mrf.mxu0
      %v2246 = vpop.f32.mrf.mxu0
      %v2247 = vadd.f32 0.0, %v2246
      %v2248 = vpop.f32.mrf.mxu0
      %2249 = vmatprep.mubr.bf16.mxu0 0
      %2250 = vmatmul.mubr.bf16.gmra.mxu0 %v1546
      %v2251 = vpop.f32.mrf.mxu0
      %v2252 = vadd.f32 0.0, %v2251
      %v2253 = vpop.f32.mrf.mxu0
      %v2254 = vpop.f32.mrf.mxu0
      %v2255 = vadd.f32 0.0, %v2254
      %v2256 = vpop.f32.mrf.mxu0
      %2257 = vmatprep.mubr.bf16.mxu0 0
      %2258 = vmatmul.mubr.bf16.gmra.mxu0 %v1549
      %v2259 = vpop.f32.mrf.mxu0
      %v2260 = vadd.f32 0.0, %v2259
      %v2261 = vpop.f32.mrf.mxu0
      %v2262 = vpop.f32.mrf.mxu0
      %v2263 = vadd.f32 0.0, %v2262
      %v2264 = vpop.f32.mrf.mxu0
      %2265 = vmatprep.mubr.bf16.mxu0 0
      %2266 = vmatmul.mubr.bf16.gmra.mxu0 %v1552
      %v2267 = vpop.f32.mrf.mxu0
      %v2268 = vadd.f32 0.0, %v2267
      %v2269 = vpop.f32.mrf.mxu0
      %v2270 = vpop.f32.mrf.mxu0
      %v2271 = vadd.f32 0.0, %v2270
      %v2272 = vpop.f32.mrf.mxu0
      %2273 = vmatprep.mubr.bf16.mxu0 0
      %2274 = vmatmul.mubr.bf16.gmra.mxu0 %v1555
      %v2275 = vpop.f32.mrf.mxu0
      %v2276 = vadd.f32 0.0, %v2275
      %v2277 = vpop.f32.mrf.mxu0
      %v2278 = vpop.f32.mrf.mxu0
      %v2279 = vadd.f32 0.0, %v2278
      %v2280 = vpop.f32.mrf.mxu0
      %2281 = vmatprep.mubr.bf16.mxu0 0
      %2282 = vmatmul.mubr.bf16.gmra.mxu0 %v1558
      %v2283 = vpop.f32.mrf.mxu0
      %v2284 = vadd.f32 0.0, %v2283
      %v2285 = vpop.f32.mrf.mxu0
      %v2286 = vpop.f32.mrf.mxu0
      %v2287 = vadd.f32 0.0, %v2286
      %v2288 = vpop.f32.mrf.mxu0
      %2289 = vmatprep.mubr.bf16.mxu0 0
      %2290 = vmatmul.mubr.bf16.gmra.mxu0 %v1561
      %v2291 = vpop.f32.mrf.mxu0
      %v2292 = vadd.f32 0.0, %v2291
      %v2293 = vpop.f32.mrf.mxu0
      %v2294 = vpop.f32.mrf.mxu0
      %v2295 = vadd.f32 0.0, %v2294
      %v2296 = vpop.f32.mrf.mxu0
      %2297 = vmatprep.mubr.bf16.mxu0 0
      %2298 = vmatmul.mubr.bf16.gmra.mxu0 %v1564
      %v2299 = vpop.f32.mrf.mxu0
      %v2300 = vadd.f32 0.0, %v2299
      %v2301 = vpop.f32.mrf.mxu0
      %v2302 = vpop.f32.mrf.mxu0
      %v2303 = vadd.f32 0.0, %v2302
      %v2304 = vpop.f32.mrf.mxu0
      %2305 = vmatprep.mubr.bf16.mxu0 0
      %2306 = vmatmul.mubr.bf16.gmra.mxu0 %v1567
      %v2307 = vpop.f32.mrf.mxu0
      %v2308 = vadd.f32 0.0, %v2307
      %v2309 = vpop.f32.mrf.mxu0
      %v2310 = vpop.f32.mrf.mxu0
      %v2311 = vadd.f32 0.0, %v2310
      %v2312 = vpop.f32.mrf.mxu0
      %2313 = vmatprep.mubr.bf16.mxu0 0
      %2314 = vmatmul.mubr.bf16.gmra.mxu0 %v1570
      %v2315 = vpop.f32.mrf.mxu0
      %v2316 = vadd.f32 0.0, %v2315
      %v2317 = vpop.f32.mrf.mxu0
      %v2318 = vpop.f32.mrf.mxu0
      %v2319 = vadd.f32 0.0, %v2318
      %v2320 = vpop.f32.mrf.mxu0
      %2321 = vmatprep.mubr.bf16.mxu0 0
      %2322 = vmatmul.mubr.bf16.gmra.mxu0 %v1573
      %v2323 = vpop.f32.mrf.mxu0
      %v2324 = vadd.f32 0.0, %v2323
      %v2325 = vpop.f32.mrf.mxu0
      %v2326 = vpop.f32.mrf.mxu0
      %v2327 = vadd.f32 0.0, %v2326
      %v2328 = vpop.f32.mrf.mxu0
      %2329 = vmatprep.mubr.bf16.mxu0 0
      %2330 = vmatmul.mubr.bf16.gmra.mxu0 %v1576
      %v2331 = vpop.f32.mrf.mxu0
      %v2332 = vadd.f32 0.0, %v2331
      %v2333 = vpop.f32.mrf.mxu0
      %v2334 = vpop.f32.mrf.mxu0
      %v2335 = vadd.f32 0.0, %v2334
      %v2336 = vpop.f32.mrf.mxu0
      %2337 = vmatprep.mubr.bf16.mxu0 0
      %2338 = vmatmul.mubr.bf16.gmra.mxu0 %v1579
      %v2339 = vpop.f32.mrf.mxu0
      %v2340 = vadd.f32 0.0, %v2339
      %v2341 = vpop.f32.mrf.mxu0
      %v2342 = vpop.f32.mrf.mxu0
      %v2343 = vadd.f32 0.0, %v2342
      %v2344 = vpop.f32.mrf.mxu0
      %2345 = vmatprep.mubr.bf16.mxu0 0
      %2346 = vmatmul.mubr.bf16.gmra.mxu0 %v1582
      %v2347 = vpop.f32.mrf.mxu0
      %v2348 = vadd.f32 0.0, %v2347
      %v2349 = vpop.f32.mrf.mxu0
      %v2350 = vpop.f32.mrf.mxu0
      %v2351 = vadd.f32 0.0, %v2350
      %v2352 = vpop.f32.mrf.mxu0
      %2353 = vmatprep.mubr.bf16.mxu0 0
      %2354 = vmatmul.mubr.bf16.gmra.mxu0 %v1585
      %v2355 = vpop.f32.mrf.mxu0
      %v2356 = vadd.f32 0.0, %v2355
      %v2357 = vpop.f32.mrf.mxu0
      %v2358 = vpop.f32.mrf.mxu0
      %v2359 = vadd.f32 0.0, %v2358
      %v2360 = vpop.f32.mrf.mxu0
      %2361 = vmatprep.mubr.bf16.mxu0 0
      %2362 = vmatmul.mubr.bf16.gmra.mxu0 %v1588
      %v2363 = vpop.f32.mrf.mxu0
      %v2364 = vadd.f32 0.0, %v2363
      %v2365 = vpop.f32.mrf.mxu0
      %v2366 = vpop.f32.mrf.mxu0
      %v2367 = vadd.f32 0.0, %v2366
      %v2368 = vpop.f32.mrf.mxu0
      %2369 = vmatprep.mubr.bf16.mxu0 0
      %2370 = vmatmul.mubr.bf16.gmra.mxu0 %v1591
      %v2371 = vpop.f32.mrf.mxu0
      %v2372 = vadd.f32 0.0, %v2371
      %v2373 = vpop.f32.mrf.mxu0
      %v2374 = vpop.f32.mrf.mxu0
      %v2375 = vadd.f32 0.0, %v2374
      %v2376 = vpop.f32.mrf.mxu0
      %2377 = vmatprep.mubr.bf16.mxu0 0
      %2378 = vmatmul.mubr.bf16.gmra.mxu0 %v1594
      %v2379 = vpop.f32.mrf.mxu0
      %v2380 = vadd.f32 0.0, %v2379
      %v2381 = vpop.f32.mrf.mxu0
      %v2382 = vpop.f32.mrf.mxu0
      %v2383 = vadd.f32 0.0, %v2382
      %v2384 = vpop.f32.mrf.mxu0
      %2385 = vmatprep.mubr.bf16.mxu0 0
      %2386 = vmatmul.mubr.bf16.gmra.mxu0 %v1597
      %v2387 = vpop.f32.mrf.mxu0
      %v2388 = vadd.f32 0.0, %v2387
      %v2389 = vpop.f32.mrf.mxu0
      %v2390 = vpop.f32.mrf.mxu0
      %v2391 = vadd.f32 0.0, %v2390
      %v2392 = vpop.f32.mrf.mxu0
      %2393 = vmatprep.mubr.bf16.mxu0 0
      %2394 = vmatmul.mubr.bf16.gmra.mxu0 %v1600
      %v2395 = vpop.f32.mrf.mxu0
      %v2396 = vadd.f32 0.0, %v2395
      %v2397 = vpop.f32.mrf.mxu0
      %v2398 = vpop.f32.mrf.mxu0
      %v2399 = vadd.f32 0.0, %v2398
      %v2400 = vpop.f32.mrf.mxu0
      %2401 = vmatprep.mubr.bf16.mxu0 0
      %2402 = vmatmul.mubr.bf16.gmra.mxu0 %v1603
      %v2403 = vpop.f32.mrf.mxu0
      %v2404 = vadd.f32 0.0, %v2403
      %v2405 = vpop.f32.mrf.mxu0
      %v2406 = vpop.f32.mrf.mxu0
      %v2407 = vadd.f32 0.0, %v2406
      %v2408 = vpop.f32.mrf.mxu0
      %2409 = vmatprep.mubr.bf16.mxu0 0
      %2410 = vmatmul.mubr.bf16.gmra.mxu0 %v1606
      %v2411 = vpop.f32.mrf.mxu0
      %v2412 = vadd.f32 0.0, %v2411
      %v2413 = vpop.f32.mrf.mxu0
      %v2414 = vpop.f32.mrf.mxu0
      %v2415 = vadd.f32 0.0, %v2414
      %v2416 = vpop.f32.mrf.mxu0
      %2417 = vmatprep.mubr.bf16.mxu0 0
      %2418 = vmatmul.mubr.bf16.gmra.mxu0 %v1609
      %v2419 = vpop.f32.mrf.mxu0
      %v2420 = vadd.f32 0.0, %v2419
      %v2421 = vpop.f32.mrf.mxu0
      %v2422 = vpop.f32.mrf.mxu0
      %v2423 = vadd.f32 0.0, %v2422
      %v2424 = vpop.f32.mrf.mxu0
      %2425 = vmatprep.mubr.bf16.mxu0 0
      %2426 = vmatmul.mubr.bf16.gmra.mxu0 %v1612
      %v2427 = vpop.f32.mrf.mxu0
      %v2428 = vadd.f32 0.0, %v2427
      %v2429 = vpop.f32.mrf.mxu0
      %v2430 = vpop.f32.mrf.mxu0
      %v2431 = vadd.f32 0.0, %v2430
      %v2432 = vpop.f32.mrf.mxu0
      %2433 = vmatprep.mubr.bf16.mxu0 0
      %2434 = vmatmul.mubr.bf16.gmra.mxu0 %v1615
      %v2435 = vpop.f32.mrf.mxu0
      %v2436 = vadd.f32 0.0, %v2435
      %v2437 = vpop.f32.mrf.mxu0
      %v2438 = vpop.f32.mrf.mxu0
      %v2439 = vadd.f32 0.0, %v2438
      %v2440 = vpop.f32.mrf.mxu0
      %2441 = vmatprep.mubr.bf16.mxu0 0
      %2442 = vmatmul.mubr.bf16.gmra.mxu0 %v1618
      %v2443 = vpop.f32.mrf.mxu0
      %v2444 = vadd.f32 0.0, %v2443
      %v2445 = vpop.f32.mrf.mxu0
      %v2446 = vpop.f32.mrf.mxu0
      %v2447 = vadd.f32 0.0, %v2446
      %v2448 = vpop.f32.mrf.mxu0
      %2449 = vmatprep.mubr.bf16.mxu0 0
      %2450 = vmatmul.mubr.bf16.gmra.mxu0 %v1621
      %v2451 = vpop.f32.mrf.mxu0
      %v2452 = vadd.f32 0.0, %v2451
      %v2453 = vpop.f32.mrf.mxu0
      %v2454 = vpop.f32.mrf.mxu0
      %v2455 = vadd.f32 0.0, %v2454
      %v2456 = vpop.f32.mrf.mxu0
      %2457 = vmatprep.mubr.bf16.mxu0 0
      %2458 = vmatmul.mubr.bf16.gmra.mxu0 %v1624
      %v2459 = vpop.f32.mrf.mxu0
      %v2460 = vadd.f32 0.0, %v2459
      %v2461 = vpop.f32.mrf.mxu0
      %v2462 = vpop.f32.mrf.mxu0
      %v2463 = vadd.f32 0.0, %v2462
      %v2464 = vpop.f32.mrf.mxu0
      %2465 = vmatprep.mubr.bf16.mxu0 0
      %2466 = vmatmul.mubr.bf16.gmra.mxu0 %v1627
      %v2467 = vpop.f32.mrf.mxu0
      %v2468 = vadd.f32 0.0, %v2467
      %v2469 = vpop.f32.mrf.mxu0
      %v2470 = vpop.f32.mrf.mxu0
      %v2471 = vadd.f32 0.0, %v2470
      %v2472 = vpop.f32.mrf.mxu0
      %2473 = vmatprep.mubr.bf16.mxu0 0
      %2474 = vmatmul.mubr.bf16.gmra.mxu0 %v1630
      %v2475 = vpop.f32.mrf.mxu0
      %v2476 = vadd.f32 0.0, %v2475
      %v2477 = vpop.f32.mrf.mxu0
      %v2478 = vpop.f32.mrf.mxu0
      %v2479 = vadd.f32 0.0, %v2478
      %v2480 = vpop.f32.mrf.mxu0
      %2481 = vmatprep.mubr.bf16.mxu0 0
      %2482 = vmatmul.mubr.bf16.gmra.mxu0 %v1633
      %v2483 = vpop.f32.mrf.mxu0
      %v2484 = vadd.f32 0.0, %v2483
      %v2485 = vpop.f32.mrf.mxu0
      %v2486 = vpop.f32.mrf.mxu0
      %v2487 = vadd.f32 0.0, %v2486
      %v2488 = vpop.f32.mrf.mxu0
      %2489 = vmatprep.mubr.bf16.mxu0 0
      %2490 = vmatmul.mubr.bf16.gmra.mxu0 %v1636
      %v2491 = vpop.f32.mrf.mxu0
      %v2492 = vadd.f32 0.0, %v2491
      %v2493 = vpop.f32.mrf.mxu0
      %v2494 = vpop.f32.mrf.mxu0
      %v2495 = vadd.f32 0.0, %v2494
      %v2496 = vpop.f32.mrf.mxu0
      %2497 = vmatprep.mubr.bf16.mxu0 0
      %2498 = vmatmul.mubr.bf16.gmra.mxu0 %v1639
      %v2499 = vpop.f32.mrf.mxu0
      %v2500 = vadd.f32 0.0, %v2499
      %v2501 = vpop.f32.mrf.mxu0
      %v2502 = vpop.f32.mrf.mxu0
      %v2503 = vadd.f32 0.0, %v2502
      %v2504 = vpop.f32.mrf.mxu0
      %2505 = vmatprep.mubr.bf16.mxu0 0
      %2506 = vmatmul.mubr.bf16.gmra.mxu0 %v1642
      %v2507 = vpop.f32.mrf.mxu0
      %v2508 = vadd.f32 0.0, %v2507
      %v2509 = vpop.f32.mrf.mxu0
      %v2510 = vpop.f32.mrf.mxu0
      %v2511 = vadd.f32 0.0, %v2510
      %v2512 = vpop.f32.mrf.mxu0
      %2513 = vmatprep.mubr.bf16.mxu0 0
      %2514 = vmatmul.mubr.bf16.gmra.mxu0 %v1645
      %v2515 = vpop.f32.mrf.mxu0
      %v2516 = vadd.f32 0.0, %v2515
      %v2517 = vpop.f32.mrf.mxu0
      %v2518 = vpop.f32.mrf.mxu0
      %v2519 = vadd.f32 0.0, %v2518
      %v2520 = vpop.f32.mrf.mxu0
      %2521 = vmatprep.mubr.bf16.mxu0 0
      %2522 = vmatmul.mubr.bf16.gmra.mxu0 %v1648
      %v2523 = vpop.f32.mrf.mxu0
      %v2524 = vadd.f32 0.0, %v2523
      %v2525 = vpop.f32.mrf.mxu0
      %v2526 = vpop.f32.mrf.mxu0
      %v2527 = vadd.f32 0.0, %v2526
      %v2528 = vpop.f32.mrf.mxu0
      %2529 = vmatprep.mubr.bf16.mxu0 0
      %2530 = vmatmul.mubr.bf16.gmra.mxu0 %v1651
      %v2531 = vpop.f32.mrf.mxu0
      %v2532 = vadd.f32 0.0, %v2531
      %v2533 = vpop.f32.mrf.mxu0
      %v2534 = vpop.f32.mrf.mxu0
      %v2535 = vadd.f32 0.0, %v2534
      %v2536 = vpop.f32.mrf.mxu0
      %2537 = vmatprep.mubr.bf16.mxu0 0
      %2538 = vmatmul.mubr.bf16.gmra.mxu0 %v1654
      %v2539 = vpop.f32.mrf.mxu0
      %v2540 = vadd.f32 0.0, %v2539
      %v2541 = vpop.f32.mrf.mxu0
      %v2542 = vpop.f32.mrf.mxu0
      %v2543 = vadd.f32 0.0, %v2542
      %v2544 = vpop.f32.mrf.mxu0
      %2545 = vmatprep.mubr.bf16.mxu0 0
      %2546 = vmatmul.mubr.bf16.gmra.mxu0 %v1657
      %v2547 = vpop.f32.mrf.mxu0
      %v2548 = vadd.f32 0.0, %v2547
      %v2549 = vpop.f32.mrf.mxu0
      %v2550 = vpop.f32.mrf.mxu0
      %v2551 = vadd.f32 0.0, %v2550
      %v2552 = vpop.f32.mrf.mxu0
      %2553 = vmatprep.mubr.bf16.mxu0 0
      %2554 = vmatmul.mubr.bf16.gmra.mxu0 %v1660
      %v2555 = vpop.f32.mrf.mxu0
      %v2556 = vadd.f32 0.0, %v2555
      %v2557 = vpop.f32.mrf.mxu0
      %v2558 = vpop.f32.mrf.mxu0
      %v2559 = vadd.f32 0.0, %v2558
      %v2560 = vpop.f32.mrf.mxu0
      %2561 = vmatprep.mubr.bf16.mxu0 0
      %2562 = vmatmul.mubr.bf16.gmra.mxu0 %v1663
      %v2563 = vpop.f32.mrf.mxu0
      %v2564 = vadd.f32 0.0, %v2563
      %v2565 = vpop.f32.mrf.mxu0
      %v2566 = vpop.f32.mrf.mxu0
      %v2567 = vadd.f32 0.0, %v2566
      %v2568 = vpop.f32.mrf.mxu0
      %2569 = vmatprep.mubr.bf16.mxu0 0
      %2570 = vmatmul.mubr.bf16.gmra.mxu0 %v1666
      %v2571 = vpop.f32.mrf.mxu0
      %v2572 = vadd.f32 0.0, %v2571
      %v2573 = vpop.f32.mrf.mxu0
      %v2574 = vpop.f32.mrf.mxu0
      %v2575 = vadd.f32 0.0, %v2574
      %v2576 = vpop.f32.mrf.mxu0
      %2577 = vmatprep.mubr.bf16.mxu0 0
      %2578 = vmatmul.mubr.bf16.gmra.mxu0 %v1669
      %v2579 = vpop.f32.mrf.mxu0
      %v2580 = vadd.f32 0.0, %v2579
      %v2581 = vpop.f32.mrf.mxu0
      %v2582 = vpop.f32.mrf.mxu0
      %v2583 = vadd.f32 0.0, %v2582
      %v2584 = vpop.f32.mrf.mxu0
      %2585 = vmatprep.mubr.bf16.mxu0 0
      %2586 = vmatmul.mubr.bf16.gmra.mxu0 %v1672
      %v2587 = vpop.f32.mrf.mxu0
      %v2588 = vadd.f32 0.0, %v2587
      %v2589 = vpop.f32.mrf.mxu0
      %v2590 = vpop.f32.mrf.mxu0
      %v2591 = vadd.f32 0.0, %v2590
      %v2592 = vpop.f32.mrf.mxu0
      %2593 = vmatprep.mubr.bf16.mxu0 0
      %2594 = vmatmul.mubr.bf16.gmra.mxu0 %v1675
      %v2595 = vpop.f32.mrf.mxu0
      %v2596 = vadd.f32 0.0, %v2595
      %v2597 = vpop.f32.mrf.mxu0
      %v2598 = vpop.f32.mrf.mxu0
      %v2599 = vadd.f32 0.0, %v2598
      %v2600 = vpop.f32.mrf.mxu0
      %2601 = vmatprep.mubr.bf16.mxu0 0
      %2602 = vmatmul.mubr.bf16.gmra.mxu0 %v1678
      %v2603 = vpop.f32.mrf.mxu0
      %v2604 = vadd.f32 0.0, %v2603
      %v2605 = vpop.f32.mrf.mxu0
      %v2606 = vpop.f32.mrf.mxu0
      %v2607 = vadd.f32 0.0, %v2606
      %v2608 = vpop.f32.mrf.mxu0
      %2609 = vmatprep.mubr.bf16.mxu0 0
      %2610 = vmatmul.mubr.bf16.gmra.mxu0 %v1681
      %v2611 = vpop.f32.mrf.mxu0
      %v2612 = vadd.f32 0.0, %v2611
      %v2613 = vpop.f32.mrf.mxu0
      %v2614 = vpop.f32.mrf.mxu0
      %v2615 = vadd.f32 0.0, %v2614
      %v2616 = vpop.f32.mrf.mxu0
      %2617 = vmatprep.mubr.bf16.mxu0 0
      %2618 = vmatmul.mubr.bf16.gmra.mxu0 %v1684
      %v2619 = vpop.f32.mrf.mxu0
      %v2620 = vadd.f32 0.0, %v2619
      %v2621 = vpop.f32.mrf.mxu0
      %v2622 = vpop.f32.mrf.mxu0
      %v2623 = vadd.f32 0.0, %v2622
      %v2624 = vpop.f32.mrf.mxu0
      %2625 = vmatprep.mubr.bf16.mxu0 0
      %2626 = vmatmul.mubr.bf16.gmra.mxu0 %v1687
      %v2627 = vpop.f32.mrf.mxu0
      %v2628 = vadd.f32 0.0, %v2627
      %v2629 = vpop.f32.mrf.mxu0
      %v2630 = vpop.f32.mrf.mxu0
      %v2631 = vadd.f32 0.0, %v2630
      %v2632 = vpop.f32.mrf.mxu0
      %2633 = vmatprep.mubr.bf16.mxu0 0
      %2634 = vmatmul.mubr.bf16.gmra.mxu0 %v1690
      %v2635 = vpop.f32.mrf.mxu0
      %v2636 = vadd.f32 0.0, %v2635
      %v2637 = vpop.f32.mrf.mxu0
      %v2638 = vpop.f32.mrf.mxu0
      %v2639 = vadd.f32 0.0, %v2638
      %v2640 = vpop.f32.mrf.mxu0
      %2641 = vmatprep.mubr.bf16.mxu0 0
      %2642 = vmatmul.mubr.bf16.gmra.mxu0 %v1693
      %v2643 = vpop.f32.mrf.mxu0
      %v2644 = vadd.f32 0.0, %v2643
      %v2645 = vpop.f32.mrf.mxu0
      %v2646 = vpop.f32.mrf.mxu0
      %v2647 = vadd.f32 0.0, %v2646
      %v2648 = vpop.f32.mrf.mxu0
      %2649 = vmatprep.mubr.bf16.mxu0 0
      %2650 = vmatmul.mubr.bf16.gmra.mxu0 %v1696
      %v2651 = vpop.f32.mrf.mxu0
      %v2652 = vadd.f32 0.0, %v2651
      %v2653 = vpop.f32.mrf.mxu0
      %v2654 = vpop.f32.mrf.mxu0
      %v2655 = vadd.f32 0.0, %v2654
      %v2656 = vpop.f32.mrf.mxu0
      %2657 = vmatprep.mubr.bf16.mxu0 0
      %2658 = vmatmul.mubr.bf16.gmra.mxu0 %v1699
      %v2659 = vpop.f32.mrf.mxu0
      %v2660 = vadd.f32 0.0, %v2659
      %v2661 = vpop.f32.mrf.mxu0
      %v2662 = vpop.f32.mrf.mxu0
      %v2663 = vadd.f32 0.0, %v2662
      %v2664 = vpop.f32.mrf.mxu0
      %2665 = vmatprep.mubr.bf16.mxu0 0
      %2666 = vmatmul.mubr.bf16.gmra.mxu0 %v1702
      %v2667 = vpop.f32.mrf.mxu0
      %v2668 = vadd.f32 0.0, %v2667
      %v2669 = vpop.f32.mrf.mxu0
      %v2670 = vpop.f32.mrf.mxu0
      %v2671 = vadd.f32 0.0, %v2670
      %v2672 = vpop.f32.mrf.mxu0
      %2673 = vmatprep.mubr.bf16.mxu0 0
      %2674 = vmatmul.mubr.bf16.gmra.mxu0 %v1705
      %v2675 = vpop.f32.mrf.mxu0
      %v2676 = vadd.f32 0.0, %v2675
      %v2677 = vpop.f32.mrf.mxu0
      %v2678 = vpop.f32.mrf.mxu0
      %v2679 = vadd.f32 0.0, %v2678
      %v2680 = vpop.f32.mrf.mxu0
      %2681 = vmatprep.mubr.bf16.mxu0 0
      %2682 = vmatmul.mubr.bf16.gmra.mxu0 %v1708
      %v2683 = vpop.f32.mrf.mxu0
      %v2684 = vadd.f32 0.0, %v2683
      %v2685 = vpop.f32.mrf.mxu0
      %v2686 = vpop.f32.mrf.mxu0
      %v2687 = vadd.f32 0.0, %v2686
      %v2688 = vpop.f32.mrf.mxu0
      %2689 = vmatprep.mubr.bf16.mxu0 0
      %2690 = vmatmul.mubr.bf16.gmra.mxu0 %v1711
      %v2691 = vpop.f32.mrf.mxu0
      %v2692 = vadd.f32 0.0, %v2691
      %v2693 = vpop.f32.mrf.mxu0
      %v2694 = vpop.f32.mrf.mxu0
      %v2695 = vadd.f32 0.0, %v2694
      %v2696 = vpop.f32.mrf.mxu0
      %2697 = vmatprep.mubr.bf16.mxu0 0
      %2698 = vmatmul.mubr.bf16.gmra.mxu0 %v1714
      %v2699 = vpop.f32.mrf.mxu0
      %v2700 = vadd.f32 0.0, %v2699
      %v2701 = vpop.f32.mrf.mxu0
      %v2702 = vpop.f32.mrf.mxu0
      %v2703 = vadd.f32 0.0, %v2702
      %v2704 = vpop.f32.mrf.mxu0
      %2705 = vmatprep.mubr.bf16.mxu0 0
      %2706 = vmatmul.mubr.bf16.gmra.mxu0 %v1717
      %v2707 = vpop.f32.mrf.mxu0
      %v2708 = vadd.f32 0.0, %v2707
      %v2709 = vpop.f32.mrf.mxu0
      %v2710 = vpop.f32.mrf.mxu0
      %v2711 = vadd.f32 0.0, %v2710
      %v2712 = vpop.f32.mrf.mxu0
      %2713 = vmatprep.mubr.bf16.mxu0 0
      %2714 = vmatmul.mubr.bf16.gmra.mxu0 %v1720
      %v2715 = vpop.f32.mrf.mxu0
      %v2716 = vadd.f32 0.0, %v2715
      %v2717 = vpop.f32.mrf.mxu0
      %v2718 = vpop.f32.mrf.mxu0
      %v2719 = vadd.f32 0.0, %v2718
      %v2720 = vpop.f32.mrf.mxu0
      %2721 = vmatprep.mubr.bf16.mxu0 0
      %2722 = vmatmul.mubr.bf16.gmra.mxu0 %v1723
      %v2723 = vpop.f32.mrf.mxu0
      %v2724 = vadd.f32 0.0, %v2723
      %v2725 = vpop.f32.mrf.mxu0
      %v2726 = vpop.f32.mrf.mxu0
      %v2727 = vadd.f32 0.0, %v2726
      %v2728 = vpop.f32.mrf.mxu0
      %2729 = vmatprep.mubr.bf16.mxu0 0
      %2730 = vmatmul.mubr.bf16.gmra.mxu0 %v1726
      %v2731 = vpop.f32.mrf.mxu0
      %v2732 = vadd.f32 0.0, %v2731
      %v2733 = vpop.f32.mrf.mxu0
      %v2734 = vpop.f32.mrf.mxu0
      %v2735 = vadd.f32 0.0, %v2734
      %v2736 = vpop.f32.mrf.mxu0
      %2737 = vmatprep.mubr.bf16.mxu0 0
      %2738 = vmatmul.mubr.bf16.gmra.mxu0 %v1729
      %v2739 = vpop.f32.mrf.mxu0
      %v2740 = vadd.f32 0.0, %v2739
      %v2741 = vpop.f32.mrf.mxu0
      %v2742 = vpop.f32.mrf.mxu0
      %v2743 = vadd.f32 0.0, %v2742
      %v2744 = vpop.f32.mrf.mxu0
      %2745 = vmatprep.mubr.bf16.mxu0 0
      %2746 = vmatmul.mubr.bf16.gmra.mxu0 %v1732
      %v2747 = vpop.f32.mrf.mxu0
      %v2748 = vadd.f32 0.0, %v2747
      %v2749 = vpop.f32.mrf.mxu0
      %v2750 = vpop.f32.mrf.mxu0
      %v2751 = vadd.f32 0.0, %v2750
      %v2752 = vpop.f32.mrf.mxu0
      %2753 = vmatprep.mubr.bf16.mxu0 0
      %2754 = vmatmul.mubr.bf16.gmra.mxu0 %v1735
      %v2755 = vpop.f32.mrf.mxu0
      %v2756 = vadd.f32 0.0, %v2755
      %v2757 = vpop.f32.mrf.mxu0
      %v2758 = vpop.f32.mrf.mxu0
      %v2759 = vadd.f32 0.0, %v2758
      %v2760 = vpop.f32.mrf.mxu0
      %2761 = vmatprep.mubr.bf16.mxu0 0
      %2762 = vmatmul.mubr.bf16.gmra.mxu0 %v1738
      %v2763 = vpop.f32.mrf.mxu0
      %v2764 = vadd.f32 0.0, %v2763
      %v2765 = vpop.f32.mrf.mxu0
      %v2766 = vpop.f32.mrf.mxu0
      %v2767 = vadd.f32 0.0, %v2766
      %v2768 = vpop.f32.mrf.mxu0
      %2769 = vmatprep.mubr.bf16.mxu0 0
      %2770 = vmatmul.mubr.bf16.gmra.mxu0 %v1741
      %v2771 = vpop.f32.mrf.mxu0
      %v2772 = vadd.f32 0.0, %v2771
      %v2773 = vpop.f32.mrf.mxu0
      %v2774 = vpop.f32.mrf.mxu0
      %v2775 = vadd.f32 0.0, %v2774
      %v2776 = vpop.f32.mrf.mxu0
      %2777 = vmatprep.mubr.bf16.mxu0 0
      %2778 = vmatmul.mubr.bf16.gmra.mxu0 %v1744
      %v2779 = vpop.f32.mrf.mxu0
      %v2780 = vadd.f32 0.0, %v2779
      %v2781 = vpop.f32.mrf.mxu0
      %v2782 = vpop.f32.mrf.mxu0
      %v2783 = vadd.f32 0.0, %v2782
      %v2784 = vpop.f32.mrf.mxu0
      %2785 = vmatprep.mubr.bf16.mxu0 0
      %2786 = vmatmul.mubr.bf16.gmra.mxu0 %v1747
      %v2787 = vpop.f32.mrf.mxu0
      %v2788 = vadd.f32 0.0, %v2787
      %v2789 = vpop.f32.mrf.mxu0
      %v2790 = vpop.f32.mrf.mxu0
      %v2791 = vadd.f32 0.0, %v2790
      %v2792 = vpop.f32.mrf.mxu0
      %2793 = vmatprep.mubr.bf16.mxu0 0
      %2794 = vmatmul.mubr.bf16.gmra.mxu0 %v1750
      %v2795 = vpop.f32.mrf.mxu0
      %v2796 = vadd.f32 0.0, %v2795
      %v2797 = vpop.f32.mrf.mxu0
      %v2798 = vpop.f32.mrf.mxu0
      %v2799 = vadd.f32 0.0, %v2798
      %v2800 = vpop.f32.mrf.mxu0
      %2801 = vmatprep.mubr.bf16.mxu0 0
      %2802 = vmatmul.mubr.bf16.gmra.mxu0 %v1753
      %v2803 = vpop.f32.mrf.mxu0
      %v2804 = vadd.f32 0.0, %v2803
      %v2805 = vpop.f32.mrf.mxu0
      %v2806 = vpop.f32.mrf.mxu0
      %v2807 = vadd.f32 0.0, %v2806
      %v2808 = vpop.f32.mrf.mxu0
      %2809 = vmatprep.mubr.bf16.mxu0 0
      %2810 = vmatmul.mubr.bf16.gmra.mxu0 %v1756
      %v2811 = vpop.f32.mrf.mxu0
      %v2812 = vadd.f32 0.0, %v2811
      %v2813 = vpop.f32.mrf.mxu0
      %v2814 = vpop.f32.mrf.mxu0
      %v2815 = vadd.f32 0.0, %v2814
      %v2816 = vpop.f32.mrf.mxu0
      %2817 = vmatprep.mubr.bf16.mxu0 0
      %2818 = vmatmul.mubr.bf16.gmra.mxu0 %v1759
      %v2819 = vpop.f32.mrf.mxu0
      %v2820 = vadd.f32 0.0, %v2819
      %v2821 = vpop.f32.mrf.mxu0
      %v2822 = vpop.f32.mrf.mxu0
      %v2823 = vadd.f32 0.0, %v2822
      %v2824 = vpop.f32.mrf.mxu0
      %2825 = vmatprep.mubr.bf16.mxu0 0
      %2826 = vmatmul.mubr.bf16.gmra.mxu0 %v1762
      %v2827 = vpop.f32.mrf.mxu0
      %v2828 = vadd.f32 0.0, %v2827
      %v2829 = vpop.f32.mrf.mxu0
      %v2830 = vpop.f32.mrf.mxu0
      %v2831 = vadd.f32 0.0, %v2830
      %v2832 = vpop.f32.mrf.mxu0
      %2833 = vmatprep.mubr.bf16.mxu0 0
      %2834 = vmatmul.mubr.bf16.gmra.mxu0 %v1765
      %v2835 = vpop.f32.mrf.mxu0
      %v2836 = vadd.f32 0.0, %v2835
      %v2837 = vpop.f32.mrf.mxu0
      %v2838 = vpop.f32.mrf.mxu0
      %v2839 = vadd.f32 0.0, %v2838
      %v2840 = vpop.f32.mrf.mxu0
      %2841 = vmatprep.mubr.bf16.mxu0 0
      %2842 = vmatmul.mubr.bf16.gmra.mxu0 %v1768
      %v2843 = vpop.f32.mrf.mxu0
      %v2844 = vadd.f32 0.0, %v2843
      %v2845 = vpop.f32.mrf.mxu0
      %v2846 = vpop.f32.mrf.mxu0
      %v2847 = vadd.f32 0.0, %v2846
      %v2848 = vpop.f32.mrf.mxu0
      %2849 = vmatprep.mubr.bf16.mxu0 0
      %2850 = vmatmul.mubr.bf16.gmra.mxu0 %v1771
      %v2851 = vpop.f32.mrf.mxu0
      %v2852 = vadd.f32 0.0, %v2851
      %v2853 = vpop.f32.mrf.mxu0
      %v2854 = vpop.f32.mrf.mxu0
      %v2855 = vadd.f32 0.0, %v2854
      %v2856 = vpop.f32.mrf.mxu0
      %2857 = vmatprep.mubr.bf16.mxu0 0
      %2858 = vmatmul.mubr.bf16.gmra.mxu0 %v1774
      %v2859 = vpop.f32.mrf.mxu0
      %v2860 = vadd.f32 0.0, %v2859
      %v2861 = vpop.f32.mrf.mxu0
      %v2862 = vpop.f32.mrf.mxu0
      %v2863 = vadd.f32 0.0, %v2862
      %v2864 = vpop.f32.mrf.mxu0
      %2865 = vmatprep.mubr.bf16.mxu0 0
      %2866 = vmatmul.mubr.bf16.gmra.mxu0 %v1777
      %v2867 = vpop.f32.mrf.mxu0
      %v2868 = vadd.f32 0.0, %v2867
      %v2869 = vpop.f32.mrf.mxu0
      %v2870 = vpop.f32.mrf.mxu0
      %v2871 = vadd.f32 0.0, %v2870
      %v2872 = vpop.f32.mrf.mxu0
      %2873 = vmatprep.mubr.bf16.mxu0 0
      %2874 = vmatmul.mubr.bf16.gmra.mxu0 %v1780
      %v2875 = vpop.f32.mrf.mxu0
      %v2876 = vadd.f32 0.0, %v2875
      %v2877 = vpop.f32.mrf.mxu0
      %v2878 = vpop.f32.mrf.mxu0
      %v2879 = vadd.f32 0.0, %v2878
      %v2880 = vpop.f32.mrf.mxu0
      %2881 = vmatprep.mubr.bf16.mxu0 0
      %2882 = vmatmul.mubr.bf16.gmra.mxu0 %v1783
      %v2883 = vpop.f32.mrf.mxu0
      %v2884 = vadd.f32 0.0, %v2883
      %v2885 = vpop.f32.mrf.mxu0
      %v2886 = vpop.f32.mrf.mxu0
      %v2887 = vadd.f32 0.0, %v2886
      %v2888 = vpop.f32.mrf.mxu0
      %2889 = vmatprep.mubr.bf16.mxu0 0
      %2890 = vmatmul.mubr.bf16.gmra.mxu0 %v1786
      %v2891 = vpop.f32.mrf.mxu0
      %v2892 = vadd.f32 0.0, %v2891
      %v2893 = vpop.f32.mrf.mxu0
      %v2894 = vpop.f32.mrf.mxu0
      %v2895 = vadd.f32 0.0, %v2894
      %v2896 = vpop.f32.mrf.mxu0
      %2897 = vmatprep.mubr.bf16.mxu0 0
      %2898 = vmatmul.mubr.bf16.gmra.mxu0 %v1789
      %v2899 = vpop.f32.mrf.mxu0
      %v2900 = vadd.f32 0.0, %v2899
      %v2901 = vpop.f32.mrf.mxu0
      %v2902 = vpop.f32.mrf.mxu0
      %v2903 = vadd.f32 0.0, %v2902
      %v2904 = vpop.f32.mrf.mxu0
      %2905 = vmatprep.mubr.bf16.mxu0 0
      %2906 = vmatmul.mubr.bf16.gmra.mxu0 %v1792
      %v2907 = vpop.f32.mrf.mxu0
      %v2908 = vadd.f32 0.0, %v2907
      %v2909 = vpop.f32.mrf.mxu0
      %v2910 = vpop.f32.mrf.mxu0
      %v2911 = vadd.f32 0.0, %v2910
      %v2912 = vpop.f32.mrf.mxu0
      %2913 = vmatprep.mubr.bf16.mxu0 0
      %2914 = vmatmul.mubr.bf16.gmra.mxu0 %v1795
      %v2915 = vpop.f32.mrf.mxu0
      %v2916 = vadd.f32 0.0, %v2915
      %v2917 = vpop.f32.mrf.mxu0
      %v2918 = vpop.f32.mrf.mxu0
      %v2919 = vadd.f32 0.0, %v2918
      %v2920 = vpop.f32.mrf.mxu0
      %2921 = vmatprep.mubr.bf16.mxu0 0
      %2922 = vmatmul.mubr.bf16.gmra.mxu0 %v1798
      %v2923 = vpop.f32.mrf.mxu0
      %v2924 = vadd.f32 0.0, %v2923
      %v2925 = vpop.f32.mrf.mxu0
      %v2926 = vpop.f32.mrf.mxu0
      %v2927 = vadd.f32 0.0, %v2926
      %v2928 = vpop.f32.mrf.mxu0
      %2929 = vmatprep.mubr.bf16.mxu0 0
      %2930 = vmatmul.mubr.bf16.gmra.mxu0 %v1801
      %v2931 = vpop.f32.mrf.mxu0
      %v2932 = vadd.f32 0.0, %v2931
      %v2933 = vpop.f32.mrf.mxu0
      %v2934 = vpop.f32.mrf.mxu0
      %v2935 = vadd.f32 0.0, %v2934
      %v2936 = vpop.f32.mrf.mxu0
      %2937 = vmatprep.mubr.bf16.mxu0 0
      %2938 = vmatmul.mubr.bf16.gmra.mxu0 %v1804
      %v2939 = vpop.f32.mrf.mxu0
      %v2940 = vadd.f32 0.0, %v2939
      %v2941 = vpop.f32.mrf.mxu0
      %v2942 = vpop.f32.mrf.mxu0
      %v2943 = vadd.f32 0.0, %v2942
      %v2944 = vpop.f32.mrf.mxu0
      %2945 = vmatprep.mubr.bf16.mxu0 0
      %2946 = vmatmul.mubr.bf16.gmra.mxu0 %v1807
      %v2947 = vpop.f32.mrf.mxu0
      %v2948 = vadd.f32 0.0, %v2947
      %v2949 = vpop.f32.mrf.mxu0
      %v2950 = vpop.f32.mrf.mxu0
      %v2951 = vadd.f32 0.0, %v2950
      %v2952 = vpop.f32.mrf.mxu0
      %2953 = vmatprep.mubr.bf16.mxu0 0
      %2954 = vmatmul.mubr.bf16.gmra.mxu0 %v1810
      %v2955 = vpop.f32.mrf.mxu0
      %v2956 = vadd.f32 0.0, %v2955
      %v2957 = vpop.f32.mrf.mxu0
      %v2958 = vpop.f32.mrf.mxu0
      %v2959 = vadd.f32 0.0, %v2958
      %v2960 = vpop.f32.mrf.mxu0
      %2961 = vmatprep.mubr.bf16.mxu0 0
      %2962 = vmatmul.mubr.bf16.gmra.mxu0 %v1813
      %v2963 = vpop.f32.mrf.mxu0
      %v2964 = vadd.f32 0.0, %v2963
      %v2965 = vpop.f32.mrf.mxu0
      %v2966 = vpop.f32.mrf.mxu0
      %v2967 = vadd.f32 0.0, %v2966
      %v2968 = vpop.f32.mrf.mxu0
      %2969 = vmatprep.mubr.bf16.mxu0 0
      %2970 = vmatmul.mubr.bf16.gmra.mxu0 %v1816
      %v2971 = vpop.f32.mrf.mxu0
      %v2972 = vadd.f32 0.0, %v2971
      %v2973 = vpop.f32.mrf.mxu0
      %v2974 = vpop.f32.mrf.mxu0
      %v2975 = vadd.f32 0.0, %v2974
      %v2976 = vpop.f32.mrf.mxu0
      %2977 = vmatprep.mubr.bf16.mxu0 0
      %2978 = vmatmul.mubr.bf16.gmra.mxu0 %v1819
      %v2979 = vpop.f32.mrf.mxu0
      %v2980 = vadd.f32 0.0, %v2979
      %v2981 = vpop.f32.mrf.mxu0
      %v2982 = vpop.f32.mrf.mxu0
      %v2983 = vadd.f32 0.0, %v2982
      %v2984 = vpop.f32.mrf.mxu0
      %2985 = vmatprep.mubr.bf16.mxu0 0
      %2986 = vmatmul.mubr.bf16.gmra.mxu0 %v1822
      %v2987 = vpop.f32.mrf.mxu0
      %v2988 = vadd.f32 0.0, %v2987
      %v2989 = vpop.f32.mrf.mxu0
      %v2990 = vpop.f32.mrf.mxu0
      %v2991 = vadd.f32 0.0, %v2990
      %v2992 = vpop.f32.mrf.mxu0
      %2993 = vmatprep.mubr.bf16.mxu0 0
      %2994 = vmatmul.mubr.bf16.gmra.mxu0 %v1825
      %v2995 = vpop.f32.mrf.mxu0
      %v2996 = vadd.f32 0.0, %v2995
      %v2997 = vpop.f32.mrf.mxu0
      %v2998 = vpop.f32.mrf.mxu0
      %v2999 = vadd.f32 0.0, %v2998
      %v3000 = vpop.f32.mrf.mxu0
      %3001 = vmatprep.mubr.bf16.mxu0 0
      %3002 = vmatmul.mubr.bf16.gmra.mxu0 %v1828
      %v3003 = vpop.f32.mrf.mxu0
      %v3004 = vadd.f32 0.0, %v3003
      %v3005 = vpop.f32.mrf.mxu0
      %v3006 = vpop.f32.mrf.mxu0
      %v3007 = vadd.f32 0.0, %v3006
      %v3008 = vpop.f32.mrf.mxu0
      %3009 = vmatprep.mubr.bf16.mxu0 0
      %3010 = vmatmul.mubr.bf16.gmra.mxu0 %v1831
      %v3011 = vpop.f32.mrf.mxu0
      %v3012 = vadd.f32 0.0, %v3011
      %v3013 = vpop.f32.mrf.mxu0
      %v3014 = vpop.f32.mrf.mxu0
      %v3015 = vadd.f32 0.0, %v3014
      %v3016 = vpop.f32.mrf.mxu0
      %3017 = vmatprep.mubr.bf16.mxu0 0
      %3018 = vmatmul.mubr.bf16.gmra.mxu0 %v1834
      %v3019 = vpop.f32.mrf.mxu0
      %v3020 = vadd.f32 0.0, %v3019
      %v3021 = vpop.f32.mrf.mxu0
      %v3022 = vpop.f32.mrf.mxu0
      %v3023 = vadd.f32 0.0, %v3022
      %v3024 = vpop.f32.mrf.mxu0
      %3025 = vmatprep.mubr.bf16.mxu0 0
      %3026 = vmatmul.mubr.bf16.gmra.mxu0 %v1837
      %v3027 = vpop.f32.mrf.mxu0
      %v3028 = vadd.f32 0.0, %v3027
      %v3029 = vpop.f32.mrf.mxu0
      %v3030 = vpop.f32.mrf.mxu0
      %v3031 = vadd.f32 0.0, %v3030
      %v3032 = vpop.f32.mrf.mxu0
      %3033 = vmatprep.mubr.bf16.mxu0 0
      %3034 = vmatmul.mubr.bf16.gmra.mxu0 %v1840
      %v3035 = vpop.f32.mrf.mxu0
      %v3036 = vadd.f32 0.0, %v3035
      %v3037 = vpop.f32.mrf.mxu0
      %v3038 = vpop.f32.mrf.mxu0
      %v3039 = vadd.f32 0.0, %v3038
      %v3040 = vpop.f32.mrf.mxu0
      %3041 = vmatprep.mubr.bf16.mxu0 0
      %3042 = vmatmul.mubr.bf16.gmra.mxu0 %v1843
      %v3043 = vpop.f32.mrf.mxu0
      %v3044 = vadd.f32 0.0, %v3043
      %v3045 = vpop.f32.mrf.mxu0
      %v3046 = vpop.f32.mrf.mxu0
      %v3047 = vadd.f32 0.0, %v3046
      %v3048 = vpop.f32.mrf.mxu0
      %3049 = vmatprep.mubr.bf16.mxu0 0
      %3050 = vmatmul.mubr.bf16.gmra.mxu0 %v1846
      %v3051 = vpop.f32.mrf.mxu0
      %v3052 = vadd.f32 0.0, %v3051
      %v3053 = vpop.f32.mrf.mxu0
      %v3054 = vpop.f32.mrf.mxu0
      %v3055 = vadd.f32 0.0, %v3054
      %v3056 = vpop.f32.mrf.mxu0
      %3057 = vmatprep.mubr.bf16.mxu0 0
      %3058 = vmatmul.mubr.bf16.gmra.mxu0 %v1849
      %v3059 = vpop.f32.mrf.mxu0
      %v3060 = vadd.f32 0.0, %v3059
      %v3061 = vpop.f32.mrf.mxu0
      %v3062 = vpop.f32.mrf.mxu0
      %v3063 = vadd.f32 0.0, %v3062
      %v3064 = vpop.f32.mrf.mxu0
      %3065 = vmatprep.mubr.bf16.mxu0 0
      %3066 = vmatmul.mubr.bf16.gmra.mxu0 %v1852
      %v3067 = vpop.f32.mrf.mxu0
      %v3068 = vadd.f32 0.0, %v3067
      %v3069 = vpop.f32.mrf.mxu0
      %v3070 = vpop.f32.mrf.mxu0
      %v3071 = vadd.f32 0.0, %v3070
      %v3072 = vpop.f32.mrf.mxu0
      %3073 = vmatprep.mubr.bf16.mxu0 0
      %3074 = vmatmul.mubr.bf16.gmra.mxu0 %v1855
      %v3075 = vpop.f32.mrf.mxu0
      %v3076 = vadd.f32 0.0, %v3075
      %v3077 = vpop.f32.mrf.mxu0
      %v3078 = vpop.f32.mrf.mxu0
      %v3079 = vadd.f32 0.0, %v3078
      %v3080 = vpop.f32.mrf.mxu0
      %3081 = vmatprep.mubr.bf16.mxu0 0
      %3082 = vmatmul.mubr.bf16.gmra.mxu0 %v1858
      %v3083 = vpop.f32.mrf.mxu0
      %v3084 = vadd.f32 0.0, %v3083
      %v3085 = vpop.f32.mrf.mxu0
      %v3086 = vpop.f32.mrf.mxu0
      %v3087 = vadd.f32 0.0, %v3086
      %v3088 = vpop.f32.mrf.mxu0
      %3089 = vmatprep.mubr.bf16.mxu0 0
      %3090 = vmatmul.mubr.bf16.gmra.mxu0 %v1861
      %v3091 = vpop.f32.mrf.mxu0
      %v3092 = vadd.f32 0.0, %v3091
      %v3093 = vpop.f32.mrf.mxu0
      %v3094 = vpop.f32.mrf.mxu0
      %v3095 = vadd.f32 0.0, %v3094
      %v3096 = vpop.f32.mrf.mxu0
      %3097 = vmatprep.mubr.bf16.mxu0 0
      %3098 = vmatmul.mubr.bf16.gmra.mxu0 %v1864
      %v3099 = vpop.f32.mrf.mxu0
      %v3100 = vadd.f32 0.0, %v3099
      %v3101 = vpop.f32.mrf.mxu0
      %v3102 = vpop.f32.mrf.mxu0
      %v3103 = vadd.f32 0.0, %v3102
      %v3104 = vpop.f32.mrf.mxu0
      %3105 = vmatprep.mubr.bf16.mxu0 0
      %3106 = vmatmul.mubr.bf16.gmra.mxu0 %v1867
      %v3107 = vpop.f32.mrf.mxu0
      %v3108 = vadd.f32 0.0, %v3107
      %v3109 = vpop.f32.mrf.mxu0
      %v3110 = vpop.f32.mrf.mxu0
      %v3111 = vadd.f32 0.0, %v3110
      %v3112 = vpop.f32.mrf.mxu0
      %3113 = vmatprep.mubr.bf16.mxu0 0
      %3114 = vmatmul.mubr.bf16.gmra.mxu0 %v1870
      %v3115 = vpop.f32.mrf.mxu0
      %v3116 = vadd.f32 0.0, %v3115
      %v3117 = vpop.f32.mrf.mxu0
      %v3118 = vpop.f32.mrf.mxu0
      %v3119 = vadd.f32 0.0, %v3118
      %v3120 = vpop.f32.mrf.mxu0
      %3121 = vmatprep.mubr.bf16.mxu0 0
      %3122 = vmatmul.mubr.bf16.gmra.mxu0 %v1873
      %v3123 = vpop.f32.mrf.mxu0
      %v3124 = vadd.f32 0.0, %v3123
      %v3125 = vpop.f32.mrf.mxu0
      %v3126 = vpop.f32.mrf.mxu0
      %v3127 = vadd.f32 0.0, %v3126
      %v3128 = vpop.f32.mrf.mxu0
      %3129 = vmatprep.mubr.bf16.mxu0 0
      %3130 = vmatmul.mubr.bf16.gmra.mxu0 %v1876
      %v3131 = vpop.f32.mrf.mxu0
      %v3132 = vadd.f32 0.0, %v3131
      %v3133 = vpop.f32.mrf.mxu0
      %v3134 = vpop.f32.mrf.mxu0
      %v3135 = vadd.f32 0.0, %v3134
      %v3136 = vpop.f32.mrf.mxu0
      %3137 = vmatprep.mubr.bf16.mxu0 0
      %3138 = vmatmul.mubr.bf16.gmra.mxu0 %v1879
      %v3139 = vpop.f32.mrf.mxu0
      %v3140 = vadd.f32 0.0, %v3139
      %v3141 = vpop.f32.mrf.mxu0
      %v3142 = vpop.f32.mrf.mxu0
      %v3143 = vadd.f32 0.0, %v3142
      %v3144 = vpop.f32.mrf.mxu0
      %3145 = vmatprep.mubr.bf16.mxu0 0
      %3146 = vmatmul.mubr.bf16.gmra.mxu0 %v1882
      %v3147 = vpop.f32.mrf.mxu0
      %v3148 = vadd.f32 0.0, %v3147
      %v3149 = vpop.f32.mrf.mxu0
      %v3150 = vpop.f32.mrf.mxu0
      %v3151 = vadd.f32 0.0, %v3150
      %v3152 = vpop.f32.mrf.mxu0
      %3153 = vmatprep.mubr.bf16.mxu0 0
      %3154 = vmatmul.mubr.bf16.gmra.mxu0 %v1885
      %v3155 = vpop.f32.mrf.mxu0
      %v3156 = vadd.f32 0.0, %v3155
      %v3157 = vpop.f32.mrf.mxu0
      %v3158 = vpop.f32.mrf.mxu0
      %v3159 = vadd.f32 0.0, %v3158
      %v3160 = vpop.f32.mrf.mxu0
      %3161 = vmatprep.mubr.bf16.mxu0 0
      %3162 = vmatmul.mubr.bf16.gmra.mxu0 %v1888
      %v3163 = vpop.f32.mrf.mxu0
      %v3164 = vadd.f32 0.0, %v3163
      %v3165 = vpop.f32.mrf.mxu0
      %v3166 = vpop.f32.mrf.mxu0
      %v3167 = vadd.f32 0.0, %v3166
      %v3168 = vpop.f32.mrf.mxu0
      %3169 = vmatprep.mubr.bf16.mxu0 0
      %3170 = vmatmul.mubr.bf16.gmra.mxu0 %v1891
      %v3171 = vpop.f32.mrf.mxu0
      %v3172 = vadd.f32 0.0, %v3171
      %v3173 = vpop.f32.mrf.mxu0
      %v3174 = vpop.f32.mrf.mxu0
      %v3175 = vadd.f32 0.0, %v3174
      %v3176 = vpop.f32.mrf.mxu0
      %3177 = vmatprep.mubr.bf16.mxu0 0
      %3178 = vmatmul.mubr.bf16.gmra.mxu0 %v1894
      %v3179 = vpop.f32.mrf.mxu0
      %v3180 = vadd.f32 0.0, %v3179
      %v3181 = vpop.f32.mrf.mxu0
      %v3182 = vpop.f32.mrf.mxu0
      %v3183 = vadd.f32 0.0, %v3182
      %v3184 = vpop.f32.mrf.mxu0
      %3185 = vmatprep.mubr.bf16.mxu0 0
      %3186 = vmatmul.mubr.bf16.gmra.mxu0 %v1897
      %v3187 = vpop.f32.mrf.mxu0
      %v3188 = vadd.f32 0.0, %v3187
      %v3189 = vpop.f32.mrf.mxu0
      %v3190 = vpop.f32.mrf.mxu0
      %v3191 = vadd.f32 0.0, %v3190
      %v3192 = vpop.f32.mrf.mxu0
      %3193 = vmatprep.mubr.bf16.mxu0 0
      %3194 = vmatmul.mubr.bf16.gmra.mxu0 %v1900
      %v3195 = vpop.f32.mrf.mxu0
      %v3196 = vadd.f32 0.0, %v3195
      %v3197 = vpop.f32.mrf.mxu0
      %v3198 = vpop.f32.mrf.mxu0
      %v3199 = vadd.f32 0.0, %v3198
      %v3200 = vpop.f32.mrf.mxu0
      %3201 = vmatprep.mubr.bf16.mxu0 0
      %3202 = vmatmul.mubr.bf16.gmra.mxu0 %v1903
      %v3203 = vpop.f32.mrf.mxu0
      %v3204 = vadd.f32 0.0, %v3203
      %v3205 = vpop.f32.mrf.mxu0
      %v3206 = vpop.f32.mrf.mxu0
      %v3207 = vadd.f32 0.0, %v3206
      %v3208 = vpop.f32.mrf.mxu0
      %3209 = vmatprep.mubr.bf16.mxu0 0
      %3210 = vmatmul.mubr.bf16.gmra.mxu0 %v1906
      %v3211 = vpop.f32.mrf.mxu0
      %v3212 = vadd.f32 0.0, %v3211
      %v3213 = vpop.f32.mrf.mxu0
      %v3214 = vpop.f32.mrf.mxu0
      %v3215 = vadd.f32 0.0, %v3214
      %v3216 = vpop.f32.mrf.mxu0
      %3217 = vmatprep.mubr.bf16.mxu0 0
      %3218 = vmatmul.mubr.bf16.gmra.mxu0 %v1909
      %v3219 = vpop.f32.mrf.mxu0
      %v3220 = vadd.f32 0.0, %v3219
      %v3221 = vpop.f32.mrf.mxu0
      %v3222 = vpop.f32.mrf.mxu0
      %v3223 = vadd.f32 0.0, %v3222
      %v3224 = vpop.f32.mrf.mxu0
      %3225 = vmatprep.mubr.bf16.mxu0 0
      %3226 = vmatmul.mubr.bf16.gmra.mxu0 %v1912
      %v3227 = vpop.f32.mrf.mxu0
      %v3228 = vadd.f32 0.0, %v3227
      %v3229 = vpop.f32.mrf.mxu0
      %v3230 = vpop.f32.mrf.mxu0
      %v3231 = vadd.f32 0.0, %v3230
      %v3232 = vpop.f32.mrf.mxu0
      %3233 = vmatprep.mubr.bf16.mxu0 0
      %3234 = vmatmul.mubr.bf16.gmra.mxu0 %v1915
      %v3235 = vpop.f32.mrf.mxu0
      %v3236 = vadd.f32 0.0, %v3235
      %v3237 = vpop.f32.mrf.mxu0
      %v3238 = vpop.f32.mrf.mxu0
      %v3239 = vadd.f32 0.0, %v3238
      %v3240 = vpop.f32.mrf.mxu0
      %3241 = vmatprep.mubr.bf16.mxu0 0
      %3242 = vmatmul.mubr.bf16.gmra.mxu0 %v1918
      %v3243 = vpop.f32.mrf.mxu0
      %v3244 = vadd.f32 0.0, %v3243
      %v3245 = vpop.f32.mrf.mxu0
      %v3246 = vpop.f32.mrf.mxu0
      %v3247 = vadd.f32 0.0, %v3246
      %v3248 = vpop.f32.mrf.mxu0
      %3249 = vmatprep.mubr.bf16.mxu0 0
      %3250 = vmatmul.mubr.bf16.gmra.mxu0 %v1921
      %v3251 = vpop.f32.mrf.mxu0
      %v3252 = vadd.f32 0.0, %v3251
      %v3253 = vpop.f32.mrf.mxu0
      %v3254 = vpop.f32.mrf.mxu0
      %v3255 = vadd.f32 0.0, %v3254
      %v3256 = vpop.f32.mrf.mxu0
      %3257 = vmatprep.mubr.bf16.mxu0 0
      %3258 = vmatmul.mubr.bf16.gmra.mxu0 %v1924
      %v3259 = vpop.f32.mrf.mxu0
      %v3260 = vadd.f32 0.0, %v3259
      %v3261 = vpop.f32.mrf.mxu0
      %v3262 = vpop.f32.mrf.mxu0
      %v3263 = vadd.f32 0.0, %v3262
      %v3264 = vpop.f32.mrf.mxu0
      %3265 = vmatprep.mubr.bf16.mxu0 0
      %3266 = vmatmul.mubr.bf16.gmra.mxu0 %v1927
      %v3267 = vpop.f32.mrf.mxu0
      %v3268 = vadd.f32 0.0, %v3267
      %v3269 = vpop.f32.mrf.mxu0
      %v3270 = vpop.f32.mrf.mxu0
      %v3271 = vadd.f32 0.0, %v3270
      %v3272 = vpop.f32.mrf.mxu0
      %3273 = vmatprep.mubr.bf16.mxu0 0
      %3274 = vmatmul.mubr.bf16.gmra.mxu0 %v1930
      %v3275 = vpop.f32.mrf.mxu0
      %v3276 = vadd.f32 0.0, %v3275
      %v3277 = vpop.f32.mrf.mxu0
      %v3278 = vpop.f32.mrf.mxu0
      %v3279 = vadd.f32 0.0, %v3278
      %v3280 = vpop.f32.mrf.mxu0
      %3281 = vmatprep.mubr.bf16.mxu0 0
      %3282 = vmatmul.mubr.bf16.gmra.mxu0 %v1933
      %v3283 = vpop.f32.mrf.mxu0
      %v3284 = vadd.f32 0.0, %v3283
      %v3285 = vpop.f32.mrf.mxu0
      %v3286 = vpop.f32.mrf.mxu0
      %v3287 = vadd.f32 0.0, %v3286
      %v3288 = vpop.f32.mrf.mxu0
      %3289 = vmatprep.mubr.bf16.mxu0 0
      %3290 = vmatmul.mubr.bf16.gmra.mxu0 %v1936
      %v3291 = vpop.f32.mrf.mxu0
      %v3292 = vadd.f32 0.0, %v3291
      %v3293 = vpop.f32.mrf.mxu0
      %v3294 = vpop.f32.mrf.mxu0
      %v3295 = vadd.f32 0.0, %v3294
      %v3296 = vpop.f32.mrf.mxu0
      %3297 = vmatprep.mubr.bf16.mxu0 0
      %3298 = vmatmul.mubr.bf16.gmra.mxu0 %v1939
      %v3299 = vpop.f32.mrf.mxu0
      %v3300 = vadd.f32 0.0, %v3299
      %v3301 = vpop.f32.mrf.mxu0
      %v3302 = vpop.f32.mrf.mxu0
      %v3303 = vadd.f32 0.0, %v3302
      %v3304 = vpop.f32.mrf.mxu0
      %3305 = vmatprep.mubr.bf16.mxu0 0
      %3306 = vmatmul.mubr.bf16.gmra.mxu0 %v1942
      %v3307 = vpop.f32.mrf.mxu0
      %v3308 = vadd.f32 0.0, %v3307
      %v3309 = vpop.f32.mrf.mxu0
      %v3310 = vpop.f32.mrf.mxu0
      %v3311 = vadd.f32 0.0, %v3310
      %v3312 = vpop.f32.mrf.mxu0
      %3313 = vmatprep.mubr.bf16.mxu0 0
      %3314 = vmatmul.mubr.bf16.gmra.mxu0 %v1945
      %v3315 = vpop.f32.mrf.mxu0
      %v3316 = vadd.f32 0.0, %v3315
      %v3317 = vpop.f32.mrf.mxu0
      %v3318 = vpop.f32.mrf.mxu0
      %v3319 = vadd.f32 0.0, %v3318
      %v3320 = vpop.f32.mrf.mxu0
      %3321 = vmatprep.mubr.bf16.mxu0 0
      %3322 = vmatmul.mubr.bf16.gmra.mxu0 %v1948
      %v3323 = vpop.f32.mrf.mxu0
      %v3324 = vadd.f32 0.0, %v3323
      %v3325 = vpop.f32.mrf.mxu0
      %v3326 = vpop.f32.mrf.mxu0
      %v3327 = vadd.f32 0.0, %v3326
      %v3328 = vpop.f32.mrf.mxu0
      %3329 = vmatprep.mubr.bf16.mxu0 0
      %3330 = vmatmul.mubr.bf16.gmra.mxu0 %v1951
      %v3331 = vpop.f32.mrf.mxu0
      %v3332 = vadd.f32 0.0, %v3331
      %v3333 = vpop.f32.mrf.mxu0
      %v3334 = vpop.f32.mrf.mxu0
      %v3335 = vadd.f32 0.0, %v3334
      %v3336 = vpop.f32.mrf.mxu0
      %3337 = vmatprep.mubr.bf16.mxu0 0
      %3338 = vmatmul.mubr.bf16.gmra.mxu0 %v1954
      %v3339 = vpop.f32.mrf.mxu0
      %v3340 = vadd.f32 0.0, %v3339
      %v3341 = vpop.f32.mrf.mxu0
      %v3342 = vpop.f32.mrf.mxu0
      %v3343 = vadd.f32 0.0, %v3342
      %v3344 = vpop.f32.mrf.mxu0
      %3345 = vmatprep.mubr.bf16.mxu0 0
      %3346 = vmatmul.mubr.bf16.gmra.mxu0 %v1957
      %v3347 = vpop.f32.mrf.mxu0
      %v3348 = vadd.f32 0.0, %v3347
      %v3349 = vpop.f32.mrf.mxu0
      %v3350 = vpop.f32.mrf.mxu0
      %v3351 = vadd.f32 0.0, %v3350
      %v3352 = vpop.f32.mrf.mxu0
      %3353 = vmatprep.mubr.bf16.mxu0 0
      %3354 = vmatmul.mubr.bf16.gmra.mxu0 %v1960
      %v3355 = vpop.f32.mrf.mxu0
      %v3356 = vadd.f32 0.0, %v3355
      %v3357 = vpop.f32.mrf.mxu0
      %v3358 = vpop.f32.mrf.mxu0
      %v3359 = vadd.f32 0.0, %v3358
      %v3360 = vpop.f32.mrf.mxu0
      %3361 = vmatprep.mubr.bf16.mxu0 0
      %3362 = vmatmul.mubr.bf16.gmra.mxu0 %v1963
      %v3363 = vpop.f32.mrf.mxu0
      %v3364 = vadd.f32 0.0, %v3363
      %v3365 = vpop.f32.mrf.mxu0
      %v3366 = vpop.f32.mrf.mxu0
      %v3367 = vadd.f32 0.0, %v3366
      %v3368 = vpop.f32.mrf.mxu0
      %3369 = vmatprep.mubr.bf16.mxu0 0
      %3370 = vmatmul.mubr.bf16.gmra.mxu0 %v1966
      %v3371 = vpop.f32.mrf.mxu0
      %v3372 = vadd.f32 0.0, %v3371
      %v3373 = vpop.f32.mrf.mxu0
      %v3374 = vpop.f32.mrf.mxu0
      %v3375 = vadd.f32 0.0, %v3374
      %v3376 = vpop.f32.mrf.mxu0
      %3377 = vmatprep.mubr.bf16.mxu0 0
      %3378 = vmatmul.mubr.bf16.gmra.mxu0 %v1969
      %v3379 = vpop.f32.mrf.mxu0
      %v3380 = vadd.f32 0.0, %v3379
      %v3381 = vpop.f32.mrf.mxu0
      %v3382 = vpop.f32.mrf.mxu0
      %v3383 = vadd.f32 0.0, %v3382
      %v3384 = vpop.f32.mrf.mxu0
      %3385 = vmatprep.mubr.bf16.mxu0 0
      %3386 = vmatmul.mubr.bf16.gmra.mxu0 %v1972
      %v3387 = vpop.f32.mrf.mxu0
      %v3388 = vadd.f32 0.0, %v3387
      %v3389 = vpop.f32.mrf.mxu0
      %v3390 = vpop.f32.mrf.mxu0
      %v3391 = vadd.f32 0.0, %v3390
      %v3392 = vpop.f32.mrf.mxu0
      %3393 = vmatprep.mubr.bf16.mxu0 0
      %3394 = vmatmul.mubr.bf16.gmra.mxu0 %v1975
      %v3395 = vpop.f32.mrf.mxu0
      %v3396 = vadd.f32 0.0, %v3395
      %v3397 = vpop.f32.mrf.mxu0
      %v3398 = vpop.f32.mrf.mxu0
      %v3399 = vadd.f32 0.0, %v3398
      %v3400 = vpop.f32.mrf.mxu0
      %3401 = vmatprep.mubr.bf16.mxu0 0
      %3402 = vmatmul.mubr.bf16.gmra.mxu0 %v1978
      %v3403 = vpop.f32.mrf.mxu0
      %v3404 = vadd.f32 0.0, %v3403
      %v3405 = vpop.f32.mrf.mxu0
      %v3406 = vpop.f32.mrf.mxu0
      %v3407 = vadd.f32 0.0, %v3406
      %v3408 = vpop.f32.mrf.mxu0
      %3409 = vmatprep.mubr.bf16.mxu0 0
      %3410 = vmatmul.mubr.bf16.gmra.mxu0 %v1981
      %v3411 = vpop.f32.mrf.mxu0
      %v3412 = vadd.f32 0.0, %v3411
      %v3413 = vpop.f32.mrf.mxu0
      %v3414 = vpop.f32.mrf.mxu0
      %v3415 = vadd.f32 0.0, %v3414
      %v3416 = vpop.f32.mrf.mxu0
      %3417 = vmatprep.mubr.bf16.mxu0 0
      %3418 = vmatmul.mubr.bf16.gmra.mxu0 %v1984
      %v3419 = vpop.f32.mrf.mxu0
      %v3420 = vadd.f32 0.0, %v3419
      %v3421 = vpop.f32.mrf.mxu0
      %v3422 = vpop.f32.mrf.mxu0
      %v3423 = vadd.f32 0.0, %v3422
      %v3424 = vpop.f32.mrf.mxu0
      %3425 = vmatprep.mubr.bf16.mxu0 0
      %3426 = vmatmul.mubr.bf16.gmra.mxu0 %v1987
      %v3427 = vpop.f32.mrf.mxu0
      %v3428 = vadd.f32 0.0, %v3427
      %v3429 = vpop.f32.mrf.mxu0
      %v3430 = vpop.f32.mrf.mxu0
      %v3431 = vadd.f32 0.0, %v3430
      %v3432 = vpop.f32.mrf.mxu0
      %3433 = vmatprep.mubr.bf16.mxu0 0
      %3434 = vmatmul.mubr.bf16.gmra.mxu0 %v1990
      %v3435 = vpop.f32.mrf.mxu0
      %v3436 = vadd.f32 0.0, %v3435
      %v3437 = vpop.f32.mrf.mxu0
      %v3438 = vpop.f32.mrf.mxu0
      %v3439 = vadd.f32 0.0, %v3438
      %v3440 = vpop.f32.mrf.mxu0
      %3441 = vmatprep.mubr.bf16.mxu0 0
      %3442 = vmatmul.mubr.bf16.gmra.mxu0 %v1993
      %v3443 = vpop.f32.mrf.mxu0
      %v3444 = vadd.f32 0.0, %v3443
      %v3445 = vpop.f32.mrf.mxu0
      %v3446 = vpop.f32.mrf.mxu0
      %v3447 = vadd.f32 0.0, %v3446
      %v3448 = vpop.f32.mrf.mxu0
      %3449 = vmatprep.mubr.bf16.mxu0 0
      %3450 = vmatmul.mubr.bf16.gmra.mxu0 %v1996
      %v3451 = vpop.f32.mrf.mxu0
      %v3452 = vadd.f32 0.0, %v3451
      %v3453 = vpop.f32.mrf.mxu0
      %v3454 = vpop.f32.mrf.mxu0
      %v3455 = vadd.f32 0.0, %v3454
      %v3456 = vpop.f32.mrf.mxu0
      %3457 = vmatprep.mubr.bf16.mxu0 0
      %3458 = vmatmul.mubr.bf16.gmra.mxu0 %v1999
      %v3459 = vpop.f32.mrf.mxu0
      %v3460 = vadd.f32 0.0, %v3459
      %v3461 = vpop.f32.mrf.mxu0
      %v3462 = vpop.f32.mrf.mxu0
      %v3463 = vadd.f32 0.0, %v3462
      %v3464 = vpop.f32.mrf.mxu0
      %3465 = vmatprep.mubr.bf16.mxu0 0
      %3466 = vmatmul.mubr.bf16.gmra.mxu0 %v2002
      %v3467 = vpop.f32.mrf.mxu0
      %v3468 = vadd.f32 0.0, %v3467
      %v3469 = vpop.f32.mrf.mxu0
      %v3470 = vpop.f32.mrf.mxu0
      %v3471 = vadd.f32 0.0, %v3470
      %v3472 = vpop.f32.mrf.mxu0
      %3473 = vmatprep.mubr.bf16.mxu0 0
      %3474 = vmatmul.mubr.bf16.gmra.mxu0 %v2005
      %v3475 = vpop.f32.mrf.mxu0
      %v3476 = vadd.f32 0.0, %v3475
      %v3477 = vpop.f32.mrf.mxu0
      %v3478 = vpop.f32.mrf.mxu0
      %v3479 = vadd.f32 0.0, %v3478
      %v3480 = vpop.f32.mrf.mxu0
      %3481 = vmatprep.mubr.bf16.mxu0 0
      %3482 = vmatmul.mubr.bf16.gmra.mxu0 %v2008
      %v3483 = vpop.f32.mrf.mxu0
      %v3484 = vadd.f32 0.0, %v3483
      %v3485 = vpop.f32.mrf.mxu0
      %v3486 = vpop.f32.mrf.mxu0
      %v3487 = vadd.f32 0.0, %v3486
      %v3488 = vpop.f32.mrf.mxu0
      %3489 = vdwg.mxu0
      %v3490 = vld [vmem:[%s2] sm:$0x1]
      %v3492 = vlaneseq
      %v3493 = vshrl.u32 %v3492, 7
      %v3494 = vsub.s32 0, %v3493
      %v3495 = vrot.slane %v3490, %v3494
      %v3497 = vmul.f32 %v2052, %v3495
      %v3498 = vmul.f32 %v2055, %v3495
      %v3499 = vmul.f32 %v2060, %v3495
      %v3500 = vmul.f32 %v2063, %v3495
      %v3501 = vmul.f32 %v2068, %v3495
      %v3502 = vmul.f32 %v2071, %v3495
      %v3503 = vmul.f32 %v2076, %v3495
      %v3504 = vmul.f32 %v2079, %v3495
      %v3505 = vmul.f32 %v2084, %v3495
      %v3506 = vmul.f32 %v2087, %v3495
      %v3507 = vmul.f32 %v2092, %v3495
      %v3508 = vmul.f32 %v2095, %v3495
      %v3509 = vmul.f32 %v2100, %v3495
      %v3510 = vmul.f32 %v2103, %v3495
      %v3511 = vmul.f32 %v2108, %v3495
      %v3512 = vmul.f32 %v2111, %v3495
      %v3513 = vmul.f32 %v2116, %v3495
      %v3514 = vmul.f32 %v2119, %v3495
      %v3515 = vmul.f32 %v2124, %v3495
      %v3516 = vmul.f32 %v2127, %v3495
      %v3517 = vmul.f32 %v2132, %v3495
      %v3518 = vmul.f32 %v2135, %v3495
      %v3519 = vmul.f32 %v2140, %v3495
      %v3520 = vmul.f32 %v2143, %v3495
      %v3521 = vmul.f32 %v2148, %v3495
      %v3522 = vmul.f32 %v2151, %v3495
      %v3523 = vmul.f32 %v2156, %v3495
      %v3524 = vmul.f32 %v2159, %v3495
      %v3525 = vmul.f32 %v2164, %v3495
      %v3526 = vmul.f32 %v2167, %v3495
      %v3527 = vmul.f32 %v2172, %v3495
      %v3528 = vmul.f32 %v2175, %v3495
      %v3529 = vmul.f32 %v2180, %v3495
      %v3530 = vmul.f32 %v2183, %v3495
      %v3531 = vmul.f32 %v2188, %v3495
      %v3532 = vmul.f32 %v2191, %v3495
      %v3533 = vmul.f32 %v2196, %v3495
      %v3534 = vmul.f32 %v2199, %v3495
      %v3535 = vmul.f32 %v2204, %v3495
      %v3536 = vmul.f32 %v2207, %v3495
      %v3537 = vmul.f32 %v2212, %v3495
      %v3538 = vmul.f32 %v2215, %v3495
      %v3539 = vmul.f32 %v2220, %v3495
      %v3540 = vmul.f32 %v2223, %v3495
      %v3541 = vmul.f32 %v2228, %v3495
      %v3542 = vmul.f32 %v2231, %v3495
      %v3543 = vmul.f32 %v2236, %v3495
      %v3544 = vmul.f32 %v2239, %v3495
      %v3545 = vmul.f32 %v2244, %v3495
      %v3546 = vmul.f32 %v2247, %v3495
      %v3547 = vmul.f32 %v2252, %v3495
      %v3548 = vmul.f32 %v2255, %v3495
      %v3549 = vmul.f32 %v2260, %v3495
      %v3550 = vmul.f32 %v2263, %v3495
      %v3551 = vmul.f32 %v2268, %v3495
      %v3552 = vmul.f32 %v2271, %v3495
      %v3553 = vmul.f32 %v2276, %v3495
      %v3554 = vmul.f32 %v2279, %v3495
      %v3555 = vmul.f32 %v2284, %v3495
      %v3556 = vmul.f32 %v2287, %v3495
      %v3557 = vmul.f32 %v2292, %v3495
      %v3558 = vmul.f32 %v2295, %v3495
      %v3559 = vmul.f32 %v2300, %v3495
      %v3560 = vmul.f32 %v2303, %v3495
      %v3561 = vmul.f32 %v2308, %v3495
      %v3562 = vmul.f32 %v2311, %v3495
      %v3563 = vmul.f32 %v2316, %v3495
      %v3564 = vmul.f32 %v2319, %v3495
      %v3565 = vmul.f32 %v2324, %v3495
      %v3566 = vmul.f32 %v2327, %v3495
      %v3567 = vmul.f32 %v2332, %v3495
      %v3568 = vmul.f32 %v2335, %v3495
      %v3569 = vmul.f32 %v2340, %v3495
      %v3570 = vmul.f32 %v2343, %v3495
      %v3571 = vmul.f32 %v2348, %v3495
      %v3572 = vmul.f32 %v2351, %v3495
      %v3573 = vmul.f32 %v2356, %v3495
      %v3574 = vmul.f32 %v2359, %v3495
      %v3575 = vmul.f32 %v2364, %v3495
      %v3576 = vmul.f32 %v2367, %v3495
      %v3577 = vmul.f32 %v2372, %v3495
      %v3578 = vmul.f32 %v2375, %v3495
      %v3579 = vmul.f32 %v2380, %v3495
      %v3580 = vmul.f32 %v2383, %v3495
      %v3581 = vmul.f32 %v2388, %v3495
      %v3582 = vmul.f32 %v2391, %v3495
      %v3583 = vmul.f32 %v2396, %v3495
      %v3584 = vmul.f32 %v2399, %v3495
      %v3585 = vmul.f32 %v2404, %v3495
      %v3586 = vmul.f32 %v2407, %v3495
      %v3587 = vmul.f32 %v2412, %v3495
      %v3588 = vmul.f32 %v2415, %v3495
      %v3589 = vmul.f32 %v2420, %v3495
      %v3590 = vmul.f32 %v2423, %v3495
      %v3591 = vmul.f32 %v2428, %v3495
      %v3592 = vmul.f32 %v2431, %v3495
      %v3593 = vmul.f32 %v2436, %v3495
      %v3594 = vmul.f32 %v2439, %v3495
      %v3595 = vmul.f32 %v2444, %v3495
      %v3596 = vmul.f32 %v2447, %v3495
      %v3597 = vmul.f32 %v2452, %v3495
      %v3598 = vmul.f32 %v2455, %v3495
      %v3599 = vmul.f32 %v2460, %v3495
      %v3600 = vmul.f32 %v2463, %v3495
      %v3601 = vmul.f32 %v2468, %v3495
      %v3602 = vmul.f32 %v2471, %v3495
      %v3603 = vmul.f32 %v2476, %v3495
      %v3604 = vmul.f32 %v2479, %v3495
      %v3605 = vmul.f32 %v2484, %v3495
      %v3606 = vmul.f32 %v2487, %v3495
      %v3607 = vmul.f32 %v2492, %v3495
      %v3608 = vmul.f32 %v2495, %v3495
      %v3609 = vmul.f32 %v2500, %v3495
      %v3610 = vmul.f32 %v2503, %v3495
      %v3611 = vmul.f32 %v2508, %v3495
      %v3612 = vmul.f32 %v2511, %v3495
      %v3613 = vmul.f32 %v2516, %v3495
      %v3614 = vmul.f32 %v2519, %v3495
      %v3615 = vmul.f32 %v2524, %v3495
      %v3616 = vmul.f32 %v2527, %v3495
      %v3617 = vmul.f32 %v2532, %v3495
      %v3618 = vmul.f32 %v2535, %v3495
      %v3619 = vmul.f32 %v2540, %v3495
      %v3620 = vmul.f32 %v2543, %v3495
      %v3621 = vmul.f32 %v2548, %v3495
      %v3622 = vmul.f32 %v2551, %v3495
      %v3623 = vmul.f32 %v2556, %v3495
      %v3624 = vmul.f32 %v2559, %v3495
      %v3625 = vmul.f32 %v2564, %v3495
      %v3626 = vmul.f32 %v2567, %v3495
      %v3627 = vmul.f32 %v2572, %v3495
      %v3628 = vmul.f32 %v2575, %v3495
      %v3629 = vmul.f32 %v2580, %v3495
      %v3630 = vmul.f32 %v2583, %v3495
      %v3631 = vmul.f32 %v2588, %v3495
      %v3632 = vmul.f32 %v2591, %v3495
      %v3633 = vmul.f32 %v2596, %v3495
      %v3634 = vmul.f32 %v2599, %v3495
      %v3635 = vmul.f32 %v2604, %v3495
      %v3636 = vmul.f32 %v2607, %v3495
      %v3637 = vmul.f32 %v2612, %v3495
      %v3638 = vmul.f32 %v2615, %v3495
      %v3639 = vmul.f32 %v2620, %v3495
      %v3640 = vmul.f32 %v2623, %v3495
      %v3641 = vmul.f32 %v2628, %v3495
      %v3642 = vmul.f32 %v2631, %v3495
      %v3643 = vmul.f32 %v2636, %v3495
      %v3644 = vmul.f32 %v2639, %v3495
      %v3645 = vmul.f32 %v2644, %v3495
      %v3646 = vmul.f32 %v2647, %v3495
      %v3647 = vmul.f32 %v2652, %v3495
      %v3648 = vmul.f32 %v2655, %v3495
      %v3649 = vmul.f32 %v2660, %v3495
      %v3650 = vmul.f32 %v2663, %v3495
      %v3651 = vmul.f32 %v2668, %v3495
      %v3652 = vmul.f32 %v2671, %v3495
      %v3653 = vmul.f32 %v2676, %v3495
      %v3654 = vmul.f32 %v2679, %v3495
      %v3655 = vmul.f32 %v2684, %v3495
      %v3656 = vmul.f32 %v2687, %v3495
      %v3657 = vmul.f32 %v2692, %v3495
      %v3658 = vmul.f32 %v2695, %v3495
      %v3659 = vmul.f32 %v2700, %v3495
      %v3660 = vmul.f32 %v2703, %v3495
      %v3661 = vmul.f32 %v2708, %v3495
      %v3662 = vmul.f32 %v2711, %v3495
      %v3663 = vmul.f32 %v2716, %v3495
      %v3664 = vmul.f32 %v2719, %v3495
      %v3665 = vmul.f32 %v2724, %v3495
      %v3666 = vmul.f32 %v2727, %v3495
      %v3667 = vmul.f32 %v2732, %v3495
      %v3668 = vmul.f32 %v2735, %v3495
      %v3669 = vmul.f32 %v2740, %v3495
      %v3670 = vmul.f32 %v2743, %v3495
      %v3671 = vmul.f32 %v2748, %v3495
      %v3672 = vmul.f32 %v2751, %v3495
      %v3673 = vmul.f32 %v2756, %v3495
      %v3674 = vmul.f32 %v2759, %v3495
      %v3675 = vmul.f32 %v2764, %v3495
      %v3676 = vmul.f32 %v2767, %v3495
      %v3677 = vmul.f32 %v2772, %v3495
      %v3678 = vmul.f32 %v2775, %v3495
      %v3679 = vmul.f32 %v2780, %v3495
      %v3680 = vmul.f32 %v2783, %v3495
      %v3681 = vmul.f32 %v2788, %v3495
      %v3682 = vmul.f32 %v2791, %v3495
      %v3683 = vmul.f32 %v2796, %v3495
      %v3684 = vmul.f32 %v2799, %v3495
      %v3685 = vmul.f32 %v2804, %v3495
      %v3686 = vmul.f32 %v2807, %v3495
      %v3687 = vmul.f32 %v2812, %v3495
      %v3688 = vmul.f32 %v2815, %v3495
      %v3689 = vmul.f32 %v2820, %v3495
      %v3690 = vmul.f32 %v2823, %v3495
      %v3691 = vmul.f32 %v2828, %v3495
      %v3692 = vmul.f32 %v2831, %v3495
      %v3693 = vmul.f32 %v2836, %v3495
      %v3694 = vmul.f32 %v2839, %v3495
      %v3695 = vmul.f32 %v2844, %v3495
      %v3696 = vmul.f32 %v2847, %v3495
      %v3697 = vmul.f32 %v2852, %v3495
      %v3698 = vmul.f32 %v2855, %v3495
      %v3699 = vmul.f32 %v2860, %v3495
      %v3700 = vmul.f32 %v2863, %v3495
      %v3701 = vmul.f32 %v2868, %v3495
      %v3702 = vmul.f32 %v2871, %v3495
      %v3703 = vmul.f32 %v2876, %v3495
      %v3704 = vmul.f32 %v2879, %v3495
      %v3705 = vmul.f32 %v2884, %v3495
      %v3706 = vmul.f32 %v2887, %v3495
      %v3707 = vmul.f32 %v2892, %v3495
      %v3708 = vmul.f32 %v2895, %v3495
      %v3709 = vmul.f32 %v2900, %v3495
      %v3710 = vmul.f32 %v2903, %v3495
      %v3711 = vmul.f32 %v2908, %v3495
      %v3712 = vmul.f32 %v2911, %v3495
      %v3713 = vmul.f32 %v2916, %v3495
      %v3714 = vmul.f32 %v2919, %v3495
      %v3715 = vmul.f32 %v2924, %v3495
      %v3716 = vmul.f32 %v2927, %v3495
      %v3717 = vmul.f32 %v2932, %v3495
      %v3718 = vmul.f32 %v2935, %v3495
      %v3719 = vmul.f32 %v2940, %v3495
      %v3720 = vmul.f32 %v2943, %v3495
      %v3721 = vmul.f32 %v2948, %v3495
      %v3722 = vmul.f32 %v2951, %v3495
      %v3723 = vmul.f32 %v2956, %v3495
      %v3724 = vmul.f32 %v2959, %v3495
      %v3725 = vmul.f32 %v2964, %v3495
      %v3726 = vmul.f32 %v2967, %v3495
      %v3727 = vmul.f32 %v2972, %v3495
      %v3728 = vmul.f32 %v2975, %v3495
      %v3729 = vmul.f32 %v2980, %v3495
      %v3730 = vmul.f32 %v2983, %v3495
      %v3731 = vmul.f32 %v2988, %v3495
      %v3732 = vmul.f32 %v2991, %v3495
      %v3733 = vmul.f32 %v2996, %v3495
      %v3734 = vmul.f32 %v2999, %v3495
      %v3735 = vmul.f32 %v3004, %v3495
      %v3736 = vmul.f32 %v3007, %v3495
      %v3737 = vmul.f32 %v3012, %v3495
      %v3738 = vmul.f32 %v3015, %v3495
      %v3739 = vmul.f32 %v3020, %v3495
      %v3740 = vmul.f32 %v3023, %v3495
      %v3741 = vmul.f32 %v3028, %v3495
      %v3742 = vmul.f32 %v3031, %v3495
      %v3743 = vmul.f32 %v3036, %v3495
      %v3744 = vmul.f32 %v3039, %v3495
      %v3745 = vmul.f32 %v3044, %v3495
      %v3746 = vmul.f32 %v3047, %v3495
      %v3747 = vmul.f32 %v3052, %v3495
      %v3748 = vmul.f32 %v3055, %v3495
      %v3749 = vmul.f32 %v3060, %v3495
      %v3750 = vmul.f32 %v3063, %v3495
      %v3751 = vmul.f32 %v3068, %v3495
      %v3752 = vmul.f32 %v3071, %v3495
      %v3753 = vmul.f32 %v3076, %v3495
      %v3754 = vmul.f32 %v3079, %v3495
      %v3755 = vmul.f32 %v3084, %v3495
      %v3756 = vmul.f32 %v3087, %v3495
      %v3757 = vmul.f32 %v3092, %v3495
      %v3758 = vmul.f32 %v3095, %v3495
      %v3759 = vmul.f32 %v3100, %v3495
      %v3760 = vmul.f32 %v3103, %v3495
      %v3761 = vmul.f32 %v3108, %v3495
      %v3762 = vmul.f32 %v3111, %v3495
      %v3763 = vmul.f32 %v3116, %v3495
      %v3764 = vmul.f32 %v3119, %v3495
      %v3765 = vmul.f32 %v3124, %v3495
      %v3766 = vmul.f32 %v3127, %v3495
      %v3767 = vmul.f32 %v3132, %v3495
      %v3768 = vmul.f32 %v3135, %v3495
      %v3769 = vmul.f32 %v3140, %v3495
      %v3770 = vmul.f32 %v3143, %v3495
      %v3771 = vmul.f32 %v3148, %v3495
      %v3772 = vmul.f32 %v3151, %v3495
      %v3773 = vmul.f32 %v3156, %v3495
      %v3774 = vmul.f32 %v3159, %v3495
      %v3775 = vmul.f32 %v3164, %v3495
      %v3776 = vmul.f32 %v3167, %v3495
      %v3777 = vmul.f32 %v3172, %v3495
      %v3778 = vmul.f32 %v3175, %v3495
      %v3779 = vmul.f32 %v3180, %v3495
      %v3780 = vmul.f32 %v3183, %v3495
      %v3781 = vmul.f32 %v3188, %v3495
      %v3782 = vmul.f32 %v3191, %v3495
      %v3783 = vmul.f32 %v3196, %v3495
      %v3784 = vmul.f32 %v3199, %v3495
      %v3785 = vmul.f32 %v3204, %v3495
      %v3786 = vmul.f32 %v3207, %v3495
      %v3787 = vmul.f32 %v3212, %v3495
      %v3788 = vmul.f32 %v3215, %v3495
      %v3789 = vmul.f32 %v3220, %v3495
      %v3790 = vmul.f32 %v3223, %v3495
      %v3791 = vmul.f32 %v3228, %v3495
      %v3792 = vmul.f32 %v3231, %v3495
      %v3793 = vmul.f32 %v3236, %v3495
      %v3794 = vmul.f32 %v3239, %v3495
      %v3795 = vmul.f32 %v3244, %v3495
      %v3796 = vmul.f32 %v3247, %v3495
      %v3797 = vmul.f32 %v3252, %v3495
      %v3798 = vmul.f32 %v3255, %v3495
      %v3799 = vmul.f32 %v3260, %v3495
      %v3800 = vmul.f32 %v3263, %v3495
      %v3801 = vmul.f32 %v3268, %v3495
      %v3802 = vmul.f32 %v3271, %v3495
      %v3803 = vmul.f32 %v3276, %v3495
      %v3804 = vmul.f32 %v3279, %v3495
      %v3805 = vmul.f32 %v3284, %v3495
      %v3806 = vmul.f32 %v3287, %v3495
      %v3807 = vmul.f32 %v3292, %v3495
      %v3808 = vmul.f32 %v3295, %v3495
      %v3809 = vmul.f32 %v3300, %v3495
      %v3810 = vmul.f32 %v3303, %v3495
      %v3811 = vmul.f32 %v3308, %v3495
      %v3812 = vmul.f32 %v3311, %v3495
      %v3813 = vmul.f32 %v3316, %v3495
      %v3814 = vmul.f32 %v3319, %v3495
      %v3815 = vmul.f32 %v3324, %v3495
      %v3816 = vmul.f32 %v3327, %v3495
      %v3817 = vmul.f32 %v3332, %v3495
      %v3818 = vmul.f32 %v3335, %v3495
      %v3819 = vmul.f32 %v3340, %v3495
      %v3820 = vmul.f32 %v3343, %v3495
      %v3821 = vmul.f32 %v3348, %v3495
      %v3822 = vmul.f32 %v3351, %v3495
      %v3823 = vmul.f32 %v3356, %v3495
      %v3824 = vmul.f32 %v3359, %v3495
      %v3825 = vmul.f32 %v3364, %v3495
      %v3826 = vmul.f32 %v3367, %v3495
      %v3827 = vmul.f32 %v3372, %v3495
      %v3828 = vmul.f32 %v3375, %v3495
      %v3829 = vmul.f32 %v3380, %v3495
      %v3830 = vmul.f32 %v3383, %v3495
      %v3831 = vmul.f32 %v3388, %v3495
      %v3832 = vmul.f32 %v3391, %v3495
      %v3833 = vmul.f32 %v3396, %v3495
      %v3834 = vmul.f32 %v3399, %v3495
      %v3835 = vmul.f32 %v3404, %v3495
      %v3836 = vmul.f32 %v3407, %v3495
      %v3837 = vmul.f32 %v3412, %v3495
      %v3838 = vmul.f32 %v3415, %v3495
      %v3839 = vmul.f32 %v3420, %v3495
      %v3840 = vmul.f32 %v3423, %v3495
      %v3841 = vmul.f32 %v3428, %v3495
      %v3842 = vmul.f32 %v3431, %v3495
      %v3843 = vmul.f32 %v3436, %v3495
      %v3844 = vmul.f32 %v3439, %v3495
      %v3845 = vmul.f32 %v3444, %v3495
      %v3846 = vmul.f32 %v3447, %v3495
      %v3847 = vmul.f32 %v3452, %v3495
      %v3848 = vmul.f32 %v3455, %v3495
      %v3849 = vmul.f32 %v3460, %v3495
      %v3850 = vmul.f32 %v3463, %v3495
      %v3851 = vmul.f32 %v3468, %v3495
      %v3852 = vmul.f32 %v3471, %v3495
      %v3853 = vmul.f32 %v3476, %v3495
      %v3854 = vmul.f32 %v3479, %v3495
      %v3855 = vmul.f32 %v3484, %v3495
      %v3856 = vmul.f32 %v3487, %v3495
      %v3857 = vld [vmem:[%s3] sm:$0x1]
      %v3859 = vlaneseq
      %v3860 = vshrl.u32 %v3859, 7
      %v3861 = vsub.s32 0, %v3860
      %v3862 = vrot.slane %v3857, %v3861
      %v3864 = vadd.f32 %v3497, %v3862
      %v3865 = vadd.f32 %v3498, %v3862
      %v3866 = vadd.f32 %v3499, %v3862
      %v3867 = vadd.f32 %v3500, %v3862
      %v3868 = vadd.f32 %v3501, %v3862
      %v3869 = vadd.f32 %v3502, %v3862
      %v3870 = vadd.f32 %v3503, %v3862
      %v3871 = vadd.f32 %v3504, %v3862
      %v3872 = vadd.f32 %v3505, %v3862
      %v3873 = vadd.f32 %v3506, %v3862
      %v3874 = vadd.f32 %v3507, %v3862
      %v3875 = vadd.f32 %v3508, %v3862
      %v3876 = vadd.f32 %v3509, %v3862
      %v3877 = vadd.f32 %v3510, %v3862
      %v3878 = vadd.f32 %v3511, %v3862
      %v3879 = vadd.f32 %v3512, %v3862
      %v3880 = vadd.f32 %v3513, %v3862
      %v3881 = vadd.f32 %v3514, %v3862
      %v3882 = vadd.f32 %v3515, %v3862
      %v3883 = vadd.f32 %v3516, %v3862
      %v3884 = vadd.f32 %v3517, %v3862
      %v3885 = vadd.f32 %v3518, %v3862
      %v3886 = vadd.f32 %v3519, %v3862
      %v3887 = vadd.f32 %v3520, %v3862
      %v3888 = vadd.f32 %v3521, %v3862
      %v3889 = vadd.f32 %v3522, %v3862
      %v3890 = vadd.f32 %v3523, %v3862
      %v3891 = vadd.f32 %v3524, %v3862
      %v3892 = vadd.f32 %v3525, %v3862
      %v3893 = vadd.f32 %v3526, %v3862
      %v3894 = vadd.f32 %v3527, %v3862
      %v3895 = vadd.f32 %v3528, %v3862
      %v3896 = vadd.f32 %v3529, %v3862
      %v3897 = vadd.f32 %v3530, %v3862
      %v3898 = vadd.f32 %v3531, %v3862
      %v3899 = vadd.f32 %v3532, %v3862
      %v3900 = vadd.f32 %v3533, %v3862
      %v3901 = vadd.f32 %v3534, %v3862
      %v3902 = vadd.f32 %v3535, %v3862
      %v3903 = vadd.f32 %v3536, %v3862
      %v3904 = vadd.f32 %v3537, %v3862
      %v3905 = vadd.f32 %v3538, %v3862
      %v3906 = vadd.f32 %v3539, %v3862
      %v3907 = vadd.f32 %v3540, %v3862
      %v3908 = vadd.f32 %v3541, %v3862
      %v3909 = vadd.f32 %v3542, %v3862
      %v3910 = vadd.f32 %v3543, %v3862
      %v3911 = vadd.f32 %v3544, %v3862
      %v3912 = vadd.f32 %v3545, %v3862
      %v3913 = vadd.f32 %v3546, %v3862
      %v3914 = vadd.f32 %v3547, %v3862
      %v3915 = vadd.f32 %v3548, %v3862
      %v3916 = vadd.f32 %v3549, %v3862
      %v3917 = vadd.f32 %v3550, %v3862
      %v3918 = vadd.f32 %v3551, %v3862
      %v3919 = vadd.f32 %v3552, %v3862
      %v3920 = vadd.f32 %v3553, %v3862
      %v3921 = vadd.f32 %v3554, %v3862
      %v3922 = vadd.f32 %v3555, %v3862
      %v3923 = vadd.f32 %v3556, %v3862
      %v3924 = vadd.f32 %v3557, %v3862
      %v3925 = vadd.f32 %v3558, %v3862
      %v3926 = vadd.f32 %v3559, %v3862
      %v3927 = vadd.f32 %v3560, %v3862
      %v3928 = vadd.f32 %v3561, %v3862
      %v3929 = vadd.f32 %v3562, %v3862
      %v3930 = vadd.f32 %v3563, %v3862
      %v3931 = vadd.f32 %v3564, %v3862
      %v3932 = vadd.f32 %v3565, %v3862
      %v3933 = vadd.f32 %v3566, %v3862
      %v3934 = vadd.f32 %v3567, %v3862
      %v3935 = vadd.f32 %v3568, %v3862
      %v3936 = vadd.f32 %v3569, %v3862
      %v3937 = vadd.f32 %v3570, %v3862
      %v3938 = vadd.f32 %v3571, %v3862
      %v3939 = vadd.f32 %v3572, %v3862
      %v3940 = vadd.f32 %v3573, %v3862
      %v3941 = vadd.f32 %v3574, %v3862
      %v3942 = vadd.f32 %v3575, %v3862
      %v3943 = vadd.f32 %v3576, %v3862
      %v3944 = vadd.f32 %v3577, %v3862
      %v3945 = vadd.f32 %v3578, %v3862
      %v3946 = vadd.f32 %v3579, %v3862
      %v3947 = vadd.f32 %v3580, %v3862
      %v3948 = vadd.f32 %v3581, %v3862
      %v3949 = vadd.f32 %v3582, %v3862
      %v3950 = vadd.f32 %v3583, %v3862
      %v3951 = vadd.f32 %v3584, %v3862
      %v3952 = vadd.f32 %v3585, %v3862
      %v3953 = vadd.f32 %v3586, %v3862
      %v3954 = vadd.f32 %v3587, %v3862
      %v3955 = vadd.f32 %v3588, %v3862
      %v3956 = vadd.f32 %v3589, %v3862
      %v3957 = vadd.f32 %v3590, %v3862
      %v3958 = vadd.f32 %v3591, %v3862
      %v3959 = vadd.f32 %v3592, %v3862
      %v3960 = vadd.f32 %v3593, %v3862
      %v3961 = vadd.f32 %v3594, %v3862
      %v3962 = vadd.f32 %v3595, %v3862
      %v3963 = vadd.f32 %v3596, %v3862
      %v3964 = vadd.f32 %v3597, %v3862
      %v3965 = vadd.f32 %v3598, %v3862
      %v3966 = vadd.f32 %v3599, %v3862
      %v3967 = vadd.f32 %v3600, %v3862
      %v3968 = vadd.f32 %v3601, %v3862
      %v3969 = vadd.f32 %v3602, %v3862
      %v3970 = vadd.f32 %v3603, %v3862
      %v3971 = vadd.f32 %v3604, %v3862
      %v3972 = vadd.f32 %v3605, %v3862
      %v3973 = vadd.f32 %v3606, %v3862
      %v3974 = vadd.f32 %v3607, %v3862
      %v3975 = vadd.f32 %v3608, %v3862
      %v3976 = vadd.f32 %v3609, %v3862
      %v3977 = vadd.f32 %v3610, %v3862
      %v3978 = vadd.f32 %v3611, %v3862
      %v3979 = vadd.f32 %v3612, %v3862
      %v3980 = vadd.f32 %v3613, %v3862
      %v3981 = vadd.f32 %v3614, %v3862
      %v3982 = vadd.f32 %v3615, %v3862
      %v3983 = vadd.f32 %v3616, %v3862
      %v3984 = vadd.f32 %v3617, %v3862
      %v3985 = vadd.f32 %v3618, %v3862
      %v3986 = vadd.f32 %v3619, %v3862
      %v3987 = vadd.f32 %v3620, %v3862
      %v3988 = vadd.f32 %v3621, %v3862
      %v3989 = vadd.f32 %v3622, %v3862
      %v3990 = vadd.f32 %v3623, %v3862
      %v3991 = vadd.f32 %v3624, %v3862
      %v3992 = vadd.f32 %v3625, %v3862
      %v3993 = vadd.f32 %v3626, %v3862
      %v3994 = vadd.f32 %v3627, %v3862
      %v3995 = vadd.f32 %v3628, %v3862
      %v3996 = vadd.f32 %v3629, %v3862
      %v3997 = vadd.f32 %v3630, %v3862
      %v3998 = vadd.f32 %v3631, %v3862
      %v3999 = vadd.f32 %v3632, %v3862
      %v4000 = vadd.f32 %v3633, %v3862
      %v4001 = vadd.f32 %v3634, %v3862
      %v4002 = vadd.f32 %v3635, %v3862
      %v4003 = vadd.f32 %v3636, %v3862
      %v4004 = vadd.f32 %v3637, %v3862
      %v4005 = vadd.f32 %v3638, %v3862
      %v4006 = vadd.f32 %v3639, %v3862
      %v4007 = vadd.f32 %v3640, %v3862
      %v4008 = vadd.f32 %v3641, %v3862
      %v4009 = vadd.f32 %v3642, %v3862
      %v4010 = vadd.f32 %v3643, %v3862
      %v4011 = vadd.f32 %v3644, %v3862
      %v4012 = vadd.f32 %v3645, %v3862
      %v4013 = vadd.f32 %v3646, %v3862
      %v4014 = vadd.f32 %v3647, %v3862
      %v4015 = vadd.f32 %v3648, %v3862
      %v4016 = vadd.f32 %v3649, %v3862
      %v4017 = vadd.f32 %v3650, %v3862
      %v4018 = vadd.f32 %v3651, %v3862
      %v4019 = vadd.f32 %v3652, %v3862
      %v4020 = vadd.f32 %v3653, %v3862
      %v4021 = vadd.f32 %v3654, %v3862
      %v4022 = vadd.f32 %v3655, %v3862
      %v4023 = vadd.f32 %v3656, %v3862
      %v4024 = vadd.f32 %v3657, %v3862
      %v4025 = vadd.f32 %v3658, %v3862
      %v4026 = vadd.f32 %v3659, %v3862
      %v4027 = vadd.f32 %v3660, %v3862
      %v4028 = vadd.f32 %v3661, %v3862
      %v4029 = vadd.f32 %v3662, %v3862
      %v4030 = vadd.f32 %v3663, %v3862
      %v4031 = vadd.f32 %v3664, %v3862
      %v4032 = vadd.f32 %v3665, %v3862
      %v4033 = vadd.f32 %v3666, %v3862
      %v4034 = vadd.f32 %v3667, %v3862
      %v4035 = vadd.f32 %v3668, %v3862
      %v4036 = vadd.f32 %v3669, %v3862
      %v4037 = vadd.f32 %v3670, %v3862
      %v4038 = vadd.f32 %v3671, %v3862
      %v4039 = vadd.f32 %v3672, %v3862
      %v4040 = vadd.f32 %v3673, %v3862
      %v4041 = vadd.f32 %v3674, %v3862
      %v4042 = vadd.f32 %v3675, %v3862
      %v4043 = vadd.f32 %v3676, %v3862
      %v4044 = vadd.f32 %v3677, %v3862
      %v4045 = vadd.f32 %v3678, %v3862
      %v4046 = vadd.f32 %v3679, %v3862
      %v4047 = vadd.f32 %v3680, %v3862
      %v4048 = vadd.f32 %v3681, %v3862
      %v4049 = vadd.f32 %v3682, %v3862
      %v4050 = vadd.f32 %v3683, %v3862
      %v4051 = vadd.f32 %v3684, %v3862
      %v4052 = vadd.f32 %v3685, %v3862
      %v4053 = vadd.f32 %v3686, %v3862
      %v4054 = vadd.f32 %v3687, %v3862
      %v4055 = vadd.f32 %v3688, %v3862
      %v4056 = vadd.f32 %v3689, %v3862
      %v4057 = vadd.f32 %v3690, %v3862
      %v4058 = vadd.f32 %v3691, %v3862
      %v4059 = vadd.f32 %v3692, %v3862
      %v4060 = vadd.f32 %v3693, %v3862
      %v4061 = vadd.f32 %v3694, %v3862
      %v4062 = vadd.f32 %v3695, %v3862
      %v4063 = vadd.f32 %v3696, %v3862
      %v4064 = vadd.f32 %v3697, %v3862
      %v4065 = vadd.f32 %v3698, %v3862
      %v4066 = vadd.f32 %v3699, %v3862
      %v4067 = vadd.f32 %v3700, %v3862
      %v4068 = vadd.f32 %v3701, %v3862
      %v4069 = vadd.f32 %v3702, %v3862
      %v4070 = vadd.f32 %v3703, %v3862
      %v4071 = vadd.f32 %v3704, %v3862
      %v4072 = vadd.f32 %v3705, %v3862
      %v4073 = vadd.f32 %v3706, %v3862
      %v4074 = vadd.f32 %v3707, %v3862
      %v4075 = vadd.f32 %v3708, %v3862
      %v4076 = vadd.f32 %v3709, %v3862
      %v4077 = vadd.f32 %v3710, %v3862
      %v4078 = vadd.f32 %v3711, %v3862
      %v4079 = vadd.f32 %v3712, %v3862
      %v4080 = vadd.f32 %v3713, %v3862
      %v4081 = vadd.f32 %v3714, %v3862
      %v4082 = vadd.f32 %v3715, %v3862
      %v4083 = vadd.f32 %v3716, %v3862
      %v4084 = vadd.f32 %v3717, %v3862
      %v4085 = vadd.f32 %v3718, %v3862
      %v4086 = vadd.f32 %v3719, %v3862
      %v4087 = vadd.f32 %v3720, %v3862
      %v4088 = vadd.f32 %v3721, %v3862
      %v4089 = vadd.f32 %v3722, %v3862
      %v4090 = vadd.f32 %v3723, %v3862
      %v4091 = vadd.f32 %v3724, %v3862
      %v4092 = vadd.f32 %v3725, %v3862
      %v4093 = vadd.f32 %v3726, %v3862
      %v4094 = vadd.f32 %v3727, %v3862
      %v4095 = vadd.f32 %v3728, %v3862
      %v4096 = vadd.f32 %v3729, %v3862
      %v4097 = vadd.f32 %v3730, %v3862
      %v4098 = vadd.f32 %v3731, %v3862
      %v4099 = vadd.f32 %v3732, %v3862
      %v4100 = vadd.f32 %v3733, %v3862
      %v4101 = vadd.f32 %v3734, %v3862
      %v4102 = vadd.f32 %v3735, %v3862
      %v4103 = vadd.f32 %v3736, %v3862
      %v4104 = vadd.f32 %v3737, %v3862
      %v4105 = vadd.f32 %v3738, %v3862
      %v4106 = vadd.f32 %v3739, %v3862
      %v4107 = vadd.f32 %v3740, %v3862
      %v4108 = vadd.f32 %v3741, %v3862
      %v4109 = vadd.f32 %v3742, %v3862
      %v4110 = vadd.f32 %v3743, %v3862
      %v4111 = vadd.f32 %v3744, %v3862
      %v4112 = vadd.f32 %v3745, %v3862
      %v4113 = vadd.f32 %v3746, %v3862
      %v4114 = vadd.f32 %v3747, %v3862
      %v4115 = vadd.f32 %v3748, %v3862
      %v4116 = vadd.f32 %v3749, %v3862
      %v4117 = vadd.f32 %v3750, %v3862
      %v4118 = vadd.f32 %v3751, %v3862
      %v4119 = vadd.f32 %v3752, %v3862
      %v4120 = vadd.f32 %v3753, %v3862
      %v4121 = vadd.f32 %v3754, %v3862
      %v4122 = vadd.f32 %v3755, %v3862
      %v4123 = vadd.f32 %v3756, %v3862
      %v4124 = vadd.f32 %v3757, %v3862
      %v4125 = vadd.f32 %v3758, %v3862
      %v4126 = vadd.f32 %v3759, %v3862
      %v4127 = vadd.f32 %v3760, %v3862
      %v4128 = vadd.f32 %v3761, %v3862
      %v4129 = vadd.f32 %v3762, %v3862
      %v4130 = vadd.f32 %v3763, %v3862
      %v4131 = vadd.f32 %v3764, %v3862
      %v4132 = vadd.f32 %v3765, %v3862
      %v4133 = vadd.f32 %v3766, %v3862
      %v4134 = vadd.f32 %v3767, %v3862
      %v4135 = vadd.f32 %v3768, %v3862
      %v4136 = vadd.f32 %v3769, %v3862
      %v4137 = vadd.f32 %v3770, %v3862
      %v4138 = vadd.f32 %v3771, %v3862
      %v4139 = vadd.f32 %v3772, %v3862
      %v4140 = vadd.f32 %v3773, %v3862
      %v4141 = vadd.f32 %v3774, %v3862
      %v4142 = vadd.f32 %v3775, %v3862
      %v4143 = vadd.f32 %v3776, %v3862
      %v4144 = vadd.f32 %v3777, %v3862
      %v4145 = vadd.f32 %v3778, %v3862
      %v4146 = vadd.f32 %v3779, %v3862
      %v4147 = vadd.f32 %v3780, %v3862
      %v4148 = vadd.f32 %v3781, %v3862
      %v4149 = vadd.f32 %v3782, %v3862
      %v4150 = vadd.f32 %v3783, %v3862
      %v4151 = vadd.f32 %v3784, %v3862
      %v4152 = vadd.f32 %v3785, %v3862
      %v4153 = vadd.f32 %v3786, %v3862
      %v4154 = vadd.f32 %v3787, %v3862
      %v4155 = vadd.f32 %v3788, %v3862
      %v4156 = vadd.f32 %v3789, %v3862
      %v4157 = vadd.f32 %v3790, %v3862
      %v4158 = vadd.f32 %v3791, %v3862
      %v4159 = vadd.f32 %v3792, %v3862
      %v4160 = vadd.f32 %v3793, %v3862
      %v4161 = vadd.f32 %v3794, %v3862
      %v4162 = vadd.f32 %v3795, %v3862
      %v4163 = vadd.f32 %v3796, %v3862
      %v4164 = vadd.f32 %v3797, %v3862
      %v4165 = vadd.f32 %v3798, %v3862
      %v4166 = vadd.f32 %v3799, %v3862
      %v4167 = vadd.f32 %v3800, %v3862
      %v4168 = vadd.f32 %v3801, %v3862
      %v4169 = vadd.f32 %v3802, %v3862
      %v4170 = vadd.f32 %v3803, %v3862
      %v4171 = vadd.f32 %v3804, %v3862
      %v4172 = vadd.f32 %v3805, %v3862
      %v4173 = vadd.f32 %v3806, %v3862
      %v4174 = vadd.f32 %v3807, %v3862
      %v4175 = vadd.f32 %v3808, %v3862
      %v4176 = vadd.f32 %v3809, %v3862
      %v4177 = vadd.f32 %v3810, %v3862
      %v4178 = vadd.f32 %v3811, %v3862
      %v4179 = vadd.f32 %v3812, %v3862
      %v4180 = vadd.f32 %v3813, %v3862
      %v4181 = vadd.f32 %v3814, %v3862
      %v4182 = vadd.f32 %v3815, %v3862
      %v4183 = vadd.f32 %v3816, %v3862
      %v4184 = vadd.f32 %v3817, %v3862
      %v4185 = vadd.f32 %v3818, %v3862
      %v4186 = vadd.f32 %v3819, %v3862
      %v4187 = vadd.f32 %v3820, %v3862
      %v4188 = vadd.f32 %v3821, %v3862
      %v4189 = vadd.f32 %v3822, %v3862
      %v4190 = vadd.f32 %v3823, %v3862
      %v4191 = vadd.f32 %v3824, %v3862
      %v4192 = vadd.f32 %v3825, %v3862
      %v4193 = vadd.f32 %v3826, %v3862
      %v4194 = vadd.f32 %v3827, %v3862
      %v4195 = vadd.f32 %v3828, %v3862
      %v4196 = vadd.f32 %v3829, %v3862
      %v4197 = vadd.f32 %v3830, %v3862
      %v4198 = vadd.f32 %v3831, %v3862
      %v4199 = vadd.f32 %v3832, %v3862
      %v4200 = vadd.f32 %v3833, %v3862
      %v4201 = vadd.f32 %v3834, %v3862
      %v4202 = vadd.f32 %v3835, %v3862
      %v4203 = vadd.f32 %v3836, %v3862
      %v4204 = vadd.f32 %v3837, %v3862
      %v4205 = vadd.f32 %v3838, %v3862
      %v4206 = vadd.f32 %v3839, %v3862
      %v4207 = vadd.f32 %v3840, %v3862
      %v4208 = vadd.f32 %v3841, %v3862
      %v4209 = vadd.f32 %v3842, %v3862
      %v4210 = vadd.f32 %v3843, %v3862
      %v4211 = vadd.f32 %v3844, %v3862
      %v4212 = vadd.f32 %v3845, %v3862
      %v4213 = vadd.f32 %v3846, %v3862
      %v4214 = vadd.f32 %v3847, %v3862
      %v4215 = vadd.f32 %v3848, %v3862
      %v4216 = vadd.f32 %v3849, %v3862
      %v4217 = vadd.f32 %v3850, %v3862
      %v4218 = vadd.f32 %v3851, %v3862
      %v4219 = vadd.f32 %v3852, %v3862
      %v4220 = vadd.f32 %v3853, %v3862
      %v4221 = vadd.f32 %v3854, %v3862
      %v4222 = vadd.f32 %v3855, %v3862
      %v4223 = vadd.f32 %v3856, %v3862
      %v4224 = vmax.f32 %v3864, %v3909
      %v4225 = vmax.f32 %v3865, %v3910
      %v4226 = vmax.f32 %v3866, %v3911
      %v4227 = vmax.f32 %v3867, %v3912
      %v4228 = vmax.f32 %v3868, %v3913
      %v4229 = vmax.f32 %v3869, %v3914
      %v4230 = vmax.f32 %v3870, %v3915
      %v4231 = vmax.f32 %v3871, %v3916
      %v4232 = vmax.f32 %v3872, %v3917
      %v4233 = vmax.f32 %v3873, %v3918
      %v4234 = vmax.f32 %v3874, %v3919
      %v4235 = vmax.f32 %v3875, %v3920
      %v4236 = vmax.f32 %v3876, %v3921
      %v4237 = vmax.f32 %v3877, %v3922
      %v4238 = vmax.f32 %v3878, %v3923
      %v4239 = vmax.f32 %v3879, %v3924
      %v4240 = vmax.f32 %v3880, %v3925
      %v4241 = vmax.f32 %v3881, %v3926
      %v4242 = vmax.f32 %v3882, %v3927
      %v4243 = vmax.f32 %v3883, %v3928
      %v4244 = vmax.f32 %v3884, %v3929
      %v4245 = vmax.f32 %v3885, %v3930
      %v4246 = vmax.f32 %v3886, %v3931
      %v4247 = vmax.f32 %v3887, %v3932
      %v4248 = vmax.f32 %v3888, %v3933
      %v4249 = vmax.f32 %v3889, %v3934
      %v4250 = vmax.f32 %v3890, %v3935
      %v4251 = vmax.f32 %v3891, %v3936
      %v4252 = vmax.f32 %v3892, %v3937
      %v4253 = vmax.f32 %v3893, %v3938
      %v4254 = vmax.f32 %v3894, %v3939
      %v4255 = vmax.f32 %v3895, %v3940
      %v4256 = vmax.f32 %v3896, %v3941
      %v4257 = vmax.f32 %v3897, %v3942
      %v4258 = vmax.f32 %v3898, %v3943
      %v4259 = vmax.f32 %v3899, %v3944
      %v4260 = vmax.f32 %v3900, %v3945
      %v4261 = vmax.f32 %v3901, %v3946
      %v4262 = vmax.f32 %v3902, %v3947
      %v4263 = vmax.f32 %v3903, %v3948
      %v4264 = vmax.f32 %v3904, %v3949
      %v4265 = vmax.f32 %v3905, %v3950
      %v4266 = vmax.f32 %v3906, %v3951
      %v4267 = vmax.f32 %v3907, %v3952
      %v4268 = vmax.f32 %v3908, %v3953
      %v4269 = vmax.f32 %v4224, %v3954
      %v4270 = vmax.f32 %v4225, %v3955
      %v4271 = vmax.f32 %v4226, %v3956
      %v4272 = vmax.f32 %v4227, %v3957
      %v4273 = vmax.f32 %v4228, %v3958
      %v4274 = vmax.f32 %v4229, %v3959
      %v4275 = vmax.f32 %v4230, %v3960
      %v4276 = vmax.f32 %v4231, %v3961
      %v4277 = vmax.f32 %v4232, %v3962
      %v4278 = vmax.f32 %v4233, %v3963
      %v4279 = vmax.f32 %v4234, %v3964
      %v4280 = vmax.f32 %v4235, %v3965
      %v4281 = vmax.f32 %v4236, %v3966
      %v4282 = vmax.f32 %v4237, %v3967
      %v4283 = vmax.f32 %v4238, %v3968
      %v4284 = vmax.f32 %v4239, %v3969
      %v4285 = vmax.f32 %v4240, %v3970
      %v4286 = vmax.f32 %v4241, %v3971
      %v4287 = vmax.f32 %v4242, %v3972
      %v4288 = vmax.f32 %v4243, %v3973
      %v4289 = vmax.f32 %v4244, %v3974
      %v4290 = vmax.f32 %v4245, %v3975
      %v4291 = vmax.f32 %v4246, %v3976
      %v4292 = vmax.f32 %v4247, %v3977
      %v4293 = vmax.f32 %v4248, %v3978
      %v4294 = vmax.f32 %v4249, %v3979
      %v4295 = vmax.f32 %v4250, %v3980
      %v4296 = vmax.f32 %v4251, %v3981
      %v4297 = vmax.f32 %v4252, %v3982
      %v4298 = vmax.f32 %v4253, %v3983
      %v4299 = vmax.f32 %v4254, %v3984
      %v4300 = vmax.f32 %v4255, %v3985
      %v4301 = vmax.f32 %v4256, %v3986
      %v4302 = vmax.f32 %v4257, %v3987
      %v4303 = vmax.f32 %v4258, %v3988
      %v4304 = vmax.f32 %v4259, %v3989
      %v4305 = vmax.f32 %v4260, %v3990
      %v4306 = vmax.f32 %v4261, %v3991
      %v4307 = vmax.f32 %v4262, %v3992
      %v4308 = vmax.f32 %v4263, %v3993
      %v4309 = vmax.f32 %v4264, %v3994
      %v4310 = vmax.f32 %v4265, %v3995
      %v4311 = vmax.f32 %v4266, %v3996
      %v4312 = vmax.f32 %v4267, %v3997
      %v4313 = vmax.f32 %v4268, %v3998
      %v4314 = vmax.f32 %v4269, %v3999
      %v4315 = vmax.f32 %v4270, %v4000
      %v4316 = vmax.f32 %v4271, %v4001
      %v4317 = vmax.f32 %v4272, %v4002
      %v4318 = vmax.f32 %v4273, %v4003
      %v4319 = vmax.f32 %v4274, %v4004
      %v4320 = vmax.f32 %v4275, %v4005
      %v4321 = vmax.f32 %v4276, %v4006
      %v4322 = vmax.f32 %v4277, %v4007
      %v4323 = vmax.f32 %v4278, %v4008
      %v4324 = vmax.f32 %v4279, %v4009
      %v4325 = vmax.f32 %v4280, %v4010
      %v4326 = vmax.f32 %v4281, %v4011
      %v4327 = vmax.f32 %v4282, %v4012
      %v4328 = vmax.f32 %v4283, %v4013
      %v4329 = vmax.f32 %v4284, %v4014
      %v4330 = vmax.f32 %v4285, %v4015
      %v4331 = vmax.f32 %v4286, %v4016
      %v4332 = vmax.f32 %v4287, %v4017
      %v4333 = vmax.f32 %v4288, %v4018
      %v4334 = vmax.f32 %v4289, %v4019
      %v4335 = vmax.f32 %v4290, %v4020
      %v4336 = vmax.f32 %v4291, %v4021
      %v4337 = vmax.f32 %v4292, %v4022
      %v4338 = vmax.f32 %v4293, %v4023
      %v4339 = vmax.f32 %v4294, %v4024
      %v4340 = vmax.f32 %v4295, %v4025
      %v4341 = vmax.f32 %v4296, %v4026
      %v4342 = vmax.f32 %v4297, %v4027
      %v4343 = vmax.f32 %v4298, %v4028
      %v4344 = vmax.f32 %v4299, %v4029
      %v4345 = vmax.f32 %v4300, %v4030
      %v4346 = vmax.f32 %v4301, %v4031
      %v4347 = vmax.f32 %v4302, %v4032
      %v4348 = vmax.f32 %v4303, %v4033
      %v4349 = vmax.f32 %v4304, %v4034
      %v4350 = vmax.f32 %v4305, %v4035
      %v4351 = vmax.f32 %v4306, %v4036
      %v4352 = vmax.f32 %v4307, %v4037
      %v4353 = vmax.f32 %v4308, %v4038
      %v4354 = vmax.f32 %v4309, %v4039
      %v4355 = vmax.f32 %v4310, %v4040
      %v4356 = vmax.f32 %v4311, %v4041
      %v4357 = vmax.f32 %v4312, %v4042
      %v4358 = vmax.f32 %v4313, %v4043
      %v4359 = vmax.f32 %v4314, %v4044
      %v4360 = vmax.f32 %v4315, %v4045
      %v4361 = vmax.f32 %v4316, %v4046
      %v4362 = vmax.f32 %v4317, %v4047
      %v4363 = vmax.f32 %v4318, %v4048
      %v4364 = vmax.f32 %v4319, %v4049
      %v4365 = vmax.f32 %v4320, %v4050
      %v4366 = vmax.f32 %v4321, %v4051
      %v4367 = vmax.f32 %v4322, %v4052
      %v4368 = vmax.f32 %v4323, %v4053
      %v4369 = vmax.f32 %v4324, %v4054
      %v4370 = vmax.f32 %v4325, %v4055
      %v4371 = vmax.f32 %v4326, %v4056
      %v4372 = vmax.f32 %v4327, %v4057
      %v4373 = vmax.f32 %v4328, %v4058
      %v4374 = vmax.f32 %v4329, %v4059
      %v4375 = vmax.f32 %v4330, %v4060
      %v4376 = vmax.f32 %v4331, %v4061
      %v4377 = vmax.f32 %v4332, %v4062
      %v4378 = vmax.f32 %v4333, %v4063
      %v4379 = vmax.f32 %v4334, %v4064
      %v4380 = vmax.f32 %v4335, %v4065
      %v4381 = vmax.f32 %v4336, %v4066
      %v4382 = vmax.f32 %v4337, %v4067
      %v4383 = vmax.f32 %v4338, %v4068
      %v4384 = vmax.f32 %v4339, %v4069
      %v4385 = vmax.f32 %v4340, %v4070
      %v4386 = vmax.f32 %v4341, %v4071
      %v4387 = vmax.f32 %v4342, %v4072
      %v4388 = vmax.f32 %v4343, %v4073
      %v4389 = vmax.f32 %v4344, %v4074
      %v4390 = vmax.f32 %v4345, %v4075
      %v4391 = vmax.f32 %v4346, %v4076
      %v4392 = vmax.f32 %v4347, %v4077
      %v4393 = vmax.f32 %v4348, %v4078
      %v4394 = vmax.f32 %v4349, %v4079
      %v4395 = vmax.f32 %v4350, %v4080
      %v4396 = vmax.f32 %v4351, %v4081
      %v4397 = vmax.f32 %v4352, %v4082
      %v4398 = vmax.f32 %v4353, %v4083
      %v4399 = vmax.f32 %v4354, %v4084
      %v4400 = vmax.f32 %v4355, %v4085
      %v4401 = vmax.f32 %v4356, %v4086
      %v4402 = vmax.f32 %v4357, %v4087
      %v4403 = vmax.f32 %v4358, %v4088
      %v4404 = vmax.f32 %v4359, %v4089
      %v4405 = vmax.f32 %v4360, %v4090
      %v4406 = vmax.f32 %v4361, %v4091
      %v4407 = vmax.f32 %v4362, %v4092
      %v4408 = vmax.f32 %v4363, %v4093
      %v4409 = vmax.f32 %v4364, %v4094
      %v4410 = vmax.f32 %v4365, %v4095
      %v4411 = vmax.f32 %v4366, %v4096
      %v4412 = vmax.f32 %v4367, %v4097
      %v4413 = vmax.f32 %v4368, %v4098
      %v4414 = vmax.f32 %v4369, %v4099
      %v4415 = vmax.f32 %v4370, %v4100
      %v4416 = vmax.f32 %v4371, %v4101
      %v4417 = vmax.f32 %v4372, %v4102
      %v4418 = vmax.f32 %v4373, %v4103
      %v4419 = vmax.f32 %v4374, %v4104
      %v4420 = vmax.f32 %v4375, %v4105
      %v4421 = vmax.f32 %v4376, %v4106
      %v4422 = vmax.f32 %v4377, %v4107
      %v4423 = vmax.f32 %v4378, %v4108
      %v4424 = vmax.f32 %v4379, %v4109
      %v4425 = vmax.f32 %v4380, %v4110
      %v4426 = vmax.f32 %v4381, %v4111
      %v4427 = vmax.f32 %v4382, %v4112
      %v4428 = vmax.f32 %v4383, %v4113
      %v4429 = vmax.f32 %v4384, %v4114
      %v4430 = vmax.f32 %v4385, %v4115
      %v4431 = vmax.f32 %v4386, %v4116
      %v4432 = vmax.f32 %v4387, %v4117
      %v4433 = vmax.f32 %v4388, %v4118
      %v4434 = vmax.f32 %v4389, %v4119
      %v4435 = vmax.f32 %v4390, %v4120
      %v4436 = vmax.f32 %v4391, %v4121
      %v4437 = vmax.f32 %v4392, %v4122
      %v4438 = vmax.f32 %v4393, %v4123
      %v4439 = vmax.f32 %v4394, %v4124
      %v4440 = vmax.f32 %v4395, %v4125
      %v4441 = vmax.f32 %v4396, %v4126
      %v4442 = vmax.f32 %v4397, %v4127
      %v4443 = vmax.f32 %v4398, %v4128
      %v4444 = vmax.f32 %v4399, %v4129
      %v4445 = vmax.f32 %v4400, %v4130
      %v4446 = vmax.f32 %v4401, %v4131
      %v4447 = vmax.f32 %v4402, %v4132
      %v4448 = vmax.f32 %v4403, %v4133
      %v4449 = vmax.f32 %v4404, %v4134
      %v4450 = vmax.f32 %v4405, %v4135
      %v4451 = vmax.f32 %v4406, %v4136
      %v4452 = vmax.f32 %v4407, %v4137
      %v4453 = vmax.f32 %v4408, %v4138
      %v4454 = vmax.f32 %v4409, %v4139
      %v4455 = vmax.f32 %v4410, %v4140
      %v4456 = vmax.f32 %v4411, %v4141
      %v4457 = vmax.f32 %v4412, %v4142
      %v4458 = vmax.f32 %v4413, %v4143
      %v4459 = vmax.f32 %v4414, %v4144
      %v4460 = vmax.f32 %v4415, %v4145
      %v4461 = vmax.f32 %v4416, %v4146
      %v4462 = vmax.f32 %v4417, %v4147
      %v4463 = vmax.f32 %v4418, %v4148
      %v4464 = vmax.f32 %v4419, %v4149
      %v4465 = vmax.f32 %v4420, %v4150
      %v4466 = vmax.f32 %v4421, %v4151
      %v4467 = vmax.f32 %v4422, %v4152
      %v4468 = vmax.f32 %v4423, %v4153
      %v4469 = vmax.f32 %v4424, %v4154
      %v4470 = vmax.f32 %v4425, %v4155
      %v4471 = vmax.f32 %v4426, %v4156
      %v4472 = vmax.f32 %v4427, %v4157
      %v4473 = vmax.f32 %v4428, %v4158
      %v4474 = vmax.f32 %v4429, %v4159
      %v4475 = vmax.f32 %v4430, %v4160
      %v4476 = vmax.f32 %v4431, %v4161
      %v4477 = vmax.f32 %v4432, %v4162
      %v4478 = vmax.f32 %v4433, %v4163
      %v4479 = vmax.f32 %v4434, %v4164
      %v4480 = vmax.f32 %v4435, %v4165
      %v4481 = vmax.f32 %v4436, %v4166
      %v4482 = vmax.f32 %v4437, %v4167
      %v4483 = vmax.f32 %v4438, %v4168
      %v4484 = vmax.f32 %v4439, %v4169
      %v4485 = vmax.f32 %v4440, %v4170
      %v4486 = vmax.f32 %v4441, %v4171
      %v4487 = vmax.f32 %v4442, %v4172
      %v4488 = vmax.f32 %v4443, %v4173
      %v4489 = vmax.f32 %v4444, %v4174
      %v4490 = vmax.f32 %v4445, %v4175
      %v4491 = vmax.f32 %v4446, %v4176
      %v4492 = vmax.f32 %v4447, %v4177
      %v4493 = vmax.f32 %v4448, %v4178
      %v4494 = vmax.f32 %v4449, %v4179
      %v4495 = vmax.f32 %v4450, %v4180
      %v4496 = vmax.f32 %v4451, %v4181
      %v4497 = vmax.f32 %v4452, %v4182
      %v4498 = vmax.f32 %v4453, %v4183
      %v4499 = vmax.f32 %v4454, %v4184
      %v4500 = vmax.f32 %v4455, %v4185
      %v4501 = vmax.f32 %v4456, %v4186
      %v4502 = vmax.f32 %v4457, %v4187
      %v4503 = vmax.f32 %v4458, %v4188
      %v4504 = vmax.f32 %v4459, %v4189
      %v4505 = vmax.f32 %v4460, %v4190
      %v4506 = vmax.f32 %v4461, %v4191
      %v4507 = vmax.f32 %v4462, %v4192
      %v4508 = vmax.f32 %v4463, %v4193
      %v4509 = vmax.f32 %v4464, %v4194
      %v4510 = vmax.f32 %v4465, %v4195
      %v4511 = vmax.f32 %v4466, %v4196
      %v4512 = vmax.f32 %v4467, %v4197
      %v4513 = vmax.f32 %v4468, %v4198
      %v4514 = vmax.f32 %v4469, %v4199
      %v4515 = vmax.f32 %v4470, %v4200
      %v4516 = vmax.f32 %v4471, %v4201
      %v4517 = vmax.f32 %v4472, %v4202
      %v4518 = vmax.f32 %v4473, %v4203
      %v4519 = vmax.f32 %v4474, %v4204
      %v4520 = vmax.f32 %v4475, %v4205
      %v4521 = vmax.f32 %v4476, %v4206
      %v4522 = vmax.f32 %v4477, %v4207
      %v4523 = vmax.f32 %v4478, %v4208
      %v4524 = vmax.f32 %v4479, %v4209
      %v4525 = vmax.f32 %v4480, %v4210
      %v4526 = vmax.f32 %v4481, %v4211
      %v4527 = vmax.f32 %v4482, %v4212
      %v4528 = vmax.f32 %v4483, %v4213
      %v4529 = vmax.f32 %v4484, %v4214
      %v4530 = vmax.f32 %v4485, %v4215
      %v4531 = vmax.f32 %v4486, %v4216
      %v4532 = vmax.f32 %v4487, %v4217
      %v4533 = vmax.f32 %v4488, %v4218
      %v4534 = vmax.f32 %v4489, %v4219
      %v4535 = vmax.f32 %v4490, %v4220
      %v4536 = vmax.f32 %v4491, %v4221
      %v4537 = vmax.f32 %v4492, %v4222
      %v4538 = vmax.f32 %v4493, %v4223
      %v4539 = vmul.f32 %v4494, 0.5
      %v4540 = vmul.f32 %v4495, 0.5
      %v4541 = vmul.f32 %v4496, 0.5
      %v4542 = vmul.f32 %v4497, 0.5
      %v4543 = vmul.f32 %v4498, 0.5
      %v4544 = vmul.f32 %v4499, 0.5
      %v4545 = vmul.f32 %v4500, 0.5
      %v4546 = vmul.f32 %v4501, 0.5
      %v4547 = vmul.f32 %v4502, 0.5
      %v4548 = vmul.f32 %v4503, 0.5
      %v4549 = vmul.f32 %v4504, 0.5
      %v4550 = vmul.f32 %v4505, 0.5
      %v4551 = vmul.f32 %v4506, 0.5
      %v4552 = vmul.f32 %v4507, 0.5
      %v4553 = vmul.f32 %v4508, 0.5
      %v4554 = vmul.f32 %v4509, 0.5
      %v4555 = vmul.f32 %v4510, 0.5
      %v4556 = vmul.f32 %v4511, 0.5
      %v4557 = vmul.f32 %v4512, 0.5
      %v4558 = vmul.f32 %v4513, 0.5
      %v4559 = vmul.f32 %v4514, 0.5
      %v4560 = vmul.f32 %v4515, 0.5
      %v4561 = vmul.f32 %v4516, 0.5
      %v4562 = vmul.f32 %v4517, 0.5
      %v4563 = vmul.f32 %v4518, 0.5
      %v4564 = vmul.f32 %v4519, 0.5
      %v4565 = vmul.f32 %v4520, 0.5
      %v4566 = vmul.f32 %v4521, 0.5
      %v4567 = vmul.f32 %v4522, 0.5
      %v4568 = vmul.f32 %v4523, 0.5
      %v4569 = vmul.f32 %v4524, 0.5
      %v4570 = vmul.f32 %v4525, 0.5
      %v4571 = vmul.f32 %v4526, 0.5
      %v4572 = vmul.f32 %v4527, 0.5
      %v4573 = vmul.f32 %v4528, 0.5
      %v4574 = vmul.f32 %v4529, 0.5
      %v4575 = vmul.f32 %v4530, 0.5
      %v4576 = vmul.f32 %v4531, 0.5
      %v4577 = vmul.f32 %v4532, 0.5
      %v4578 = vmul.f32 %v4533, 0.5
      %v4579 = vmul.f32 %v4534, 0.5
      %v4580 = vmul.f32 %v4535, 0.5
      %v4581 = vmul.f32 %v4536, 0.5
      %v4582 = vmul.f32 %v4537, 0.5
      %v4583 = vmul.f32 %v4538, 0.5
      %v4584 = vtanh.pop %v4539
      %v4585 = vtanh.pop %v4540
      %v4586 = vtanh.pop %v4541
      %v4587 = vtanh.pop %v4542
      %v4588 = vtanh.pop %v4543
      %v4589 = vtanh.pop %v4544
      %v4590 = vtanh.pop %v4545
      %v4591 = vtanh.pop %v4546
      %v4592 = vtanh.pop %v4547
      %v4593 = vtanh.pop %v4548
      %v4594 = vtanh.pop %v4549
      %v4595 = vtanh.pop %v4550
      %v4596 = vtanh.pop %v4551
      %v4597 = vtanh.pop %v4552
      %v4598 = vtanh.pop %v4553
      %v4599 = vtanh.pop %v4554
      %v4600 = vtanh.pop %v4555
      %v4601 = vtanh.pop %v4556
      %v4602 = vtanh.pop %v4557
      %v4603 = vtanh.pop %v4558
      %v4604 = vtanh.pop %v4559
      %v4605 = vtanh.pop %v4560
      %v4606 = vtanh.pop %v4561
      %v4607 = vtanh.pop %v4562
      %v4608 = vtanh.pop %v4563
      %v4609 = vtanh.pop %v4564
      %v4610 = vtanh.pop %v4565
      %v4611 = vtanh.pop %v4566
      %v4612 = vtanh.pop %v4567
      %v4613 = vtanh.pop %v4568
      %v4614 = vtanh.pop %v4569
      %v4615 = vtanh.pop %v4570
      %v4616 = vtanh.pop %v4571
      %v4617 = vtanh.pop %v4572
      %v4618 = vtanh.pop %v4573
      %v4619 = vtanh.pop %v4574
      %v4620 = vtanh.pop %v4575
      %v4621 = vtanh.pop %v4576
      %v4622 = vtanh.pop %v4577
      %v4623 = vtanh.pop %v4578
      %v4624 = vtanh.pop %v4579
      %v4625 = vtanh.pop %v4580
      %v4626 = vtanh.pop %v4581
      %v4627 = vtanh.pop %v4582
      %v4628 = vtanh.pop %v4583
      %v4629 = vmul.f32 %v4494, 1.442695
      %v4630 = vpow.pop %v4629
      %v4631 = vmul.f32 %v4495, 1.442695
      %v4632 = vpow.pop %v4631
      %v4633 = vmul.f32 %v4496, 1.442695
      %v4634 = vpow.pop %v4633
      %v4635 = vmul.f32 %v4497, 1.442695
      %v4636 = vpow.pop %v4635
      %v4637 = vmul.f32 %v4498, 1.442695
      %v4638 = vpow.pop %v4637
      %v4639 = vmul.f32 %v4499, 1.442695
      %v4640 = vpow.pop %v4639
      %v4641 = vmul.f32 %v4500, 1.442695
      %v4642 = vpow.pop %v4641
      %v4643 = vmul.f32 %v4501, 1.442695
      %v4644 = vpow.pop %v4643
      %v4645 = vmul.f32 %v4502, 1.442695
      %v4646 = vpow.pop %v4645
      %v4647 = vmul.f32 %v4503, 1.442695
      %v4648 = vpow.pop %v4647
      %v4649 = vmul.f32 %v4504, 1.442695
      %v4650 = vpow.pop %v4649
      %v4651 = vmul.f32 %v4505, 1.442695
      %v4652 = vpow.pop %v4651
      %v4653 = vmul.f32 %v4506, 1.442695
      %v4654 = vpow.pop %v4653
      %v4655 = vmul.f32 %v4507, 1.442695
      %v4656 = vpow.pop %v4655
      %v4657 = vmul.f32 %v4508, 1.442695
      %v4658 = vpow.pop %v4657
      %v4659 = vmul.f32 %v4509, 1.442695
      %v4660 = vpow.pop %v4659
      %v4661 = vmul.f32 %v4510, 1.442695
      %v4662 = vpow.pop %v4661
      %v4663 = vmul.f32 %v4511, 1.442695
      %v4664 = vpow.pop %v4663
      %v4665 = vmul.f32 %v4512, 1.442695
      %v4666 = vpow.pop %v4665
      %v4667 = vmul.f32 %v4513, 1.442695
      %v4668 = vpow.pop %v4667
      %v4669 = vmul.f32 %v4514, 1.442695
      %v4670 = vpow.pop %v4669
      %v4671 = vmul.f32 %v4515, 1.442695
      %v4672 = vpow.pop %v4671
      %v4673 = vmul.f32 %v4516, 1.442695
      %v4674 = vpow.pop %v4673
      %v4675 = vmul.f32 %v4517, 1.442695
      %v4676 = vpow.pop %v4675
      %v4677 = vmul.f32 %v4518, 1.442695
      %v4678 = vpow.pop %v4677
      %v4679 = vmul.f32 %v4519, 1.442695
      %v4680 = vpow.pop %v4679
      %v4681 = vmul.f32 %v4520, 1.442695
      %v4682 = vpow.pop %v4681
      %v4683 = vmul.f32 %v4521, 1.442695
      %v4684 = vpow.pop %v4683
      %v4685 = vmul.f32 %v4522, 1.442695
      %v4686 = vpow.pop %v4685
      %v4687 = vmul.f32 %v4523, 1.442695
      %v4688 = vpow.pop %v4687
      %v4689 = vmul.f32 %v4524, 1.442695
      %v4690 = vpow.pop %v4689
      %v4691 = vmul.f32 %v4525, 1.442695
      %v4692 = vpow.pop %v4691
      %v4693 = vmul.f32 %v4526, 1.442695
      %v4694 = vpow.pop %v4693
      %v4695 = vmul.f32 %v4527, 1.442695
      %v4696 = vpow.pop %v4695
      %v4697 = vmul.f32 %v4528, 1.442695
      %v4698 = vpow.pop %v4697
      %v4699 = vmul.f32 %v4529, 1.442695
      %v4700 = vpow.pop %v4699
      %v4701 = vmul.f32 %v4530, 1.442695
      %v4702 = vpow.pop %v4701
      %v4703 = vmul.f32 %v4531, 1.442695
      %v4704 = vpow.pop %v4703
      %v4705 = vmul.f32 %v4532, 1.442695
      %v4706 = vpow.pop %v4705
      %v4707 = vmul.f32 %v4533, 1.442695
      %v4708 = vpow.pop %v4707
      %v4709 = vmul.f32 %v4534, 1.442695
      %v4710 = vpow.pop %v4709
      %v4711 = vmul.f32 %v4535, 1.442695
      %v4712 = vpow.pop %v4711
      %v4713 = vmul.f32 %v4536, 1.442695
      %v4714 = vpow.pop %v4713
      %v4715 = vmul.f32 %v4537, 1.442695
      %v4716 = vpow.pop %v4715
      %v4717 = vmul.f32 %v4538, 1.442695
      %v4718 = vpow.pop %v4717
      %v4719 = vadd.f32 %v4630, 1.0
      %v4720 = vadd.f32 %v4632, 1.0
      %v4721 = vadd.f32 %v4634, 1.0
      %v4722 = vadd.f32 %v4636, 1.0
      %v4723 = vadd.f32 %v4638, 1.0
      %v4724 = vadd.f32 %v4640, 1.0
      %v4725 = vadd.f32 %v4642, 1.0
      %v4726 = vadd.f32 %v4644, 1.0
      %v4727 = vadd.f32 %v4646, 1.0
      %v4728 = vadd.f32 %v4648, 1.0
      %v4729 = vadd.f32 %v4650, 1.0
      %v4730 = vadd.f32 %v4652, 1.0
      %v4731 = vadd.f32 %v4654, 1.0
      %v4732 = vadd.f32 %v4656, 1.0
      %v4733 = vadd.f32 %v4658, 1.0
      %v4734 = vadd.f32 %v4660, 1.0
      %v4735 = vadd.f32 %v4662, 1.0
      %v4736 = vadd.f32 %v4664, 1.0
      %v4737 = vadd.f32 %v4666, 1.0
      %v4738 = vadd.f32 %v4668, 1.0
      %v4739 = vadd.f32 %v4670, 1.0
      %v4740 = vadd.f32 %v4672, 1.0
      %v4741 = vadd.f32 %v4674, 1.0
      %v4742 = vadd.f32 %v4676, 1.0
      %v4743 = vadd.f32 %v4678, 1.0
      %v4744 = vadd.f32 %v4680, 1.0
      %v4745 = vadd.f32 %v4682, 1.0
      %v4746 = vadd.f32 %v4684, 1.0
      %v4747 = vadd.f32 %v4686, 1.0
      %v4748 = vadd.f32 %v4688, 1.0
      %v4749 = vadd.f32 %v4690, 1.0
      %v4750 = vadd.f32 %v4692, 1.0
      %v4751 = vadd.f32 %v4694, 1.0
      %v4752 = vadd.f32 %v4696, 1.0
      %v4753 = vadd.f32 %v4698, 1.0
      %v4754 = vadd.f32 %v4700, 1.0
      %v4755 = vadd.f32 %v4702, 1.0
      %v4756 = vadd.f32 %v4704, 1.0
      %v4757 = vadd.f32 %v4706, 1.0
      %v4758 = vadd.f32 %v4708, 1.0
      %v4759 = vadd.f32 %v4710, 1.0
      %v4760 = vadd.f32 %v4712, 1.0
      %v4761 = vadd.f32 %v4714, 1.0
      %v4762 = vadd.f32 %v4716, 1.0
      %v4763 = vadd.f32 %v4718, 1.0
      %v4764 = vmul.f32 %v4584, %v4719
      %v4765 = vmul.f32 %v4585, %v4720
      %v4766 = vmul.f32 %v4586, %v4721
      %v4767 = vmul.f32 %v4587, %v4722
      %v4768 = vmul.f32 %v4588, %v4723
      %v4769 = vmul.f32 %v4589, %v4724
      %v4770 = vmul.f32 %v4590, %v4725
      %v4771 = vmul.f32 %v4591, %v4726
      %v4772 = vmul.f32 %v4592, %v4727
      %v4773 = vmul.f32 %v4593, %v4728
      %v4774 = vmul.f32 %v4594, %v4729
      %v4775 = vmul.f32 %v4595, %v4730
      %v4776 = vmul.f32 %v4596, %v4731
      %v4777 = vmul.f32 %v4597, %v4732
      %v4778 = vmul.f32 %v4598, %v4733
      %v4779 = vmul.f32 %v4599, %v4734
      %v4780 = vmul.f32 %v4600, %v4735
      %v4781 = vmul.f32 %v4601, %v4736
      %v4782 = vmul.f32 %v4602, %v4737
      %v4783 = vmul.f32 %v4603, %v4738
      %v4784 = vmul.f32 %v4604, %v4739
      %v4785 = vmul.f32 %v4605, %v4740
      %v4786 = vmul.f32 %v4606, %v4741
      %v4787 = vmul.f32 %v4607, %v4742
      %v4788 = vmul.f32 %v4608, %v4743
      %v4789 = vmul.f32 %v4609, %v4744
      %v4790 = vmul.f32 %v4610, %v4745
      %v4791 = vmul.f32 %v4611, %v4746
      %v4792 = vmul.f32 %v4612, %v4747
      %v4793 = vmul.f32 %v4613, %v4748
      %v4794 = vmul.f32 %v4614, %v4749
      %v4795 = vmul.f32 %v4615, %v4750
      %v4796 = vmul.f32 %v4616, %v4751
      %v4797 = vmul.f32 %v4617, %v4752
      %v4798 = vmul.f32 %v4618, %v4753
      %v4799 = vmul.f32 %v4619, %v4754
      %v4800 = vmul.f32 %v4620, %v4755
      %v4801 = vmul.f32 %v4621, %v4756
      %v4802 = vmul.f32 %v4622, %v4757
      %v4803 = vmul.f32 %v4623, %v4758
      %v4804 = vmul.f32 %v4624, %v4759
      %v4805 = vmul.f32 %v4625, %v4760
      %v4806 = vmul.f32 %v4626, %v4761
      %v4807 = vmul.f32 %v4627, %v4762
      %v4808 = vmul.f32 %v4628, %v4763
      %vm4809 = vcmp.gt.f32.partialorder %v4494, 0.0
      %vm4810 = vcmp.gt.f32.partialorder %v4495, 0.0
      %vm4811 = vcmp.gt.f32.partialorder %v4496, 0.0
      %vm4812 = vcmp.gt.f32.partialorder %v4497, 0.0
      %vm4813 = vcmp.gt.f32.partialorder %v4498, 0.0
      %vm4814 = vcmp.gt.f32.partialorder %v4499, 0.0
      %vm4815 = vcmp.gt.f32.partialorder %v4500, 0.0
      %vm4816 = vcmp.gt.f32.partialorder %v4501, 0.0
      %vm4817 = vcmp.gt.f32.partialorder %v4502, 0.0
      %vm4818 = vcmp.gt.f32.partialorder %v4503, 0.0
      %vm4819 = vcmp.gt.f32.partialorder %v4504, 0.0
      %vm4820 = vcmp.gt.f32.partialorder %v4505, 0.0
      %vm4821 = vcmp.gt.f32.partialorder %v4506, 0.0
      %vm4822 = vcmp.gt.f32.partialorder %v4507, 0.0
      %vm4823 = vcmp.gt.f32.partialorder %v4508, 0.0
      %vm4824 = vcmp.gt.f32.partialorder %v4509, 0.0
      %vm4825 = vcmp.gt.f32.partialorder %v4510, 0.0
      %vm4826 = vcmp.gt.f32.partialorder %v4511, 0.0
      %vm4827 = vcmp.gt.f32.partialorder %v4512, 0.0
      %vm4828 = vcmp.gt.f32.partialorder %v4513, 0.0
      %vm4829 = vcmp.gt.f32.partialorder %v4514, 0.0
      %vm4830 = vcmp.gt.f32.partialorder %v4515, 0.0
      %vm4831 = vcmp.gt.f32.partialorder %v4516, 0.0
      %vm4832 = vcmp.gt.f32.partialorder %v4517, 0.0
      %vm4833 = vcmp.gt.f32.partialorder %v4518, 0.0
      %vm4834 = vcmp.gt.f32.partialorder %v4519, 0.0
      %vm4835 = vcmp.gt.f32.partialorder %v4520, 0.0
      %vm4836 = vcmp.gt.f32.partialorder %v4521, 0.0
      %vm4837 = vcmp.gt.f32.partialorder %v4522, 0.0
      %vm4838 = vcmp.gt.f32.partialorder %v4523, 0.0
      %vm4839 = vcmp.gt.f32.partialorder %v4524, 0.0
      %vm4840 = vcmp.gt.f32.partialorder %v4525, 0.0
      %vm4841 = vcmp.gt.f32.partialorder %v4526, 0.0
      %vm4842 = vcmp.gt.f32.partialorder %v4527, 0.0
      %vm4843 = vcmp.gt.f32.partialorder %v4528, 0.0
      %vm4844 = vcmp.gt.f32.partialorder %v4529, 0.0
      %vm4845 = vcmp.gt.f32.partialorder %v4530, 0.0
      %vm4846 = vcmp.gt.f32.partialorder %v4531, 0.0
      %vm4847 = vcmp.gt.f32.partialorder %v4532, 0.0
      %vm4848 = vcmp.gt.f32.partialorder %v4533, 0.0
      %vm4849 = vcmp.gt.f32.partialorder %v4534, 0.0
      %vm4850 = vcmp.gt.f32.partialorder %v4535, 0.0
      %vm4851 = vcmp.gt.f32.partialorder %v4536, 0.0
      %vm4852 = vcmp.gt.f32.partialorder %v4537, 0.0
      %vm4853 = vcmp.gt.f32.partialorder %v4538, 0.0
      %v4854 = vsel %vm4809, %v4494, %v4764
      %v4855 = vsel %vm4810, %v4495, %v4765
      %v4856 = vsel %vm4811, %v4496, %v4766
      %v4857 = vsel %vm4812, %v4497, %v4767
      %v4858 = vsel %vm4813, %v4498, %v4768
      %v4859 = vsel %vm4814, %v4499, %v4769
      %v4860 = vsel %vm4815, %v4500, %v4770
      %v4861 = vsel %vm4816, %v4501, %v4771
      %v4862 = vsel %vm4817, %v4502, %v4772
      %v4863 = vsel %vm4818, %v4503, %v4773
      %v4864 = vsel %vm4819, %v4504, %v4774
      %v4865 = vsel %vm4820, %v4505, %v4775
      %v4866 = vsel %vm4821, %v4506, %v4776
      %v4867 = vsel %vm4822, %v4507, %v4777
      %v4868 = vsel %vm4823, %v4508, %v4778
      %v4869 = vsel %vm4824, %v4509, %v4779
      %v4870 = vsel %vm4825, %v4510, %v4780
      %v4871 = vsel %vm4826, %v4511, %v4781
      %v4872 = vsel %vm4827, %v4512, %v4782
      %v4873 = vsel %vm4828, %v4513, %v4783
      %v4874 = vsel %vm4829, %v4514, %v4784
      %v4875 = vsel %vm4830, %v4515, %v4785
      %v4876 = vsel %vm4831, %v4516, %v4786
      %v4877 = vsel %vm4832, %v4517, %v4787
      %v4878 = vsel %vm4833, %v4518, %v4788
      %v4879 = vsel %vm4834, %v4519, %v4789
      %v4880 = vsel %vm4835, %v4520, %v4790
      %v4881 = vsel %vm4836, %v4521, %v4791
      %v4882 = vsel %vm4837, %v4522, %v4792
      %v4883 = vsel %vm4838, %v4523, %v4793
      %v4884 = vsel %vm4839, %v4524, %v4794
      %v4885 = vsel %vm4840, %v4525, %v4795
      %v4886 = vsel %vm4841, %v4526, %v4796
      %v4887 = vsel %vm4842, %v4527, %v4797
      %v4888 = vsel %vm4843, %v4528, %v4798
      %v4889 = vsel %vm4844, %v4529, %v4799
      %v4890 = vsel %vm4845, %v4530, %v4800
      %v4891 = vsel %vm4846, %v4531, %v4801
      %v4892 = vsel %vm4847, %v4532, %v4802
      %v4893 = vsel %vm4848, %v4533, %v4803
      %v4894 = vsel %vm4849, %v4534, %v4804
      %v4895 = vsel %vm4850, %v4535, %v4805
      %v4896 = vsel %vm4851, %v4536, %v4806
      %v4897 = vsel %vm4852, %v4537, %v4807
      %v4898 = vsel %vm4853, %v4538, %v4808
      %vm4899 = vcmask 261120
      %4900 = vst.msk [vmem:[%s199] sm:$0xff] %vm4899, %v4854
      %4901 = vst.msk [vmem:[%s199 + $0x8] sm:$0xff] %vm4899, %v4855
      %4902 = vst.msk [vmem:[%s199 + $0x10] sm:$0xff] %vm4899, %v4856
      %4903 = vst.msk [vmem:[%s199 + $0x18] sm:$0xff] %vm4899, %v4857
      %4904 = vst.msk [vmem:[%s199 + $0x20] sm:$0xff] %vm4899, %v4858
      %4905 = vst.msk [vmem:[%s199 + $0x28] sm:$0xff] %vm4899, %v4859
      %4906 = vst.msk [vmem:[%s199 + $0x30] sm:$0xff] %vm4899, %v4860
      %4907 = vst.msk [vmem:[%s199 + $0x38] sm:$0xff] %vm4899, %v4861
      %4908 = vst.msk [vmem:[%s199 + $0x40] sm:$0xff] %vm4899, %v4862
      %4909 = vst.msk [vmem:[%s199 + $0x48] sm:$0xff] %vm4899, %v4863
      %4910 = vst.msk [vmem:[%s199 + $0x50] sm:$0xff] %vm4899, %v4864
      %4911 = vst.msk [vmem:[%s199 + $0x58] sm:$0xff] %vm4899, %v4865
      %4912 = vst.msk [vmem:[%s199 + $0x60] sm:$0xff] %vm4899, %v4866
      %4913 = vst.msk [vmem:[%s199 + $0x68] sm:$0xff] %vm4899, %v4867
      %4914 = vst.msk [vmem:[%s199 + $0x70] sm:$0xff] %vm4899, %v4868
      %4915 = vst.msk [vmem:[%s199 + $0x78] sm:$0xff] %vm4899, %v4869
      %4916 = vst.msk [vmem:[%s199 + $0x80] sm:$0xff] %vm4899, %v4870
      %4917 = vst.msk [vmem:[%s199 + $0x88] sm:$0xff] %vm4899, %v4871
      %4918 = vst.msk [vmem:[%s199 + $0x90] sm:$0xff] %vm4899, %v4872
      %4919 = vst.msk [vmem:[%s199 + $0x98] sm:$0xff] %vm4899, %v4873
      %4920 = vst.msk [vmem:[%s199 + $0xa0] sm:$0xff] %vm4899, %v4874
      %4921 = vst.msk [vmem:[%s199 + $0xa8] sm:$0xff] %vm4899, %v4875
      %4922 = vst.msk [vmem:[%s199 + $0xb0] sm:$0xff] %vm4899, %v4876
      %4923 = vst.msk [vmem:[%s199 + $0xb8] sm:$0xff] %vm4899, %v4877
      %4924 = vst.msk [vmem:[%s199 + $0xc0] sm:$0xff] %vm4899, %v4878
      %4925 = vst.msk [vmem:[%s199 + $0xc8] sm:$0xff] %vm4899, %v4879
      %4926 = vst.msk [vmem:[%s199 + $0xd0] sm:$0xff] %vm4899, %v4880
      %4927 = vst.msk [vmem:[%s199 + $0xd8] sm:$0xff] %vm4899, %v4881
      %4928 = vst.msk [vmem:[%s199 + $0xe0] sm:$0xff] %vm4899, %v4882
      %4929 = vst.msk [vmem:[%s199 + $0xe8] sm:$0xff] %vm4899, %v4883
      %4930 = vst.msk [vmem:[%s199 + $0xf0] sm:$0xff] %vm4899, %v4884
      %4931 = vst.msk [vmem:[%s199 + $0xf8] sm:$0xff] %vm4899, %v4885
      %4932 = vst.msk [vmem:[%s199 + $0x100] sm:$0xff] %vm4899, %v4886
      %4933 = vst.msk [vmem:[%s199 + $0x108] sm:$0xff] %vm4899, %v4887
      %4934 = vst.msk [vmem:[%s199 + $0x110] sm:$0xff] %vm4899, %v4888
      %4935 = vst.msk [vmem:[%s199 + $0x118] sm:$0xff] %vm4899, %v4889
      %4936 = vst.msk [vmem:[%s199 + $0x120] sm:$0xff] %vm4899, %v4890
      %4937 = vst.msk [vmem:[%s199 + $0x128] sm:$0xff] %vm4899, %v4891
      %4938 = vst.msk [vmem:[%s199 + $0x130] sm:$0xff] %vm4899, %v4892
      %4939 = vst.msk [vmem:[%s199 + $0x138] sm:$0xff] %vm4899, %v4893
      %4940 = vst.msk [vmem:[%s199 + $0x140] sm:$0xff] %vm4899, %v4894
      %4941 = vst.msk [vmem:[%s199 + $0x148] sm:$0xff] %vm4899, %v4895
      %4942 = vst.msk [vmem:[%s199 + $0x150] sm:$0xff] %vm4899, %v4896
      %4943 = vst.msk [vmem:[%s199 + $0x158] sm:$0xff] %vm4899, %v4897
      %4944 = vst.msk [vmem:[%s199 + $0x160] sm:$0xff] %vm4899, %v4898
      %s4945 = smul.u32 45, %s15
      %p4946 = scmp.lt.s32.totalorder %s4945, 179
      %s4947 = scalar_select %p4946, %s4945, 179
      %s4948 = smul.addr %s4947, 8
      %s4949 = scalar_lea.vmem %s4, %s4948
      // Predicated region
      $region37: #{forward.6} parent=35 // pred_check
        %p4950 = pneg %p122
      $region38: #{forward.6} parent=35 // pred_check_branch
        %4952 = sbr.rel (%p4950) target = $region40
      $region39: #{forward.6} parent=35 // pred_region
        %s4953 = smul.u32 45, %s15
      $region40: #{forward.6} parent=35 // pred_fallthru
        _
    $region36: #{forward.6} parent=5 // pred_fallthru
      _
    %p4954 = scmp.le.s32.totalorder 2, %s10
    // Predicated region
    $region41: #{forward.6} parent=5 // pred_check
      %p4955 = pneg %p4954
    $region42: #{forward.6} parent=5 // pred_check_branch
      %4957 = sbr.rel (%p4955) target = $region44
    $region43: #{forward.6} parent=5 // pred_region
      %s4958 = ssub.s32 %s10, 2
      // Predicated region
      $region45: #{forward.6} parent=43 // pred_check
        %p4959 = pneg %p128
      $region46: #{forward.6} parent=43 // pred_check_branch
        %4961 = sbr.rel (%p4959) target = $region48
      $region47: #{forward.6} parent=43 // pred_region
        %s4962 = smul.u32 45, %s16
        %p4963 = scmp.lt.s32.totalorder %s4962, 179
        %s4964 = scalar_select %p4963, %s4962, 179
        %s4965 = smul.addr %s4964, 8
        %s4966 = scalar_lea.vmem %s4, %s4965
      $region48: #{forward.6} parent=43 // pred_fallthru
        _
    $region44: #{forward.6} parent=5 // pred_fallthru
      _
  $region6: #{forward.6} parent=0 // loop_footer
    %s14 = sadd.s32 1, %s10
  $region7: #{forward.6} parent=0 // loop_footer_branch
    %9 = sbr.rel target = $region3
  $region8: #{forward.6} parent=0 // loop_exit
    _

// kernel: forward.7
$region0: #{forward.7}
  #allocation0 [shape = 'u32[]', space=smem, size = 0x4, offset = 0x4, fixed_abs, tag = 'smem constant byte address 0x4 - core index']
  #allocation1 [shape = 'u32[144,128]{1,0:T(1,128)}', space=vmem, size = 0x12000, scoped, tag = 'internal scratch']
  %s0 = inlined_call_operand.vmem [shape: bf16[1440,288], index: 0, kind: input, shape index: {}]
  %s1 = inlined_call_operand.vmem [shape: bf16[288,64], index: 1, kind: input, shape index: {}]
  %s2 = inlined_call_operand.vmem [shape: f32[1,64], index: 2, kind: input, shape index: {}]
  %s3 = inlined_call_operand.vmem [shape: f32[1,64], index: 3, kind: input, shape index: {}]
  %s4 = inlined_call_operand.vmem [shape: f32[120,64], index: 4, kind: output, shape index: {}]
  %s5 = sld [smem:[#allocation0]]
  $region26: #{forward.7} parent=0
    _
  %s7 = ssub.s32 1, %s5
  %s8 = scalar_select 0, %s7, %s5
  // Predicated region
  $region2: #{forward.7} parent=0 // pred_check
    _
  $region3: #{forward.7} parent=0 // pred_check_branch
    %10 = sbr.rel (0) target = $region5
  $region4: #{forward.7} parent=0 // pred_region
    _
  $region5: #{forward.7} parent=0 // pred_fallthru
    _
  // Predicated region
  $region6: #{forward.7} parent=0 // pred_check
    _
  $region7: #{forward.7} parent=0 // pred_check_branch
    %12 = sbr.rel (0) target = $region9
  $region8: #{forward.7} parent=0 // pred_region
    _
  $region9: #{forward.7} parent=0 // pred_fallthru
    _
  // Predicated region
  $region10: #{forward.7} parent=0 // pred_check
    _
  $region11: #{forward.7} parent=0 // pred_check_branch
    %14 = sbr.rel (0) target = $region13
  $region12: #{forward.7} parent=0 // pred_region
    _
  $region13: #{forward.7} parent=0 // pred_fallthru
    _
  // Predicated region
  $region14: #{forward.7} parent=0 // pred_check
    _
  $region15: #{forward.7} parent=0 // pred_check_branch
    %16 = sbr.rel (0) target = $region17
  $region16: #{forward.7} parent=0 // pred_region
    _
  $region17: #{forward.7} parent=0 // pred_fallthru
    _
  %v18 = vld [vmem:[%s0] sm:$0xff]
  %v19 = vld [vmem:[%s0 + $0x8] sm:$0xf]
  %v20 = vld [vmem:[%s0 + $0xc] sm:$0xff]
  %v21 = vld [vmem:[%s0 + $0x14] sm:$0xf]
  %v22 = vld [vmem:[%s0 + $0x18] sm:$0xff]
  %v23 = vld [vmem:[%s0 + $0x20] sm:$0xf]
  %v24 = vld [vmem:[%s0 + $0x24] sm:$0xff]
  %v25 = vld [vmem:[%s0 + $0x2c] sm:$0xf]
  %v26 = vld [vmem:[%s0 + $0x30] sm:$0xff]
  %v27 = vld [vmem:[%s0 + $0x38] sm:$0xf]
  %v28 = vld [vmem:[%s0 + $0x3c] sm:$0xff]
  %v29 = vld [vmem:[%s0 + $0x44] sm:$0xf]
  %v30 = vld [vmem:[%s0 + $0x48] sm:$0xff]
  %v31 = vld [vmem:[%s0 + $0x50] sm:$0xf]
  %v32 = vld [vmem:[%s0 + $0x54] sm:$0xff]
  %v33 = vld [vmem:[%s0 + $0x5c] sm:$0xf]
  %v34 = vld [vmem:[%s0 + $0x60] sm:$0xff]
  %v35 = vld [vmem:[%s0 + $0x68] sm:$0xf]
  %v36 = vld [vmem:[%s0 + $0x6c] sm:$0xff]
  %v37 = vld [vmem:[%s0 + $0x74] sm:$0xf]
  %v38 = vld [vmem:[%s0 + $0x78] sm:$0xff]
  %v39 = vld [vmem:[%s0 + $0x80] sm:$0xf]
  %v40 = vld [vmem:[%s0 + $0x84] sm:$0xff]
  %v41 = vld [vmem:[%s0 + $0x8c] sm:$0xf]
  %v42 = vld [vmem:[%s0 + $0x90] sm:$0xff]
  %v43 = vld [vmem:[%s0 + $0x98] sm:$0xf]
  %v44 = vld [vmem:[%s0 + $0x9c] sm:$0xff]
  %v45 = vld [vmem:[%s0 + $0xa4] sm:$0xf]
  %v46 = vld [vmem:[%s0 + $0xa8] sm:$0xff]
  %v47 = vld [vmem:[%s0 + $0xb0] sm:$0xf]
  %v48 = vld [vmem:[%s0 + $0xb4] sm:$0xff]
  %v49 = vld [vmem:[%s0 + $0xbc] sm:$0xf]
  %v50 = vld [vmem:[%s0 + $0xc0] sm:$0xff]
  %v51 = vld [vmem:[%s0 + $0xc8] sm:$0xf]
  %v52 = vld [vmem:[%s0 + $0xcc] sm:$0xff]
  %v53 = vld [vmem:[%s0 + $0xd4] sm:$0xf]
  %v54 = vld [vmem:[%s0 + $0xd8] sm:$0xff]
  %v55 = vld [vmem:[%s0 + $0xe0] sm:$0xf]
  %v56 = vld [vmem:[%s0 + $0xe4] sm:$0xff]
  %v57 = vld [vmem:[%s0 + $0xec] sm:$0xf]
  %v58 = vld [vmem:[%s0 + $0xf0] sm:$0xff]
  %v59 = vld [vmem:[%s0 + $0xf8] sm:$0xf]
  %v60 = vld [vmem:[%s0 + $0xfc] sm:$0xff]
  %v61 = vld [vmem:[%s0 + $0x104] sm:$0xf]
  %v62 = vld [vmem:[%s0 + $0x108] sm:$0xff]
  %v63 = vld [vmem:[%s0 + $0x110] sm:$0xf]
  %v64 = vld [vmem:[%s0 + $0x114] sm:$0xff]
  %v65 = vld [vmem:[%s0 + $0x11c] sm:$0xf]
  %v66 = vld [vmem:[%s0 + $0x120] sm:$0xff]
  %v67 = vld [vmem:[%s0 + $0x128] sm:$0xf]
  %v68 = vld [vmem:[%s0 + $0x12c] sm:$0xff]
  %v69 = vld [vmem:[%s0 + $0x134] sm:$0xf]
  %v70 = vld [vmem:[%s0 + $0x138] sm:$0xff]
  %v71 = vld [vmem:[%s0 + $0x140] sm:$0xf]
  %v72 = vld [vmem:[%s0 + $0x144] sm:$0xff]
  %v73 = vld [vmem:[%s0 + $0x14c] sm:$0xf]
  %v74 = vld [vmem:[%s0 + $0x150] sm:$0xff]
  %v75 = vld [vmem:[%s0 + $0x158] sm:$0xf]
  %v76 = vld [vmem:[%s0 + $0x15c] sm:$0xff]
  %v77 = vld [vmem:[%s0 + $0x164] sm:$0xf]
  %v78 = vld [vmem:[%s0 + $0x168] sm:$0xff]
  %v79 = vld [vmem:[%s0 + $0x170] sm:$0xf]
  %v80 = vld [vmem:[%s0 + $0x174] sm:$0xff]
  %v81 = vld [vmem:[%s0 + $0x17c] sm:$0xf]
  %v82 = vld [vmem:[%s0 + $0x180] sm:$0xff]
  %v83 = vld [vmem:[%s0 + $0x188] sm:$0xf]
  %v84 = vld [vmem:[%s0 + $0x18c] sm:$0xff]
  %v85 = vld [vmem:[%s0 + $0x194] sm:$0xf]
  %v86 = vld [vmem:[%s0 + $0x198] sm:$0xff]
  %v87 = vld [vmem:[%s0 + $0x1a0] sm:$0xf]
  %v88 = vld [vmem:[%s0 + $0x1a4] sm:$0xff]
  %v89 = vld [vmem:[%s0 + $0x1ac] sm:$0xf]
  %v90 = vld [vmem:[%s0 + $0x1b0] sm:$0xff]
  %v91 = vld [vmem:[%s0 + $0x1b8] sm:$0xf]
  %v92 = vld [vmem:[%s0 + $0x1bc] sm:$0xff]
  %v93 = vld [vmem:[%s0 + $0x1c4] sm:$0xf]
  %v94 = vld [vmem:[%s0 + $0x1c8] sm:$0xff]
  %v95 = vld [vmem:[%s0 + $0x1d0] sm:$0xf]
  %v96 = vld [vmem:[%s0 + $0x1d4] sm:$0xff]
  %v97 = vld [vmem:[%s0 + $0x1dc] sm:$0xf]
  %v98 = vld [vmem:[%s0 + $0x1e0] sm:$0xff]
  %v99 = vld [vmem:[%s0 + $0x1e8] sm:$0xf]
  %v100 = vld [vmem:[%s0 + $0x1ec] sm:$0xff]
  %v101 = vld [vmem:[%s0 + $0x1f4] sm:$0xf]
  %v102 = vld [vmem:[%s0 + $0x1f8] sm:$0xff]
  %v103 = vld [vmem:[%s0 + $0x200] sm:$0xf]
  %v104 = vld [vmem:[%s0 + $0x204] sm:$0xff]
  %v105 = vld [vmem:[%s0 + $0x20c] sm:$0xf]
  %v106 = vld [vmem:[%s0 + $0x210] sm:$0xff]
  %v107 = vld [vmem:[%s0 + $0x218] sm:$0xf]
  %v108 = vld [vmem:[%s0 + $0x21c] sm:$0xff]
  %v109 = vld [vmem:[%s0 + $0x224] sm:$0xf]
  %v110 = vld [vmem:[%s0 + $0x228] sm:$0xff]
  %v111 = vld [vmem:[%s0 + $0x230] sm:$0xf]
  %v112 = vld [vmem:[%s0 + $0x234] sm:$0xff]
  %v113 = vld [vmem:[%s0 + $0x23c] sm:$0xf]
  %v114 = vld [vmem:[%s0 + $0x240] sm:$0xff]
  %v115 = vld [vmem:[%s0 + $0x248] sm:$0xf]
  %v116 = vld [vmem:[%s0 + $0x24c] sm:$0xff]
  %v117 = vld [vmem:[%s0 + $0x254] sm:$0xf]
  %v118 = vld [vmem:[%s0 + $0x258] sm:$0xff]
  %v119 = vld [vmem:[%s0 + $0x260] sm:$0xf]
  %v120 = vld [vmem:[%s0 + $0x264] sm:$0xff]
  %v121 = vld [vmem:[%s0 + $0x26c] sm:$0xf]
  %v122 = vld [vmem:[%s0 + $0x270] sm:$0xff]
  %v123 = vld [vmem:[%s0 + $0x278] sm:$0xf]
  %v124 = vld [vmem:[%s0 + $0x27c] sm:$0xff]
  %v125 = vld [vmem:[%s0 + $0x284] sm:$0xf]
  %v126 = vld [vmem:[%s0 + $0x288] sm:$0xff]
  %v127 = vld [vmem:[%s0 + $0x290] sm:$0xf]
  %v128 = vld [vmem:[%s0 + $0x294] sm:$0xff]
  %v129 = vld [vmem:[%s0 + $0x29c] sm:$0xf]
  %v130 = vld [vmem:[%s0 + $0x2a0] sm:$0xff]
  %v131 = vld [vmem:[%s0 + $0x2a8] sm:$0xf]
  %v132 = vld [vmem:[%s0 + $0x2ac] sm:$0xff]
  %v133 = vld [vmem:[%s0 + $0x2b4] sm:$0xf]
  %v134 = vld [vmem:[%s0 + $0x2b8] sm:$0xff]
  %v135 = vld [vmem:[%s0 + $0x2c0] sm:$0xf]
  %v136 = vld [vmem:[%s0 + $0x2c4] sm:$0xff]
  %v137 = vld [vmem:[%s0 + $0x2cc] sm:$0xf]
  %v138 = vld [vmem:[%s0 + $0x2d0] sm:$0xff]
  %v139 = vld [vmem:[%s0 + $0x2d8] sm:$0xf]
  %v140 = vld [vmem:[%s0 + $0x2dc] sm:$0xff]
  %v141 = vld [vmem:[%s0 + $0x2e4] sm:$0xf]
  %v142 = vld [vmem:[%s0 + $0x2e8] sm:$0xff]
  %v143 = vld [vmem:[%s0 + $0x2f0] sm:$0xf]
  %v144 = vld [vmem:[%s0 + $0x2f4] sm:$0xff]
  %v145 = vld [vmem:[%s0 + $0x2fc] sm:$0xf]
  %v146 = vld [vmem:[%s0 + $0x300] sm:$0xff]
  %v147 = vld [vmem:[%s0 + $0x308] sm:$0xf]
  %v148 = vld [vmem:[%s0 + $0x30c] sm:$0xff]
  %v149 = vld [vmem:[%s0 + $0x314] sm:$0xf]
  %v150 = vld [vmem:[%s0 + $0x318] sm:$0xff]
  %v151 = vld [vmem:[%s0 + $0x320] sm:$0xf]
  %v152 = vld [vmem:[%s0 + $0x324] sm:$0xff]
  %v153 = vld [vmem:[%s0 + $0x32c] sm:$0xf]
  %v154 = vld [vmem:[%s0 + $0x330] sm:$0xff]
  %v155 = vld [vmem:[%s0 + $0x338] sm:$0xf]
  %v156 = vld [vmem:[%s0 + $0x33c] sm:$0xff]
  %v157 = vld [vmem:[%s0 + $0x344] sm:$0xf]
  %v158 = vld [vmem:[%s0 + $0x348] sm:$0xff]
  %v159 = vld [vmem:[%s0 + $0x350] sm:$0xf]
  %v160 = vld [vmem:[%s0 + $0x354] sm:$0xff]
  %v161 = vld [vmem:[%s0 + $0x35c] sm:$0xf]
  %v162 = vld [vmem:[%s0 + $0x360] sm:$0xff]
  %v163 = vld [vmem:[%s0 + $0x368] sm:$0xf]
  %v164 = vld [vmem:[%s0 + $0x36c] sm:$0xff]
  %v165 = vld [vmem:[%s0 + $0x374] sm:$0xf]
  %v166 = vld [vmem:[%s0 + $0x378] sm:$0xff]
  %v167 = vld [vmem:[%s0 + $0x380] sm:$0xf]
  %v168 = vld [vmem:[%s0 + $0x384] sm:$0xff]
  %v169 = vld [vmem:[%s0 + $0x38c] sm:$0xf]
  %v170 = vld [vmem:[%s0 + $0x390] sm:$0xff]
  %v171 = vld [vmem:[%s0 + $0x398] sm:$0xf]
  %v172 = vld [vmem:[%s0 + $0x39c] sm:$0xff]
  %v173 = vld [vmem:[%s0 + $0x3a4] sm:$0xf]
  %v174 = vld [vmem:[%s0 + $0x3a8] sm:$0xff]
  %v175 = vld [vmem:[%s0 + $0x3b0] sm:$0xf]
  %v176 = vld [vmem:[%s0 + $0x3b4] sm:$0xff]
  %v177 = vld [vmem:[%s0 + $0x3bc] sm:$0xf]
  %v178 = vld [vmem:[%s0 + $0x3c0] sm:$0xff]
  %v179 = vld [vmem:[%s0 + $0x3c8] sm:$0xf]
  %v180 = vld [vmem:[%s0 + $0x3cc] sm:$0xff]
  %v181 = vld [vmem:[%s0 + $0x3d4] sm:$0xf]
  %v182 = vld [vmem:[%s0 + $0x3d8] sm:$0xff]
  %v183 = vld [vmem:[%s0 + $0x3e0] sm:$0xf]
  %v184 = vld [vmem:[%s0 + $0x3e4] sm:$0xff]
  %v185 = vld [vmem:[%s0 + $0x3ec] sm:$0xf]
  %v186 = vld [vmem:[%s0 + $0x3f0] sm:$0xff]
  %v187 = vld [vmem:[%s0 + $0x3f8] sm:$0xf]
  %v188 = vld [vmem:[%s0 + $0x3fc] sm:$0xff]
  %v189 = vld [vmem:[%s0 + $0x404] sm:$0xf]
  %v190 = vld [vmem:[%s0 + $0x408] sm:$0xff]
  %v191 = vld [vmem:[%s0 + $0x410] sm:$0xf]
  %v192 = vld [vmem:[%s0 + $0x414] sm:$0xff]
  %v193 = vld [vmem:[%s0 + $0x41c] sm:$0xf]
  %v194 = vld [vmem:[%s0 + $0x420] sm:$0xff]
  %v195 = vld [vmem:[%s0 + $0x428] sm:$0xf]
  %v196 = vld [vmem:[%s0 + $0x42c] sm:$0xff]
  %v197 = vld [vmem:[%s0 + $0x434] sm:$0xf]
  %v198 = vld [vmem:[%s0 + $0x438] sm:$0xff]
  %v199 = vld [vmem:[%s0 + $0x440] sm:$0xf]
  %v200 = vld [vmem:[%s0 + $0x444] sm:$0xff]
  %v201 = vld [vmem:[%s0 + $0x44c] sm:$0xf]
  %v202 = vld [vmem:[%s0 + $0x450] sm:$0xff]
  %v203 = vld [vmem:[%s0 + $0x458] sm:$0xf]
  %v204 = vld [vmem:[%s0 + $0x45c] sm:$0xff]
  %v205 = vld [vmem:[%s0 + $0x464] sm:$0xf]
  %v206 = vld [vmem:[%s0 + $0x468] sm:$0xff]
  %v207 = vld [vmem:[%s0 + $0x470] sm:$0xf]
  %v208 = vld [vmem:[%s0 + $0x474] sm:$0xff]
  %v209 = vld [vmem:[%s0 + $0x47c] sm:$0xf]
  %v210 = vld [vmem:[%s0 + $0x480] sm:$0xff]
  %v211 = vld [vmem:[%s0 + $0x488] sm:$0xf]
  %v212 = vld [vmem:[%s0 + $0x48c] sm:$0xff]
  %v213 = vld [vmem:[%s0 + $0x494] sm:$0xf]
  %v214 = vld [vmem:[%s0 + $0x498] sm:$0xff]
  %v215 = vld [vmem:[%s0 + $0x4a0] sm:$0xf]
  %v216 = vld [vmem:[%s0 + $0x4a4] sm:$0xff]
  %v217 = vld [vmem:[%s0 + $0x4ac] sm:$0xf]
  %v218 = vld [vmem:[%s0 + $0x4b0] sm:$0xff]
  %v219 = vld [vmem:[%s0 + $0x4b8] sm:$0xf]
  %v220 = vld [vmem:[%s0 + $0x4bc] sm:$0xff]
  %v221 = vld [vmem:[%s0 + $0x4c4] sm:$0xf]
  %v222 = vld [vmem:[%s0 + $0x4c8] sm:$0xff]
  %v223 = vld [vmem:[%s0 + $0x4d0] sm:$0xf]
  %v224 = vld [vmem:[%s0 + $0x4d4] sm:$0xff]
  %v225 = vld [vmem:[%s0 + $0x4dc] sm:$0xf]
  %v226 = vld [vmem:[%s0 + $0x4e0] sm:$0xff]
  %v227 = vld [vmem:[%s0 + $0x4e8] sm:$0xf]
  %v228 = vld [vmem:[%s0 + $0x4ec] sm:$0xff]
  %v229 = vld [vmem:[%s0 + $0x4f4] sm:$0xf]
  %v230 = vld [vmem:[%s0 + $0x4f8] sm:$0xff]
  %v231 = vld [vmem:[%s0 + $0x500] sm:$0xf]
  %v232 = vld [vmem:[%s0 + $0x504] sm:$0xff]
  %v233 = vld [vmem:[%s0 + $0x50c] sm:$0xf]
  %v234 = vld [vmem:[%s0 + $0x510] sm:$0xff]
  %v235 = vld [vmem:[%s0 + $0x518] sm:$0xf]
  %v236 = vld [vmem:[%s0 + $0x51c] sm:$0xff]
  %v237 = vld [vmem:[%s0 + $0x524] sm:$0xf]
  %v238 = vld [vmem:[%s0 + $0x528] sm:$0xff]
  %v239 = vld [vmem:[%s0 + $0x530] sm:$0xf]
  %v240 = vld [vmem:[%s0 + $0x534] sm:$0xff]
  %v241 = vld [vmem:[%s0 + $0x53c] sm:$0xf]
  %v242 = vld [vmem:[%s0 + $0x540] sm:$0xff]
  %v243 = vld [vmem:[%s0 + $0x548] sm:$0xf]
  %v244 = vld [vmem:[%s0 + $0x54c] sm:$0xff]
  %v245 = vld [vmem:[%s0 + $0x554] sm:$0xf]
  %v246 = vld [vmem:[%s0 + $0x558] sm:$0xff]
  %v247 = vld [vmem:[%s0 + $0x560] sm:$0xf]
  %v248 = vld [vmem:[%s0 + $0x564] sm:$0xff]
  %v249 = vld [vmem:[%s0 + $0x56c] sm:$0xf]
  %v250 = vld [vmem:[%s0 + $0x570] sm:$0xff]
  %v251 = vld [vmem:[%s0 + $0x578] sm:$0xf]
  %v252 = vld [vmem:[%s0 + $0x57c] sm:$0xff]
  %v253 = vld [vmem:[%s0 + $0x584] sm:$0xf]
  %v254 = vld [vmem:[%s0 + $0x588] sm:$0xff]
  %v255 = vld [vmem:[%s0 + $0x590] sm:$0xf]
  %v256 = vld [vmem:[%s0 + $0x594] sm:$0xff]
  %v257 = vld [vmem:[%s0 + $0x59c] sm:$0xf]
  %v258 = vld [vmem:[%s0 + $0x5a0] sm:$0xff]
  %v259 = vld [vmem:[%s0 + $0x5a8] sm:$0xf]
  %v260 = vld [vmem:[%s0 + $0x5ac] sm:$0xff]
  %v261 = vld [vmem:[%s0 + $0x5b4] sm:$0xf]
  %v262 = vld [vmem:[%s0 + $0x5b8] sm:$0xff]
  %v263 = vld [vmem:[%s0 + $0x5c0] sm:$0xf]
  %v264 = vld [vmem:[%s0 + $0x5c4] sm:$0xff]
  %v265 = vld [vmem:[%s0 + $0x5cc] sm:$0xf]
  %v266 = vld [vmem:[%s0 + $0x5d0] sm:$0xff]
  %v267 = vld [vmem:[%s0 + $0x5d8] sm:$0xf]
  %v268 = vld [vmem:[%s0 + $0x5dc] sm:$0xff]
  %v269 = vld [vmem:[%s0 + $0x5e4] sm:$0xf]
  %v270 = vld [vmem:[%s0 + $0x5e8] sm:$0xff]
  %v271 = vld [vmem:[%s0 + $0x5f0] sm:$0xf]
  %v272 = vld [vmem:[%s0 + $0x5f4] sm:$0xff]
  %v273 = vld [vmem:[%s0 + $0x5fc] sm:$0xf]
  %v274 = vld [vmem:[%s0 + $0x600] sm:$0xff]
  %v275 = vld [vmem:[%s0 + $0x608] sm:$0xf]
  %v276 = vld [vmem:[%s0 + $0x60c] sm:$0xff]
  %v277 = vld [vmem:[%s0 + $0x614] sm:$0xf]
  %v278 = vld [vmem:[%s0 + $0x618] sm:$0xff]
  %v279 = vld [vmem:[%s0 + $0x620] sm:$0xf]
  %v280 = vld [vmem:[%s0 + $0x624] sm:$0xff]
  %v281 = vld [vmem:[%s0 + $0x62c] sm:$0xf]
  %v282 = vld [vmem:[%s0 + $0x630] sm:$0xff]
  %v283 = vld [vmem:[%s0 + $0x638] sm:$0xf]
  %v284 = vld [vmem:[%s0 + $0x63c] sm:$0xff]
  %v285 = vld [vmem:[%s0 + $0x644] sm:$0xf]
  %v286 = vld [vmem:[%s0 + $0x648] sm:$0xff]
  %v287 = vld [vmem:[%s0 + $0x650] sm:$0xf]
  %v288 = vld [vmem:[%s0 + $0x654] sm:$0xff]
  %v289 = vld [vmem:[%s0 + $0x65c] sm:$0xf]
  %v290 = vld [vmem:[%s0 + $0x660] sm:$0xff]
  %v291 = vld [vmem:[%s0 + $0x668] sm:$0xf]
  %v292 = vld [vmem:[%s0 + $0x66c] sm:$0xff]
  %v293 = vld [vmem:[%s0 + $0x674] sm:$0xf]
  %v294 = vld [vmem:[%s0 + $0x678] sm:$0xff]
  %v295 = vld [vmem:[%s0 + $0x680] sm:$0xf]
  %v296 = vld [vmem:[%s0 + $0x684] sm:$0xff]
  %v297 = vld [vmem:[%s0 + $0x68c] sm:$0xf]
  %v298 = vld [vmem:[%s0 + $0x690] sm:$0xff]
  %v299 = vld [vmem:[%s0 + $0x698] sm:$0xf]
  %v300 = vld [vmem:[%s0 + $0x69c] sm:$0xff]
  %v301 = vld [vmem:[%s0 + $0x6a4] sm:$0xf]
  %v302 = vld [vmem:[%s0 + $0x6a8] sm:$0xff]
  %v303 = vld [vmem:[%s0 + $0x6b0] sm:$0xf]
  %v304 = vld [vmem:[%s0 + $0x6b4] sm:$0xff]
  %v305 = vld [vmem:[%s0 + $0x6bc] sm:$0xf]
  %v306 = vld [vmem:[%s0 + $0x6c0] sm:$0xff]
  %v307 = vld [vmem:[%s0 + $0x6c8] sm:$0xf]
  %v308 = vld [vmem:[%s0 + $0x6cc] sm:$0xff]
  %v309 = vld [vmem:[%s0 + $0x6d4] sm:$0xf]
  %v310 = vld [vmem:[%s0 + $0x6d8] sm:$0xff]
  %v311 = vld [vmem:[%s0 + $0x6e0] sm:$0xf]
  %v312 = vld [vmem:[%s0 + $0x6e4] sm:$0xff]
  %v313 = vld [vmem:[%s0 + $0x6ec] sm:$0xf]
  %v314 = vld [vmem:[%s0 + $0x6f0] sm:$0xff]
  %v315 = vld [vmem:[%s0 + $0x6f8] sm:$0xf]
  %v316 = vld [vmem:[%s0 + $0x6fc] sm:$0xff]
  %v317 = vld [vmem:[%s0 + $0x704] sm:$0xf]
  %v318 = vld [vmem:[%s0 + $0x708] sm:$0xff]
  %v319 = vld [vmem:[%s0 + $0x710] sm:$0xf]
  %v320 = vld [vmem:[%s0 + $0x714] sm:$0xff]
  %v321 = vld [vmem:[%s0 + $0x71c] sm:$0xf]
  %v322 = vld [vmem:[%s0 + $0x720] sm:$0xff]
  %v323 = vld [vmem:[%s0 + $0x728] sm:$0xf]
  %v324 = vld [vmem:[%s0 + $0x72c] sm:$0xff]
  %v325 = vld [vmem:[%s0 + $0x734] sm:$0xf]
  %v326 = vld [vmem:[%s0 + $0x738] sm:$0xff]
  %v327 = vld [vmem:[%s0 + $0x740] sm:$0xf]
  %v328 = vld [vmem:[%s0 + $0x744] sm:$0xff]
  %v329 = vld [vmem:[%s0 + $0x74c] sm:$0xf]
  %v330 = vld [vmem:[%s0 + $0x750] sm:$0xff]
  %v331 = vld [vmem:[%s0 + $0x758] sm:$0xf]
  %v332 = vld [vmem:[%s0 + $0x75c] sm:$0xff]
  %v333 = vld [vmem:[%s0 + $0x764] sm:$0xf]
  %v334 = vld [vmem:[%s0 + $0x768] sm:$0xff]
  %v335 = vld [vmem:[%s0 + $0x770] sm:$0xf]
  %v336 = vld [vmem:[%s0 + $0x774] sm:$0xff]
  %v337 = vld [vmem:[%s0 + $0x77c] sm:$0xf]
  %v338 = vld [vmem:[%s0 + $0x780] sm:$0xff]
  %v339 = vld [vmem:[%s0 + $0x788] sm:$0xf]
  %v340 = vld [vmem:[%s0 + $0x78c] sm:$0xff]
  %v341 = vld [vmem:[%s0 + $0x794] sm:$0xf]
  %v342 = vld [vmem:[%s0 + $0x798] sm:$0xff]
  %v343 = vld [vmem:[%s0 + $0x7a0] sm:$0xf]
  %v344 = vld [vmem:[%s0 + $0x7a4] sm:$0xff]
  %v345 = vld [vmem:[%s0 + $0x7ac] sm:$0xf]
  %v346 = vld [vmem:[%s0 + $0x7b0] sm:$0xff]
  %v347 = vld [vmem:[%s0 + $0x7b8] sm:$0xf]
  %v348 = vld [vmem:[%s0 + $0x7bc] sm:$0xff]
  %v349 = vld [vmem:[%s0 + $0x7c4] sm:$0xf]
  %v350 = vld [vmem:[%s0 + $0x7c8] sm:$0xff]
  %v351 = vld [vmem:[%s0 + $0x7d0] sm:$0xf]
  %v352 = vld [vmem:[%s0 + $0x7d4] sm:$0xff]
  %v353 = vld [vmem:[%s0 + $0x7dc] sm:$0xf]
  %v354 = vld [vmem:[%s0 + $0x7e0] sm:$0xff]
  %v355 = vld [vmem:[%s0 + $0x7e8] sm:$0xf]
  %v356 = vld [vmem:[%s0 + $0x7ec] sm:$0xff]
  %v357 = vld [vmem:[%s0 + $0x7f4] sm:$0xf]
  %v358 = vld [vmem:[%s0 + $0x7f8] sm:$0xff]
  %v359 = vld [vmem:[%s0 + $0x800] sm:$0xf]
  %v360 = vld [vmem:[%s0 + $0x804] sm:$0xff]
  %v361 = vld [vmem:[%s0 + $0x80c] sm:$0xf]
  %v362 = vld [vmem:[%s0 + $0x810] sm:$0xff]
  %v363 = vld [vmem:[%s0 + $0x818] sm:$0xf]
  %v364 = vld [vmem:[%s0 + $0x81c] sm:$0xff]
  %v365 = vld [vmem:[%s0 + $0x824] sm:$0xf]
  %v366 = vld [vmem:[%s0 + $0x828] sm:$0xff]
  %v367 = vld [vmem:[%s0 + $0x830] sm:$0xf]
  %v368 = vld [vmem:[%s0 + $0x834] sm:$0xff]
  %v369 = vld [vmem:[%s0 + $0x83c] sm:$0xf]
  %v370 = vld [vmem:[%s0 + $0x840] sm:$0xff]
  %v371 = vld [vmem:[%s0 + $0x848] sm:$0xf]
  %v372 = vld [vmem:[%s0 + $0x84c] sm:$0xff]
  %v373 = vld [vmem:[%s0 + $0x854] sm:$0xf]
  %v374 = vld [vmem:[%s0 + $0x858] sm:$0xff]
  %v375 = vld [vmem:[%s0 + $0x860] sm:$0xf]
  %v376 = vld [vmem:[%s0 + $0x864] sm:$0xff]
  %v377 = vld [vmem:[%s0 + $0x86c] sm:$0xf]
  %v378 = vld [vmem:[%s1] sm:$0xf]
  %v379 = vld [vmem:[%s1 + $0x4] sm:$0xf]
  %v380 = vld [vmem:[%s1 + $0x8] sm:$0xf]
  %v381 = vld [vmem:[%s1 + $0xc] sm:$0xf]
  %v382 = vld [vmem:[%s1 + $0x10] sm:$0xf]
  %v383 = vld [vmem:[%s1 + $0x14] sm:$0xf]
  %v384 = vld [vmem:[%s1 + $0x18] sm:$0xf]
  %v385 = vld [vmem:[%s1 + $0x1c] sm:$0xf]
  %v386 = vld [vmem:[%s1 + $0x20] sm:$0xf]
  %v387 = vld [vmem:[%s1 + $0x24] sm:$0xf]
  %v388 = vld [vmem:[%s1 + $0x28] sm:$0xf]
  %v389 = vld [vmem:[%s1 + $0x2c] sm:$0xf]
  %v390 = vld [vmem:[%s1 + $0x30] sm:$0xf]
  %v391 = vld [vmem:[%s1 + $0x34] sm:$0xf]
  %v392 = vld [vmem:[%s1 + $0x38] sm:$0xf]
  %v393 = vld [vmem:[%s1 + $0x3c] sm:$0xf]
  %v394 = vld [vmem:[%s1 + $0x40] sm:$0xf]
  %v395 = vld [vmem:[%s1 + $0x44] sm:$0xf]
  %v396 = vld [vmem:[%s1 + $0x48] sm:$0xf]
  %v397 = vld [vmem:[%s1 + $0x4c] sm:$0xf]
  %v398 = vld [vmem:[%s1 + $0x50] sm:$0xf]
  %v399 = vld [vmem:[%s1 + $0x54] sm:$0xf]
  %v400 = vld [vmem:[%s1 + $0x58] sm:$0xf]
  %v401 = vld [vmem:[%s1 + $0x5c] sm:$0xf]
  %v402 = vld [vmem:[%s1 + $0x60] sm:$0xf]
  %v403 = vld [vmem:[%s1 + $0x64] sm:$0xf]
  %v404 = vld [vmem:[%s1 + $0x68] sm:$0xf]
  %v405 = vld [vmem:[%s1 + $0x6c] sm:$0xf]
  %v406 = vld [vmem:[%s1 + $0x70] sm:$0xf]
  %v407 = vld [vmem:[%s1 + $0x74] sm:$0xf]
  %v408 = vld [vmem:[%s1 + $0x78] sm:$0xf]
  %v409 = vld [vmem:[%s1 + $0x7c] sm:$0xf]
  %v410 = vld [vmem:[%s1 + $0x80] sm:$0xf]
  %v411 = vld [vmem:[%s1 + $0x84] sm:$0xf]
  %v412 = vld [vmem:[%s1 + $0x88] sm:$0xf]
  %v413 = vld [vmem:[%s1 + $0x8c] sm:$0xf]
  %v774 = vunpack.c.l.b16 %v18
  %v775 = vunpack.c.h.b16 %v18
  %v776 = vunpack.c.l.b16 %v19
  %v777 = vunpack.c.l.b16 %v20
  %v778 = vunpack.c.h.b16 %v20
  %v779 = vunpack.c.l.b16 %v21
  %v780 = vunpack.c.l.b16 %v22
  %v781 = vunpack.c.h.b16 %v22
  %v782 = vunpack.c.l.b16 %v23
  %v783 = vunpack.c.l.b16 %v24
  %v784 = vunpack.c.h.b16 %v24
  %v785 = vunpack.c.l.b16 %v25
  %v786 = vunpack.c.l.b16 %v26
  %v787 = vunpack.c.h.b16 %v26
  %v788 = vunpack.c.l.b16 %v27
  %v789 = vunpack.c.l.b16 %v28
  %v790 = vunpack.c.h.b16 %v28
  %v791 = vunpack.c.l.b16 %v29
  %v792 = vunpack.c.l.b16 %v30
  %v793 = vunpack.c.h.b16 %v30
  %v794 = vunpack.c.l.b16 %v31
  %v795 = vunpack.c.l.b16 %v32
  %v796 = vunpack.c.h.b16 %v32
  %v797 = vunpack.c.l.b16 %v33
  %v798 = vunpack.c.l.b16 %v34
  %v799 = vunpack.c.h.b16 %v34
  %v800 = vunpack.c.l.b16 %v35
  %v801 = vunpack.c.l.b16 %v36
  %v802 = vunpack.c.h.b16 %v36
  %v803 = vunpack.c.l.b16 %v37
  %v804 = vunpack.c.l.b16 %v38
  %v805 = vunpack.c.h.b16 %v38
  %v806 = vunpack.c.l.b16 %v39
  %v807 = vunpack.c.l.b16 %v40
  %v808 = vunpack.c.h.b16 %v40
  %v809 = vunpack.c.l.b16 %v41
  %v810 = vunpack.c.l.b16 %v42
  %v811 = vunpack.c.h.b16 %v42
  %v812 = vunpack.c.l.b16 %v43
  %v813 = vunpack.c.l.b16 %v44
  %v814 = vunpack.c.h.b16 %v44
  %v815 = vunpack.c.l.b16 %v45
  %v816 = vunpack.c.l.b16 %v46
  %v817 = vunpack.c.h.b16 %v46
  %v818 = vunpack.c.l.b16 %v47
  %v819 = vunpack.c.l.b16 %v48
  %v820 = vunpack.c.h.b16 %v48
  %v821 = vunpack.c.l.b16 %v49
  %v822 = vunpack.c.l.b16 %v50
  %v823 = vunpack.c.h.b16 %v50
  %v824 = vunpack.c.l.b16 %v51
  %v825 = vunpack.c.l.b16 %v52
  %v826 = vunpack.c.h.b16 %v52
  %v827 = vunpack.c.l.b16 %v53
  %v828 = vunpack.c.l.b16 %v54
  %v829 = vunpack.c.h.b16 %v54
  %v830 = vunpack.c.l.b16 %v55
  %v831 = vunpack.c.l.b16 %v56
  %v832 = vunpack.c.h.b16 %v56
  %v833 = vunpack.c.l.b16 %v57
  %v834 = vunpack.c.l.b16 %v58
  %v835 = vunpack.c.h.b16 %v58
  %v836 = vunpack.c.l.b16 %v59
  %v837 = vunpack.c.l.b16 %v60
  %v838 = vunpack.c.h.b16 %v60
  %v839 = vunpack.c.l.b16 %v61
  %v840 = vunpack.c.l.b16 %v62
  %v841 = vunpack.c.h.b16 %v62
  %v842 = vunpack.c.l.b16 %v63
  %v843 = vunpack.c.l.b16 %v64
  %v844 = vunpack.c.h.b16 %v64
  %v845 = vunpack.c.l.b16 %v65
  %v846 = vunpack.c.l.b16 %v66
  %v847 = vunpack.c.h.b16 %v66
  %v848 = vunpack.c.l.b16 %v67
  %v849 = vunpack.c.l.b16 %v68
  %v850 = vunpack.c.h.b16 %v68
  %v851 = vunpack.c.l.b16 %v69
  %v852 = vunpack.c.l.b16 %v70
  %v853 = vunpack.c.h.b16 %v70
  %v854 = vunpack.c.l.b16 %v71
  %v855 = vunpack.c.l.b16 %v72
  %v856 = vunpack.c.h.b16 %v72
  %v857 = vunpack.c.l.b16 %v73
  %v858 = vunpack.c.l.b16 %v74
  %v859 = vunpack.c.h.b16 %v74
  %v860 = vunpack.c.l.b16 %v75
  %v861 = vunpack.c.l.b16 %v76
  %v862 = vunpack.c.h.b16 %v76
  %v863 = vunpack.c.l.b16 %v77
  %v864 = vunpack.c.l.b16 %v78
  %v865 = vunpack.c.h.b16 %v78
  %v866 = vunpack.c.l.b16 %v79
  %v867 = vunpack.c.l.b16 %v80
  %v868 = vunpack.c.h.b16 %v80
  %v869 = vunpack.c.l.b16 %v81
  %v870 = vunpack.c.l.b16 %v82
  %v871 = vunpack.c.h.b16 %v82
  %v872 = vunpack.c.l.b16 %v83
  %v873 = vunpack.c.l.b16 %v84
  %v874 = vunpack.c.h.b16 %v84
  %v875 = vunpack.c.l.b16 %v85
  %v876 = vunpack.c.l.b16 %v86
  %v877 = vunpack.c.h.b16 %v86
  %v878 = vunpack.c.l.b16 %v87
  %v879 = vunpack.c.l.b16 %v88
  %v880 = vunpack.c.h.b16 %v88
  %v881 = vunpack.c.l.b16 %v89
  %v882 = vunpack.c.l.b16 %v90
  %v883 = vunpack.c.h.b16 %v90
  %v884 = vunpack.c.l.b16 %v91
  %v885 = vunpack.c.l.b16 %v92
  %v886 = vunpack.c.h.b16 %v92
  %v887 = vunpack.c.l.b16 %v93
  %v888 = vunpack.c.l.b16 %v94
  %v889 = vunpack.c.h.b16 %v94
  %v890 = vunpack.c.l.b16 %v95
  %v891 = vunpack.c.l.b16 %v96
  %v892 = vunpack.c.h.b16 %v96
  %v893 = vunpack.c.l.b16 %v97
  %v894 = vunpack.c.l.b16 %v98
  %v895 = vunpack.c.h.b16 %v98
  %v896 = vunpack.c.l.b16 %v99
  %v897 = vunpack.c.l.b16 %v100
  %v898 = vunpack.c.h.b16 %v100
  %v899 = vunpack.c.l.b16 %v101
  %v900 = vunpack.c.l.b16 %v102
  %v901 = vunpack.c.h.b16 %v102
  %v902 = vunpack.c.l.b16 %v103
  %v903 = vunpack.c.l.b16 %v104
  %v904 = vunpack.c.h.b16 %v104
  %v905 = vunpack.c.l.b16 %v105
  %v906 = vunpack.c.l.b16 %v106
  %v907 = vunpack.c.h.b16 %v106
  %v908 = vunpack.c.l.b16 %v107
  %v909 = vunpack.c.l.b16 %v108
  %v910 = vunpack.c.h.b16 %v108
  %v911 = vunpack.c.l.b16 %v109
  %v912 = vunpack.c.l.b16 %v110
  %v913 = vunpack.c.h.b16 %v110
  %v914 = vunpack.c.l.b16 %v111
  %v915 = vunpack.c.l.b16 %v112
  %v916 = vunpack.c.h.b16 %v112
  %v917 = vunpack.c.l.b16 %v113
  %v918 = vunpack.c.l.b16 %v114
  %v919 = vunpack.c.h.b16 %v114
  %v920 = vunpack.c.l.b16 %v115
  %v921 = vunpack.c.l.b16 %v116
  %v922 = vunpack.c.h.b16 %v116
  %v923 = vunpack.c.l.b16 %v117
  %v924 = vunpack.c.l.b16 %v118
  %v925 = vunpack.c.h.b16 %v118
  %v926 = vunpack.c.l.b16 %v119
  %v927 = vunpack.c.l.b16 %v120
  %v928 = vunpack.c.h.b16 %v120
  %v929 = vunpack.c.l.b16 %v121
  %v930 = vunpack.c.l.b16 %v122
  %v931 = vunpack.c.h.b16 %v122
  %v932 = vunpack.c.l.b16 %v123
  %v933 = vunpack.c.l.b16 %v124
  %v934 = vunpack.c.h.b16 %v124
  %v935 = vunpack.c.l.b16 %v125
  %v936 = vunpack.c.l.b16 %v126
  %v937 = vunpack.c.h.b16 %v126
  %v938 = vunpack.c.l.b16 %v127
  %v939 = vunpack.c.l.b16 %v128
  %v940 = vunpack.c.h.b16 %v128
  %v941 = vunpack.c.l.b16 %v129
  %v942 = vunpack.c.l.b16 %v130
  %v943 = vunpack.c.h.b16 %v130
  %v944 = vunpack.c.l.b16 %v131
  %v945 = vunpack.c.l.b16 %v132
  %v946 = vunpack.c.h.b16 %v132
  %v947 = vunpack.c.l.b16 %v133
  %v948 = vunpack.c.l.b16 %v134
  %v949 = vunpack.c.h.b16 %v134
  %v950 = vunpack.c.l.b16 %v135
  %v951 = vunpack.c.l.b16 %v136
  %v952 = vunpack.c.h.b16 %v136
  %v953 = vunpack.c.l.b16 %v137
  %v954 = vunpack.c.l.b16 %v138
  %v955 = vunpack.c.h.b16 %v138
  %v956 = vunpack.c.l.b16 %v139
  %v957 = vunpack.c.l.b16 %v140
  %v958 = vunpack.c.h.b16 %v140
  %v959 = vunpack.c.l.b16 %v141
  %v960 = vunpack.c.l.b16 %v142
  %v961 = vunpack.c.h.b16 %v142
  %v962 = vunpack.c.l.b16 %v143
  %v963 = vunpack.c.l.b16 %v144
  %v964 = vunpack.c.h.b16 %v144
  %v965 = vunpack.c.l.b16 %v145
  %v966 = vunpack.c.l.b16 %v146
  %v967 = vunpack.c.h.b16 %v146
  %v968 = vunpack.c.l.b16 %v147
  %v969 = vunpack.c.l.b16 %v148
  %v970 = vunpack.c.h.b16 %v148
  %v971 = vunpack.c.l.b16 %v149
  %v972 = vunpack.c.l.b16 %v150
  %v973 = vunpack.c.h.b16 %v150
  %v974 = vunpack.c.l.b16 %v151
  %v975 = vunpack.c.l.b16 %v152
  %v976 = vunpack.c.h.b16 %v152
  %v977 = vunpack.c.l.b16 %v153
  %v978 = vunpack.c.l.b16 %v154
  %v979 = vunpack.c.h.b16 %v154
  %v980 = vunpack.c.l.b16 %v155
  %v981 = vunpack.c.l.b16 %v156
  %v982 = vunpack.c.h.b16 %v156
  %v983 = vunpack.c.l.b16 %v157
  %v984 = vunpack.c.l.b16 %v158
  %v985 = vunpack.c.h.b16 %v158
  %v986 = vunpack.c.l.b16 %v159
  %v987 = vunpack.c.l.b16 %v160
  %v988 = vunpack.c.h.b16 %v160
  %v989 = vunpack.c.l.b16 %v161
  %v990 = vunpack.c.l.b16 %v162
  %v991 = vunpack.c.h.b16 %v162
  %v992 = vunpack.c.l.b16 %v163
  %v993 = vunpack.c.l.b16 %v164
  %v994 = vunpack.c.h.b16 %v164
  %v995 = vunpack.c.l.b16 %v165
  %v996 = vunpack.c.l.b16 %v166
  %v997 = vunpack.c.h.b16 %v166
  %v998 = vunpack.c.l.b16 %v167
  %v999 = vunpack.c.l.b16 %v168
  %v1000 = vunpack.c.h.b16 %v168
  %v1001 = vunpack.c.l.b16 %v169
  %v1002 = vunpack.c.l.b16 %v170
  %v1003 = vunpack.c.h.b16 %v170
  %v1004 = vunpack.c.l.b16 %v171
  %v1005 = vunpack.c.l.b16 %v172
  %v1006 = vunpack.c.h.b16 %v172
  %v1007 = vunpack.c.l.b16 %v173
  %v1008 = vunpack.c.l.b16 %v174
  %v1009 = vunpack.c.h.b16 %v174
  %v1010 = vunpack.c.l.b16 %v175
  %v1011 = vunpack.c.l.b16 %v176
  %v1012 = vunpack.c.h.b16 %v176
  %v1013 = vunpack.c.l.b16 %v177
  %v1014 = vunpack.c.l.b16 %v178
  %v1015 = vunpack.c.h.b16 %v178
  %v1016 = vunpack.c.l.b16 %v179
  %v1017 = vunpack.c.l.b16 %v180
  %v1018 = vunpack.c.h.b16 %v180
  %v1019 = vunpack.c.l.b16 %v181
  %v1020 = vunpack.c.l.b16 %v182
  %v1021 = vunpack.c.h.b16 %v182
  %v1022 = vunpack.c.l.b16 %v183
  %v1023 = vunpack.c.l.b16 %v184
  %v1024 = vunpack.c.h.b16 %v184
  %v1025 = vunpack.c.l.b16 %v185
  %v1026 = vunpack.c.l.b16 %v186
  %v1027 = vunpack.c.h.b16 %v186
  %v1028 = vunpack.c.l.b16 %v187
  %v1029 = vunpack.c.l.b16 %v188
  %v1030 = vunpack.c.h.b16 %v188
  %v1031 = vunpack.c.l.b16 %v189
  %v1032 = vunpack.c.l.b16 %v190
  %v1033 = vunpack.c.h.b16 %v190
  %v1034 = vunpack.c.l.b16 %v191
  %v1035 = vunpack.c.l.b16 %v192
  %v1036 = vunpack.c.h.b16 %v192
  %v1037 = vunpack.c.l.b16 %v193
  %v1038 = vunpack.c.l.b16 %v194
  %v1039 = vunpack.c.h.b16 %v194
  %v1040 = vunpack.c.l.b16 %v195
  %v1041 = vunpack.c.l.b16 %v196
  %v1042 = vunpack.c.h.b16 %v196
  %v1043 = vunpack.c.l.b16 %v197
  %v1044 = vunpack.c.l.b16 %v198
  %v1045 = vunpack.c.h.b16 %v198
  %v1046 = vunpack.c.l.b16 %v199
  %v1047 = vunpack.c.l.b16 %v200
  %v1048 = vunpack.c.h.b16 %v200
  %v1049 = vunpack.c.l.b16 %v201
  %v1050 = vunpack.c.l.b16 %v202
  %v1051 = vunpack.c.h.b16 %v202
  %v1052 = vunpack.c.l.b16 %v203
  %v1053 = vunpack.c.l.b16 %v204
  %v1054 = vunpack.c.h.b16 %v204
  %v1055 = vunpack.c.l.b16 %v205
  %v1056 = vunpack.c.l.b16 %v206
  %v1057 = vunpack.c.h.b16 %v206
  %v1058 = vunpack.c.l.b16 %v207
  %v1059 = vunpack.c.l.b16 %v208
  %v1060 = vunpack.c.h.b16 %v208
  %v1061 = vunpack.c.l.b16 %v209
  %v1062 = vunpack.c.l.b16 %v210
  %v1063 = vunpack.c.h.b16 %v210
  %v1064 = vunpack.c.l.b16 %v211
  %v1065 = vunpack.c.l.b16 %v212
  %v1066 = vunpack.c.h.b16 %v212
  %v1067 = vunpack.c.l.b16 %v213
  %v1068 = vunpack.c.l.b16 %v214
  %v1069 = vunpack.c.h.b16 %v214
  %v1070 = vunpack.c.l.b16 %v215
  %v1071 = vunpack.c.l.b16 %v216
  %v1072 = vunpack.c.h.b16 %v216
  %v1073 = vunpack.c.l.b16 %v217
  %v1074 = vunpack.c.l.b16 %v218
  %v1075 = vunpack.c.h.b16 %v218
  %v1076 = vunpack.c.l.b16 %v219
  %v1077 = vunpack.c.l.b16 %v220
  %v1078 = vunpack.c.h.b16 %v220
  %v1079 = vunpack.c.l.b16 %v221
  %v1080 = vunpack.c.l.b16 %v222
  %v1081 = vunpack.c.h.b16 %v222
  %v1082 = vunpack.c.l.b16 %v223
  %v1083 = vunpack.c.l.b16 %v224
  %v1084 = vunpack.c.h.b16 %v224
  %v1085 = vunpack.c.l.b16 %v225
  %v1086 = vunpack.c.l.b16 %v226
  %v1087 = vunpack.c.h.b16 %v226
  %v1088 = vunpack.c.l.b16 %v227
  %v1089 = vunpack.c.l.b16 %v228
  %v1090 = vunpack.c.h.b16 %v228
  %v1091 = vunpack.c.l.b16 %v229
  %v1092 = vunpack.c.l.b16 %v230
  %v1093 = vunpack.c.h.b16 %v230
  %v1094 = vunpack.c.l.b16 %v231
  %v1095 = vunpack.c.l.b16 %v232
  %v1096 = vunpack.c.h.b16 %v232
  %v1097 = vunpack.c.l.b16 %v233
  %v1098 = vunpack.c.l.b16 %v234
  %v1099 = vunpack.c.h.b16 %v234
  %v1100 = vunpack.c.l.b16 %v235
  %v1101 = vunpack.c.l.b16 %v236
  %v1102 = vunpack.c.h.b16 %v236
  %v1103 = vunpack.c.l.b16 %v237
  %v1104 = vunpack.c.l.b16 %v238
  %v1105 = vunpack.c.h.b16 %v238
  %v1106 = vunpack.c.l.b16 %v239
  %v1107 = vunpack.c.l.b16 %v240
  %v1108 = vunpack.c.h.b16 %v240
  %v1109 = vunpack.c.l.b16 %v241
  %v1110 = vunpack.c.l.b16 %v242
  %v1111 = vunpack.c.h.b16 %v242
  %v1112 = vunpack.c.l.b16 %v243
  %v1113 = vunpack.c.l.b16 %v244
  %v1114 = vunpack.c.h.b16 %v244
  %v1115 = vunpack.c.l.b16 %v245
  %v1116 = vunpack.c.l.b16 %v246
  %v1117 = vunpack.c.h.b16 %v246
  %v1118 = vunpack.c.l.b16 %v247
  %v1119 = vunpack.c.l.b16 %v248
  %v1120 = vunpack.c.h.b16 %v248
  %v1121 = vunpack.c.l.b16 %v249
  %v1122 = vunpack.c.l.b16 %v250
  %v1123 = vunpack.c.h.b16 %v250
  %v1124 = vunpack.c.l.b16 %v251
  %v1125 = vunpack.c.l.b16 %v252
  %v1126 = vunpack.c.h.b16 %v252
  %v1127 = vunpack.c.l.b16 %v253
  %v1128 = vunpack.c.l.b16 %v254
  %v1129 = vunpack.c.h.b16 %v254
  %v1130 = vunpack.c.l.b16 %v255
  %v1131 = vunpack.c.l.b16 %v256
  %v1132 = vunpack.c.h.b16 %v256
  %v1133 = vunpack.c.l.b16 %v257
  %v1134 = vunpack.c.l.b16 %v258
  %v1135 = vunpack.c.h.b16 %v258
  %v1136 = vunpack.c.l.b16 %v259
  %v1137 = vunpack.c.l.b16 %v260
  %v1138 = vunpack.c.h.b16 %v260
  %v1139 = vunpack.c.l.b16 %v261
  %v1140 = vunpack.c.l.b16 %v262
  %v1141 = vunpack.c.h.b16 %v262
  %v1142 = vunpack.c.l.b16 %v263
  %v1143 = vunpack.c.l.b16 %v264
  %v1144 = vunpack.c.h.b16 %v264
  %v1145 = vunpack.c.l.b16 %v265
  %v1146 = vunpack.c.l.b16 %v266
  %v1147 = vunpack.c.h.b16 %v266
  %v1148 = vunpack.c.l.b16 %v267
  %v1149 = vunpack.c.l.b16 %v268
  %v1150 = vunpack.c.h.b16 %v268
  %v1151 = vunpack.c.l.b16 %v269
  %v1152 = vunpack.c.l.b16 %v270
  %v1153 = vunpack.c.h.b16 %v270
  %v1154 = vunpack.c.l.b16 %v271
  %v1155 = vunpack.c.l.b16 %v272
  %v1156 = vunpack.c.h.b16 %v272
  %v1157 = vunpack.c.l.b16 %v273
  %v1158 = vunpack.c.l.b16 %v274
  %v1159 = vunpack.c.h.b16 %v274
  %v1160 = vunpack.c.l.b16 %v275
  %v1161 = vunpack.c.l.b16 %v276
  %v1162 = vunpack.c.h.b16 %v276
  %v1163 = vunpack.c.l.b16 %v277
  %v1164 = vunpack.c.l.b16 %v278
  %v1165 = vunpack.c.h.b16 %v278
  %v1166 = vunpack.c.l.b16 %v279
  %v1167 = vunpack.c.l.b16 %v280
  %v1168 = vunpack.c.h.b16 %v280
  %v1169 = vunpack.c.l.b16 %v281
  %v1170 = vunpack.c.l.b16 %v282
  %v1171 = vunpack.c.h.b16 %v282
  %v1172 = vunpack.c.l.b16 %v283
  %v1173 = vunpack.c.l.b16 %v284
  %v1174 = vunpack.c.h.b16 %v284
  %v1175 = vunpack.c.l.b16 %v285
  %v1176 = vunpack.c.l.b16 %v286
  %v1177 = vunpack.c.h.b16 %v286
  %v1178 = vunpack.c.l.b16 %v287
  %v1179 = vunpack.c.l.b16 %v288
  %v1180 = vunpack.c.h.b16 %v288
  %v1181 = vunpack.c.l.b16 %v289
  %v1182 = vunpack.c.l.b16 %v290
  %v1183 = vunpack.c.h.b16 %v290
  %v1184 = vunpack.c.l.b16 %v291
  %v1185 = vunpack.c.l.b16 %v292
  %v1186 = vunpack.c.h.b16 %v292
  %v1187 = vunpack.c.l.b16 %v293
  %v1188 = vunpack.c.l.b16 %v294
  %v1189 = vunpack.c.h.b16 %v294
  %v1190 = vunpack.c.l.b16 %v295
  %v1191 = vunpack.c.l.b16 %v296
  %v1192 = vunpack.c.h.b16 %v296
  %v1193 = vunpack.c.l.b16 %v297
  %v1194 = vunpack.c.l.b16 %v298
  %v1195 = vunpack.c.h.b16 %v298
  %v1196 = vunpack.c.l.b16 %v299
  %v1197 = vunpack.c.l.b16 %v300
  %v1198 = vunpack.c.h.b16 %v300
  %v1199 = vunpack.c.l.b16 %v301
  %v1200 = vunpack.c.l.b16 %v302
  %v1201 = vunpack.c.h.b16 %v302
  %v1202 = vunpack.c.l.b16 %v303
  %v1203 = vunpack.c.l.b16 %v304
  %v1204 = vunpack.c.h.b16 %v304
  %v1205 = vunpack.c.l.b16 %v305
  %v1206 = vunpack.c.l.b16 %v306
  %v1207 = vunpack.c.h.b16 %v306
  %v1208 = vunpack.c.l.b16 %v307
  %v1209 = vunpack.c.l.b16 %v308
  %v1210 = vunpack.c.h.b16 %v308
  %v1211 = vunpack.c.l.b16 %v309
  %v1212 = vunpack.c.l.b16 %v310
  %v1213 = vunpack.c.h.b16 %v310
  %v1214 = vunpack.c.l.b16 %v311
  %v1215 = vunpack.c.l.b16 %v312
  %v1216 = vunpack.c.h.b16 %v312
  %v1217 = vunpack.c.l.b16 %v313
  %v1218 = vunpack.c.l.b16 %v314
  %v1219 = vunpack.c.h.b16 %v314
  %v1220 = vunpack.c.l.b16 %v315
  %v1221 = vunpack.c.l.b16 %v316
  %v1222 = vunpack.c.h.b16 %v316
  %v1223 = vunpack.c.l.b16 %v317
  %v1224 = vunpack.c.l.b16 %v318
  %v1225 = vunpack.c.h.b16 %v318
  %v1226 = vunpack.c.l.b16 %v319
  %v1227 = vunpack.c.l.b16 %v320
  %v1228 = vunpack.c.h.b16 %v320
  %v1229 = vunpack.c.l.b16 %v321
  %v1230 = vunpack.c.l.b16 %v322
  %v1231 = vunpack.c.h.b16 %v322
  %v1232 = vunpack.c.l.b16 %v323
  %v1233 = vunpack.c.l.b16 %v324
  %v1234 = vunpack.c.h.b16 %v324
  %v1235 = vunpack.c.l.b16 %v325
  %v1236 = vunpack.c.l.b16 %v326
  %v1237 = vunpack.c.h.b16 %v326
  %v1238 = vunpack.c.l.b16 %v327
  %v1239 = vunpack.c.l.b16 %v328
  %v1240 = vunpack.c.h.b16 %v328
  %v1241 = vunpack.c.l.b16 %v329
  %v1242 = vunpack.c.l.b16 %v330
  %v1243 = vunpack.c.h.b16 %v330
  %v1244 = vunpack.c.l.b16 %v331
  %v1245 = vunpack.c.l.b16 %v332
  %v1246 = vunpack.c.h.b16 %v332
  %v1247 = vunpack.c.l.b16 %v333
  %v1248 = vunpack.c.l.b16 %v334
  %v1249 = vunpack.c.h.b16 %v334
  %v1250 = vunpack.c.l.b16 %v335
  %v1251 = vunpack.c.l.b16 %v336
  %v1252 = vunpack.c.h.b16 %v336
  %v1253 = vunpack.c.l.b16 %v337
  %v1254 = vunpack.c.l.b16 %v338
  %v1255 = vunpack.c.h.b16 %v338
  %v1256 = vunpack.c.l.b16 %v339
  %v1257 = vunpack.c.l.b16 %v340
  %v1258 = vunpack.c.h.b16 %v340
  %v1259 = vunpack.c.l.b16 %v341
  %v1260 = vunpack.c.l.b16 %v342
  %v1261 = vunpack.c.h.b16 %v342
  %v1262 = vunpack.c.l.b16 %v343
  %v1263 = vunpack.c.l.b16 %v344
  %v1264 = vunpack.c.h.b16 %v344
  %v1265 = vunpack.c.l.b16 %v345
  %v1266 = vunpack.c.l.b16 %v346
  %v1267 = vunpack.c.h.b16 %v346
  %v1268 = vunpack.c.l.b16 %v347
  %v1269 = vunpack.c.l.b16 %v348
  %v1270 = vunpack.c.h.b16 %v348
  %v1271 = vunpack.c.l.b16 %v349
  %v1272 = vunpack.c.l.b16 %v350
  %v1273 = vunpack.c.h.b16 %v350
  %v1274 = vunpack.c.l.b16 %v351
  %v1275 = vunpack.c.l.b16 %v352
  %v1276 = vunpack.c.h.b16 %v352
  %v1277 = vunpack.c.l.b16 %v353
  %v1278 = vunpack.c.l.b16 %v354
  %v1279 = vunpack.c.h.b16 %v354
  %v1280 = vunpack.c.l.b16 %v355
  %v1281 = vunpack.c.l.b16 %v356
  %v1282 = vunpack.c.h.b16 %v356
  %v1283 = vunpack.c.l.b16 %v357
  %v1284 = vunpack.c.l.b16 %v358
  %v1285 = vunpack.c.h.b16 %v358
  %v1286 = vunpack.c.l.b16 %v359
  %v1287 = vunpack.c.l.b16 %v360
  %v1288 = vunpack.c.h.b16 %v360
  %v1289 = vunpack.c.l.b16 %v361
  %v1290 = vunpack.c.l.b16 %v362
  %v1291 = vunpack.c.h.b16 %v362
  %v1292 = vunpack.c.l.b16 %v363
  %v1293 = vunpack.c.l.b16 %v364
  %v1294 = vunpack.c.h.b16 %v364
  %v1295 = vunpack.c.l.b16 %v365
  %v1296 = vunpack.c.l.b16 %v366
  %v1297 = vunpack.c.h.b16 %v366
  %v1298 = vunpack.c.l.b16 %v367
  %v1299 = vunpack.c.l.b16 %v368
  %v1300 = vunpack.c.h.b16 %v368
  %v1301 = vunpack.c.l.b16 %v369
  %v1302 = vunpack.c.l.b16 %v370
  %v1303 = vunpack.c.h.b16 %v370
  %v1304 = vunpack.c.l.b16 %v371
  %v1305 = vunpack.c.l.b16 %v372
  %v1306 = vunpack.c.h.b16 %v372
  %v1307 = vunpack.c.l.b16 %v373
  %v1308 = vunpack.c.l.b16 %v374
  %v1309 = vunpack.c.h.b16 %v374
  %v1310 = vunpack.c.l.b16 %v375
  %v1311 = vunpack.c.l.b16 %v376
  %v1312 = vunpack.c.h.b16 %v376
  %v1313 = vunpack.c.l.b16 %v377
  %v1314 = vpack.c.b16 %v777, %v774
  %v1315 = vpack.c.b16 %v778, %v775
  %v1316 = vpack.c.b16 %v779, %v776
  %v1317 = vpack.c.b16 %v783, %v780
  %v1318 = vpack.c.b16 %v784, %v781
  %v1319 = vpack.c.b16 %v785, %v782
  %v1320 = vpack.c.b16 %v789, %v786
  %v1321 = vpack.c.b16 %v790, %v787
  %v1322 = vpack.c.b16 %v791, %v788
  %v1323 = vpack.c.b16 %v795, %v792
  %v1324 = vpack.c.b16 %v796, %v793
  %v1325 = vpack.c.b16 %v797, %v794
  %v1326 = vpack.c.b16 %v801, %v798
  %v1327 = vpack.c.b16 %v802, %v799
  %v1328 = vpack.c.b16 %v803, %v800
  %v1329 = vpack.c.b16 %v807, %v804
  %v1330 = vpack.c.b16 %v808, %v805
  %v1331 = vpack.c.b16 %v809, %v806
  %v1332 = vpack.c.b16 %v813, %v810
  %v1333 = vpack.c.b16 %v814, %v811
  %v1334 = vpack.c.b16 %v815, %v812
  %v1335 = vpack.c.b16 %v819, %v816
  %v1336 = vpack.c.b16 %v820, %v817
  %v1337 = vpack.c.b16 %v821, %v818
  %v1338 = vpack.c.b16 %v825, %v822
  %v1339 = vpack.c.b16 %v826, %v823
  %v1340 = vpack.c.b16 %v827, %v824
  %v1341 = vpack.c.b16 %v831, %v828
  %v1342 = vpack.c.b16 %v832, %v829
  %v1343 = vpack.c.b16 %v833, %v830
  %v1344 = vpack.c.b16 %v837, %v834
  %v1345 = vpack.c.b16 %v838, %v835
  %v1346 = vpack.c.b16 %v839, %v836
  %v1347 = vpack.c.b16 %v843, %v840
  %v1348 = vpack.c.b16 %v844, %v841
  %v1349 = vpack.c.b16 %v845, %v842
  %v1350 = vpack.c.b16 %v849, %v846
  %v1351 = vpack.c.b16 %v850, %v847
  %v1352 = vpack.c.b16 %v851, %v848
  %v1353 = vpack.c.b16 %v855, %v852
  %v1354 = vpack.c.b16 %v856, %v853
  %v1355 = vpack.c.b16 %v857, %v854
  %v1356 = vpack.c.b16 %v861, %v858
  %v1357 = vpack.c.b16 %v862, %v859
  %v1358 = vpack.c.b16 %v863, %v860
  %v1359 = vpack.c.b16 %v867, %v864
  %v1360 = vpack.c.b16 %v868, %v865
  %v1361 = vpack.c.b16 %v869, %v866
  %v1362 = vpack.c.b16 %v873, %v870
  %v1363 = vpack.c.b16 %v874, %v871
  %v1364 = vpack.c.b16 %v875, %v872
  %v1365 = vpack.c.b16 %v879, %v876
  %v1366 = vpack.c.b16 %v880, %v877
  %v1367 = vpack.c.b16 %v881, %v878
  %v1368 = vpack.c.b16 %v885, %v882
  %v1369 = vpack.c.b16 %v886, %v883
  %v1370 = vpack.c.b16 %v887, %v884
  %v1371 = vpack.c.b16 %v891, %v888
  %v1372 = vpack.c.b16 %v892, %v889
  %v1373 = vpack.c.b16 %v893, %v890
  %v1374 = vpack.c.b16 %v897, %v894
  %v1375 = vpack.c.b16 %v898, %v895
  %v1376 = vpack.c.b16 %v899, %v896
  %v1377 = vpack.c.b16 %v903, %v900
  %v1378 = vpack.c.b16 %v904, %v901
  %v1379 = vpack.c.b16 %v905, %v902
  %v1380 = vpack.c.b16 %v909, %v906
  %v1381 = vpack.c.b16 %v910, %v907
  %v1382 = vpack.c.b16 %v911, %v908
  %v1383 = vpack.c.b16 %v915, %v912
  %v1384 = vpack.c.b16 %v916, %v913
  %v1385 = vpack.c.b16 %v917, %v914
  %v1386 = vpack.c.b16 %v921, %v918
  %v1387 = vpack.c.b16 %v922, %v919
  %v1388 = vpack.c.b16 %v923, %v920
  %v1389 = vpack.c.b16 %v927, %v924
  %v1390 = vpack.c.b16 %v928, %v925
  %v1391 = vpack.c.b16 %v929, %v926
  %v1392 = vpack.c.b16 %v933, %v930
  %v1393 = vpack.c.b16 %v934, %v931
  %v1394 = vpack.c.b16 %v935, %v932
  %v1395 = vpack.c.b16 %v939, %v936
  %v1396 = vpack.c.b16 %v940, %v937
  %v1397 = vpack.c.b16 %v941, %v938
  %v1398 = vpack.c.b16 %v945, %v942
  %v1399 = vpack.c.b16 %v946, %v943
  %v1400 = vpack.c.b16 %v947, %v944
  %v1401 = vpack.c.b16 %v951, %v948
  %v1402 = vpack.c.b16 %v952, %v949
  %v1403 = vpack.c.b16 %v953, %v950
  %v1404 = vpack.c.b16 %v957, %v954
  %v1405 = vpack.c.b16 %v958, %v955
  %v1406 = vpack.c.b16 %v959, %v956
  %v1407 = vpack.c.b16 %v963, %v960
  %v1408 = vpack.c.b16 %v964, %v961
  %v1409 = vpack.c.b16 %v965, %v962
  %v1410 = vpack.c.b16 %v969, %v966
  %v1411 = vpack.c.b16 %v970, %v967
  %v1412 = vpack.c.b16 %v971, %v968
  %v1413 = vpack.c.b16 %v975, %v972
  %v1414 = vpack.c.b16 %v976, %v973
  %v1415 = vpack.c.b16 %v977, %v974
  %v1416 = vpack.c.b16 %v981, %v978
  %v1417 = vpack.c.b16 %v982, %v979
  %v1418 = vpack.c.b16 %v983, %v980
  %v1419 = vpack.c.b16 %v987, %v984
  %v1420 = vpack.c.b16 %v988, %v985
  %v1421 = vpack.c.b16 %v989, %v986
  %v1422 = vpack.c.b16 %v993, %v990
  %v1423 = vpack.c.b16 %v994, %v991
  %v1424 = vpack.c.b16 %v995, %v992
  %v1425 = vpack.c.b16 %v999, %v996
  %v1426 = vpack.c.b16 %v1000, %v997
  %v1427 = vpack.c.b16 %v1001, %v998
  %v1428 = vpack.c.b16 %v1005, %v1002
  %v1429 = vpack.c.b16 %v1006, %v1003
  %v1430 = vpack.c.b16 %v1007, %v1004
  %v1431 = vpack.c.b16 %v1011, %v1008
  %v1432 = vpack.c.b16 %v1012, %v1009
  %v1433 = vpack.c.b16 %v1013, %v1010
  %v1434 = vpack.c.b16 %v1017, %v1014
  %v1435 = vpack.c.b16 %v1018, %v1015
  %v1436 = vpack.c.b16 %v1019, %v1016
  %v1437 = vpack.c.b16 %v1023, %v1020
  %v1438 = vpack.c.b16 %v1024, %v1021
  %v1439 = vpack.c.b16 %v1025, %v1022
  %v1440 = vpack.c.b16 %v1029, %v1026
  %v1441 = vpack.c.b16 %v1030, %v1027
  %v1442 = vpack.c.b16 %v1031, %v1028
  %v1443 = vpack.c.b16 %v1035, %v1032
  %v1444 = vpack.c.b16 %v1036, %v1033
  %v1445 = vpack.c.b16 %v1037, %v1034
  %v1446 = vpack.c.b16 %v1041, %v1038
  %v1447 = vpack.c.b16 %v1042, %v1039
  %v1448 = vpack.c.b16 %v1043, %v1040
  %v1449 = vpack.c.b16 %v1047, %v1044
  %v1450 = vpack.c.b16 %v1048, %v1045
  %v1451 = vpack.c.b16 %v1049, %v1046
  %v1452 = vpack.c.b16 %v1053, %v1050
  %v1453 = vpack.c.b16 %v1054, %v1051
  %v1454 = vpack.c.b16 %v1055, %v1052
  %v1455 = vpack.c.b16 %v1059, %v1056
  %v1456 = vpack.c.b16 %v1060, %v1057
  %v1457 = vpack.c.b16 %v1061, %v1058
  %v1458 = vpack.c.b16 %v1065, %v1062
  %v1459 = vpack.c.b16 %v1066, %v1063
  %v1460 = vpack.c.b16 %v1067, %v1064
  %v1461 = vpack.c.b16 %v1071, %v1068
  %v1462 = vpack.c.b16 %v1072, %v1069
  %v1463 = vpack.c.b16 %v1073, %v1070
  %v1464 = vpack.c.b16 %v1077, %v1074
  %v1465 = vpack.c.b16 %v1078, %v1075
  %v1466 = vpack.c.b16 %v1079, %v1076
  %v1467 = vpack.c.b16 %v1083, %v1080
  %v1468 = vpack.c.b16 %v1084, %v1081
  %v1469 = vpack.c.b16 %v1085, %v1082
  %v1470 = vpack.c.b16 %v1089, %v1086
  %v1471 = vpack.c.b16 %v1090, %v1087
  %v1472 = vpack.c.b16 %v1091, %v1088
  %v1473 = vpack.c.b16 %v1095, %v1092
  %v1474 = vpack.c.b16 %v1096, %v1093
  %v1475 = vpack.c.b16 %v1097, %v1094
  %v1476 = vpack.c.b16 %v1101, %v1098
  %v1477 = vpack.c.b16 %v1102, %v1099
  %v1478 = vpack.c.b16 %v1103, %v1100
  %v1479 = vpack.c.b16 %v1107, %v1104
  %v1480 = vpack.c.b16 %v1108, %v1105
  %v1481 = vpack.c.b16 %v1109, %v1106
  %v1482 = vpack.c.b16 %v1113, %v1110
  %v1483 = vpack.c.b16 %v1114, %v1111
  %v1484 = vpack.c.b16 %v1115, %v1112
  %v1485 = vpack.c.b16 %v1119, %v1116
  %v1486 = vpack.c.b16 %v1120, %v1117
  %v1487 = vpack.c.b16 %v1121, %v1118
  %v1488 = vpack.c.b16 %v1125, %v1122
  %v1489 = vpack.c.b16 %v1126, %v1123
  %v1490 = vpack.c.b16 %v1127, %v1124
  %v1491 = vpack.c.b16 %v1131, %v1128
  %v1492 = vpack.c.b16 %v1132, %v1129
  %v1493 = vpack.c.b16 %v1133, %v1130
  %v1494 = vpack.c.b16 %v1137, %v1134
  %v1495 = vpack.c.b16 %v1138, %v1135
  %v1496 = vpack.c.b16 %v1139, %v1136
  %v1497 = vpack.c.b16 %v1143, %v1140
  %v1498 = vpack.c.b16 %v1144, %v1141
  %v1499 = vpack.c.b16 %v1145, %v1142
  %v1500 = vpack.c.b16 %v1149, %v1146
  %v1501 = vpack.c.b16 %v1150, %v1147
  %v1502 = vpack.c.b16 %v1151, %v1148
  %v1503 = vpack.c.b16 %v1155, %v1152
  %v1504 = vpack.c.b16 %v1156, %v1153
  %v1505 = vpack.c.b16 %v1157, %v1154
  %v1506 = vpack.c.b16 %v1161, %v1158
  %v1507 = vpack.c.b16 %v1162, %v1159
  %v1508 = vpack.c.b16 %v1163, %v1160
  %v1509 = vpack.c.b16 %v1167, %v1164
  %v1510 = vpack.c.b16 %v1168, %v1165
  %v1511 = vpack.c.b16 %v1169, %v1166
  %v1512 = vpack.c.b16 %v1173, %v1170
  %v1513 = vpack.c.b16 %v1174, %v1171
  %v1514 = vpack.c.b16 %v1175, %v1172
  %v1515 = vpack.c.b16 %v1179, %v1176
  %v1516 = vpack.c.b16 %v1180, %v1177
  %v1517 = vpack.c.b16 %v1181, %v1178
  %v1518 = vpack.c.b16 %v1185, %v1182
  %v1519 = vpack.c.b16 %v1186, %v1183
  %v1520 = vpack.c.b16 %v1187, %v1184
  %v1521 = vpack.c.b16 %v1191, %v1188
  %v1522 = vpack.c.b16 %v1192, %v1189
  %v1523 = vpack.c.b16 %v1193, %v1190
  %v1524 = vpack.c.b16 %v1197, %v1194
  %v1525 = vpack.c.b16 %v1198, %v1195
  %v1526 = vpack.c.b16 %v1199, %v1196
  %v1527 = vpack.c.b16 %v1203, %v1200
  %v1528 = vpack.c.b16 %v1204, %v1201
  %v1529 = vpack.c.b16 %v1205, %v1202
  %v1530 = vpack.c.b16 %v1209, %v1206
  %v1531 = vpack.c.b16 %v1210, %v1207
  %v1532 = vpack.c.b16 %v1211, %v1208
  %v1533 = vpack.c.b16 %v1215, %v1212
  %v1534 = vpack.c.b16 %v1216, %v1213
  %v1535 = vpack.c.b16 %v1217, %v1214
  %v1536 = vpack.c.b16 %v1221, %v1218
  %v1537 = vpack.c.b16 %v1222, %v1219
  %v1538 = vpack.c.b16 %v1223, %v1220
  %v1539 = vpack.c.b16 %v1227, %v1224
  %v1540 = vpack.c.b16 %v1228, %v1225
  %v1541 = vpack.c.b16 %v1229, %v1226
  %v1542 = vpack.c.b16 %v1233, %v1230
  %v1543 = vpack.c.b16 %v1234, %v1231
  %v1544 = vpack.c.b16 %v1235, %v1232
  %v1545 = vpack.c.b16 %v1239, %v1236
  %v1546 = vpack.c.b16 %v1240, %v1237
  %v1547 = vpack.c.b16 %v1241, %v1238
  %v1548 = vpack.c.b16 %v1245, %v1242
  %v1549 = vpack.c.b16 %v1246, %v1243
  %v1550 = vpack.c.b16 %v1247, %v1244
  %v1551 = vpack.c.b16 %v1251, %v1248
  %v1552 = vpack.c.b16 %v1252, %v1249
  %v1553 = vpack.c.b16 %v1253, %v1250
  %v1554 = vpack.c.b16 %v1257, %v1254
  %v1555 = vpack.c.b16 %v1258, %v1255
  %v1556 = vpack.c.b16 %v1259, %v1256
  %v1557 = vpack.c.b16 %v1263, %v1260
  %v1558 = vpack.c.b16 %v1264, %v1261
  %v1559 = vpack.c.b16 %v1265, %v1262
  %v1560 = vpack.c.b16 %v1269, %v1266
  %v1561 = vpack.c.b16 %v1270, %v1267
  %v1562 = vpack.c.b16 %v1271, %v1268
  %v1563 = vpack.c.b16 %v1275, %v1272
  %v1564 = vpack.c.b16 %v1276, %v1273
  %v1565 = vpack.c.b16 %v1277, %v1274
  %v1566 = vpack.c.b16 %v1281, %v1278
  %v1567 = vpack.c.b16 %v1282, %v1279
  %v1568 = vpack.c.b16 %v1283, %v1280
  %v1569 = vpack.c.b16 %v1287, %v1284
  %v1570 = vpack.c.b16 %v1288, %v1285
  %v1571 = vpack.c.b16 %v1289, %v1286
  %v1572 = vpack.c.b16 %v1293, %v1290
  %v1573 = vpack.c.b16 %v1294, %v1291
  %v1574 = vpack.c.b16 %v1295, %v1292
  %v1575 = vpack.c.b16 %v1299, %v1296
  %v1576 = vpack.c.b16 %v1300, %v1297
  %v1577 = vpack.c.b16 %v1301, %v1298
  %v1578 = vpack.c.b16 %v1305, %v1302
  %v1579 = vpack.c.b16 %v1306, %v1303
  %v1580 = vpack.c.b16 %v1307, %v1304
  %v1581 = vpack.c.b16 %v1311, %v1308
  %v1582 = vpack.c.b16 %v1312, %v1309
  %v1583 = vpack.c.b16 %v1313, %v1310
  %v1800 = vunpack.c.l.b16 %v378
  %v1801 = vunpack.c.l.b16 %v379
  %v1802 = vunpack.c.l.b16 %v380
  %v1803 = vunpack.c.l.b16 %v381
  %v1804 = vunpack.c.l.b16 %v382
  %v1805 = vunpack.c.l.b16 %v383
  %v1806 = vunpack.c.l.b16 %v384
  %v1807 = vunpack.c.l.b16 %v385
  %v1808 = vunpack.c.l.b16 %v386
  %v1809 = vunpack.c.l.b16 %v387
  %v1810 = vunpack.c.l.b16 %v388
  %v1811 = vunpack.c.l.b16 %v389
  %v1812 = vunpack.c.l.b16 %v390
  %v1813 = vunpack.c.l.b16 %v391
  %v1814 = vunpack.c.l.b16 %v392
  %v1815 = vunpack.c.l.b16 %v393
  %v1816 = vunpack.c.l.b16 %v394
  %v1817 = vunpack.c.l.b16 %v395
  %v1818 = vunpack.c.l.b16 %v396
  %v1819 = vunpack.c.l.b16 %v397
  %v1820 = vunpack.c.l.b16 %v398
  %v1821 = vunpack.c.l.b16 %v399
  %v1822 = vunpack.c.l.b16 %v400
  %v1823 = vunpack.c.l.b16 %v401
  %v1824 = vunpack.c.l.b16 %v402
  %v1825 = vunpack.c.l.b16 %v403
  %v1826 = vunpack.c.l.b16 %v404
  %v1827 = vunpack.c.l.b16 %v405
  %v1828 = vunpack.c.l.b16 %v406
  %v1829 = vunpack.c.l.b16 %v407
  %v1830 = vunpack.c.l.b16 %v408
  %v1831 = vunpack.c.l.b16 %v409
  %v1832 = vunpack.c.l.b16 %v410
  %v1833 = vunpack.c.l.b16 %v411
  %v1834 = vunpack.c.l.b16 %v412
  %v1835 = vunpack.c.l.b16 %v413
  %v1836 = vpack.c.b16 %v1801, %v1800
  %v1837 = vpack.c.b16 %v1803, %v1802
  %v1838 = vpack.c.b16 %v1805, %v1804
  %v1839 = vpack.c.b16 %v1807, %v1806
  %v1840 = vpack.c.b16 %v1809, %v1808
  %v1841 = vpack.c.b16 %v1811, %v1810
  %v1842 = vpack.c.b16 %v1813, %v1812
  %v1843 = vpack.c.b16 %v1815, %v1814
  %v1844 = vpack.c.b16 %v1817, %v1816
  %v1845 = vpack.c.b16 %v1819, %v1818
  %v1846 = vpack.c.b16 %v1821, %v1820
  %v1847 = vpack.c.b16 %v1823, %v1822
  %v1848 = vpack.c.b16 %v1825, %v1824
  %v1849 = vpack.c.b16 %v1827, %v1826
  %v1850 = vpack.c.b16 %v1829, %v1828
  %v1851 = vpack.c.b16 %v1831, %v1830
  %v1852 = vpack.c.b16 %v1833, %v1832
  %v1853 = vpack.c.b16 %v1835, %v1834
  %vm1872 = vcmask 261120
  %v1874 = vsel %vm1872, %v1316, 0
  %v1877 = vsel %vm1872, %v1319, 0
  %v1880 = vsel %vm1872, %v1322, 0
  %v1883 = vsel %vm1872, %v1325, 0
  %v1886 = vsel %vm1872, %v1328, 0
  %v1889 = vsel %vm1872, %v1331, 0
  %v1892 = vsel %vm1872, %v1334, 0
  %v1895 = vsel %vm1872, %v1337, 0
  %v1898 = vsel %vm1872, %v1340, 0
  %v1901 = vsel %vm1872, %v1343, 0
  %v1904 = vsel %vm1872, %v1346, 0
  %v1907 = vsel %vm1872, %v1349, 0
  %v1910 = vsel %vm1872, %v1352, 0
  %v1913 = vsel %vm1872, %v1355, 0
  %v1916 = vsel %vm1872, %v1358, 0
  %v1919 = vsel %vm1872, %v1361, 0
  %v1922 = vsel %vm1872, %v1364, 0
  %v1925 = vsel %vm1872, %v1367, 0
  %v1928 = vsel %vm1872, %v1370, 0
  %v1931 = vsel %vm1872, %v1373, 0
  %v1934 = vsel %vm1872, %v1376, 0
  %v1937 = vsel %vm1872, %v1379, 0
  %v1940 = vsel %vm1872, %v1382, 0
  %v1943 = vsel %vm1872, %v1385, 0
  %v1946 = vsel %vm1872, %v1388, 0
  %v1949 = vsel %vm1872, %v1391, 0
  %v1952 = vsel %vm1872, %v1394, 0
  %v1955 = vsel %vm1872, %v1397, 0
  %v1958 = vsel %vm1872, %v1400, 0
  %v1961 = vsel %vm1872, %v1403, 0
  %v1964 = vsel %vm1872, %v1406, 0
  %v1967 = vsel %vm1872, %v1409, 0
  %v1970 = vsel %vm1872, %v1412, 0
  %v1973 = vsel %vm1872, %v1415, 0
  %v1976 = vsel %vm1872, %v1418, 0
  %v1979 = vsel %vm1872, %v1421, 0
  %v1982 = vsel %vm1872, %v1424, 0
  %v1985 = vsel %vm1872, %v1427, 0
  %v1988 = vsel %vm1872, %v1430, 0
  %v1991 = vsel %vm1872, %v1433, 0
  %v1994 = vsel %vm1872, %v1436, 0
  %v1997 = vsel %vm1872, %v1439, 0
  %v2000 = vsel %vm1872, %v1442, 0
  %v2003 = vsel %vm1872, %v1445, 0
  %v2006 = vsel %vm1872, %v1448, 0
  %v2009 = vsel %vm1872, %v1451, 0
  %v2012 = vsel %vm1872, %v1454, 0
  %v2015 = vsel %vm1872, %v1457, 0
  %v2018 = vsel %vm1872, %v1460, 0
  %v2021 = vsel %vm1872, %v1463, 0
  %v2024 = vsel %vm1872, %v1466, 0
  %v2027 = vsel %vm1872, %v1469, 0
  %v2030 = vsel %vm1872, %v1472, 0
  %v2033 = vsel %vm1872, %v1475, 0
  %v2036 = vsel %vm1872, %v1478, 0
  %v2039 = vsel %vm1872, %v1481, 0
  %v2042 = vsel %vm1872, %v1484, 0
  %v2045 = vsel %vm1872, %v1487, 0
  %v2048 = vsel %vm1872, %v1490, 0
  %v2051 = vsel %vm1872, %v1493, 0
  %v2054 = vsel %vm1872, %v1496, 0
  %v2057 = vsel %vm1872, %v1499, 0
  %v2060 = vsel %vm1872, %v1502, 0
  %v2063 = vsel %vm1872, %v1505, 0
  %v2066 = vsel %vm1872, %v1508, 0
  %v2069 = vsel %vm1872, %v1511, 0
  %v2072 = vsel %vm1872, %v1514, 0
  %v2075 = vsel %vm1872, %v1517, 0
  %v2078 = vsel %vm1872, %v1520, 0
  %v2081 = vsel %vm1872, %v1523, 0
  %v2084 = vsel %vm1872, %v1526, 0
  %v2087 = vsel %vm1872, %v1529, 0
  %v2090 = vsel %vm1872, %v1532, 0
  %v2093 = vsel %vm1872, %v1535, 0
  %v2096 = vsel %vm1872, %v1538, 0
  %v2099 = vsel %vm1872, %v1541, 0
  %v2102 = vsel %vm1872, %v1544, 0
  %v2105 = vsel %vm1872, %v1547, 0
  %v2108 = vsel %vm1872, %v1550, 0
  %v2111 = vsel %vm1872, %v1553, 0
  %v2114 = vsel %vm1872, %v1556, 0
  %v2117 = vsel %vm1872, %v1559, 0
  %v2120 = vsel %vm1872, %v1562, 0
  %v2123 = vsel %vm1872, %v1565, 0
  %v2126 = vsel %vm1872, %v1568, 0
  %v2129 = vsel %vm1872, %v1571, 0
  %v2132 = vsel %vm1872, %v1574, 0
  %v2135 = vsel %vm1872, %v1577, 0
  %v2138 = vsel %vm1872, %v1580, 0
  %v2141 = vsel %vm1872, %v1583, 0
  %2143 = vmatprep.subr.bf16.mxu0 0
  %2144 = vmatpush1.bf16.msra.mxu0 %v1843
  %2145 = vmatprep.subr.bf16.mxu0 0
  %2146 = vmatpush1.bf16.msra.mxu0 %v1842
  %2147 = vmatprep.subr.bf16.mxu0 0
  %2148 = vmatpush1.bf16.msra.mxu0 %v1841
  %2149 = vmatprep.subr.bf16.mxu0 0
  %2150 = vmatpush1.bf16.msra.mxu0 %v1840
  %2151 = vmatprep.subr.bf16.mxu0 0
  %2152 = vmatpush1.bf16.msra.mxu0 %v1839
  %2153 = vmatprep.subr.bf16.mxu0 0
  %2154 = vmatpush1.bf16.msra.mxu0 %v1838
  %2155 = vmatprep.subr.bf16.mxu0 0
  %2156 = vmatpush1.bf16.msra.mxu0 %v1837
  %2157 = vmatprep.subr.bf16.mxu0 0
  %2158 = vmatpush1.bf16.msra.mxu0 %v1836
  %2159 = vmatprep.subr.bf16.mxu0 0
  %2160 = vmatpush2.bf16.msra.mxu0 %v1851
  %2161 = vmatprep.subr.bf16.mxu0 0
  %2162 = vmatpush2.bf16.msra.mxu0 %v1850
  %2163 = vmatprep.subr.bf16.mxu0 0
  %2164 = vmatpush2.bf16.msra.mxu0 %v1849
  %2165 = vmatprep.subr.bf16.mxu0 0
  %2166 = vmatpush2.bf16.msra.mxu0 %v1848
  %2167 = vmatprep.subr.bf16.mxu0 0
  %2168 = vmatpush2.bf16.msra.mxu0 %v1847
  %2169 = vmatprep.subr.bf16.mxu0 0
  %2170 = vmatpush2.bf16.msra.mxu0 %v1846
  %2171 = vmatprep.subr.bf16.mxu0 0
  %2172 = vmatpush2.bf16.msra.mxu0 %v1845
  %2173 = vmatprep.subr.bf16.mxu0 0
  %2174 = vmatpush2.bf16.msra.mxu0 %v1844
  %2175 = vmatprep.mubr.bf16.mxu0 %v1315
  %2176 = vmatmul.mubr.bf16.gmra.mxu0 %v1314
  %v2177 = vpop.f32.mrf.mxu0
  %v2178 = vadd.f32 0.0, %v2177
  %v2179 = vpop.f32.mrf.mxu0
  %v2180 = vpop.f32.mrf.mxu0
  %v2181 = vadd.f32 0.0, %v2180
  %v2182 = vpop.f32.mrf.mxu0
  %2183 = vmatprep.mubr.bf16.mxu0 %v1318
  %2184 = vmatmul.mubr.bf16.gmra.mxu0 %v1317
  %v2185 = vpop.f32.mrf.mxu0
  %v2186 = vadd.f32 0.0, %v2185
  %v2187 = vpop.f32.mrf.mxu0
  %v2188 = vpop.f32.mrf.mxu0
  %v2189 = vadd.f32 0.0, %v2188
  %v2190 = vpop.f32.mrf.mxu0
  %2191 = vmatprep.mubr.bf16.mxu0 %v1321
  %2192 = vmatmul.mubr.bf16.gmra.mxu0 %v1320
  %v2193 = vpop.f32.mrf.mxu0
  %v2194 = vadd.f32 0.0, %v2193
  %v2195 = vpop.f32.mrf.mxu0
  %v2196 = vpop.f32.mrf.mxu0
  %v2197 = vadd.f32 0.0, %v2196
  %v2198 = vpop.f32.mrf.mxu0
  %2199 = vmatprep.mubr.bf16.mxu0 %v1324
  %2200 = vmatmul.mubr.bf16.gmra.mxu0 %v1323
  %v2201 = vpop.f32.mrf.mxu0
  %v2202 = vadd.f32 0.0, %v2201
  %v2203 = vpop.f32.mrf.mxu0
  %v2204 = vpop.f32.mrf.mxu0
  %v2205 = vadd.f32 0.0, %v2204
  %v2206 = vpop.f32.mrf.mxu0
  %2207 = vmatprep.mubr.bf16.mxu0 %v1327
  %2208 = vmatmul.mubr.bf16.gmra.mxu0 %v1326
  %v2209 = vpop.f32.mrf.mxu0
  %v2210 = vadd.f32 0.0, %v2209
  %v2211 = vpop.f32.mrf.mxu0
  %v2212 = vpop.f32.mrf.mxu0
  %v2213 = vadd.f32 0.0, %v2212
  %v2214 = vpop.f32.mrf.mxu0
  %2215 = vmatprep.mubr.bf16.mxu0 %v1330
  %2216 = vmatmul.mubr.bf16.gmra.mxu0 %v1329
  %v2217 = vpop.f32.mrf.mxu0
  %v2218 = vadd.f32 0.0, %v2217
  %v2219 = vpop.f32.mrf.mxu0
  %v2220 = vpop.f32.mrf.mxu0
  %v2221 = vadd.f32 0.0, %v2220
  %v2222 = vpop.f32.mrf.mxu0
  %2223 = vmatprep.mubr.bf16.mxu0 %v1333
  %2224 = vmatmul.mubr.bf16.gmra.mxu0 %v1332
  %v2225 = vpop.f32.mrf.mxu0
  %v2226 = vadd.f32 0.0, %v2225
  %v2227 = vpop.f32.mrf.mxu0
  %v2228 = vpop.f32.mrf.mxu0
  %v2229 = vadd.f32 0.0, %v2228
  %v2230 = vpop.f32.mrf.mxu0
  %2231 = vmatprep.mubr.bf16.mxu0 %v1336
  %2232 = vmatmul.mubr.bf16.gmra.mxu0 %v1335
  %v2233 = vpop.f32.mrf.mxu0
  %v2234 = vadd.f32 0.0, %v2233
  %v2235 = vpop.f32.mrf.mxu0
  %v2236 = vpop.f32.mrf.mxu0
  %v2237 = vadd.f32 0.0, %v2236
  %v2238 = vpop.f32.mrf.mxu0
  %2239 = vmatprep.mubr.bf16.mxu0 %v1339
  %2240 = vmatmul.mubr.bf16.gmra.mxu0 %v1338
  %v2241 = vpop.f32.mrf.mxu0
  %v2242 = vadd.f32 0.0, %v2241
  %v2243 = vpop.f32.mrf.mxu0
  %v2244 = vpop.f32.mrf.mxu0
  %v2245 = vadd.f32 0.0, %v2244
  %v2246 = vpop.f32.mrf.mxu0
  %2247 = vmatprep.mubr.bf16.mxu0 %v1342
  %2248 = vmatmul.mubr.bf16.gmra.mxu0 %v1341
  %v2249 = vpop.f32.mrf.mxu0
  %v2250 = vadd.f32 0.0, %v2249
  %v2251 = vpop.f32.mrf.mxu0
  %v2252 = vpop.f32.mrf.mxu0
  %v2253 = vadd.f32 0.0, %v2252
  %v2254 = vpop.f32.mrf.mxu0
  %2255 = vmatprep.mubr.bf16.mxu0 %v1345
  %2256 = vmatmul.mubr.bf16.gmra.mxu0 %v1344
  %v2257 = vpop.f32.mrf.mxu0
  %v2258 = vadd.f32 0.0, %v2257
  %v2259 = vpop.f32.mrf.mxu0
  %v2260 = vpop.f32.mrf.mxu0
  %v2261 = vadd.f32 0.0, %v2260
  %v2262 = vpop.f32.mrf.mxu0
  %2263 = vmatprep.mubr.bf16.mxu0 %v1348
  %2264 = vmatmul.mubr.bf16.gmra.mxu0 %v1347
  %v2265 = vpop.f32.mrf.mxu0
  %v2266 = vadd.f32 0.0, %v2265
  %v2267 = vpop.f32.mrf.mxu0
  %v2268 = vpop.f32.mrf.mxu0
  %v2269 = vadd.f32 0.0, %v2268
  %v2270 = vpop.f32.mrf.mxu0
  %2271 = vmatprep.mubr.bf16.mxu0 %v1351
  %2272 = vmatmul.mubr.bf16.gmra.mxu0 %v1350
  %v2273 = vpop.f32.mrf.mxu0
  %v2274 = vadd.f32 0.0, %v2273
  %v2275 = vpop.f32.mrf.mxu0
  %v2276 = vpop.f32.mrf.mxu0
  %v2277 = vadd.f32 0.0, %v2276
  %v2278 = vpop.f32.mrf.mxu0
  %2279 = vmatprep.mubr.bf16.mxu0 %v1354
  %2280 = vmatmul.mubr.bf16.gmra.mxu0 %v1353
  %v2281 = vpop.f32.mrf.mxu0
  %v2282 = vadd.f32 0.0, %v2281
  %v2283 = vpop.f32.mrf.mxu0
  %v2284 = vpop.f32.mrf.mxu0
  %v2285 = vadd.f32 0.0, %v2284
  %v2286 = vpop.f32.mrf.mxu0
  %2287 = vmatprep.mubr.bf16.mxu0 %v1357
  %2288 = vmatmul.mubr.bf16.gmra.mxu0 %v1356
  %v2289 = vpop.f32.mrf.mxu0
  %v2290 = vadd.f32 0.0, %v2289
  %v2291 = vpop.f32.mrf.mxu0
  %v2292 = vpop.f32.mrf.mxu0
  %v2293 = vadd.f32 0.0, %v2292
  %v2294 = vpop.f32.mrf.mxu0
  %2295 = vmatprep.mubr.bf16.mxu0 %v1360
  %2296 = vmatmul.mubr.bf16.gmra.mxu0 %v1359
  %v2297 = vpop.f32.mrf.mxu0
  %v2298 = vadd.f32 0.0, %v2297
  %v2299 = vpop.f32.mrf.mxu0
  %v2300 = vpop.f32.mrf.mxu0
  %v2301 = vadd.f32 0.0, %v2300
  %v2302 = vpop.f32.mrf.mxu0
  %2303 = vmatprep.mubr.bf16.mxu0 %v1363
  %2304 = vmatmul.mubr.bf16.gmra.mxu0 %v1362
  %v2305 = vpop.f32.mrf.mxu0
  %v2306 = vadd.f32 0.0, %v2305
  %v2307 = vpop.f32.mrf.mxu0
  %v2308 = vpop.f32.mrf.mxu0
  %v2309 = vadd.f32 0.0, %v2308
  %v2310 = vpop.f32.mrf.mxu0
  %2311 = vmatprep.mubr.bf16.mxu0 %v1366
  %2312 = vmatmul.mubr.bf16.gmra.mxu0 %v1365
  %v2313 = vpop.f32.mrf.mxu0
  %v2314 = vadd.f32 0.0, %v2313
  %v2315 = vpop.f32.mrf.mxu0
  %v2316 = vpop.f32.mrf.mxu0
  %v2317 = vadd.f32 0.0, %v2316
  %v2318 = vpop.f32.mrf.mxu0
  %2319 = vmatprep.mubr.bf16.mxu0 %v1369
  %2320 = vmatmul.mubr.bf16.gmra.mxu0 %v1368
  %v2321 = vpop.f32.mrf.mxu0
  %v2322 = vadd.f32 0.0, %v2321
  %v2323 = vpop.f32.mrf.mxu0
  %v2324 = vpop.f32.mrf.mxu0
  %v2325 = vadd.f32 0.0, %v2324
  %v2326 = vpop.f32.mrf.mxu0
  %2327 = vmatprep.mubr.bf16.mxu0 %v1372
  %2328 = vmatmul.mubr.bf16.gmra.mxu0 %v1371
  %v2329 = vpop.f32.mrf.mxu0
  %v2330 = vadd.f32 0.0, %v2329
  %v2331 = vpop.f32.mrf.mxu0
  %v2332 = vpop.f32.mrf.mxu0
  %v2333 = vadd.f32 0.0, %v2332
  %v2334 = vpop.f32.mrf.mxu0
  %2335 = vmatprep.mubr.bf16.mxu0 %v1375
  %2336 = vmatmul.mubr.bf16.gmra.mxu0 %v1374
  %v2337 = vpop.f32.mrf.mxu0
  %v2338 = vadd.f32 0.0, %v2337
  %v2339 = vpop.f32.mrf.mxu0
  %v2340 = vpop.f32.mrf.mxu0
  %v2341 = vadd.f32 0.0, %v2340
  %v2342 = vpop.f32.mrf.mxu0
  %2343 = vmatprep.mubr.bf16.mxu0 %v1378
  %2344 = vmatmul.mubr.bf16.gmra.mxu0 %v1377
  %v2345 = vpop.f32.mrf.mxu0
  %v2346 = vadd.f32 0.0, %v2345
  %v2347 = vpop.f32.mrf.mxu0
  %v2348 = vpop.f32.mrf.mxu0
  %v2349 = vadd.f32 0.0, %v2348
  %v2350 = vpop.f32.mrf.mxu0
  %2351 = vmatprep.mubr.bf16.mxu0 %v1381
  %2352 = vmatmul.mubr.bf16.gmra.mxu0 %v1380
  %v2353 = vpop.f32.mrf.mxu0
  %v2354 = vadd.f32 0.0, %v2353
  %v2355 = vpop.f32.mrf.mxu0
  %v2356 = vpop.f32.mrf.mxu0
  %v2357 = vadd.f32 0.0, %v2356
  %v2358 = vpop.f32.mrf.mxu0
  %2359 = vmatprep.mubr.bf16.mxu0 %v1384
  %2360 = vmatmul.mubr.bf16.gmra.mxu0 %v1383
  %v2361 = vpop.f32.mrf.mxu0
  %v2362 = vadd.f32 0.0, %v2361
  %v2363 = vpop.f32.mrf.mxu0
  %v2364 = vpop.f32.mrf.mxu0
  %v2365 = vadd.f32 0.0, %v2364
  %v2366 = vpop.f32.mrf.mxu0
  %2367 = vmatprep.mubr.bf16.mxu0 %v1387
  %2368 = vmatmul.mubr.bf16.gmra.mxu0 %v1386
  %v2369 = vpop.f32.mrf.mxu0
  %v2370 = vadd.f32 0.0, %v2369
  %v2371 = vpop.f32.mrf.mxu0
  %v2372 = vpop.f32.mrf.mxu0
  %v2373 = vadd.f32 0.0, %v2372
  %v2374 = vpop.f32.mrf.mxu0
  %2375 = vmatprep.mubr.bf16.mxu0 %v1390
  %2376 = vmatmul.mubr.bf16.gmra.mxu0 %v1389
  %v2377 = vpop.f32.mrf.mxu0
  %v2378 = vadd.f32 0.0, %v2377
  %v2379 = vpop.f32.mrf.mxu0
  %v2380 = vpop.f32.mrf.mxu0
  %v2381 = vadd.f32 0.0, %v2380
  %v2382 = vpop.f32.mrf.mxu0
  %2383 = vmatprep.mubr.bf16.mxu0 %v1393
  %2384 = vmatmul.mubr.bf16.gmra.mxu0 %v1392
  %v2385 = vpop.f32.mrf.mxu0
  %v2386 = vadd.f32 0.0, %v2385
  %v2387 = vpop.f32.mrf.mxu0
  %v2388 = vpop.f32.mrf.mxu0
  %v2389 = vadd.f32 0.0, %v2388
  %v2390 = vpop.f32.mrf.mxu0
  %2391 = vmatprep.mubr.bf16.mxu0 %v1396
  %2392 = vmatmul.mubr.bf16.gmra.mxu0 %v1395
  %v2393 = vpop.f32.mrf.mxu0
  %v2394 = vadd.f32 0.0, %v2393
  %v2395 = vpop.f32.mrf.mxu0
  %v2396 = vpop.f32.mrf.mxu0
  %v2397 = vadd.f32 0.0, %v2396
  %v2398 = vpop.f32.mrf.mxu0
  %2399 = vmatprep.mubr.bf16.mxu0 %v1399
  %2400 = vmatmul.mubr.bf16.gmra.mxu0 %v1398
  %v2401 = vpop.f32.mrf.mxu0
  %v2402 = vadd.f32 0.0, %v2401
  %v2403 = vpop.f32.mrf.mxu0
  %v2404 = vpop.f32.mrf.mxu0
  %v2405 = vadd.f32 0.0, %v2404
  %v2406 = vpop.f32.mrf.mxu0
  %2407 = vmatprep.mubr.bf16.mxu0 %v1402
  %2408 = vmatmul.mubr.bf16.gmra.mxu0 %v1401
  %v2409 = vpop.f32.mrf.mxu0
  %v2410 = vadd.f32 0.0, %v2409
  %v2411 = vpop.f32.mrf.mxu0
  %v2412 = vpop.f32.mrf.mxu0
  %v2413 = vadd.f32 0.0, %v2412
  %v2414 = vpop.f32.mrf.mxu0
  %2415 = vmatprep.mubr.bf16.mxu0 %v1405
  %2416 = vmatmul.mubr.bf16.gmra.mxu0 %v1404
  %v2417 = vpop.f32.mrf.mxu0
  %v2418 = vadd.f32 0.0, %v2417
  %v2419 = vpop.f32.mrf.mxu0
  %v2420 = vpop.f32.mrf.mxu0
  %v2421 = vadd.f32 0.0, %v2420
  %v2422 = vpop.f32.mrf.mxu0
  %2423 = vmatprep.mubr.bf16.mxu0 %v1408
  %2424 = vmatmul.mubr.bf16.gmra.mxu0 %v1407
  %v2425 = vpop.f32.mrf.mxu0
  %v2426 = vadd.f32 0.0, %v2425
  %v2427 = vpop.f32.mrf.mxu0
  %v2428 = vpop.f32.mrf.mxu0
  %v2429 = vadd.f32 0.0, %v2428
  %v2430 = vpop.f32.mrf.mxu0
  %2431 = vmatprep.mubr.bf16.mxu0 %v1411
  %2432 = vmatmul.mubr.bf16.gmra.mxu0 %v1410
  %v2433 = vpop.f32.mrf.mxu0
  %v2434 = vadd.f32 0.0, %v2433
  %v2435 = vpop.f32.mrf.mxu0
  %v2436 = vpop.f32.mrf.mxu0
  %v2437 = vadd.f32 0.0, %v2436
  %v2438 = vpop.f32.mrf.mxu0
  %2439 = vmatprep.mubr.bf16.mxu0 %v1414
  %2440 = vmatmul.mubr.bf16.gmra.mxu0 %v1413
  %v2441 = vpop.f32.mrf.mxu0
  %v2442 = vadd.f32 0.0, %v2441
  %v2443 = vpop.f32.mrf.mxu0
  %v2444 = vpop.f32.mrf.mxu0
  %v2445 = vadd.f32 0.0, %v2444
  %v2446 = vpop.f32.mrf.mxu0
  %2447 = vmatprep.mubr.bf16.mxu0 %v1417
  %2448 = vmatmul.mubr.bf16.gmra.mxu0 %v1416
  %v2449 = vpop.f32.mrf.mxu0
  %v2450 = vadd.f32 0.0, %v2449
  %v2451 = vpop.f32.mrf.mxu0
  %v2452 = vpop.f32.mrf.mxu0
  %v2453 = vadd.f32 0.0, %v2452
  %v2454 = vpop.f32.mrf.mxu0
  %2455 = vmatprep.mubr.bf16.mxu0 %v1420
  %2456 = vmatmul.mubr.bf16.gmra.mxu0 %v1419
  %v2457 = vpop.f32.mrf.mxu0
  %v2458 = vadd.f32 0.0, %v2457
  %v2459 = vpop.f32.mrf.mxu0
  %v2460 = vpop.f32.mrf.mxu0
  %v2461 = vadd.f32 0.0, %v2460
  %v2462 = vpop.f32.mrf.mxu0
  %2463 = vmatprep.mubr.bf16.mxu0 %v1423
  %2464 = vmatmul.mubr.bf16.gmra.mxu0 %v1422
  %v2465 = vpop.f32.mrf.mxu0
  %v2466 = vadd.f32 0.0, %v2465
  %v2467 = vpop.f32.mrf.mxu0
  %v2468 = vpop.f32.mrf.mxu0
  %v2469 = vadd.f32 0.0, %v2468
  %v2470 = vpop.f32.mrf.mxu0
  %2471 = vmatprep.mubr.bf16.mxu0 %v1426
  %2472 = vmatmul.mubr.bf16.gmra.mxu0 %v1425
  %v2473 = vpop.f32.mrf.mxu0
  %v2474 = vadd.f32 0.0, %v2473
  %v2475 = vpop.f32.mrf.mxu0
  %v2476 = vpop.f32.mrf.mxu0
  %v2477 = vadd.f32 0.0, %v2476
  %v2478 = vpop.f32.mrf.mxu0
  %2479 = vmatprep.mubr.bf16.mxu0 %v1429
  %2480 = vmatmul.mubr.bf16.gmra.mxu0 %v1428
  %v2481 = vpop.f32.mrf.mxu0
  %v2482 = vadd.f32 0.0, %v2481
  %v2483 = vpop.f32.mrf.mxu0
  %v2484 = vpop.f32.mrf.mxu0
  %v2485 = vadd.f32 0.0, %v2484
  %v2486 = vpop.f32.mrf.mxu0
  %2487 = vmatprep.mubr.bf16.mxu0 %v1432
  %2488 = vmatmul.mubr.bf16.gmra.mxu0 %v1431
  %v2489 = vpop.f32.mrf.mxu0
  %v2490 = vadd.f32 0.0, %v2489
  %v2491 = vpop.f32.mrf.mxu0
  %v2492 = vpop.f32.mrf.mxu0
  %v2493 = vadd.f32 0.0, %v2492
  %v2494 = vpop.f32.mrf.mxu0
  %2495 = vmatprep.mubr.bf16.mxu0 %v1435
  %2496 = vmatmul.mubr.bf16.gmra.mxu0 %v1434
  %v2497 = vpop.f32.mrf.mxu0
  %v2498 = vadd.f32 0.0, %v2497
  %v2499 = vpop.f32.mrf.mxu0
  %v2500 = vpop.f32.mrf.mxu0
  %v2501 = vadd.f32 0.0, %v2500
  %v2502 = vpop.f32.mrf.mxu0
  %2503 = vmatprep.mubr.bf16.mxu0 %v1438
  %2504 = vmatmul.mubr.bf16.gmra.mxu0 %v1437
  %v2505 = vpop.f32.mrf.mxu0
  %v2506 = vadd.f32 0.0, %v2505
  %v2507 = vpop.f32.mrf.mxu0
  %v2508 = vpop.f32.mrf.mxu0
  %v2509 = vadd.f32 0.0, %v2508
  %v2510 = vpop.f32.mrf.mxu0
  %2511 = vmatprep.mubr.bf16.mxu0 %v1441
  %2512 = vmatmul.mubr.bf16.gmra.mxu0 %v1440
  %v2513 = vpop.f32.mrf.mxu0
  %v2514 = vadd.f32 0.0, %v2513
  %v2515 = vpop.f32.mrf.mxu0
  %v2516 = vpop.f32.mrf.mxu0
  %v2517 = vadd.f32 0.0, %v2516
  %v2518 = vpop.f32.mrf.mxu0
  %2519 = vmatprep.mubr.bf16.mxu0 %v1444
  %2520 = vmatmul.mubr.bf16.gmra.mxu0 %v1443
  %v2521 = vpop.f32.mrf.mxu0
  %v2522 = vadd.f32 0.0, %v2521
  %v2523 = vpop.f32.mrf.mxu0
  %v2524 = vpop.f32.mrf.mxu0
  %v2525 = vadd.f32 0.0, %v2524
  %v2526 = vpop.f32.mrf.mxu0
  %2527 = vmatprep.mubr.bf16.mxu0 %v1447
  %2528 = vmatmul.mubr.bf16.gmra.mxu0 %v1446
  %v2529 = vpop.f32.mrf.mxu0
  %v2530 = vadd.f32 0.0, %v2529
  %v2531 = vpop.f32.mrf.mxu0
  %v2532 = vpop.f32.mrf.mxu0
  %v2533 = vadd.f32 0.0, %v2532
  %v2534 = vpop.f32.mrf.mxu0
  %2535 = vmatprep.mubr.bf16.mxu0 %v1450
  %2536 = vmatmul.mubr.bf16.gmra.mxu0 %v1449
  %v2537 = vpop.f32.mrf.mxu0
  %v2538 = vadd.f32 0.0, %v2537
  %v2539 = vpop.f32.mrf.mxu0
  %v2540 = vpop.f32.mrf.mxu0
  %v2541 = vadd.f32 0.0, %v2540
  %v2542 = vpop.f32.mrf.mxu0
  %2543 = vmatprep.mubr.bf16.mxu0 %v1453
  %2544 = vmatmul.mubr.bf16.gmra.mxu0 %v1452
  %v2545 = vpop.f32.mrf.mxu0
  %v2546 = vadd.f32 0.0, %v2545
  %v2547 = vpop.f32.mrf.mxu0
  %v2548 = vpop.f32.mrf.mxu0
  %v2549 = vadd.f32 0.0, %v2548
  %v2550 = vpop.f32.mrf.mxu0
  %2551 = vmatprep.mubr.bf16.mxu0 %v1456
  %2552 = vmatmul.mubr.bf16.gmra.mxu0 %v1455
  %v2553 = vpop.f32.mrf.mxu0
  %v2554 = vadd.f32 0.0, %v2553
  %v2555 = vpop.f32.mrf.mxu0
  %v2556 = vpop.f32.mrf.mxu0
  %v2557 = vadd.f32 0.0, %v2556
  %v2558 = vpop.f32.mrf.mxu0
  %2559 = vmatprep.mubr.bf16.mxu0 %v1459
  %2560 = vmatmul.mubr.bf16.gmra.mxu0 %v1458
  %v2561 = vpop.f32.mrf.mxu0
  %v2562 = vadd.f32 0.0, %v2561
  %v2563 = vpop.f32.mrf.mxu0
  %v2564 = vpop.f32.mrf.mxu0
  %v2565 = vadd.f32 0.0, %v2564
  %v2566 = vpop.f32.mrf.mxu0
  %2567 = vmatprep.mubr.bf16.mxu0 %v1462
  %2568 = vmatmul.mubr.bf16.gmra.mxu0 %v1461
  %v2569 = vpop.f32.mrf.mxu0
  %v2570 = vadd.f32 0.0, %v2569
  %v2571 = vpop.f32.mrf.mxu0
  %v2572 = vpop.f32.mrf.mxu0
  %v2573 = vadd.f32 0.0, %v2572
  %v2574 = vpop.f32.mrf.mxu0
  %2575 = vmatprep.mubr.bf16.mxu0 %v1465
  %2576 = vmatmul.mubr.bf16.gmra.mxu0 %v1464
  %v2577 = vpop.f32.mrf.mxu0
  %v2578 = vadd.f32 0.0, %v2577
  %v2579 = vpop.f32.mrf.mxu0
  %v2580 = vpop.f32.mrf.mxu0
  %v2581 = vadd.f32 0.0, %v2580
  %v2582 = vpop.f32.mrf.mxu0
  %2583 = vmatprep.mubr.bf16.mxu0 %v1468
  %2584 = vmatmul.mubr.bf16.gmra.mxu0 %v1467
  %v2585 = vpop.f32.mrf.mxu0
  %v2586 = vadd.f32 0.0, %v2585
  %v2587 = vpop.f32.mrf.mxu0
  %v2588 = vpop.f32.mrf.mxu0
  %v2589 = vadd.f32 0.0, %v2588
  %v2590 = vpop.f32.mrf.mxu0
  %2591 = vmatprep.mubr.bf16.mxu0 %v1471
  %2592 = vmatmul.mubr.bf16.gmra.mxu0 %v1470
  %v2593 = vpop.f32.mrf.mxu0
  %v2594 = vadd.f32 0.0, %v2593
  %v2595 = vpop.f32.mrf.mxu0
  %v2596 = vpop.f32.mrf.mxu0
  %v2597 = vadd.f32 0.0, %v2596
  %v2598 = vpop.f32.mrf.mxu0
  %2599 = vmatprep.mubr.bf16.mxu0 %v1474
  %2600 = vmatmul.mubr.bf16.gmra.mxu0 %v1473
  %v2601 = vpop.f32.mrf.mxu0
  %v2602 = vadd.f32 0.0, %v2601
  %v2603 = vpop.f32.mrf.mxu0
  %v2604 = vpop.f32.mrf.mxu0
  %v2605 = vadd.f32 0.0, %v2604
  %v2606 = vpop.f32.mrf.mxu0
  %2607 = vmatprep.mubr.bf16.mxu0 %v1477
  %2608 = vmatmul.mubr.bf16.gmra.mxu0 %v1476
  %v2609 = vpop.f32.mrf.mxu0
  %v2610 = vadd.f32 0.0, %v2609
  %v2611 = vpop.f32.mrf.mxu0
  %v2612 = vpop.f32.mrf.mxu0
  %v2613 = vadd.f32 0.0, %v2612
  %v2614 = vpop.f32.mrf.mxu0
  %2615 = vmatprep.mubr.bf16.mxu0 %v1480
  %2616 = vmatmul.mubr.bf16.gmra.mxu0 %v1479
  %v2617 = vpop.f32.mrf.mxu0
  %v2618 = vadd.f32 0.0, %v2617
  %v2619 = vpop.f32.mrf.mxu0
  %v2620 = vpop.f32.mrf.mxu0
  %v2621 = vadd.f32 0.0, %v2620
  %v2622 = vpop.f32.mrf.mxu0
  %2623 = vmatprep.mubr.bf16.mxu0 %v1483
  %2624 = vmatmul.mubr.bf16.gmra.mxu0 %v1482
  %v2625 = vpop.f32.mrf.mxu0
  %v2626 = vadd.f32 0.0, %v2625
  %v2627 = vpop.f32.mrf.mxu0
  %v2628 = vpop.f32.mrf.mxu0
  %v2629 = vadd.f32 0.0, %v2628
  %v2630 = vpop.f32.mrf.mxu0
  %2631 = vmatprep.mubr.bf16.mxu0 %v1486
  %2632 = vmatmul.mubr.bf16.gmra.mxu0 %v1485
  %v2633 = vpop.f32.mrf.mxu0
  %v2634 = vadd.f32 0.0, %v2633
  %v2635 = vpop.f32.mrf.mxu0
  %v2636 = vpop.f32.mrf.mxu0
  %v2637 = vadd.f32 0.0, %v2636
  %v2638 = vpop.f32.mrf.mxu0
  %2639 = vmatprep.mubr.bf16.mxu0 %v1489
  %2640 = vmatmul.mubr.bf16.gmra.mxu0 %v1488
  %v2641 = vpop.f32.mrf.mxu0
  %v2642 = vadd.f32 0.0, %v2641
  %v2643 = vpop.f32.mrf.mxu0
  %v2644 = vpop.f32.mrf.mxu0
  %v2645 = vadd.f32 0.0, %v2644
  %v2646 = vpop.f32.mrf.mxu0
  %2647 = vmatprep.mubr.bf16.mxu0 %v1492
  %2648 = vmatmul.mubr.bf16.gmra.mxu0 %v1491
  %v2649 = vpop.f32.mrf.mxu0
  %v2650 = vadd.f32 0.0, %v2649
  %v2651 = vpop.f32.mrf.mxu0
  %v2652 = vpop.f32.mrf.mxu0
  %v2653 = vadd.f32 0.0, %v2652
  %v2654 = vpop.f32.mrf.mxu0
  %2655 = vmatprep.mubr.bf16.mxu0 %v1495
  %2656 = vmatmul.mubr.bf16.gmra.mxu0 %v1494
  %v2657 = vpop.f32.mrf.mxu0
  %v2658 = vadd.f32 0.0, %v2657
  %v2659 = vpop.f32.mrf.mxu0
  %v2660 = vpop.f32.mrf.mxu0
  %v2661 = vadd.f32 0.0, %v2660
  %v2662 = vpop.f32.mrf.mxu0
  %2663 = vmatprep.mubr.bf16.mxu0 %v1498
  %2664 = vmatmul.mubr.bf16.gmra.mxu0 %v1497
  %v2665 = vpop.f32.mrf.mxu0
  %v2666 = vadd.f32 0.0, %v2665
  %v2667 = vpop.f32.mrf.mxu0
  %v2668 = vpop.f32.mrf.mxu0
  %v2669 = vadd.f32 0.0, %v2668
  %v2670 = vpop.f32.mrf.mxu0
  %2671 = vmatprep.mubr.bf16.mxu0 %v1501
  %2672 = vmatmul.mubr.bf16.gmra.mxu0 %v1500
  %v2673 = vpop.f32.mrf.mxu0
  %v2674 = vadd.f32 0.0, %v2673
  %v2675 = vpop.f32.mrf.mxu0
  %v2676 = vpop.f32.mrf.mxu0
  %v2677 = vadd.f32 0.0, %v2676
  %v2678 = vpop.f32.mrf.mxu0
  %2679 = vmatprep.mubr.bf16.mxu0 %v1504
  %2680 = vmatmul.mubr.bf16.gmra.mxu0 %v1503
  %v2681 = vpop.f32.mrf.mxu0
  %v2682 = vadd.f32 0.0, %v2681
  %v2683 = vpop.f32.mrf.mxu0
  %v2684 = vpop.f32.mrf.mxu0
  %v2685 = vadd.f32 0.0, %v2684
  %v2686 = vpop.f32.mrf.mxu0
  %2687 = vmatprep.mubr.bf16.mxu0 %v1507
  %2688 = vmatmul.mubr.bf16.gmra.mxu0 %v1506
  %v2689 = vpop.f32.mrf.mxu0
  %v2690 = vadd.f32 0.0, %v2689
  %v2691 = vpop.f32.mrf.mxu0
  %v2692 = vpop.f32.mrf.mxu0
  %v2693 = vadd.f32 0.0, %v2692
  %v2694 = vpop.f32.mrf.mxu0
  %2695 = vmatprep.mubr.bf16.mxu0 %v1510
  %2696 = vmatmul.mubr.bf16.gmra.mxu0 %v1509
  %v2697 = vpop.f32.mrf.mxu0
  %v2698 = vadd.f32 0.0, %v2697
  %v2699 = vpop.f32.mrf.mxu0
  %v2700 = vpop.f32.mrf.mxu0
  %v2701 = vadd.f32 0.0, %v2700
  %v2702 = vpop.f32.mrf.mxu0
  %2703 = vmatprep.mubr.bf16.mxu0 %v1513
  %2704 = vmatmul.mubr.bf16.gmra.mxu0 %v1512
  %v2705 = vpop.f32.mrf.mxu0
  %v2706 = vadd.f32 0.0, %v2705
  %v2707 = vpop.f32.mrf.mxu0
  %v2708 = vpop.f32.mrf.mxu0
  %v2709 = vadd.f32 0.0, %v2708
  %v2710 = vpop.f32.mrf.mxu0
  %2711 = vmatprep.mubr.bf16.mxu0 %v1516
  %2712 = vmatmul.mubr.bf16.gmra.mxu0 %v1515
  %v2713 = vpop.f32.mrf.mxu0
  %v2714 = vadd.f32 0.0, %v2713
  %v2715 = vpop.f32.mrf.mxu0
  %v2716 = vpop.f32.mrf.mxu0
  %v2717 = vadd.f32 0.0, %v2716
  %v2718 = vpop.f32.mrf.mxu0
  %2719 = vmatprep.mubr.bf16.mxu0 %v1519
  %2720 = vmatmul.mubr.bf16.gmra.mxu0 %v1518
  %v2721 = vpop.f32.mrf.mxu0
  %v2722 = vadd.f32 0.0, %v2721
  %v2723 = vpop.f32.mrf.mxu0
  %v2724 = vpop.f32.mrf.mxu0
  %v2725 = vadd.f32 0.0, %v2724
  %v2726 = vpop.f32.mrf.mxu0
  %2727 = vmatprep.mubr.bf16.mxu0 %v1522
  %2728 = vmatmul.mubr.bf16.gmra.mxu0 %v1521
  %v2729 = vpop.f32.mrf.mxu0
  %v2730 = vadd.f32 0.0, %v2729
  %v2731 = vpop.f32.mrf.mxu0
  %v2732 = vpop.f32.mrf.mxu0
  %v2733 = vadd.f32 0.0, %v2732
  %v2734 = vpop.f32.mrf.mxu0
  %2735 = vmatprep.mubr.bf16.mxu0 %v1525
  %2736 = vmatmul.mubr.bf16.gmra.mxu0 %v1524
  %v2737 = vpop.f32.mrf.mxu0
  %v2738 = vadd.f32 0.0, %v2737
  %v2739 = vpop.f32.mrf.mxu0
  %v2740 = vpop.f32.mrf.mxu0
  %v2741 = vadd.f32 0.0, %v2740
  %v2742 = vpop.f32.mrf.mxu0
  %2743 = vmatprep.mubr.bf16.mxu0 %v1528
  %2744 = vmatmul.mubr.bf16.gmra.mxu0 %v1527
  %v2745 = vpop.f32.mrf.mxu0
  %v2746 = vadd.f32 0.0, %v2745
  %v2747 = vpop.f32.mrf.mxu0
  %v2748 = vpop.f32.mrf.mxu0
  %v2749 = vadd.f32 0.0, %v2748
  %v2750 = vpop.f32.mrf.mxu0
  %2751 = vmatprep.mubr.bf16.mxu0 %v1531
  %2752 = vmatmul.mubr.bf16.gmra.mxu0 %v1530
  %v2753 = vpop.f32.mrf.mxu0
  %v2754 = vadd.f32 0.0, %v2753
  %v2755 = vpop.f32.mrf.mxu0
  %v2756 = vpop.f32.mrf.mxu0
  %v2757 = vadd.f32 0.0, %v2756
  %v2758 = vpop.f32.mrf.mxu0
  %2759 = vmatprep.mubr.bf16.mxu0 %v1534
  %2760 = vmatmul.mubr.bf16.gmra.mxu0 %v1533
  %v2761 = vpop.f32.mrf.mxu0
  %v2762 = vadd.f32 0.0, %v2761
  %v2763 = vpop.f32.mrf.mxu0
  %v2764 = vpop.f32.mrf.mxu0
  %v2765 = vadd.f32 0.0, %v2764
  %v2766 = vpop.f32.mrf.mxu0
  %2767 = vmatprep.mubr.bf16.mxu0 %v1537
  %2768 = vmatmul.mubr.bf16.gmra.mxu0 %v1536
  %v2769 = vpop.f32.mrf.mxu0
  %v2770 = vadd.f32 0.0, %v2769
  %v2771 = vpop.f32.mrf.mxu0
  %v2772 = vpop.f32.mrf.mxu0
  %v2773 = vadd.f32 0.0, %v2772
  %v2774 = vpop.f32.mrf.mxu0
  %2775 = vmatprep.mubr.bf16.mxu0 %v1540
  %2776 = vmatmul.mubr.bf16.gmra.mxu0 %v1539
  %v2777 = vpop.f32.mrf.mxu0
  %v2778 = vadd.f32 0.0, %v2777
  %v2779 = vpop.f32.mrf.mxu0
  %v2780 = vpop.f32.mrf.mxu0
  %v2781 = vadd.f32 0.0, %v2780
  %v2782 = vpop.f32.mrf.mxu0
  %2783 = vmatprep.mubr.bf16.mxu0 %v1543
  %2784 = vmatmul.mubr.bf16.gmra.mxu0 %v1542
  %v2785 = vpop.f32.mrf.mxu0
  %v2786 = vadd.f32 0.0, %v2785
  %v2787 = vpop.f32.mrf.mxu0
  %v2788 = vpop.f32.mrf.mxu0
  %v2789 = vadd.f32 0.0, %v2788
  %v2790 = vpop.f32.mrf.mxu0
  %2791 = vmatprep.mubr.bf16.mxu0 %v1546
  %2792 = vmatmul.mubr.bf16.gmra.mxu0 %v1545
  %v2793 = vpop.f32.mrf.mxu0
  %v2794 = vadd.f32 0.0, %v2793
  %v2795 = vpop.f32.mrf.mxu0
  %v2796 = vpop.f32.mrf.mxu0
  %v2797 = vadd.f32 0.0, %v2796
  %v2798 = vpop.f32.mrf.mxu0
  %2799 = vmatprep.mubr.bf16.mxu0 %v1549
  %2800 = vmatmul.mubr.bf16.gmra.mxu0 %v1548
  %v2801 = vpop.f32.mrf.mxu0
  %v2802 = vadd.f32 0.0, %v2801
  %v2803 = vpop.f32.mrf.mxu0
  %v2804 = vpop.f32.mrf.mxu0
  %v2805 = vadd.f32 0.0, %v2804
  %v2806 = vpop.f32.mrf.mxu0
  %2807 = vmatprep.mubr.bf16.mxu0 %v1552
  %2808 = vmatmul.mubr.bf16.gmra.mxu0 %v1551
  %v2809 = vpop.f32.mrf.mxu0
  %v2810 = vadd.f32 0.0, %v2809
  %v2811 = vpop.f32.mrf.mxu0
  %v2812 = vpop.f32.mrf.mxu0
  %v2813 = vadd.f32 0.0, %v2812
  %v2814 = vpop.f32.mrf.mxu0
  %2815 = vmatprep.mubr.bf16.mxu0 %v1555
  %2816 = vmatmul.mubr.bf16.gmra.mxu0 %v1554
  %v2817 = vpop.f32.mrf.mxu0
  %v2818 = vadd.f32 0.0, %v2817
  %v2819 = vpop.f32.mrf.mxu0
  %v2820 = vpop.f32.mrf.mxu0
  %v2821 = vadd.f32 0.0, %v2820
  %v2822 = vpop.f32.mrf.mxu0
  %2823 = vmatprep.mubr.bf16.mxu0 %v1558
  %2824 = vmatmul.mubr.bf16.gmra.mxu0 %v1557
  %v2825 = vpop.f32.mrf.mxu0
  %v2826 = vadd.f32 0.0, %v2825
  %v2827 = vpop.f32.mrf.mxu0
  %v2828 = vpop.f32.mrf.mxu0
  %v2829 = vadd.f32 0.0, %v2828
  %v2830 = vpop.f32.mrf.mxu0
  %2831 = vmatprep.mubr.bf16.mxu0 %v1561
  %2832 = vmatmul.mubr.bf16.gmra.mxu0 %v1560
  %v2833 = vpop.f32.mrf.mxu0
  %v2834 = vadd.f32 0.0, %v2833
  %v2835 = vpop.f32.mrf.mxu0
  %v2836 = vpop.f32.mrf.mxu0
  %v2837 = vadd.f32 0.0, %v2836
  %v2838 = vpop.f32.mrf.mxu0
  %2839 = vmatprep.mubr.bf16.mxu0 %v1564
  %2840 = vmatmul.mubr.bf16.gmra.mxu0 %v1563
  %v2841 = vpop.f32.mrf.mxu0
  %v2842 = vadd.f32 0.0, %v2841
  %v2843 = vpop.f32.mrf.mxu0
  %v2844 = vpop.f32.mrf.mxu0
  %v2845 = vadd.f32 0.0, %v2844
  %v2846 = vpop.f32.mrf.mxu0
  %2847 = vmatprep.mubr.bf16.mxu0 %v1567
  %2848 = vmatmul.mubr.bf16.gmra.mxu0 %v1566
  %v2849 = vpop.f32.mrf.mxu0
  %v2850 = vadd.f32 0.0, %v2849
  %v2851 = vpop.f32.mrf.mxu0
  %v2852 = vpop.f32.mrf.mxu0
  %v2853 = vadd.f32 0.0, %v2852
  %v2854 = vpop.f32.mrf.mxu0
  %2855 = vmatprep.mubr.bf16.mxu0 %v1570
  %2856 = vmatmul.mubr.bf16.gmra.mxu0 %v1569
  %v2857 = vpop.f32.mrf.mxu0
  %v2858 = vadd.f32 0.0, %v2857
  %v2859 = vpop.f32.mrf.mxu0
  %v2860 = vpop.f32.mrf.mxu0
  %v2861 = vadd.f32 0.0, %v2860
  %v2862 = vpop.f32.mrf.mxu0
  %2863 = vmatprep.mubr.bf16.mxu0 %v1573
  %2864 = vmatmul.mubr.bf16.gmra.mxu0 %v1572
  %v2865 = vpop.f32.mrf.mxu0
  %v2866 = vadd.f32 0.0, %v2865
  %v2867 = vpop.f32.mrf.mxu0
  %v2868 = vpop.f32.mrf.mxu0
  %v2869 = vadd.f32 0.0, %v2868
  %v2870 = vpop.f32.mrf.mxu0
  %2871 = vmatprep.mubr.bf16.mxu0 %v1576
  %2872 = vmatmul.mubr.bf16.gmra.mxu0 %v1575
  %v2873 = vpop.f32.mrf.mxu0
  %v2874 = vadd.f32 0.0, %v2873
  %v2875 = vpop.f32.mrf.mxu0
  %v2876 = vpop.f32.mrf.mxu0
  %v2877 = vadd.f32 0.0, %v2876
  %v2878 = vpop.f32.mrf.mxu0
  %2879 = vmatprep.mubr.bf16.mxu0 %v1579
  %2880 = vmatmul.mubr.bf16.gmra.mxu0 %v1578
  %v2881 = vpop.f32.mrf.mxu0
  %v2882 = vadd.f32 0.0, %v2881
  %v2883 = vpop.f32.mrf.mxu0
  %v2884 = vpop.f32.mrf.mxu0
  %v2885 = vadd.f32 0.0, %v2884
  %v2886 = vpop.f32.mrf.mxu0
  %2887 = vmatprep.mubr.bf16.mxu0 %v1582
  %2888 = vmatmul.mubr.bf16.gmra.mxu0 %v1581
  %v2889 = vpop.f32.mrf.mxu0
  %v2890 = vadd.f32 0.0, %v2889
  %v2891 = vpop.f32.mrf.mxu0
  %v2892 = vpop.f32.mrf.mxu0
  %v2893 = vadd.f32 0.0, %v2892
  %v2894 = vpop.f32.mrf.mxu0
  %2895 = vdwg.mxu0
  %2896 = vmatprep.subr.bf16.mxu0 0
  %2897 = vmatpush1.bf16.msra.mxu0 0
  %2898 = vmatprep.subr.bf16.mxu0 0
  %2899 = vmatpush1.bf16.msra.mxu0 0
  %2900 = vmatprep.subr.bf16.mxu0 0
  %2901 = vmatpush1.bf16.msra.mxu0 0
  %2902 = vmatprep.subr.bf16.mxu0 0
  %2903 = vmatpush1.bf16.msra.mxu0 0
  %2904 = vmatprep.subr.bf16.mxu0 0
  %2905 = vmatpush1.bf16.msra.mxu0 0
  %2906 = vmatprep.subr.bf16.mxu0 0
  %2907 = vmatpush1.bf16.msra.mxu0 0
  %2908 = vmatprep.subr.bf16.mxu0 0
  %2909 = vmatpush1.bf16.msra.mxu0 %v1853
  %2910 = vmatprep.subr.bf16.mxu0 0
  %2911 = vmatpush1.bf16.msra.mxu0 %v1852
  %2912 = vmatprep.subr.bf16.mxu0 0
  %2913 = vmatpush2.bf16.msra.mxu0 0
  %2914 = vmatprep.subr.bf16.mxu0 0
  %2915 = vmatpush2.bf16.msra.mxu0 0
  %2916 = vmatprep.subr.bf16.mxu0 0
  %2917 = vmatpush2.bf16.msra.mxu0 0
  %2918 = vmatprep.subr.bf16.mxu0 0
  %2919 = vmatpush2.bf16.msra.mxu0 0
  %2920 = vmatprep.subr.bf16.mxu0 0
  %2921 = vmatpush2.bf16.msra.mxu0 0
  %2922 = vmatprep.subr.bf16.mxu0 0
  %2923 = vmatpush2.bf16.msra.mxu0 0
  %2924 = vmatprep.subr.bf16.mxu0 0
  %2925 = vmatpush2.bf16.msra.mxu0 0
  %2926 = vmatprep.subr.bf16.mxu0 0
  %2927 = vmatpush2.bf16.msra.mxu0 0
  %2928 = vmatprep.mubr.bf16.mxu0 0
  %2929 = vmatmul.mubr.bf16.gmra.mxu0 %v1874
  %v2930 = vpop.f32.mrf.mxu0
  %v2931 = vadd.f32 %v2178, %v2930
  %v2932 = vpop.f32.mrf.mxu0
  %v2933 = vpop.f32.mrf.mxu0
  %v2934 = vadd.f32 %v2181, %v2933
  %v2935 = vpop.f32.mrf.mxu0
  %2936 = vmatprep.mubr.bf16.mxu0 0
  %2937 = vmatmul.mubr.bf16.gmra.mxu0 %v1877
  %v2938 = vpop.f32.mrf.mxu0
  %v2939 = vadd.f32 %v2186, %v2938
  %v2940 = vpop.f32.mrf.mxu0
  %v2941 = vpop.f32.mrf.mxu0
  %v2942 = vadd.f32 %v2189, %v2941
  %v2943 = vpop.f32.mrf.mxu0
  %2944 = vmatprep.mubr.bf16.mxu0 0
  %2945 = vmatmul.mubr.bf16.gmra.mxu0 %v1880
  %v2946 = vpop.f32.mrf.mxu0
  %v2947 = vadd.f32 %v2194, %v2946
  %v2948 = vpop.f32.mrf.mxu0
  %v2949 = vpop.f32.mrf.mxu0
  %v2950 = vadd.f32 %v2197, %v2949
  %v2951 = vpop.f32.mrf.mxu0
  %2952 = vmatprep.mubr.bf16.mxu0 0
  %2953 = vmatmul.mubr.bf16.gmra.mxu0 %v1883
  %v2954 = vpop.f32.mrf.mxu0
  %v2955 = vadd.f32 %v2202, %v2954
  %v2956 = vpop.f32.mrf.mxu0
  %v2957 = vpop.f32.mrf.mxu0
  %v2958 = vadd.f32 %v2205, %v2957
  %v2959 = vpop.f32.mrf.mxu0
  %2960 = vmatprep.mubr.bf16.mxu0 0
  %2961 = vmatmul.mubr.bf16.gmra.mxu0 %v1886
  %v2962 = vpop.f32.mrf.mxu0
  %v2963 = vadd.f32 %v2210, %v2962
  %v2964 = vpop.f32.mrf.mxu0
  %v2965 = vpop.f32.mrf.mxu0
  %v2966 = vadd.f32 %v2213, %v2965
  %v2967 = vpop.f32.mrf.mxu0
  %2968 = vmatprep.mubr.bf16.mxu0 0
  %2969 = vmatmul.mubr.bf16.gmra.mxu0 %v1889
  %v2970 = vpop.f32.mrf.mxu0
  %v2971 = vadd.f32 %v2218, %v2970
  %v2972 = vpop.f32.mrf.mxu0
  %v2973 = vpop.f32.mrf.mxu0
  %v2974 = vadd.f32 %v2221, %v2973
  %v2975 = vpop.f32.mrf.mxu0
  %2976 = vmatprep.mubr.bf16.mxu0 0
  %2977 = vmatmul.mubr.bf16.gmra.mxu0 %v1892
  %v2978 = vpop.f32.mrf.mxu0
  %v2979 = vadd.f32 %v2226, %v2978
  %v2980 = vpop.f32.mrf.mxu0
  %v2981 = vpop.f32.mrf.mxu0
  %v2982 = vadd.f32 %v2229, %v2981
  %v2983 = vpop.f32.mrf.mxu0
  %2984 = vmatprep.mubr.bf16.mxu0 0
  %2985 = vmatmul.mubr.bf16.gmra.mxu0 %v1895
  %v2986 = vpop.f32.mrf.mxu0
  %v2987 = vadd.f32 %v2234, %v2986
  %v2988 = vpop.f32.mrf.mxu0
  %v2989 = vpop.f32.mrf.mxu0
  %v2990 = vadd.f32 %v2237, %v2989
  %v2991 = vpop.f32.mrf.mxu0
  %2992 = vmatprep.mubr.bf16.mxu0 0
  %2993 = vmatmul.mubr.bf16.gmra.mxu0 %v1898
  %v2994 = vpop.f32.mrf.mxu0
  %v2995 = vadd.f32 %v2242, %v2994
  %v2996 = vpop.f32.mrf.mxu0
  %v2997 = vpop.f32.mrf.mxu0
  %v2998 = vadd.f32 %v2245, %v2997
  %v2999 = vpop.f32.mrf.mxu0
  %3000 = vmatprep.mubr.bf16.mxu0 0
  %3001 = vmatmul.mubr.bf16.gmra.mxu0 %v1901
  %v3002 = vpop.f32.mrf.mxu0
  %v3003 = vadd.f32 %v2250, %v3002
  %v3004 = vpop.f32.mrf.mxu0
  %v3005 = vpop.f32.mrf.mxu0
  %v3006 = vadd.f32 %v2253, %v3005
  %v3007 = vpop.f32.mrf.mxu0
  %3008 = vmatprep.mubr.bf16.mxu0 0
  %3009 = vmatmul.mubr.bf16.gmra.mxu0 %v1904
  %v3010 = vpop.f32.mrf.mxu0
  %v3011 = vadd.f32 %v2258, %v3010
  %v3012 = vpop.f32.mrf.mxu0
  %v3013 = vpop.f32.mrf.mxu0
  %v3014 = vadd.f32 %v2261, %v3013
  %v3015 = vpop.f32.mrf.mxu0
  %3016 = vmatprep.mubr.bf16.mxu0 0
  %3017 = vmatmul.mubr.bf16.gmra.mxu0 %v1907
  %v3018 = vpop.f32.mrf.mxu0
  %v3019 = vadd.f32 %v2266, %v3018
  %v3020 = vpop.f32.mrf.mxu0
  %v3021 = vpop.f32.mrf.mxu0
  %v3022 = vadd.f32 %v2269, %v3021
  %v3023 = vpop.f32.mrf.mxu0
  %3024 = vmatprep.mubr.bf16.mxu0 0
  %3025 = vmatmul.mubr.bf16.gmra.mxu0 %v1910
  %v3026 = vpop.f32.mrf.mxu0
  %v3027 = vadd.f32 %v2274, %v3026
  %v3028 = vpop.f32.mrf.mxu0
  %v3029 = vpop.f32.mrf.mxu0
  %v3030 = vadd.f32 %v2277, %v3029
  %v3031 = vpop.f32.mrf.mxu0
  %3032 = vmatprep.mubr.bf16.mxu0 0
  %3033 = vmatmul.mubr.bf16.gmra.mxu0 %v1913
  %v3034 = vpop.f32.mrf.mxu0
  %v3035 = vadd.f32 %v2282, %v3034
  %v3036 = vpop.f32.mrf.mxu0
  %v3037 = vpop.f32.mrf.mxu0
  %v3038 = vadd.f32 %v2285, %v3037
  %v3039 = vpop.f32.mrf.mxu0
  %3040 = vmatprep.mubr.bf16.mxu0 0
  %3041 = vmatmul.mubr.bf16.gmra.mxu0 %v1916
  %v3042 = vpop.f32.mrf.mxu0
  %v3043 = vadd.f32 %v2290, %v3042
  %v3044 = vpop.f32.mrf.mxu0
  %v3045 = vpop.f32.mrf.mxu0
  %v3046 = vadd.f32 %v2293, %v3045
  %v3047 = vpop.f32.mrf.mxu0
  %3048 = vmatprep.mubr.bf16.mxu0 0
  %3049 = vmatmul.mubr.bf16.gmra.mxu0 %v1919
  %v3050 = vpop.f32.mrf.mxu0
  %v3051 = vadd.f32 %v2298, %v3050
  %v3052 = vpop.f32.mrf.mxu0
  %v3053 = vpop.f32.mrf.mxu0
  %v3054 = vadd.f32 %v2301, %v3053
  %v3055 = vpop.f32.mrf.mxu0
  %3056 = vmatprep.mubr.bf16.mxu0 0
  %3057 = vmatmul.mubr.bf16.gmra.mxu0 %v1922
  %v3058 = vpop.f32.mrf.mxu0
  %v3059 = vadd.f32 %v2306, %v3058
  %v3060 = vpop.f32.mrf.mxu0
  %v3061 = vpop.f32.mrf.mxu0
  %v3062 = vadd.f32 %v2309, %v3061
  %v3063 = vpop.f32.mrf.mxu0
  %3064 = vmatprep.mubr.bf16.mxu0 0
  %3065 = vmatmul.mubr.bf16.gmra.mxu0 %v1925
  %v3066 = vpop.f32.mrf.mxu0
  %v3067 = vadd.f32 %v2314, %v3066
  %v3068 = vpop.f32.mrf.mxu0
  %v3069 = vpop.f32.mrf.mxu0
  %v3070 = vadd.f32 %v2317, %v3069
  %v3071 = vpop.f32.mrf.mxu0
  %3072 = vmatprep.mubr.bf16.mxu0 0
  %3073 = vmatmul.mubr.bf16.gmra.mxu0 %v1928
  %v3074 = vpop.f32.mrf.mxu0
  %v3075 = vadd.f32 %v2322, %v3074
  %v3076 = vpop.f32.mrf.mxu0
  %v3077 = vpop.f32.mrf.mxu0
  %v3078 = vadd.f32 %v2325, %v3077
  %v3079 = vpop.f32.mrf.mxu0
  %3080 = vmatprep.mubr.bf16.mxu0 0
  %3081 = vmatmul.mubr.bf16.gmra.mxu0 %v1931
  %v3082 = vpop.f32.mrf.mxu0
  %v3083 = vadd.f32 %v2330, %v3082
  %v3084 = vpop.f32.mrf.mxu0
  %v3085 = vpop.f32.mrf.mxu0
  %v3086 = vadd.f32 %v2333, %v3085
  %v3087 = vpop.f32.mrf.mxu0
  %3088 = vmatprep.mubr.bf16.mxu0 0
  %3089 = vmatmul.mubr.bf16.gmra.mxu0 %v1934
  %v3090 = vpop.f32.mrf.mxu0
  %v3091 = vadd.f32 %v2338, %v3090
  %v3092 = vpop.f32.mrf.mxu0
  %v3093 = vpop.f32.mrf.mxu0
  %v3094 = vadd.f32 %v2341, %v3093
  %v3095 = vpop.f32.mrf.mxu0
  %3096 = vmatprep.mubr.bf16.mxu0 0
  %3097 = vmatmul.mubr.bf16.gmra.mxu0 %v1937
  %v3098 = vpop.f32.mrf.mxu0
  %v3099 = vadd.f32 %v2346, %v3098
  %v3100 = vpop.f32.mrf.mxu0
  %v3101 = vpop.f32.mrf.mxu0
  %v3102 = vadd.f32 %v2349, %v3101
  %v3103 = vpop.f32.mrf.mxu0
  %3104 = vmatprep.mubr.bf16.mxu0 0
  %3105 = vmatmul.mubr.bf16.gmra.mxu0 %v1940
  %v3106 = vpop.f32.mrf.mxu0
  %v3107 = vadd.f32 %v2354, %v3106
  %v3108 = vpop.f32.mrf.mxu0
  %v3109 = vpop.f32.mrf.mxu0
  %v3110 = vadd.f32 %v2357, %v3109
  %v3111 = vpop.f32.mrf.mxu0
  %3112 = vmatprep.mubr.bf16.mxu0 0
  %3113 = vmatmul.mubr.bf16.gmra.mxu0 %v1943
  %v3114 = vpop.f32.mrf.mxu0
  %v3115 = vadd.f32 %v2362, %v3114
  %v3116 = vpop.f32.mrf.mxu0
  %v3117 = vpop.f32.mrf.mxu0
  %v3118 = vadd.f32 %v2365, %v3117
  %v3119 = vpop.f32.mrf.mxu0
  %3120 = vmatprep.mubr.bf16.mxu0 0
  %3121 = vmatmul.mubr.bf16.gmra.mxu0 %v1946
  %v3122 = vpop.f32.mrf.mxu0
  %v3123 = vadd.f32 %v2370, %v3122
  %v3124 = vpop.f32.mrf.mxu0
  %v3125 = vpop.f32.mrf.mxu0
  %v3126 = vadd.f32 %v2373, %v3125
  %v3127 = vpop.f32.mrf.mxu0
  %3128 = vmatprep.mubr.bf16.mxu0 0
  %3129 = vmatmul.mubr.bf16.gmra.mxu0 %v1949
  %v3130 = vpop.f32.mrf.mxu0
  %v3131 = vadd.f32 %v2378, %v3130
  %v3132 = vpop.f32.mrf.mxu0
  %v3133 = vpop.f32.mrf.mxu0
  %v3134 = vadd.f32 %v2381, %v3133
  %v3135 = vpop.f32.mrf.mxu0
  %3136 = vmatprep.mubr.bf16.mxu0 0
  %3137 = vmatmul.mubr.bf16.gmra.mxu0 %v1952
  %v3138 = vpop.f32.mrf.mxu0
  %v3139 = vadd.f32 %v2386, %v3138
  %v3140 = vpop.f32.mrf.mxu0
  %v3141 = vpop.f32.mrf.mxu0
  %v3142 = vadd.f32 %v2389, %v3141
  %v3143 = vpop.f32.mrf.mxu0
  %3144 = vmatprep.mubr.bf16.mxu0 0
  %3145 = vmatmul.mubr.bf16.gmra.mxu0 %v1955
  %v3146 = vpop.f32.mrf.mxu0
  %v3147 = vadd.f32 %v2394, %v3146
  %v3148 = vpop.f32.mrf.mxu0
  %v3149 = vpop.f32.mrf.mxu0
  %v3150 = vadd.f32 %v2397, %v3149
  %v3151 = vpop.f32.mrf.mxu0
  %3152 = vmatprep.mubr.bf16.mxu0 0
  %3153 = vmatmul.mubr.bf16.gmra.mxu0 %v1958
  %v3154 = vpop.f32.mrf.mxu0
  %v3155 = vadd.f32 %v2402, %v3154
  %v3156 = vpop.f32.mrf.mxu0
  %v3157 = vpop.f32.mrf.mxu0
  %v3158 = vadd.f32 %v2405, %v3157
  %v3159 = vpop.f32.mrf.mxu0
  %3160 = vmatprep.mubr.bf16.mxu0 0
  %3161 = vmatmul.mubr.bf16.gmra.mxu0 %v1961
  %v3162 = vpop.f32.mrf.mxu0
  %v3163 = vadd.f32 %v2410, %v3162
  %v3164 = vpop.f32.mrf.mxu0
  %v3165 = vpop.f32.mrf.mxu0
  %v3166 = vadd.f32 %v2413, %v3165
  %v3167 = vpop.f32.mrf.mxu0
  %3168 = vmatprep.mubr.bf16.mxu0 0
  %3169 = vmatmul.mubr.bf16.gmra.mxu0 %v1964
  %v3170 = vpop.f32.mrf.mxu0
  %v3171 = vadd.f32 %v2418, %v3170
  %v3172 = vpop.f32.mrf.mxu0
  %v3173 = vpop.f32.mrf.mxu0
  %v3174 = vadd.f32 %v2421, %v3173
  %v3175 = vpop.f32.mrf.mxu0
  %3176 = vmatprep.mubr.bf16.mxu0 0
  %3177 = vmatmul.mubr.bf16.gmra.mxu0 %v1967
  %v3178 = vpop.f32.mrf.mxu0
  %v3179 = vadd.f32 %v2426, %v3178
  %v3180 = vpop.f32.mrf.mxu0
  %v3181 = vpop.f32.mrf.mxu0
  %v3182 = vadd.f32 %v2429, %v3181
  %v3183 = vpop.f32.mrf.mxu0
  %3184 = vmatprep.mubr.bf16.mxu0 0
  %3185 = vmatmul.mubr.bf16.gmra.mxu0 %v1970
  %v3186 = vpop.f32.mrf.mxu0
  %v3187 = vadd.f32 %v2434, %v3186
  %v3188 = vpop.f32.mrf.mxu0
  %v3189 = vpop.f32.mrf.mxu0
  %v3190 = vadd.f32 %v2437, %v3189
  %v3191 = vpop.f32.mrf.mxu0
  %3192 = vmatprep.mubr.bf16.mxu0 0
  %3193 = vmatmul.mubr.bf16.gmra.mxu0 %v1973
  %v3194 = vpop.f32.mrf.mxu0
  %v3195 = vadd.f32 %v2442, %v3194
  %v3196 = vpop.f32.mrf.mxu0
  %v3197 = vpop.f32.mrf.mxu0
  %v3198 = vadd.f32 %v2445, %v3197
  %v3199 = vpop.f32.mrf.mxu0
  %3200 = vmatprep.mubr.bf16.mxu0 0
  %3201 = vmatmul.mubr.bf16.gmra.mxu0 %v1976
  %v3202 = vpop.f32.mrf.mxu0
  %v3203 = vadd.f32 %v2450, %v3202
  %v3204 = vpop.f32.mrf.mxu0
  %v3205 = vpop.f32.mrf.mxu0
  %v3206 = vadd.f32 %v2453, %v3205
  %v3207 = vpop.f32.mrf.mxu0
  %3208 = vmatprep.mubr.bf16.mxu0 0
  %3209 = vmatmul.mubr.bf16.gmra.mxu0 %v1979
  %v3210 = vpop.f32.mrf.mxu0
  %v3211 = vadd.f32 %v2458, %v3210
  %v3212 = vpop.f32.mrf.mxu0
  %v3213 = vpop.f32.mrf.mxu0
  %v3214 = vadd.f32 %v2461, %v3213
  %v3215 = vpop.f32.mrf.mxu0
  %3216 = vmatprep.mubr.bf16.mxu0 0
  %3217 = vmatmul.mubr.bf16.gmra.mxu0 %v1982
  %v3218 = vpop.f32.mrf.mxu0
  %v3219 = vadd.f32 %v2466, %v3218
  %v3220 = vpop.f32.mrf.mxu0
  %v3221 = vpop.f32.mrf.mxu0
  %v3222 = vadd.f32 %v2469, %v3221
  %v3223 = vpop.f32.mrf.mxu0
  %3224 = vmatprep.mubr.bf16.mxu0 0
  %3225 = vmatmul.mubr.bf16.gmra.mxu0 %v1985
  %v3226 = vpop.f32.mrf.mxu0
  %v3227 = vadd.f32 %v2474, %v3226
  %v3228 = vpop.f32.mrf.mxu0
  %v3229 = vpop.f32.mrf.mxu0
  %v3230 = vadd.f32 %v2477, %v3229
  %v3231 = vpop.f32.mrf.mxu0
  %3232 = vmatprep.mubr.bf16.mxu0 0
  %3233 = vmatmul.mubr.bf16.gmra.mxu0 %v1988
  %v3234 = vpop.f32.mrf.mxu0
  %v3235 = vadd.f32 %v2482, %v3234
  %v3236 = vpop.f32.mrf.mxu0
  %v3237 = vpop.f32.mrf.mxu0
  %v3238 = vadd.f32 %v2485, %v3237
  %v3239 = vpop.f32.mrf.mxu0
  %3240 = vmatprep.mubr.bf16.mxu0 0
  %3241 = vmatmul.mubr.bf16.gmra.mxu0 %v1991
  %v3242 = vpop.f32.mrf.mxu0
  %v3243 = vadd.f32 %v2490, %v3242
  %v3244 = vpop.f32.mrf.mxu0
  %v3245 = vpop.f32.mrf.mxu0
  %v3246 = vadd.f32 %v2493, %v3245
  %v3247 = vpop.f32.mrf.mxu0
  %3248 = vmatprep.mubr.bf16.mxu0 0
  %3249 = vmatmul.mubr.bf16.gmra.mxu0 %v1994
  %v3250 = vpop.f32.mrf.mxu0
  %v3251 = vadd.f32 %v2498, %v3250
  %v3252 = vpop.f32.mrf.mxu0
  %v3253 = vpop.f32.mrf.mxu0
  %v3254 = vadd.f32 %v2501, %v3253
  %v3255 = vpop.f32.mrf.mxu0
  %3256 = vmatprep.mubr.bf16.mxu0 0
  %3257 = vmatmul.mubr.bf16.gmra.mxu0 %v1997
  %v3258 = vpop.f32.mrf.mxu0
  %v3259 = vadd.f32 %v2506, %v3258
  %v3260 = vpop.f32.mrf.mxu0
  %v3261 = vpop.f32.mrf.mxu0
  %v3262 = vadd.f32 %v2509, %v3261
  %v3263 = vpop.f32.mrf.mxu0
  %3264 = vmatprep.mubr.bf16.mxu0 0
  %3265 = vmatmul.mubr.bf16.gmra.mxu0 %v2000
  %v3266 = vpop.f32.mrf.mxu0
  %v3267 = vadd.f32 %v2514, %v3266
  %v3268 = vpop.f32.mrf.mxu0
  %v3269 = vpop.f32.mrf.mxu0
  %v3270 = vadd.f32 %v2517, %v3269
  %v3271 = vpop.f32.mrf.mxu0
  %3272 = vmatprep.mubr.bf16.mxu0 0
  %3273 = vmatmul.mubr.bf16.gmra.mxu0 %v2003
  %v3274 = vpop.f32.mrf.mxu0
  %v3275 = vadd.f32 %v2522, %v3274
  %v3276 = vpop.f32.mrf.mxu0
  %v3277 = vpop.f32.mrf.mxu0
  %v3278 = vadd.f32 %v2525, %v3277
  %v3279 = vpop.f32.mrf.mxu0
  %3280 = vmatprep.mubr.bf16.mxu0 0
  %3281 = vmatmul.mubr.bf16.gmra.mxu0 %v2006
  %v3282 = vpop.f32.mrf.mxu0
  %v3283 = vadd.f32 %v2530, %v3282
  %v3284 = vpop.f32.mrf.mxu0
  %v3285 = vpop.f32.mrf.mxu0
  %v3286 = vadd.f32 %v2533, %v3285
  %v3287 = vpop.f32.mrf.mxu0
  %3288 = vmatprep.mubr.bf16.mxu0 0
  %3289 = vmatmul.mubr.bf16.gmra.mxu0 %v2009
  %v3290 = vpop.f32.mrf.mxu0
  %v3291 = vadd.f32 %v2538, %v3290
  %v3292 = vpop.f32.mrf.mxu0
  %v3293 = vpop.f32.mrf.mxu0
  %v3294 = vadd.f32 %v2541, %v3293
  %v3295 = vpop.f32.mrf.mxu0
  %3296 = vmatprep.mubr.bf16.mxu0 0
  %3297 = vmatmul.mubr.bf16.gmra.mxu0 %v2012
  %v3298 = vpop.f32.mrf.mxu0
  %v3299 = vadd.f32 %v2546, %v3298
  %v3300 = vpop.f32.mrf.mxu0
  %v3301 = vpop.f32.mrf.mxu0
  %v3302 = vadd.f32 %v2549, %v3301
  %v3303 = vpop.f32.mrf.mxu0
  %3304 = vmatprep.mubr.bf16.mxu0 0
  %3305 = vmatmul.mubr.bf16.gmra.mxu0 %v2015
  %v3306 = vpop.f32.mrf.mxu0
  %v3307 = vadd.f32 %v2554, %v3306
  %v3308 = vpop.f32.mrf.mxu0
  %v3309 = vpop.f32.mrf.mxu0
  %v3310 = vadd.f32 %v2557, %v3309
  %v3311 = vpop.f32.mrf.mxu0
  %3312 = vmatprep.mubr.bf16.mxu0 0
  %3313 = vmatmul.mubr.bf16.gmra.mxu0 %v2018
  %v3314 = vpop.f32.mrf.mxu0
  %v3315 = vadd.f32 %v2562, %v3314
  %v3316 = vpop.f32.mrf.mxu0
  %v3317 = vpop.f32.mrf.mxu0
  %v3318 = vadd.f32 %v2565, %v3317
  %v3319 = vpop.f32.mrf.mxu0
  %3320 = vmatprep.mubr.bf16.mxu0 0
  %3321 = vmatmul.mubr.bf16.gmra.mxu0 %v2021
  %v3322 = vpop.f32.mrf.mxu0
  %v3323 = vadd.f32 %v2570, %v3322
  %v3324 = vpop.f32.mrf.mxu0
  %v3325 = vpop.f32.mrf.mxu0
  %v3326 = vadd.f32 %v2573, %v3325
  %v3327 = vpop.f32.mrf.mxu0
  %3328 = vmatprep.mubr.bf16.mxu0 0
  %3329 = vmatmul.mubr.bf16.gmra.mxu0 %v2024
  %v3330 = vpop.f32.mrf.mxu0
  %v3331 = vadd.f32 %v2578, %v3330
  %v3332 = vpop.f32.mrf.mxu0
  %v3333 = vpop.f32.mrf.mxu0
  %v3334 = vadd.f32 %v2581, %v3333
  %v3335 = vpop.f32.mrf.mxu0
  %3336 = vmatprep.mubr.bf16.mxu0 0
  %3337 = vmatmul.mubr.bf16.gmra.mxu0 %v2027
  %v3338 = vpop.f32.mrf.mxu0
  %v3339 = vadd.f32 %v2586, %v3338
  %v3340 = vpop.f32.mrf.mxu0
  %v3341 = vpop.f32.mrf.mxu0
  %v3342 = vadd.f32 %v2589, %v3341
  %v3343 = vpop.f32.mrf.mxu0
  %3344 = vmatprep.mubr.bf16.mxu0 0
  %3345 = vmatmul.mubr.bf16.gmra.mxu0 %v2030
  %v3346 = vpop.f32.mrf.mxu0
  %v3347 = vadd.f32 %v2594, %v3346
  %v3348 = vpop.f32.mrf.mxu0
  %v3349 = vpop.f32.mrf.mxu0
  %v3350 = vadd.f32 %v2597, %v3349
  %v3351 = vpop.f32.mrf.mxu0
  %3352 = vmatprep.mubr.bf16.mxu0 0
  %3353 = vmatmul.mubr.bf16.gmra.mxu0 %v2033
  %v3354 = vpop.f32.mrf.mxu0
  %v3355 = vadd.f32 %v2602, %v3354
  %v3356 = vpop.f32.mrf.mxu0
  %v3357 = vpop.f32.mrf.mxu0
  %v3358 = vadd.f32 %v2605, %v3357
  %v3359 = vpop.f32.mrf.mxu0
  %3360 = vmatprep.mubr.bf16.mxu0 0
  %3361 = vmatmul.mubr.bf16.gmra.mxu0 %v2036
  %v3362 = vpop.f32.mrf.mxu0
  %v3363 = vadd.f32 %v2610, %v3362
  %v3364 = vpop.f32.mrf.mxu0
  %v3365 = vpop.f32.mrf.mxu0
  %v3366 = vadd.f32 %v2613, %v3365
  %v3367 = vpop.f32.mrf.mxu0
  %3368 = vmatprep.mubr.bf16.mxu0 0
  %3369 = vmatmul.mubr.bf16.gmra.mxu0 %v2039
  %v3370 = vpop.f32.mrf.mxu0
  %v3371 = vadd.f32 %v2618, %v3370
  %v3372 = vpop.f32.mrf.mxu0
  %v3373 = vpop.f32.mrf.mxu0
  %v3374 = vadd.f32 %v2621, %v3373
  %v3375 = vpop.f32.mrf.mxu0
  %3376 = vmatprep.mubr.bf16.mxu0 0
  %3377 = vmatmul.mubr.bf16.gmra.mxu0 %v2042
  %v3378 = vpop.f32.mrf.mxu0
  %v3379 = vadd.f32 %v2626, %v3378
  %v3380 = vpop.f32.mrf.mxu0
  %v3381 = vpop.f32.mrf.mxu0
  %v3382 = vadd.f32 %v2629, %v3381
  %v3383 = vpop.f32.mrf.mxu0
  %3384 = vmatprep.mubr.bf16.mxu0 0
  %3385 = vmatmul.mubr.bf16.gmra.mxu0 %v2045
  %v3386 = vpop.f32.mrf.mxu0
  %v3387 = vadd.f32 %v2634, %v3386
  %v3388 = vpop.f32.mrf.mxu0
  %v3389 = vpop.f32.mrf.mxu0
  %v3390 = vadd.f32 %v2637, %v3389
  %v3391 = vpop.f32.mrf.mxu0
  %3392 = vmatprep.mubr.bf16.mxu0 0
  %3393 = vmatmul.mubr.bf16.gmra.mxu0 %v2048
  %v3394 = vpop.f32.mrf.mxu0
  %v3395 = vadd.f32 %v2642, %v3394
  %v3396 = vpop.f32.mrf.mxu0
  %v3397 = vpop.f32.mrf.mxu0
  %v3398 = vadd.f32 %v2645, %v3397
  %v3399 = vpop.f32.mrf.mxu0
  %3400 = vmatprep.mubr.bf16.mxu0 0
  %3401 = vmatmul.mubr.bf16.gmra.mxu0 %v2051
  %v3402 = vpop.f32.mrf.mxu0
  %v3403 = vadd.f32 %v2650, %v3402
  %v3404 = vpop.f32.mrf.mxu0
  %v3405 = vpop.f32.mrf.mxu0
  %v3406 = vadd.f32 %v2653, %v3405
  %v3407 = vpop.f32.mrf.mxu0
  %3408 = vmatprep.mubr.bf16.mxu0 0
  %3409 = vmatmul.mubr.bf16.gmra.mxu0 %v2054
  %v3410 = vpop.f32.mrf.mxu0
  %v3411 = vadd.f32 %v2658, %v3410
  %v3412 = vpop.f32.mrf.mxu0
  %v3413 = vpop.f32.mrf.mxu0
  %v3414 = vadd.f32 %v2661, %v3413
  %v3415 = vpop.f32.mrf.mxu0
  %3416 = vmatprep.mubr.bf16.mxu0 0
  %3417 = vmatmul.mubr.bf16.gmra.mxu0 %v2057
  %v3418 = vpop.f32.mrf.mxu0
  %v3419 = vadd.f32 %v2666, %v3418
  %v3420 = vpop.f32.mrf.mxu0
  %v3421 = vpop.f32.mrf.mxu0
  %v3422 = vadd.f32 %v2669, %v3421
  %v3423 = vpop.f32.mrf.mxu0
  %3424 = vmatprep.mubr.bf16.mxu0 0
  %3425 = vmatmul.mubr.bf16.gmra.mxu0 %v2060
  %v3426 = vpop.f32.mrf.mxu0
  %v3427 = vadd.f32 %v2674, %v3426
  %v3428 = vpop.f32.mrf.mxu0
  %v3429 = vpop.f32.mrf.mxu0
  %v3430 = vadd.f32 %v2677, %v3429
  %v3431 = vpop.f32.mrf.mxu0
  %3432 = vmatprep.mubr.bf16.mxu0 0
  %3433 = vmatmul.mubr.bf16.gmra.mxu0 %v2063
  %v3434 = vpop.f32.mrf.mxu0
  %v3435 = vadd.f32 %v2682, %v3434
  %v3436 = vpop.f32.mrf.mxu0
  %v3437 = vpop.f32.mrf.mxu0
  %v3438 = vadd.f32 %v2685, %v3437
  %v3439 = vpop.f32.mrf.mxu0
  %3440 = vmatprep.mubr.bf16.mxu0 0
  %3441 = vmatmul.mubr.bf16.gmra.mxu0 %v2066
  %v3442 = vpop.f32.mrf.mxu0
  %v3443 = vadd.f32 %v2690, %v3442
  %v3444 = vpop.f32.mrf.mxu0
  %v3445 = vpop.f32.mrf.mxu0
  %v3446 = vadd.f32 %v2693, %v3445
  %v3447 = vpop.f32.mrf.mxu0
  %3448 = vmatprep.mubr.bf16.mxu0 0
  %3449 = vmatmul.mubr.bf16.gmra.mxu0 %v2069
  %v3450 = vpop.f32.mrf.mxu0
  %v3451 = vadd.f32 %v2698, %v3450
  %v3452 = vpop.f32.mrf.mxu0
  %v3453 = vpop.f32.mrf.mxu0
  %v3454 = vadd.f32 %v2701, %v3453
  %v3455 = vpop.f32.mrf.mxu0
  %3456 = vmatprep.mubr.bf16.mxu0 0
  %3457 = vmatmul.mubr.bf16.gmra.mxu0 %v2072
  %v3458 = vpop.f32.mrf.mxu0
  %v3459 = vadd.f32 %v2706, %v3458
  %v3460 = vpop.f32.mrf.mxu0
  %v3461 = vpop.f32.mrf.mxu0
  %v3462 = vadd.f32 %v2709, %v3461
  %v3463 = vpop.f32.mrf.mxu0
  %3464 = vmatprep.mubr.bf16.mxu0 0
  %3465 = vmatmul.mubr.bf16.gmra.mxu0 %v2075
  %v3466 = vpop.f32.mrf.mxu0
  %v3467 = vadd.f32 %v2714, %v3466
  %v3468 = vpop.f32.mrf.mxu0
  %v3469 = vpop.f32.mrf.mxu0
  %v3470 = vadd.f32 %v2717, %v3469
  %v3471 = vpop.f32.mrf.mxu0
  %3472 = vmatprep.mubr.bf16.mxu0 0
  %3473 = vmatmul.mubr.bf16.gmra.mxu0 %v2078
  %v3474 = vpop.f32.mrf.mxu0
  %v3475 = vadd.f32 %v2722, %v3474
  %v3476 = vpop.f32.mrf.mxu0
  %v3477 = vpop.f32.mrf.mxu0
  %v3478 = vadd.f32 %v2725, %v3477
  %v3479 = vpop.f32.mrf.mxu0
  %3480 = vmatprep.mubr.bf16.mxu0 0
  %3481 = vmatmul.mubr.bf16.gmra.mxu0 %v2081
  %v3482 = vpop.f32.mrf.mxu0
  %v3483 = vadd.f32 %v2730, %v3482
  %v3484 = vpop.f32.mrf.mxu0
  %v3485 = vpop.f32.mrf.mxu0
  %v3486 = vadd.f32 %v2733, %v3485
  %v3487 = vpop.f32.mrf.mxu0
  %3488 = vmatprep.mubr.bf16.mxu0 0
  %3489 = vmatmul.mubr.bf16.gmra.mxu0 %v2084
  %v3490 = vpop.f32.mrf.mxu0
  %v3491 = vadd.f32 %v2738, %v3490
  %v3492 = vpop.f32.mrf.mxu0
  %v3493 = vpop.f32.mrf.mxu0
  %v3494 = vadd.f32 %v2741, %v3493
  %v3495 = vpop.f32.mrf.mxu0
  %3496 = vmatprep.mubr.bf16.mxu0 0
  %3497 = vmatmul.mubr.bf16.gmra.mxu0 %v2087
  %v3498 = vpop.f32.mrf.mxu0
  %v3499 = vadd.f32 %v2746, %v3498
  %v3500 = vpop.f32.mrf.mxu0
  %v3501 = vpop.f32.mrf.mxu0
  %v3502 = vadd.f32 %v2749, %v3501
  %v3503 = vpop.f32.mrf.mxu0
  %3504 = vmatprep.mubr.bf16.mxu0 0
  %3505 = vmatmul.mubr.bf16.gmra.mxu0 %v2090
  %v3506 = vpop.f32.mrf.mxu0
  %v3507 = vadd.f32 %v2754, %v3506
  %v3508 = vpop.f32.mrf.mxu0
  %v3509 = vpop.f32.mrf.mxu0
  %v3510 = vadd.f32 %v2757, %v3509
  %v3511 = vpop.f32.mrf.mxu0
  %3512 = vmatprep.mubr.bf16.mxu0 0
  %3513 = vmatmul.mubr.bf16.gmra.mxu0 %v2093
  %v3514 = vpop.f32.mrf.mxu0
  %v3515 = vadd.f32 %v2762, %v3514
  %v3516 = vpop.f32.mrf.mxu0
  %v3517 = vpop.f32.mrf.mxu0
  %v3518 = vadd.f32 %v2765, %v3517
  %v3519 = vpop.f32.mrf.mxu0
  %3520 = vmatprep.mubr.bf16.mxu0 0
  %3521 = vmatmul.mubr.bf16.gmra.mxu0 %v2096
  %v3522 = vpop.f32.mrf.mxu0
  %v3523 = vadd.f32 %v2770, %v3522
  %v3524 = vpop.f32.mrf.mxu0
  %v3525 = vpop.f32.mrf.mxu0
  %v3526 = vadd.f32 %v2773, %v3525
  %v3527 = vpop.f32.mrf.mxu0
  %3528 = vmatprep.mubr.bf16.mxu0 0
  %3529 = vmatmul.mubr.bf16.gmra.mxu0 %v2099
  %v3530 = vpop.f32.mrf.mxu0
  %v3531 = vadd.f32 %v2778, %v3530
  %v3532 = vpop.f32.mrf.mxu0
  %v3533 = vpop.f32.mrf.mxu0
  %v3534 = vadd.f32 %v2781, %v3533
  %v3535 = vpop.f32.mrf.mxu0
  %3536 = vmatprep.mubr.bf16.mxu0 0
  %3537 = vmatmul.mubr.bf16.gmra.mxu0 %v2102
  %v3538 = vpop.f32.mrf.mxu0
  %v3539 = vadd.f32 %v2786, %v3538
  %v3540 = vpop.f32.mrf.mxu0
  %v3541 = vpop.f32.mrf.mxu0
  %v3542 = vadd.f32 %v2789, %v3541
  %v3543 = vpop.f32.mrf.mxu0
  %3544 = vmatprep.mubr.bf16.mxu0 0
  %3545 = vmatmul.mubr.bf16.gmra.mxu0 %v2105
  %v3546 = vpop.f32.mrf.mxu0
  %v3547 = vadd.f32 %v2794, %v3546
  %v3548 = vpop.f32.mrf.mxu0
  %v3549 = vpop.f32.mrf.mxu0
  %v3550 = vadd.f32 %v2797, %v3549
  %v3551 = vpop.f32.mrf.mxu0
  %3552 = vmatprep.mubr.bf16.mxu0 0
  %3553 = vmatmul.mubr.bf16.gmra.mxu0 %v2108
  %v3554 = vpop.f32.mrf.mxu0
  %v3555 = vadd.f32 %v2802, %v3554
  %v3556 = vpop.f32.mrf.mxu0
  %v3557 = vpop.f32.mrf.mxu0
  %v3558 = vadd.f32 %v2805, %v3557
  %v3559 = vpop.f32.mrf.mxu0
  %3560 = vmatprep.mubr.bf16.mxu0 0
  %3561 = vmatmul.mubr.bf16.gmra.mxu0 %v2111
  %v3562 = vpop.f32.mrf.mxu0
  %v3563 = vadd.f32 %v2810, %v3562
  %v3564 = vpop.f32.mrf.mxu0
  %v3565 = vpop.f32.mrf.mxu0
  %v3566 = vadd.f32 %v2813, %v3565
  %v3567 = vpop.f32.mrf.mxu0
  %3568 = vmatprep.mubr.bf16.mxu0 0
  %3569 = vmatmul.mubr.bf16.gmra.mxu0 %v2114
  %v3570 = vpop.f32.mrf.mxu0
  %v3571 = vadd.f32 %v2818, %v3570
  %v3572 = vpop.f32.mrf.mxu0
  %v3573 = vpop.f32.mrf.mxu0
  %v3574 = vadd.f32 %v2821, %v3573
  %v3575 = vpop.f32.mrf.mxu0
  %3576 = vmatprep.mubr.bf16.mxu0 0
  %3577 = vmatmul.mubr.bf16.gmra.mxu0 %v2117
  %v3578 = vpop.f32.mrf.mxu0
  %v3579 = vadd.f32 %v2826, %v3578
  %v3580 = vpop.f32.mrf.mxu0
  %v3581 = vpop.f32.mrf.mxu0
  %v3582 = vadd.f32 %v2829, %v3581
  %v3583 = vpop.f32.mrf.mxu0
  %3584 = vmatprep.mubr.bf16.mxu0 0
  %3585 = vmatmul.mubr.bf16.gmra.mxu0 %v2120
  %v3586 = vpop.f32.mrf.mxu0
  %v3587 = vadd.f32 %v2834, %v3586
  %v3588 = vpop.f32.mrf.mxu0
  %v3589 = vpop.f32.mrf.mxu0
  %v3590 = vadd.f32 %v2837, %v3589
  %v3591 = vpop.f32.mrf.mxu0
  %3592 = vmatprep.mubr.bf16.mxu0 0
  %3593 = vmatmul.mubr.bf16.gmra.mxu0 %v2123
  %v3594 = vpop.f32.mrf.mxu0
  %v3595 = vadd.f32 %v2842, %v3594
  %v3596 = vpop.f32.mrf.mxu0
  %v3597 = vpop.f32.mrf.mxu0
  %v3598 = vadd.f32 %v2845, %v3597
  %v3599 = vpop.f32.mrf.mxu0
  %3600 = vmatprep.mubr.bf16.mxu0 0
  %3601 = vmatmul.mubr.bf16.gmra.mxu0 %v2126
  %v3602 = vpop.f32.mrf.mxu0
  %v3603 = vadd.f32 %v2850, %v3602
  %v3604 = vpop.f32.mrf.mxu0
  %v3605 = vpop.f32.mrf.mxu0
  %v3606 = vadd.f32 %v2853, %v3605
  %v3607 = vpop.f32.mrf.mxu0
  %3608 = vmatprep.mubr.bf16.mxu0 0
  %3609 = vmatmul.mubr.bf16.gmra.mxu0 %v2129
  %v3610 = vpop.f32.mrf.mxu0
  %v3611 = vadd.f32 %v2858, %v3610
  %v3612 = vpop.f32.mrf.mxu0
  %v3613 = vpop.f32.mrf.mxu0
  %v3614 = vadd.f32 %v2861, %v3613
  %v3615 = vpop.f32.mrf.mxu0
  %3616 = vmatprep.mubr.bf16.mxu0 0
  %3617 = vmatmul.mubr.bf16.gmra.mxu0 %v2132
  %v3618 = vpop.f32.mrf.mxu0
  %v3619 = vadd.f32 %v2866, %v3618
  %v3620 = vpop.f32.mrf.mxu0
  %v3621 = vpop.f32.mrf.mxu0
  %v3622 = vadd.f32 %v2869, %v3621
  %v3623 = vpop.f32.mrf.mxu0
  %3624 = vmatprep.mubr.bf16.mxu0 0
  %3625 = vmatmul.mubr.bf16.gmra.mxu0 %v2135
  %v3626 = vpop.f32.mrf.mxu0
  %v3627 = vadd.f32 %v2874, %v3626
  %v3628 = vpop.f32.mrf.mxu0
  %v3629 = vpop.f32.mrf.mxu0
  %v3630 = vadd.f32 %v2877, %v3629
  %v3631 = vpop.f32.mrf.mxu0
  %3632 = vmatprep.mubr.bf16.mxu0 0
  %3633 = vmatmul.mubr.bf16.gmra.mxu0 %v2138
  %v3634 = vpop.f32.mrf.mxu0
  %v3635 = vadd.f32 %v2882, %v3634
  %v3636 = vpop.f32.mrf.mxu0
  %v3637 = vpop.f32.mrf.mxu0
  %v3638 = vadd.f32 %v2885, %v3637
  %v3639 = vpop.f32.mrf.mxu0
  %3640 = vmatprep.mubr.bf16.mxu0 0
  %3641 = vmatmul.mubr.bf16.gmra.mxu0 %v2141
  %v3642 = vpop.f32.mrf.mxu0
  %v3643 = vadd.f32 %v2890, %v3642
  %v3644 = vpop.f32.mrf.mxu0
  %v3645 = vpop.f32.mrf.mxu0
  %v3646 = vadd.f32 %v2893, %v3645
  %v3647 = vpop.f32.mrf.mxu0
  %3648 = vdwg.mxu0
  %v3649 = vld [vmem:[%s2] sm:$0x1]
  %v3651 = vlaneseq
  %v3652 = vshrl.u32 %v3651, 7
  %v3653 = vsub.s32 0, %v3652
  %v3654 = vrot.slane %v3649, %v3653
  %v3656 = vmul.f32 %v2931, %v3654
  %v3657 = vmul.f32 %v2934, %v3654
  %v3658 = vmul.f32 %v2939, %v3654
  %v3659 = vmul.f32 %v2942, %v3654
  %v3660 = vmul.f32 %v2947, %v3654
  %v3661 = vmul.f32 %v2950, %v3654
  %v3662 = vmul.f32 %v2955, %v3654
  %v3663 = vmul.f32 %v2958, %v3654
  %v3664 = vmul.f32 %v2963, %v3654
  %v3665 = vmul.f32 %v2966, %v3654
  %v3666 = vmul.f32 %v2971, %v3654
  %v3667 = vmul.f32 %v2974, %v3654
  %v3668 = vmul.f32 %v2979, %v3654
  %v3669 = vmul.f32 %v2982, %v3654
  %v3670 = vmul.f32 %v2987, %v3654
  %v3671 = vmul.f32 %v2990, %v3654
  %v3672 = vmul.f32 %v2995, %v3654
  %v3673 = vmul.f32 %v2998, %v3654
  %v3674 = vmul.f32 %v3003, %v3654
  %v3675 = vmul.f32 %v3006, %v3654
  %v3676 = vmul.f32 %v3011, %v3654
  %v3677 = vmul.f32 %v3014, %v3654
  %v3678 = vmul.f32 %v3019, %v3654
  %v3679 = vmul.f32 %v3022, %v3654
  %v3680 = vmul.f32 %v3027, %v3654
  %v3681 = vmul.f32 %v3030, %v3654
  %v3682 = vmul.f32 %v3035, %v3654
  %v3683 = vmul.f32 %v3038, %v3654
  %v3684 = vmul.f32 %v3043, %v3654
  %v3685 = vmul.f32 %v3046, %v3654
  %v3686 = vmul.f32 %v3051, %v3654
  %v3687 = vmul.f32 %v3054, %v3654
  %v3688 = vmul.f32 %v3059, %v3654
  %v3689 = vmul.f32 %v3062, %v3654
  %v3690 = vmul.f32 %v3067, %v3654
  %v3691 = vmul.f32 %v3070, %v3654
  %v3692 = vmul.f32 %v3075, %v3654
  %v3693 = vmul.f32 %v3078, %v3654
  %v3694 = vmul.f32 %v3083, %v3654
  %v3695 = vmul.f32 %v3086, %v3654
  %v3696 = vmul.f32 %v3091, %v3654
  %v3697 = vmul.f32 %v3094, %v3654
  %v3698 = vmul.f32 %v3099, %v3654
  %v3699 = vmul.f32 %v3102, %v3654
  %v3700 = vmul.f32 %v3107, %v3654
  %v3701 = vmul.f32 %v3110, %v3654
  %v3702 = vmul.f32 %v3115, %v3654
  %v3703 = vmul.f32 %v3118, %v3654
  %v3704 = vmul.f32 %v3123, %v3654
  %v3705 = vmul.f32 %v3126, %v3654
  %v3706 = vmul.f32 %v3131, %v3654
  %v3707 = vmul.f32 %v3134, %v3654
  %v3708 = vmul.f32 %v3139, %v3654
  %v3709 = vmul.f32 %v3142, %v3654
  %v3710 = vmul.f32 %v3147, %v3654
  %v3711 = vmul.f32 %v3150, %v3654
  %v3712 = vmul.f32 %v3155, %v3654
  %v3713 = vmul.f32 %v3158, %v3654
  %v3714 = vmul.f32 %v3163, %v3654
  %v3715 = vmul.f32 %v3166, %v3654
  %v3716 = vmul.f32 %v3171, %v3654
  %v3717 = vmul.f32 %v3174, %v3654
  %v3718 = vmul.f32 %v3179, %v3654
  %v3719 = vmul.f32 %v3182, %v3654
  %v3720 = vmul.f32 %v3187, %v3654
  %v3721 = vmul.f32 %v3190, %v3654
  %v3722 = vmul.f32 %v3195, %v3654
  %v3723 = vmul.f32 %v3198, %v3654
  %v3724 = vmul.f32 %v3203, %v3654
  %v3725 = vmul.f32 %v3206, %v3654
  %v3726 = vmul.f32 %v3211, %v3654
  %v3727 = vmul.f32 %v3214, %v3654
  %v3728 = vmul.f32 %v3219, %v3654
  %v3729 = vmul.f32 %v3222, %v3654
  %v3730 = vmul.f32 %v3227, %v3654
  %v3731 = vmul.f32 %v3230, %v3654
  %v3732 = vmul.f32 %v3235, %v3654
  %v3733 = vmul.f32 %v3238, %v3654
  %v3734 = vmul.f32 %v3243, %v3654
  %v3735 = vmul.f32 %v3246, %v3654
  %v3736 = vmul.f32 %v3251, %v3654
  %v3737 = vmul.f32 %v3254, %v3654
  %v3738 = vmul.f32 %v3259, %v3654
  %v3739 = vmul.f32 %v3262, %v3654
  %v3740 = vmul.f32 %v3267, %v3654
  %v3741 = vmul.f32 %v3270, %v3654
  %v3742 = vmul.f32 %v3275, %v3654
  %v3743 = vmul.f32 %v3278, %v3654
  %v3744 = vmul.f32 %v3283, %v3654
  %v3745 = vmul.f32 %v3286, %v3654
  %v3746 = vmul.f32 %v3291, %v3654
  %v3747 = vmul.f32 %v3294, %v3654
  %v3748 = vmul.f32 %v3299, %v3654
  %v3749 = vmul.f32 %v3302, %v3654
  %v3750 = vmul.f32 %v3307, %v3654
  %v3751 = vmul.f32 %v3310, %v3654
  %v3752 = vmul.f32 %v3315, %v3654
  %v3753 = vmul.f32 %v3318, %v3654
  %v3754 = vmul.f32 %v3323, %v3654
  %v3755 = vmul.f32 %v3326, %v3654
  %v3756 = vmul.f32 %v3331, %v3654
  %v3757 = vmul.f32 %v3334, %v3654
  %v3758 = vmul.f32 %v3339, %v3654
  %v3759 = vmul.f32 %v3342, %v3654
  %v3760 = vmul.f32 %v3347, %v3654
  %v3761 = vmul.f32 %v3350, %v3654
  %v3762 = vmul.f32 %v3355, %v3654
  %v3763 = vmul.f32 %v3358, %v3654
  %v3764 = vmul.f32 %v3363, %v3654
  %v3765 = vmul.f32 %v3366, %v3654
  %v3766 = vmul.f32 %v3371, %v3654
  %v3767 = vmul.f32 %v3374, %v3654
  %v3768 = vmul.f32 %v3379, %v3654
  %v3769 = vmul.f32 %v3382, %v3654
  %v3770 = vmul.f32 %v3387, %v3654
  %v3771 = vmul.f32 %v3390, %v3654
  %v3772 = vmul.f32 %v3395, %v3654
  %v3773 = vmul.f32 %v3398, %v3654
  %v3774 = vmul.f32 %v3403, %v3654
  %v3775 = vmul.f32 %v3406, %v3654
  %v3776 = vmul.f32 %v3411, %v3654
  %v3777 = vmul.f32 %v3414, %v3654
  %v3778 = vmul.f32 %v3419, %v3654
  %v3779 = vmul.f32 %v3422, %v3654
  %v3780 = vmul.f32 %v3427, %v3654
  %v3781 = vmul.f32 %v3430, %v3654
  %v3782 = vmul.f32 %v3435, %v3654
  %v3783 = vmul.f32 %v3438, %v3654
  %v3784 = vmul.f32 %v3443, %v3654
  %v3785 = vmul.f32 %v3446, %v3654
  %v3786 = vmul.f32 %v3451, %v3654
  %v3787 = vmul.f32 %v3454, %v3654
  %v3788 = vmul.f32 %v3459, %v3654
  %v3789 = vmul.f32 %v3462, %v3654
  %v3790 = vmul.f32 %v3467, %v3654
  %v3791 = vmul.f32 %v3470, %v3654
  %v3792 = vmul.f32 %v3475, %v3654
  %v3793 = vmul.f32 %v3478, %v3654
  %v3794 = vmul.f32 %v3483, %v3654
  %v3795 = vmul.f32 %v3486, %v3654
  %v3796 = vmul.f32 %v3491, %v3654
  %v3797 = vmul.f32 %v3494, %v3654
  %v3798 = vmul.f32 %v3499, %v3654
  %v3799 = vmul.f32 %v3502, %v3654
  %v3800 = vmul.f32 %v3507, %v3654
  %v3801 = vmul.f32 %v3510, %v3654
  %v3802 = vmul.f32 %v3515, %v3654
  %v3803 = vmul.f32 %v3518, %v3654
  %v3804 = vmul.f32 %v3523, %v3654
  %v3805 = vmul.f32 %v3526, %v3654
  %v3806 = vmul.f32 %v3531, %v3654
  %v3807 = vmul.f32 %v3534, %v3654
  %v3808 = vmul.f32 %v3539, %v3654
  %v3809 = vmul.f32 %v3542, %v3654
  %v3810 = vmul.f32 %v3547, %v3654
  %v3811 = vmul.f32 %v3550, %v3654
  %v3812 = vmul.f32 %v3555, %v3654
  %v3813 = vmul.f32 %v3558, %v3654
  %v3814 = vmul.f32 %v3563, %v3654
  %v3815 = vmul.f32 %v3566, %v3654
  %v3816 = vmul.f32 %v3571, %v3654
  %v3817 = vmul.f32 %v3574, %v3654
  %v3818 = vmul.f32 %v3579, %v3654
  %v3819 = vmul.f32 %v3582, %v3654
  %v3820 = vmul.f32 %v3587, %v3654
  %v3821 = vmul.f32 %v3590, %v3654
  %v3822 = vmul.f32 %v3595, %v3654
  %v3823 = vmul.f32 %v3598, %v3654
  %v3824 = vmul.f32 %v3603, %v3654
  %v3825 = vmul.f32 %v3606, %v3654
  %v3826 = vmul.f32 %v3611, %v3654
  %v3827 = vmul.f32 %v3614, %v3654
  %v3828 = vmul.f32 %v3619, %v3654
  %v3829 = vmul.f32 %v3622, %v3654
  %v3830 = vmul.f32 %v3627, %v3654
  %v3831 = vmul.f32 %v3630, %v3654
  %v3832 = vmul.f32 %v3635, %v3654
  %v3833 = vmul.f32 %v3638, %v3654
  %v3834 = vmul.f32 %v3643, %v3654
  %v3835 = vmul.f32 %v3646, %v3654
  %v3836 = vld [vmem:[%s3] sm:$0x1]
  %v3838 = vlaneseq
  %v3839 = vshrl.u32 %v3838, 7
  %v3840 = vsub.s32 0, %v3839
  %v3841 = vrot.slane %v3836, %v3840
  %v3843 = vadd.f32 %v3656, %v3841
  %v3844 = vadd.f32 %v3657, %v3841
  %v3845 = vadd.f32 %v3658, %v3841
  %v3846 = vadd.f32 %v3659, %v3841
  %v3847 = vadd.f32 %v3660, %v3841
  %v3848 = vadd.f32 %v3661, %v3841
  %v3849 = vadd.f32 %v3662, %v3841
  %v3850 = vadd.f32 %v3663, %v3841
  %v3851 = vadd.f32 %v3664, %v3841
  %v3852 = vadd.f32 %v3665, %v3841
  %v3853 = vadd.f32 %v3666, %v3841
  %v3854 = vadd.f32 %v3667, %v3841
  %v3855 = vadd.f32 %v3668, %v3841
  %v3856 = vadd.f32 %v3669, %v3841
  %v3857 = vadd.f32 %v3670, %v3841
  %v3858 = vadd.f32 %v3671, %v3841
  %v3859 = vadd.f32 %v3672, %v3841
  %v3860 = vadd.f32 %v3673, %v3841
  %v3861 = vadd.f32 %v3674, %v3841
  %v3862 = vadd.f32 %v3675, %v3841
  %v3863 = vadd.f32 %v3676, %v3841
  %v3864 = vadd.f32 %v3677, %v3841
  %v3865 = vadd.f32 %v3678, %v3841
  %v3866 = vadd.f32 %v3679, %v3841
  %v3867 = vadd.f32 %v3680, %v3841
  %v3868 = vadd.f32 %v3681, %v3841
  %v3869 = vadd.f32 %v3682, %v3841
  %v3870 = vadd.f32 %v3683, %v3841
  %v3871 = vadd.f32 %v3684, %v3841
  %v3872 = vadd.f32 %v3685, %v3841
  %v3873 = vadd.f32 %v3686, %v3841
  %v3874 = vadd.f32 %v3687, %v3841
  %v3875 = vadd.f32 %v3688, %v3841
  %v3876 = vadd.f32 %v3689, %v3841
  %v3877 = vadd.f32 %v3690, %v3841
  %v3878 = vadd.f32 %v3691, %v3841
  %v3879 = vadd.f32 %v3692, %v3841
  %v3880 = vadd.f32 %v3693, %v3841
  %v3881 = vadd.f32 %v3694, %v3841
  %v3882 = vadd.f32 %v3695, %v3841
  %v3883 = vadd.f32 %v3696, %v3841
  %v3884 = vadd.f32 %v3697, %v3841
  %v3885 = vadd.f32 %v3698, %v3841
  %v3886 = vadd.f32 %v3699, %v3841
  %v3887 = vadd.f32 %v3700, %v3841
  %v3888 = vadd.f32 %v3701, %v3841
  %v3889 = vadd.f32 %v3702, %v3841
  %v3890 = vadd.f32 %v3703, %v3841
  %v3891 = vadd.f32 %v3704, %v3841
  %v3892 = vadd.f32 %v3705, %v3841
  %v3893 = vadd.f32 %v3706, %v3841
  %v3894 = vadd.f32 %v3707, %v3841
  %v3895 = vadd.f32 %v3708, %v3841
  %v3896 = vadd.f32 %v3709, %v3841
  %v3897 = vadd.f32 %v3710, %v3841
  %v3898 = vadd.f32 %v3711, %v3841
  %v3899 = vadd.f32 %v3712, %v3841
  %v3900 = vadd.f32 %v3713, %v3841
  %v3901 = vadd.f32 %v3714, %v3841
  %v3902 = vadd.f32 %v3715, %v3841
  %v3903 = vadd.f32 %v3716, %v3841
  %v3904 = vadd.f32 %v3717, %v3841
  %v3905 = vadd.f32 %v3718, %v3841
  %v3906 = vadd.f32 %v3719, %v3841
  %v3907 = vadd.f32 %v3720, %v3841
  %v3908 = vadd.f32 %v3721, %v3841
  %v3909 = vadd.f32 %v3722, %v3841
  %v3910 = vadd.f32 %v3723, %v3841
  %v3911 = vadd.f32 %v3724, %v3841
  %v3912 = vadd.f32 %v3725, %v3841
  %v3913 = vadd.f32 %v3726, %v3841
  %v3914 = vadd.f32 %v3727, %v3841
  %v3915 = vadd.f32 %v3728, %v3841
  %v3916 = vadd.f32 %v3729, %v3841
  %v3917 = vadd.f32 %v3730, %v3841
  %v3918 = vadd.f32 %v3731, %v3841
  %v3919 = vadd.f32 %v3732, %v3841
  %v3920 = vadd.f32 %v3733, %v3841
  %v3921 = vadd.f32 %v3734, %v3841
  %v3922 = vadd.f32 %v3735, %v3841
  %v3923 = vadd.f32 %v3736, %v3841
  %v3924 = vadd.f32 %v3737, %v3841
  %v3925 = vadd.f32 %v3738, %v3841
  %v3926 = vadd.f32 %v3739, %v3841
  %v3927 = vadd.f32 %v3740, %v3841
  %v3928 = vadd.f32 %v3741, %v3841
  %v3929 = vadd.f32 %v3742, %v3841
  %v3930 = vadd.f32 %v3743, %v3841
  %v3931 = vadd.f32 %v3744, %v3841
  %v3932 = vadd.f32 %v3745, %v3841
  %v3933 = vadd.f32 %v3746, %v3841
  %v3934 = vadd.f32 %v3747, %v3841
  %v3935 = vadd.f32 %v3748, %v3841
  %v3936 = vadd.f32 %v3749, %v3841
  %v3937 = vadd.f32 %v3750, %v3841
  %v3938 = vadd.f32 %v3751, %v3841
  %v3939 = vadd.f32 %v3752, %v3841
  %v3940 = vadd.f32 %v3753, %v3841
  %v3941 = vadd.f32 %v3754, %v3841
  %v3942 = vadd.f32 %v3755, %v3841
  %v3943 = vadd.f32 %v3756, %v3841
  %v3944 = vadd.f32 %v3757, %v3841
  %v3945 = vadd.f32 %v3758, %v3841
  %v3946 = vadd.f32 %v3759, %v3841
  %v3947 = vadd.f32 %v3760, %v3841
  %v3948 = vadd.f32 %v3761, %v3841
  %v3949 = vadd.f32 %v3762, %v3841
  %v3950 = vadd.f32 %v3763, %v3841
  %v3951 = vadd.f32 %v3764, %v3841
  %v3952 = vadd.f32 %v3765, %v3841
  %v3953 = vadd.f32 %v3766, %v3841
  %v3954 = vadd.f32 %v3767, %v3841
  %v3955 = vadd.f32 %v3768, %v3841
  %v3956 = vadd.f32 %v3769, %v3841
  %v3957 = vadd.f32 %v3770, %v3841
  %v3958 = vadd.f32 %v3771, %v3841
  %v3959 = vadd.f32 %v3772, %v3841
  %v3960 = vadd.f32 %v3773, %v3841
  %v3961 = vadd.f32 %v3774, %v3841
  %v3962 = vadd.f32 %v3775, %v3841
  %v3963 = vadd.f32 %v3776, %v3841
  %v3964 = vadd.f32 %v3777, %v3841
  %v3965 = vadd.f32 %v3778, %v3841
  %v3966 = vadd.f32 %v3779, %v3841
  %v3967 = vadd.f32 %v3780, %v3841
  %v3968 = vadd.f32 %v3781, %v3841
  %v3969 = vadd.f32 %v3782, %v3841
  %v3970 = vadd.f32 %v3783, %v3841
  %v3971 = vadd.f32 %v3784, %v3841
  %v3972 = vadd.f32 %v3785, %v3841
  %v3973 = vadd.f32 %v3786, %v3841
  %v3974 = vadd.f32 %v3787, %v3841
  %v3975 = vadd.f32 %v3788, %v3841
  %v3976 = vadd.f32 %v3789, %v3841
  %v3977 = vadd.f32 %v3790, %v3841
  %v3978 = vadd.f32 %v3791, %v3841
  %v3979 = vadd.f32 %v3792, %v3841
  %v3980 = vadd.f32 %v3793, %v3841
  %v3981 = vadd.f32 %v3794, %v3841
  %v3982 = vadd.f32 %v3795, %v3841
  %v3983 = vadd.f32 %v3796, %v3841
  %v3984 = vadd.f32 %v3797, %v3841
  %v3985 = vadd.f32 %v3798, %v3841
  %v3986 = vadd.f32 %v3799, %v3841
  %v3987 = vadd.f32 %v3800, %v3841
  %v3988 = vadd.f32 %v3801, %v3841
  %v3989 = vadd.f32 %v3802, %v3841
  %v3990 = vadd.f32 %v3803, %v3841
  %v3991 = vadd.f32 %v3804, %v3841
  %v3992 = vadd.f32 %v3805, %v3841
  %v3993 = vadd.f32 %v3806, %v3841
  %v3994 = vadd.f32 %v3807, %v3841
  %v3995 = vadd.f32 %v3808, %v3841
  %v3996 = vadd.f32 %v3809, %v3841
  %v3997 = vadd.f32 %v3810, %v3841
  %v3998 = vadd.f32 %v3811, %v3841
  %v3999 = vadd.f32 %v3812, %v3841
  %v4000 = vadd.f32 %v3813, %v3841
  %v4001 = vadd.f32 %v3814, %v3841
  %v4002 = vadd.f32 %v3815, %v3841
  %v4003 = vadd.f32 %v3816, %v3841
  %v4004 = vadd.f32 %v3817, %v3841
  %v4005 = vadd.f32 %v3818, %v3841
  %v4006 = vadd.f32 %v3819, %v3841
  %v4007 = vadd.f32 %v3820, %v3841
  %v4008 = vadd.f32 %v3821, %v3841
  %v4009 = vadd.f32 %v3822, %v3841
  %v4010 = vadd.f32 %v3823, %v3841
  %v4011 = vadd.f32 %v3824, %v3841
  %v4012 = vadd.f32 %v3825, %v3841
  %v4013 = vadd.f32 %v3826, %v3841
  %v4014 = vadd.f32 %v3827, %v3841
  %v4015 = vadd.f32 %v3828, %v3841
  %v4016 = vadd.f32 %v3829, %v3841
  %v4017 = vadd.f32 %v3830, %v3841
  %v4018 = vadd.f32 %v3831, %v3841
  %v4019 = vadd.f32 %v3832, %v3841
  %v4020 = vadd.f32 %v3833, %v3841
  %v4021 = vadd.f32 %v3834, %v3841
  %v4022 = vadd.f32 %v3835, %v3841
  %v4023 = vmax.f32 %v3843, %v3858
  %v4024 = vmax.f32 %v3844, %v3859
  %v4025 = vmax.f32 %v3845, %v3860
  %v4026 = vmax.f32 %v3846, %v3861
  %v4027 = vmax.f32 %v3847, %v3862
  %v4028 = vmax.f32 %v3848, %v3863
  %v4029 = vmax.f32 %v3849, %v3864
  %v4030 = vmax.f32 %v3850, %v3865
  %v4031 = vmax.f32 %v3851, %v3866
  %v4032 = vmax.f32 %v3852, %v3867
  %v4033 = vmax.f32 %v3853, %v3868
  %v4034 = vmax.f32 %v3854, %v3869
  %v4035 = vmax.f32 %v3855, %v3870
  %v4036 = vmax.f32 %v3856, %v3871
  %v4037 = vmax.f32 %v3857, %v3872
  %v4038 = vmax.f32 %v4023, %v3873
  %v4039 = vmax.f32 %v4024, %v3874
  %v4040 = vmax.f32 %v4025, %v3875
  %v4041 = vmax.f32 %v4026, %v3876
  %v4042 = vmax.f32 %v4027, %v3877
  %v4043 = vmax.f32 %v4028, %v3878
  %v4044 = vmax.f32 %v4029, %v3879
  %v4045 = vmax.f32 %v4030, %v3880
  %v4046 = vmax.f32 %v4031, %v3881
  %v4047 = vmax.f32 %v4032, %v3882
  %v4048 = vmax.f32 %v4033, %v3883
  %v4049 = vmax.f32 %v4034, %v3884
  %v4050 = vmax.f32 %v4035, %v3885
  %v4051 = vmax.f32 %v4036, %v3886
  %v4052 = vmax.f32 %v4037, %v3887
  %v4053 = vmax.f32 %v4038, %v3888
  %v4054 = vmax.f32 %v4039, %v3889
  %v4055 = vmax.f32 %v4040, %v3890
  %v4056 = vmax.f32 %v4041, %v3891
  %v4057 = vmax.f32 %v4042, %v3892
  %v4058 = vmax.f32 %v4043, %v3893
  %v4059 = vmax.f32 %v4044, %v3894
  %v4060 = vmax.f32 %v4045, %v3895
  %v4061 = vmax.f32 %v4046, %v3896
  %v4062 = vmax.f32 %v4047, %v3897
  %v4063 = vmax.f32 %v4048, %v3898
  %v4064 = vmax.f32 %v4049, %v3899
  %v4065 = vmax.f32 %v4050, %v3900
  %v4066 = vmax.f32 %v4051, %v3901
  %v4067 = vmax.f32 %v4052, %v3902
  %v4068 = vmax.f32 %v4053, %v3903
  %v4069 = vmax.f32 %v4054, %v3904
  %v4070 = vmax.f32 %v4055, %v3905
  %v4071 = vmax.f32 %v4056, %v3906
  %v4072 = vmax.f32 %v4057, %v3907
  %v4073 = vmax.f32 %v4058, %v3908
  %v4074 = vmax.f32 %v4059, %v3909
  %v4075 = vmax.f32 %v4060, %v3910
  %v4076 = vmax.f32 %v4061, %v3911
  %v4077 = vmax.f32 %v4062, %v3912
  %v4078 = vmax.f32 %v4063, %v3913
  %v4079 = vmax.f32 %v4064, %v3914
  %v4080 = vmax.f32 %v4065, %v3915
  %v4081 = vmax.f32 %v4066, %v3916
  %v4082 = vmax.f32 %v4067, %v3917
  %v4083 = vmax.f32 %v4068, %v3918
  %v4084 = vmax.f32 %v4069, %v3919
  %v4085 = vmax.f32 %v4070, %v3920
  %v4086 = vmax.f32 %v4071, %v3921
  %v4087 = vmax.f32 %v4072, %v3922
  %v4088 = vmax.f32 %v4073, %v3923
  %v4089 = vmax.f32 %v4074, %v3924
  %v4090 = vmax.f32 %v4075, %v3925
  %v4091 = vmax.f32 %v4076, %v3926
  %v4092 = vmax.f32 %v4077, %v3927
  %v4093 = vmax.f32 %v4078, %v3928
  %v4094 = vmax.f32 %v4079, %v3929
  %v4095 = vmax.f32 %v4080, %v3930
  %v4096 = vmax.f32 %v4081, %v3931
  %v4097 = vmax.f32 %v4082, %v3932
  %v4098 = vmax.f32 %v4083, %v3933
  %v4099 = vmax.f32 %v4084, %v3934
  %v4100 = vmax.f32 %v4085, %v3935
  %v4101 = vmax.f32 %v4086, %v3936
  %v4102 = vmax.f32 %v4087, %v3937
  %v4103 = vmax.f32 %v4088, %v3938
  %v4104 = vmax.f32 %v4089, %v3939
  %v4105 = vmax.f32 %v4090, %v3940
  %v4106 = vmax.f32 %v4091, %v3941
  %v4107 = vmax.f32 %v4092, %v3942
  %v4108 = vmax.f32 %v4093, %v3943
  %v4109 = vmax.f32 %v4094, %v3944
  %v4110 = vmax.f32 %v4095, %v3945
  %v4111 = vmax.f32 %v4096, %v3946
  %v4112 = vmax.f32 %v4097, %v3947
  %v4113 = vmax.f32 %v4098, %v3948
  %v4114 = vmax.f32 %v4099, %v3949
  %v4115 = vmax.f32 %v4100, %v3950
  %v4116 = vmax.f32 %v4101, %v3951
  %v4117 = vmax.f32 %v4102, %v3952
  %v4118 = vmax.f32 %v4103, %v3953
  %v4119 = vmax.f32 %v4104, %v3954
  %v4120 = vmax.f32 %v4105, %v3955
  %v4121 = vmax.f32 %v4106, %v3956
  %v4122 = vmax.f32 %v4107, %v3957
  %v4123 = vmax.f32 %v4108, %v3958
  %v4124 = vmax.f32 %v4109, %v3959
  %v4125 = vmax.f32 %v4110, %v3960
  %v4126 = vmax.f32 %v4111, %v3961
  %v4127 = vmax.f32 %v4112, %v3962
  %v4128 = vmax.f32 %v4113, %v3963
  %v4129 = vmax.f32 %v4114, %v3964
  %v4130 = vmax.f32 %v4115, %v3965
  %v4131 = vmax.f32 %v4116, %v3966
  %v4132 = vmax.f32 %v4117, %v3967
  %v4133 = vmax.f32 %v4118, %v3968
  %v4134 = vmax.f32 %v4119, %v3969
  %v4135 = vmax.f32 %v4120, %v3970
  %v4136 = vmax.f32 %v4121, %v3971
  %v4137 = vmax.f32 %v4122, %v3972
  %v4138 = vmax.f32 %v4123, %v3973
  %v4139 = vmax.f32 %v4124, %v3974
  %v4140 = vmax.f32 %v4125, %v3975
  %v4141 = vmax.f32 %v4126, %v3976
  %v4142 = vmax.f32 %v4127, %v3977
  %v4143 = vmax.f32 %v4128, %v3978
  %v4144 = vmax.f32 %v4129, %v3979
  %v4145 = vmax.f32 %v4130, %v3980
  %v4146 = vmax.f32 %v4131, %v3981
  %v4147 = vmax.f32 %v4132, %v3982
  %v4148 = vmax.f32 %v4133, %v3983
  %v4149 = vmax.f32 %v4134, %v3984
  %v4150 = vmax.f32 %v4135, %v3985
  %v4151 = vmax.f32 %v4136, %v3986
  %v4152 = vmax.f32 %v4137, %v3987
  %v4153 = vmax.f32 %v4138, %v3988
  %v4154 = vmax.f32 %v4139, %v3989
  %v4155 = vmax.f32 %v4140, %v3990
  %v4156 = vmax.f32 %v4141, %v3991
  %v4157 = vmax.f32 %v4142, %v3992
  %v4158 = vmax.f32 %v4143, %v3993
  %v4159 = vmax.f32 %v4144, %v3994
  %v4160 = vmax.f32 %v4145, %v3995
  %v4161 = vmax.f32 %v4146, %v3996
  %v4162 = vmax.f32 %v4147, %v3997
  %v4163 = vmax.f32 %v4148, %v3998
  %v4164 = vmax.f32 %v4149, %v3999
  %v4165 = vmax.f32 %v4150, %v4000
  %v4166 = vmax.f32 %v4151, %v4001
  %v4167 = vmax.f32 %v4152, %v4002
  %v4168 = vmax.f32 %v4153, %v4003
  %v4169 = vmax.f32 %v4154, %v4004
  %v4170 = vmax.f32 %v4155, %v4005
  %v4171 = vmax.f32 %v4156, %v4006
  %v4172 = vmax.f32 %v4157, %v4007
  %v4173 = vmax.f32 %v4158, %v4008
  %v4174 = vmax.f32 %v4159, %v4009
  %v4175 = vmax.f32 %v4160, %v4010
  %v4176 = vmax.f32 %v4161, %v4011
  %v4177 = vmax.f32 %v4162, %v4012
  %v4178 = vmax.f32 %v4163, %v4013
  %v4179 = vmax.f32 %v4164, %v4014
  %v4180 = vmax.f32 %v4165, %v4015
  %v4181 = vmax.f32 %v4166, %v4016
  %v4182 = vmax.f32 %v4167, %v4017
  %v4183 = vmax.f32 %v4168, %v4018
  %v4184 = vmax.f32 %v4169, %v4019
  %v4185 = vmax.f32 %v4170, %v4020
  %v4186 = vmax.f32 %v4171, %v4021
  %v4187 = vmax.f32 %v4172, %v4022
  %v4188 = vmul.f32 %v4173, 0.5
  %v4189 = vmul.f32 %v4174, 0.5
  %v4190 = vmul.f32 %v4175, 0.5
  %v4191 = vmul.f32 %v4176, 0.5
  %v4192 = vmul.f32 %v4177, 0.5
  %v4193 = vmul.f32 %v4178, 0.5
  %v4194 = vmul.f32 %v4179, 0.5
  %v4195 = vmul.f32 %v4180, 0.5
  %v4196 = vmul.f32 %v4181, 0.5
  %v4197 = vmul.f32 %v4182, 0.5
  %v4198 = vmul.f32 %v4183, 0.5
  %v4199 = vmul.f32 %v4184, 0.5
  %v4200 = vmul.f32 %v4185, 0.5
  %v4201 = vmul.f32 %v4186, 0.5
  %v4202 = vmul.f32 %v4187, 0.5
  %v4203 = vtanh.pop %v4188
  %v4204 = vtanh.pop %v4189
  %v4205 = vtanh.pop %v4190
  %v4206 = vtanh.pop %v4191
  %v4207 = vtanh.pop %v4192
  %v4208 = vtanh.pop %v4193
  %v4209 = vtanh.pop %v4194
  %v4210 = vtanh.pop %v4195
  %v4211 = vtanh.pop %v4196
  %v4212 = vtanh.pop %v4197
  %v4213 = vtanh.pop %v4198
  %v4214 = vtanh.pop %v4199
  %v4215 = vtanh.pop %v4200
  %v4216 = vtanh.pop %v4201
  %v4217 = vtanh.pop %v4202
  %v4218 = vmul.f32 %v4173, 1.442695
  %v4219 = vpow.pop %v4218
  %v4220 = vmul.f32 %v4174, 1.442695
  %v4221 = vpow.pop %v4220
  %v4222 = vmul.f32 %v4175, 1.442695
  %v4223 = vpow.pop %v4222
  %v4224 = vmul.f32 %v4176, 1.442695
  %v4225 = vpow.pop %v4224
  %v4226 = vmul.f32 %v4177, 1.442695
  %v4227 = vpow.pop %v4226
  %v4228 = vmul.f32 %v4178, 1.442695
  %v4229 = vpow.pop %v4228
  %v4230 = vmul.f32 %v4179, 1.442695
  %v4231 = vpow.pop %v4230
  %v4232 = vmul.f32 %v4180, 1.442695
  %v4233 = vpow.pop %v4232
  %v4234 = vmul.f32 %v4181, 1.442695
  %v4235 = vpow.pop %v4234
  %v4236 = vmul.f32 %v4182, 1.442695
  %v4237 = vpow.pop %v4236
  %v4238 = vmul.f32 %v4183, 1.442695
  %v4239 = vpow.pop %v4238
  %v4240 = vmul.f32 %v4184, 1.442695
  %v4241 = vpow.pop %v4240
  %v4242 = vmul.f32 %v4185, 1.442695
  %v4243 = vpow.pop %v4242
  %v4244 = vmul.f32 %v4186, 1.442695
  %v4245 = vpow.pop %v4244
  %v4246 = vmul.f32 %v4187, 1.442695
  %v4247 = vpow.pop %v4246
  %v4248 = vadd.f32 %v4219, 1.0
  %v4249 = vadd.f32 %v4221, 1.0
  %v4250 = vadd.f32 %v4223, 1.0
  %v4251 = vadd.f32 %v4225, 1.0
  %v4252 = vadd.f32 %v4227, 1.0
  %v4253 = vadd.f32 %v4229, 1.0
  %v4254 = vadd.f32 %v4231, 1.0
  %v4255 = vadd.f32 %v4233, 1.0
  %v4256 = vadd.f32 %v4235, 1.0
  %v4257 = vadd.f32 %v4237, 1.0
  %v4258 = vadd.f32 %v4239, 1.0
  %v4259 = vadd.f32 %v4241, 1.0
  %v4260 = vadd.f32 %v4243, 1.0
  %v4261 = vadd.f32 %v4245, 1.0
  %v4262 = vadd.f32 %v4247, 1.0
  %v4263 = vmul.f32 %v4203, %v4248
  %v4264 = vmul.f32 %v4204, %v4249
  %v4265 = vmul.f32 %v4205, %v4250
  %v4266 = vmul.f32 %v4206, %v4251
  %v4267 = vmul.f32 %v4207, %v4252
  %v4268 = vmul.f32 %v4208, %v4253
  %v4269 = vmul.f32 %v4209, %v4254
  %v4270 = vmul.f32 %v4210, %v4255
  %v4271 = vmul.f32 %v4211, %v4256
  %v4272 = vmul.f32 %v4212, %v4257
  %v4273 = vmul.f32 %v4213, %v4258
  %v4274 = vmul.f32 %v4214, %v4259
  %v4275 = vmul.f32 %v4215, %v4260
  %v4276 = vmul.f32 %v4216, %v4261
  %v4277 = vmul.f32 %v4217, %v4262
  %vm4278 = vcmp.gt.f32.partialorder %v4173, 0.0
  %vm4279 = vcmp.gt.f32.partialorder %v4174, 0.0
  %vm4280 = vcmp.gt.f32.partialorder %v4175, 0.0
  %vm4281 = vcmp.gt.f32.partialorder %v4176, 0.0
  %vm4282 = vcmp.gt.f32.partialorder %v4177, 0.0
  %vm4283 = vcmp.gt.f32.partialorder %v4178, 0.0
  %vm4284 = vcmp.gt.f32.partialorder %v4179, 0.0
  %vm4285 = vcmp.gt.f32.partialorder %v4180, 0.0
  %vm4286 = vcmp.gt.f32.partialorder %v4181, 0.0
  %vm4287 = vcmp.gt.f32.partialorder %v4182, 0.0
  %vm4288 = vcmp.gt.f32.partialorder %v4183, 0.0
  %vm4289 = vcmp.gt.f32.partialorder %v4184, 0.0
  %vm4290 = vcmp.gt.f32.partialorder %v4185, 0.0
  %vm4291 = vcmp.gt.f32.partialorder %v4186, 0.0
  %vm4292 = vcmp.gt.f32.partialorder %v4187, 0.0
  %v4293 = vsel %vm4278, %v4173, %v4263
  %v4294 = vsel %vm4279, %v4174, %v4264
  %v4295 = vsel %vm4280, %v4175, %v4265
  %v4296 = vsel %vm4281, %v4176, %v4266
  %v4297 = vsel %vm4282, %v4177, %v4267
  %v4298 = vsel %vm4283, %v4178, %v4268
  %v4299 = vsel %vm4284, %v4179, %v4269
  %v4300 = vsel %vm4285, %v4180, %v4270
  %v4301 = vsel %vm4286, %v4181, %v4271
  %v4302 = vsel %vm4287, %v4182, %v4272
  %v4303 = vsel %vm4288, %v4183, %v4273
  %v4304 = vsel %vm4289, %v4184, %v4274
  %v4305 = vsel %vm4290, %v4185, %v4275
  %v4306 = vsel %vm4291, %v4186, %v4276
  %v4307 = vsel %vm4292, %v4187, %v4277
  %vm4308 = vcmask 523264
  %4309 = vst.msk [vmem:[%s4] sm:$0xff] %vm4308, %v4293
  %4310 = vst.msk [vmem:[%s4 + $0x8] sm:$0xff] %vm4308, %v4294
  %4311 = vst.msk [vmem:[%s4 + $0x10] sm:$0xff] %vm4308, %v4295
  %4312 = vst.msk [vmem:[%s4 + $0x18] sm:$0xff] %vm4308, %v4296
  %4313 = vst.msk [vmem:[%s4 + $0x20] sm:$0xff] %vm4308, %v4297
  %4314 = vst.msk [vmem:[%s4 + $0x28] sm:$0xff] %vm4308, %v4298
  %4315 = vst.msk [vmem:[%s4 + $0x30] sm:$0xff] %vm4308, %v4299
  %4316 = vst.msk [vmem:[%s4 + $0x38] sm:$0xff] %vm4308, %v4300
  %4317 = vst.msk [vmem:[%s4 + $0x40] sm:$0xff] %vm4308, %v4301
  %4318 = vst.msk [vmem:[%s4 + $0x48] sm:$0xff] %vm4308, %v4302
  %4319 = vst.msk [vmem:[%s4 + $0x50] sm:$0xff] %vm4308, %v4303
  %4320 = vst.msk [vmem:[%s4 + $0x58] sm:$0xff] %vm4308, %v4304
  %4321 = vst.msk [vmem:[%s4 + $0x60] sm:$0xff] %vm4308, %v4305
  %4322 = vst.msk [vmem:[%s4 + $0x68] sm:$0xff] %vm4308, %v4306
  %4323 = vst.msk [vmem:[%s4 + $0x70] sm:$0xff] %vm4308, %v4307
  // Predicated region
  $region18: #{forward.7} parent=0 // pred_check
    _
  $region19: #{forward.7} parent=0 // pred_check_branch
    %4325 = sbr.rel (0) target = $region21
  $region20: #{forward.7} parent=0 // pred_region
    _
  $region21: #{forward.7} parent=0 // pred_fallthru
    _
  // Predicated region
  $region22: #{forward.7} parent=0 // pred_check
    _
  $region23: #{forward.7} parent=0 // pred_check_branch
    %4327 = sbr.rel (0) target = $region25
  $region24: #{forward.7} parent=0 // pred_region
    _
  $region25: #{forward.7} parent=0 // pred_fallthru
    _

// kernel: forward.9
$region0: #{forward.9}
  #allocation0 [shape = 'u32[]', space=smem, size = 0x4, offset = 0x4, fixed_abs, tag = 'smem constant byte address 0x4 - core index']
  #allocation1 [shape = 'u32[144,128]{1,0:T(1,128)}', space=vmem, size = 0x12000, scoped, tag = 'internal scratch']
  %s0 = inlined_call_operand.vmem [shape: f32[2,384], index: 0, kind: input, shape index: {}]
  %s1 = inlined_call_operand.vmem [shape: f32[128,384], index: 1, kind: input, shape index: {}]
  %s2 = inlined_call_operand.vmem [shape: f32[1,128], index: 2, kind: input, shape index: {}]
  %s3 = inlined_call_operand.vmem [shape: f32[1,128], index: 3, kind: input, shape index: {}]
  %s4 = inlined_call_operand.vmem [shape: f32[8,128], index: 4, kind: input, shape index: {}]
  %s5 = inlined_call_operand.vmem [shape: f32[1,8], index: 5, kind: input, shape index: {}]
  %s6 = inlined_call_operand.hbm [shape: f32[2,8], index: 6, kind: output, shape index: {}]
  %s7 = sld [smem:[#allocation0]]
  $region34: #{forward.9} parent=0
    _
  %s9 = ssub.s32 1, %s7
  %s10 = scalar_select 0, %s9, %s7
  $region1: #{forward.9} parent=0
    #allocation2 [shape = 'u8[1024]{0}', space=vmem, size = 0x400, scoped, tag = 'output window, operand 0, single buffered']
    #allocation3 [shape = 's32[1]{0}', space=sflag, size = 0x4, scoped, tag = 'scoped memory for forward.9']
    %11 = vsyncpa [#allocation3], 0
    // Predicated region
    $region2: #{forward.9} parent=1 // pred_check
      _
    $region3: #{forward.9} parent=1 // pred_check_branch
      %13 = sbr.rel (0) target = $region5
    $region4: #{forward.9} parent=1 // pred_region
      _
    $region5: #{forward.9} parent=1 // pred_fallthru
      _
    // Predicated region
    $region6: #{forward.9} parent=1 // pred_check
      _
    $region7: #{forward.9} parent=1 // pred_check_branch
      %15 = sbr.rel (0) target = $region9
    $region8: #{forward.9} parent=1 // pred_region
      _
    $region9: #{forward.9} parent=1 // pred_fallthru
      _
    // Predicated region
    $region10: #{forward.9} parent=1 // pred_check
      _
    $region11: #{forward.9} parent=1 // pred_check_branch
      %17 = sbr.rel (0) target = $region13
    $region12: #{forward.9} parent=1 // pred_region
      _
    $region13: #{forward.9} parent=1 // pred_fallthru
      _
    // Predicated region
    $region14: #{forward.9} parent=1 // pred_check
      _
    $region15: #{forward.9} parent=1 // pred_check_branch
      %19 = sbr.rel (0) target = $region17
    $region16: #{forward.9} parent=1 // pred_region
      _
    $region17: #{forward.9} parent=1 // pred_fallthru
      _
    // Predicated region
    $region18: #{forward.9} parent=1 // pred_check
      _
    $region19: #{forward.9} parent=1 // pred_check_branch
      %21 = sbr.rel (0) target = $region21
    $region20: #{forward.9} parent=1 // pred_region
      _
    $region21: #{forward.9} parent=1 // pred_fallthru
      _
    // Predicated region
    $region22: #{forward.9} parent=1 // pred_check
      _
    $region23: #{forward.9} parent=1 // pred_check_branch
      %23 = sbr.rel (0) target = $region25
    $region24: #{forward.9} parent=1 // pred_region
      _
    $region25: #{forward.9} parent=1 // pred_fallthru
      _
    %v24 = vld [vmem:[%s0] sm:$0x3f]
    %v25 = vld [vmem:[%s1] sm:$0xff]
    %v26 = vld [vmem:[%s1 + $0x8] sm:$0xff]
    %v27 = vld [vmem:[%s1 + $0x10] sm:$0xff]
    %v28 = vld [vmem:[%s1 + $0x18] sm:$0xff]
    %v29 = vld [vmem:[%s1 + $0x20] sm:$0xff]
    %v30 = vld [vmem:[%s1 + $0x28] sm:$0xff]
    %v31 = vld [vmem:[%s1 + $0x30] sm:$0xff]
    %v32 = vld [vmem:[%s1 + $0x38] sm:$0xff]
    %v33 = vld [vmem:[%s1 + $0x40] sm:$0xff]
    %v34 = vld [vmem:[%s1 + $0x48] sm:$0xff]
    %v35 = vld [vmem:[%s1 + $0x50] sm:$0xff]
    %v36 = vld [vmem:[%s1 + $0x58] sm:$0xff]
    %v37 = vld [vmem:[%s1 + $0x60] sm:$0xff]
    %v38 = vld [vmem:[%s1 + $0x68] sm:$0xff]
    %v39 = vld [vmem:[%s1 + $0x70] sm:$0xff]
    %v40 = vld [vmem:[%s1 + $0x78] sm:$0xff]
    %v41 = vld [vmem:[%s1 + $0x80] sm:$0xff]
    %v42 = vld [vmem:[%s1 + $0x88] sm:$0xff]
    %v43 = vld [vmem:[%s1 + $0x90] sm:$0xff]
    %v44 = vld [vmem:[%s1 + $0x98] sm:$0xff]
    %v45 = vld [vmem:[%s1 + $0xa0] sm:$0xff]
    %v46 = vld [vmem:[%s1 + $0xa8] sm:$0xff]
    %v47 = vld [vmem:[%s1 + $0xb0] sm:$0xff]
    %v48 = vld [vmem:[%s1 + $0xb8] sm:$0xff]
    %v49 = vld [vmem:[%s1 + $0xc0] sm:$0xff]
    %v50 = vld [vmem:[%s1 + $0xc8] sm:$0xff]
    %v51 = vld [vmem:[%s1 + $0xd0] sm:$0xff]
    %v52 = vld [vmem:[%s1 + $0xd8] sm:$0xff]
    %v53 = vld [vmem:[%s1 + $0xe0] sm:$0xff]
    %v54 = vld [vmem:[%s1 + $0xe8] sm:$0xff]
    %v55 = vld [vmem:[%s1 + $0xf0] sm:$0xff]
    %v56 = vld [vmem:[%s1 + $0xf8] sm:$0xff]
    %v57 = vld [vmem:[%s1 + $0x100] sm:$0xff]
    %v58 = vld [vmem:[%s1 + $0x108] sm:$0xff]
    %v59 = vld [vmem:[%s1 + $0x110] sm:$0xff]
    %v60 = vld [vmem:[%s1 + $0x118] sm:$0xff]
    %v61 = vld [vmem:[%s1 + $0x120] sm:$0xff]
    %v62 = vld [vmem:[%s1 + $0x128] sm:$0xff]
    %v63 = vld [vmem:[%s1 + $0x130] sm:$0xff]
    %v64 = vld [vmem:[%s1 + $0x138] sm:$0xff]
    %v65 = vld [vmem:[%s1 + $0x140] sm:$0xff]
    %v66 = vld [vmem:[%s1 + $0x148] sm:$0xff]
    %v67 = vld [vmem:[%s1 + $0x150] sm:$0xff]
    %v68 = vld [vmem:[%s1 + $0x158] sm:$0xff]
    %v69 = vld [vmem:[%s1 + $0x160] sm:$0xff]
    %v70 = vld [vmem:[%s1 + $0x168] sm:$0xff]
    %v71 = vld [vmem:[%s1 + $0x170] sm:$0xff]
    %v72 = vld [vmem:[%s1 + $0x178] sm:$0xff]
    %v73 = vld [vmem:[%s2] sm:$0x1]
    %v75 = vlaneseq
    %v76 = vshrl.u32 %v75, 7
    %v77 = vsub.s32 0, %v76
    %v78 = vrot.slane %v73, %v77
    %v81 = vcombine.high %v24, %v24
    %v83 = vunpack.c.l.s4 1983009808
    %v84 = vunpack.c.0.s8 %v83
    %v85 = vlaneseq
    %v86 = vshrl.u32 %v85, 7
    %v87 = vsub.s32 %v84, %v86
    %v88 = vrot.slane %v24, %v87
    %v90 = vunpack.c.l.s4 1983009808
    %v91 = vunpack.c.0.s8 %v90
    %v92 = vlaneseq
    %v93 = vshrl.u32 %v92, 7
    %v94 = vsub.s32 %v91, %v93
    %v95 = vrot.slane %v81, %v94
    %v96 = vcombine.high %v88, %v88
    %100 = vmatprep.subr.mxu0 %v71
    %101 = vmatpush1.xpose.msra.mxu0 %v70
    %102 = vmatprep.subr.mxu0 %v68
    %103 = vmatpush1.xpose.msra.mxu0 %v67
    %104 = vmatprep.subr.mxu0 %v65
    %105 = vmatpush1.xpose.msra.mxu0 %v64
    %106 = vmatprep.subr.mxu0 %v62
    %107 = vmatpush1.xpose.msra.mxu0 %v61
    %108 = vmatprep.subr.mxu0 %v59
    %109 = vmatpush1.xpose.msra.mxu0 %v58
    %110 = vmatprep.subr.mxu0 %v56
    %111 = vmatpush1.xpose.msra.mxu0 %v55
    %112 = vmatprep.subr.mxu0 %v53
    %113 = vmatpush1.xpose.msra.mxu0 %v52
    %114 = vmatprep.subr.mxu0 %v50
    %115 = vmatpush1.xpose.msra.mxu0 %v49
    %116 = vmatprep.subr.mxu0 %v47
    %117 = vmatpush1.xpose.msra.mxu0 %v46
    %118 = vmatprep.subr.mxu0 %v44
    %119 = vmatpush1.xpose.msra.mxu0 %v43
    %120 = vmatprep.subr.mxu0 %v41
    %121 = vmatpush1.xpose.msra.mxu0 %v40
    %122 = vmatprep.subr.mxu0 %v38
    %123 = vmatpush1.xpose.msra.mxu0 %v37
    %124 = vmatprep.subr.mxu0 %v35
    %125 = vmatpush1.xpose.msra.mxu0 %v34
    %126 = vmatprep.subr.mxu0 %v32
    %127 = vmatpush1.xpose.msra.mxu0 %v31
    %128 = vmatprep.subr.mxu0 %v29
    %129 = vmatpush1.xpose.msra.mxu0 %v28
    %130 = vmatprep.subr.mxu0 %v26
    %131 = vmatpush1.xpose.msra.mxu0 %v25
    %132 = vmatprep.subr.mxu0 0.0
    %133 = vmatpush2.xpose.msra.mxu0 0.0
    %134 = vmatprep.subr.mxu0 0.0
    %135 = vmatpush2.xpose.msra.mxu0 0.0
    %136 = vmatprep.subr.mxu0 0.0
    %137 = vmatpush2.xpose.msra.mxu0 0.0
    %138 = vmatprep.subr.mxu0 0.0
    %139 = vmatpush2.xpose.msra.mxu0 0.0
    %140 = vmatprep.subr.mxu0 0.0
    %141 = vmatpush2.xpose.msra.mxu0 0.0
    %142 = vmatprep.subr.mxu0 0.0
    %143 = vmatpush2.xpose.msra.mxu0 0.0
    %144 = vmatprep.subr.mxu0 0.0
    %145 = vmatpush2.xpose.msra.mxu0 0.0
    %146 = vmatprep.subr.mxu0 0.0
    %147 = vmatpush2.xpose.msra.mxu0 0.0
    %148 = vmatprep.subr.mxu0 0.0
    %149 = vmatpush2.xpose.msra.mxu0 0.0
    %150 = vmatprep.subr.mxu0 0.0
    %151 = vmatpush2.xpose.msra.mxu0 0.0
    %152 = vmatprep.subr.mxu0 0.0
    %153 = vmatpush2.xpose.msra.mxu0 0.0
    %154 = vmatprep.subr.mxu0 0.0
    %155 = vmatpush2.xpose.msra.mxu0 0.0
    %156 = vmatprep.subr.mxu0 0.0
    %157 = vmatpush2.xpose.msra.mxu0 0.0
    %158 = vmatprep.subr.mxu0 0.0
    %159 = vmatpush2.xpose.msra.mxu0 0.0
    %160 = vmatprep.subr.mxu0 0.0
    %161 = vmatpush2.xpose.msra.mxu0 0.0
    %162 = vmatprep.subr.mxu0 0.0
    %163 = vmatpush2.xpose.msra.mxu0 0.0
    %164 = vmatprep.mubr.f32.mxu0 %v96
    %165 = vmatmul.mubr.f32.gmra.mxu0 %v88
    %v166 = vpop.f32.mrf.mxu0
    %v167 = vadd.f32 %v78, %v166
    %v168 = vpop.f32.mrf.mxu0
    %169 = vdwg.mxu0
    %170 = vmatprep.subr.mxu0 0.0
    %171 = vmatpush1.xpose.msra.mxu0 %v72
    %172 = vmatprep.subr.mxu0 0.0
    %173 = vmatpush1.xpose.msra.mxu0 %v69
    %174 = vmatprep.subr.mxu0 0.0
    %175 = vmatpush1.xpose.msra.mxu0 %v66
    %176 = vmatprep.subr.mxu0 0.0
    %177 = vmatpush1.xpose.msra.mxu0 %v63
    %178 = vmatprep.subr.mxu0 0.0
    %179 = vmatpush1.xpose.msra.mxu0 %v60
    %180 = vmatprep.subr.mxu0 0.0
    %181 = vmatpush1.xpose.msra.mxu0 %v57
    %182 = vmatprep.subr.mxu0 0.0
    %183 = vmatpush1.xpose.msra.mxu0 %v54
    %184 = vmatprep.subr.mxu0 0.0
    %185 = vmatpush1.xpose.msra.mxu0 %v51
    %186 = vmatprep.subr.mxu0 0.0
    %187 = vmatpush1.xpose.msra.mxu0 %v48
    %188 = vmatprep.subr.mxu0 0.0
    %189 = vmatpush1.xpose.msra.mxu0 %v45
    %190 = vmatprep.subr.mxu0 0.0
    %191 = vmatpush1.xpose.msra.mxu0 %v42
    %192 = vmatprep.subr.mxu0 0.0
    %193 = vmatpush1.xpose.msra.mxu0 %v39
    %194 = vmatprep.subr.mxu0 0.0
    %195 = vmatpush1.xpose.msra.mxu0 %v36
    %196 = vmatprep.subr.mxu0 0.0
    %197 = vmatpush1.xpose.msra.mxu0 %v33
    %198 = vmatprep.subr.mxu0 0.0
    %199 = vmatpush1.xpose.msra.mxu0 %v30
    %200 = vmatprep.subr.mxu0 0.0
    %201 = vmatpush1.xpose.msra.mxu0 %v27
    %202 = vmatprep.subr.mxu0 0.0
    %203 = vmatpush2.xpose.msra.mxu0 0.0
    %204 = vmatprep.subr.mxu0 0.0
    %205 = vmatpush2.xpose.msra.mxu0 0.0
    %206 = vmatprep.subr.mxu0 0.0
    %207 = vmatpush2.xpose.msra.mxu0 0.0
    %208 = vmatprep.subr.mxu0 0.0
    %209 = vmatpush2.xpose.msra.mxu0 0.0
    %210 = vmatprep.subr.mxu0 0.0
    %211 = vmatpush2.xpose.msra.mxu0 0.0
    %212 = vmatprep.subr.mxu0 0.0
    %213 = vmatpush2.xpose.msra.mxu0 0.0
    %214 = vmatprep.subr.mxu0 0.0
    %215 = vmatpush2.xpose.msra.mxu0 0.0
    %216 = vmatprep.subr.mxu0 0.0
    %217 = vmatpush2.xpose.msra.mxu0 0.0
    %218 = vmatprep.subr.mxu0 0.0
    %219 = vmatpush2.xpose.msra.mxu0 0.0
    %220 = vmatprep.subr.mxu0 0.0
    %221 = vmatpush2.xpose.msra.mxu0 0.0
    %222 = vmatprep.subr.mxu0 0.0
    %223 = vmatpush2.xpose.msra.mxu0 0.0
    %224 = vmatprep.subr.mxu0 0.0
    %225 = vmatpush2.xpose.msra.mxu0 0.0
    %226 = vmatprep.subr.mxu0 0.0
    %227 = vmatpush2.xpose.msra.mxu0 0.0
    %228 = vmatprep.subr.mxu0 0.0
    %229 = vmatpush2.xpose.msra.mxu0 0.0
    %230 = vmatprep.subr.mxu0 0.0
    %231 = vmatpush2.xpose.msra.mxu0 0.0
    %232 = vmatprep.subr.mxu0 0.0
    %233 = vmatpush2.xpose.msra.mxu0 0.0
    %234 = vmatprep.mubr.f32.mxu0 0.0
    %235 = vmatmul.mubr.f32.gmra.mxu0 %v95
    %v236 = vpop.f32.mrf.mxu0
    %v237 = vadd.f32 %v167, %v236
    %v238 = vpop.f32.mrf.mxu0
    %239 = vdwg.mxu0
    %v240 = vld [vmem:[%s3] sm:$0x1]
    %v242 = vlaneseq
    %v243 = vshrl.u32 %v242, 7
    %v244 = vsub.s32 0, %v243
    %v245 = vrot.slane %v240, %v244
    %v247 = vmul.f32 %v237, %v245
    %v248 = vld [vmem:[%s4] sm:$0xff]
    %v249 = vld [vmem:[%s5] sm:$0x1]
    %v251 = vlaneseq
    %v252 = vshrl.u32 %v251, 7
    %v253 = vsub.s32 0, %v252
    %v254 = vrot.slane %v249, %v253
    %256 = vmatprep.subr.mxu0 0.0
    %257 = vmatpush1.xpose.msra.mxu0 0.0
    %258 = vmatprep.subr.mxu0 0.0
    %259 = vmatpush1.xpose.msra.mxu0 0.0
    %260 = vmatprep.subr.mxu0 0.0
    %261 = vmatpush1.xpose.msra.mxu0 0.0
    %262 = vmatprep.subr.mxu0 0.0
    %263 = vmatpush1.xpose.msra.mxu0 0.0
    %264 = vmatprep.subr.mxu0 0.0
    %265 = vmatpush1.xpose.msra.mxu0 0.0
    %266 = vmatprep.subr.mxu0 0.0
    %267 = vmatpush1.xpose.msra.mxu0 0.0
    %268 = vmatprep.subr.mxu0 0.0
    %269 = vmatpush1.xpose.msra.mxu0 0.0
    %270 = vmatprep.subr.mxu0 0.0
    %271 = vmatpush1.xpose.msra.mxu0 0.0
    %272 = vmatprep.subr.mxu0 0.0
    %273 = vmatpush1.xpose.msra.mxu0 0.0
    %274 = vmatprep.subr.mxu0 0.0
    %275 = vmatpush1.xpose.msra.mxu0 0.0
    %276 = vmatprep.subr.mxu0 0.0
    %277 = vmatpush1.xpose.msra.mxu0 0.0
    %278 = vmatprep.subr.mxu0 0.0
    %279 = vmatpush1.xpose.msra.mxu0 0.0
    %280 = vmatprep.subr.mxu0 0.0
    %281 = vmatpush1.xpose.msra.mxu0 0.0
    %282 = vmatprep.subr.mxu0 0.0
    %283 = vmatpush1.xpose.msra.mxu0 0.0
    %284 = vmatprep.subr.mxu0 0.0
    %285 = vmatpush1.xpose.msra.mxu0 0.0
    %286 = vmatprep.subr.mxu0 0.0
    %287 = vmatpush1.xpose.msra.mxu0 %v248
    %288 = vmatprep.subr.mxu0 0.0
    %289 = vmatpush2.xpose.msra.mxu0 0.0
    %290 = vmatprep.subr.mxu0 0.0
    %291 = vmatpush2.xpose.msra.mxu0 0.0
    %292 = vmatprep.subr.mxu0 0.0
    %293 = vmatpush2.xpose.msra.mxu0 0.0
    %294 = vmatprep.subr.mxu0 0.0
    %295 = vmatpush2.xpose.msra.mxu0 0.0
    %296 = vmatprep.subr.mxu0 0.0
    %297 = vmatpush2.xpose.msra.mxu0 0.0
    %298 = vmatprep.subr.mxu0 0.0
    %299 = vmatpush2.xpose.msra.mxu0 0.0
    %300 = vmatprep.subr.mxu0 0.0
    %301 = vmatpush2.xpose.msra.mxu0 0.0
    %302 = vmatprep.subr.mxu0 0.0
    %303 = vmatpush2.xpose.msra.mxu0 0.0
    %304 = vmatprep.subr.mxu0 0.0
    %305 = vmatpush2.xpose.msra.mxu0 0.0
    %306 = vmatprep.subr.mxu0 0.0
    %307 = vmatpush2.xpose.msra.mxu0 0.0
    %308 = vmatprep.subr.mxu0 0.0
    %309 = vmatpush2.xpose.msra.mxu0 0.0
    %310 = vmatprep.subr.mxu0 0.0
    %311 = vmatpush2.xpose.msra.mxu0 0.0
    %312 = vmatprep.subr.mxu0 0.0
    %313 = vmatpush2.xpose.msra.mxu0 0.0
    %314 = vmatprep.subr.mxu0 0.0
    %315 = vmatpush2.xpose.msra.mxu0 0.0
    %316 = vmatprep.subr.mxu0 0.0
    %317 = vmatpush2.xpose.msra.mxu0 0.0
    %318 = vmatprep.subr.mxu0 0.0
    %319 = vmatpush2.xpose.msra.mxu0 0.0
    %320 = vmatprep.mubr.f32.mxu0 0.0
    %321 = vmatmul.mubr.f32.gmra.mxu0 %v247
    %v322 = vpop.f32.mrf.mxu0
    %v323 = vadd.f32 %v254, %v322
    %v324 = vpop.f32.mrf.mxu0
    %325 = vdwg.mxu0
    %vm326 = vcmask 58368
    %327 = vst.msk [vmem:[#allocation2] sm:$0x3] %vm326, %v323
    // Predicated region
    $region26: #{forward.9} parent=1 // pred_check
      _
    $region27: #{forward.9} parent=1 // pred_check_branch
      %329 = sbr.rel (0) target = $region29
    $region28: #{forward.9} parent=1 // pred_region
      %s331 = ssub.s32 32, 32
      %332 = vsyncadd [#allocation3], %s331
      %s334 = sshll.u32 [#allocation2], 4
      %s335 = int_to_ptr.vmem [resolvable:$true] %s334
      %337 = dma.vmem_to_hbm [thread:$0]  %s335, 32, %s6, [#allocation3]
    $region29: #{forward.9} parent=1 // pred_fallthru
      _
    // Predicated region
    $region30: #{forward.9} parent=1 // pred_check
      _
    $region31: #{forward.9} parent=1 // pred_check_branch
      %339 = sbr.rel (0) target = $region33
    $region32: #{forward.9} parent=1 // pred_region
      %340 = dma.done [#allocation3], 32
    $region33: #{forward.9} parent=1 // pred_fallthru
      _
    %341 = vsyncpa [#allocation3], 1

// kernel: forward.8
$region0: #{forward.8}
  #allocation0 [shape = 'u32[]', space=smem, size = 0x4, offset = 0x4, fixed_abs, tag = 'smem constant byte address 0x4 - core index']
  #allocation1 [shape = 'u32[144,128]{1,0:T(1,128)}', space=vmem, size = 0x12000, scoped, tag = 'internal scratch']
  %s0 = inlined_call_operand.vmem [shape: bf16[120,576], index: 0, kind: input, shape index: {}]
  %s1 = inlined_call_operand.vmem [shape: bf16[576,64], index: 1, kind: input, shape index: {}]
  %s2 = inlined_call_operand.vmem [shape: f32[1,64], index: 2, kind: input, shape index: {}]
  %s3 = inlined_call_operand.vmem [shape: f32[1,64], index: 3, kind: input, shape index: {}]
  %s4 = inlined_call_operand.vmem [shape: f32[12,64], index: 4, kind: output, shape index: {}]
  %s5 = sld [smem:[#allocation0]]
  $region26: #{forward.8} parent=0
    _
  %s7 = ssub.s32 1, %s5
  %s8 = scalar_select 0, %s7, %s5
  // Predicated region
  $region2: #{forward.8} parent=0 // pred_check
    _
  $region3: #{forward.8} parent=0 // pred_check_branch
    %10 = sbr.rel (0) target = $region5
  $region4: #{forward.8} parent=0 // pred_region
    _
  $region5: #{forward.8} parent=0 // pred_fallthru
    _
  // Predicated region
  $region6: #{forward.8} parent=0 // pred_check
    _
  $region7: #{forward.8} parent=0 // pred_check_branch
    %12 = sbr.rel (0) target = $region9
  $region8: #{forward.8} parent=0 // pred_region
    _
  $region9: #{forward.8} parent=0 // pred_fallthru
    _
  // Predicated region
  $region10: #{forward.8} parent=0 // pred_check
    _
  $region11: #{forward.8} parent=0 // pred_check_branch
    %14 = sbr.rel (0) target = $region13
  $region12: #{forward.8} parent=0 // pred_region
    _
  $region13: #{forward.8} parent=0 // pred_fallthru
    _
  // Predicated region
  $region14: #{forward.8} parent=0 // pred_check
    _
  $region15: #{forward.8} parent=0 // pred_check_branch
    %16 = sbr.rel (0) target = $region17
  $region16: #{forward.8} parent=0 // pred_region
    _
  $region17: #{forward.8} parent=0 // pred_fallthru
    _
  %v18 = vld [vmem:[%s0] sm:$0xff]
  %v19 = vld [vmem:[%s0 + $0x8] sm:$0xff]
  %v20 = vld [vmem:[%s0 + $0x10] sm:$0xf]
  %v21 = vld [vmem:[%s0 + $0x14] sm:$0xff]
  %v22 = vld [vmem:[%s0 + $0x1c] sm:$0xff]
  %v23 = vld [vmem:[%s0 + $0x24] sm:$0xf]
  %v24 = vld [vmem:[%s0 + $0x28] sm:$0xff]
  %v25 = vld [vmem:[%s0 + $0x30] sm:$0xff]
  %v26 = vld [vmem:[%s0 + $0x38] sm:$0xf]
  %v27 = vld [vmem:[%s0 + $0x3c] sm:$0xff]
  %v28 = vld [vmem:[%s0 + $0x44] sm:$0xff]
  %v29 = vld [vmem:[%s0 + $0x4c] sm:$0xf]
  %v30 = vld [vmem:[%s0 + $0x50] sm:$0xff]
  %v31 = vld [vmem:[%s0 + $0x58] sm:$0xff]
  %v32 = vld [vmem:[%s0 + $0x60] sm:$0xf]
  %v33 = vld [vmem:[%s0 + $0x64] sm:$0xff]
  %v34 = vld [vmem:[%s0 + $0x6c] sm:$0xff]
  %v35 = vld [vmem:[%s0 + $0x74] sm:$0xf]
  %v36 = vld [vmem:[%s0 + $0x78] sm:$0xff]
  %v37 = vld [vmem:[%s0 + $0x80] sm:$0xff]
  %v38 = vld [vmem:[%s0 + $0x88] sm:$0xf]
  %v39 = vld [vmem:[%s0 + $0x8c] sm:$0xff]
  %v40 = vld [vmem:[%s0 + $0x94] sm:$0xff]
  %v41 = vld [vmem:[%s0 + $0x9c] sm:$0xf]
  %v42 = vld [vmem:[%s0 + $0xa0] sm:$0xff]
  %v43 = vld [vmem:[%s0 + $0xa8] sm:$0xff]
  %v44 = vld [vmem:[%s0 + $0xb0] sm:$0xf]
  %v45 = vld [vmem:[%s0 + $0xb4] sm:$0xff]
  %v46 = vld [vmem:[%s0 + $0xbc] sm:$0xff]
  %v47 = vld [vmem:[%s0 + $0xc4] sm:$0xf]
  %v48 = vld [vmem:[%s0 + $0xc8] sm:$0xff]
  %v49 = vld [vmem:[%s0 + $0xd0] sm:$0xff]
  %v50 = vld [vmem:[%s0 + $0xd8] sm:$0xf]
  %v51 = vld [vmem:[%s0 + $0xdc] sm:$0xff]
  %v52 = vld [vmem:[%s0 + $0xe4] sm:$0xff]
  %v53 = vld [vmem:[%s0 + $0xec] sm:$0xf]
  %v54 = vld [vmem:[%s0 + $0xf0] sm:$0xff]
  %v55 = vld [vmem:[%s0 + $0xf8] sm:$0xff]
  %v56 = vld [vmem:[%s0 + $0x100] sm:$0xf]
  %v57 = vld [vmem:[%s0 + $0x104] sm:$0xff]
  %v58 = vld [vmem:[%s0 + $0x10c] sm:$0xff]
  %v59 = vld [vmem:[%s0 + $0x114] sm:$0xf]
  %v60 = vld [vmem:[%s0 + $0x118] sm:$0xff]
  %v61 = vld [vmem:[%s0 + $0x120] sm:$0xff]
  %v62 = vld [vmem:[%s0 + $0x128] sm:$0xf]
  %v63 = vld [vmem:[%s1] sm:$0xf]
  %v64 = vld [vmem:[%s1 + $0x4] sm:$0xf]
  %v65 = vld [vmem:[%s1 + $0x8] sm:$0xf]
  %v66 = vld [vmem:[%s1 + $0xc] sm:$0xf]
  %v67 = vld [vmem:[%s1 + $0x10] sm:$0xf]
  %v68 = vld [vmem:[%s1 + $0x14] sm:$0xf]
  %v69 = vld [vmem:[%s1 + $0x18] sm:$0xf]
  %v70 = vld [vmem:[%s1 + $0x1c] sm:$0xf]
  %v71 = vld [vmem:[%s1 + $0x20] sm:$0xf]
  %v72 = vld [vmem:[%s1 + $0x24] sm:$0xf]
  %v73 = vld [vmem:[%s1 + $0x28] sm:$0xf]
  %v74 = vld [vmem:[%s1 + $0x2c] sm:$0xf]
  %v75 = vld [vmem:[%s1 + $0x30] sm:$0xf]
  %v76 = vld [vmem:[%s1 + $0x34] sm:$0xf]
  %v77 = vld [vmem:[%s1 + $0x38] sm:$0xf]
  %v78 = vld [vmem:[%s1 + $0x3c] sm:$0xf]
  %v79 = vld [vmem:[%s1 + $0x40] sm:$0xf]
  %v80 = vld [vmem:[%s1 + $0x44] sm:$0xf]
  %v81 = vld [vmem:[%s1 + $0x48] sm:$0xf]
  %v82 = vld [vmem:[%s1 + $0x4c] sm:$0xf]
  %v83 = vld [vmem:[%s1 + $0x50] sm:$0xf]
  %v84 = vld [vmem:[%s1 + $0x54] sm:$0xf]
  %v85 = vld [vmem:[%s1 + $0x58] sm:$0xf]
  %v86 = vld [vmem:[%s1 + $0x5c] sm:$0xf]
  %v87 = vld [vmem:[%s1 + $0x60] sm:$0xf]
  %v88 = vld [vmem:[%s1 + $0x64] sm:$0xf]
  %v89 = vld [vmem:[%s1 + $0x68] sm:$0xf]
  %v90 = vld [vmem:[%s1 + $0x6c] sm:$0xf]
  %v91 = vld [vmem:[%s1 + $0x70] sm:$0xf]
  %v92 = vld [vmem:[%s1 + $0x74] sm:$0xf]
  %v93 = vld [vmem:[%s1 + $0x78] sm:$0xf]
  %v94 = vld [vmem:[%s1 + $0x7c] sm:$0xf]
  %v95 = vld [vmem:[%s1 + $0x80] sm:$0xf]
  %v96 = vld [vmem:[%s1 + $0x84] sm:$0xf]
  %v97 = vld [vmem:[%s1 + $0x88] sm:$0xf]
  %v98 = vld [vmem:[%s1 + $0x8c] sm:$0xf]
  %v99 = vld [vmem:[%s1 + $0x90] sm:$0xf]
  %v100 = vld [vmem:[%s1 + $0x94] sm:$0xf]
  %v101 = vld [vmem:[%s1 + $0x98] sm:$0xf]
  %v102 = vld [vmem:[%s1 + $0x9c] sm:$0xf]
  %v103 = vld [vmem:[%s1 + $0xa0] sm:$0xf]
  %v104 = vld [vmem:[%s1 + $0xa4] sm:$0xf]
  %v105 = vld [vmem:[%s1 + $0xa8] sm:$0xf]
  %v106 = vld [vmem:[%s1 + $0xac] sm:$0xf]
  %v107 = vld [vmem:[%s1 + $0xb0] sm:$0xf]
  %v108 = vld [vmem:[%s1 + $0xb4] sm:$0xf]
  %v109 = vld [vmem:[%s1 + $0xb8] sm:$0xf]
  %v110 = vld [vmem:[%s1 + $0xbc] sm:$0xf]
  %v111 = vld [vmem:[%s1 + $0xc0] sm:$0xf]
  %v112 = vld [vmem:[%s1 + $0xc4] sm:$0xf]
  %v113 = vld [vmem:[%s1 + $0xc8] sm:$0xf]
  %v114 = vld [vmem:[%s1 + $0xcc] sm:$0xf]
  %v115 = vld [vmem:[%s1 + $0xd0] sm:$0xf]
  %v116 = vld [vmem:[%s1 + $0xd4] sm:$0xf]
  %v117 = vld [vmem:[%s1 + $0xd8] sm:$0xf]
  %v118 = vld [vmem:[%s1 + $0xdc] sm:$0xf]
  %v119 = vld [vmem:[%s1 + $0xe0] sm:$0xf]
  %v120 = vld [vmem:[%s1 + $0xe4] sm:$0xf]
  %v121 = vld [vmem:[%s1 + $0xe8] sm:$0xf]
  %v122 = vld [vmem:[%s1 + $0xec] sm:$0xf]
  %v123 = vld [vmem:[%s1 + $0xf0] sm:$0xf]
  %v124 = vld [vmem:[%s1 + $0xf4] sm:$0xf]
  %v125 = vld [vmem:[%s1 + $0xf8] sm:$0xf]
  %v126 = vld [vmem:[%s1 + $0xfc] sm:$0xf]
  %v127 = vld [vmem:[%s1 + $0x100] sm:$0xf]
  %v128 = vld [vmem:[%s1 + $0x104] sm:$0xf]
  %v129 = vld [vmem:[%s1 + $0x108] sm:$0xf]
  %v130 = vld [vmem:[%s1 + $0x10c] sm:$0xf]
  %v131 = vld [vmem:[%s1 + $0x110] sm:$0xf]
  %v132 = vld [vmem:[%s1 + $0x114] sm:$0xf]
  %v133 = vld [vmem:[%s1 + $0x118] sm:$0xf]
  %v134 = vld [vmem:[%s1 + $0x11c] sm:$0xf]
  %v180 = vunpack.c.l.b16 %v18
  %v181 = vunpack.c.h.b16 %v18
  %v182 = vunpack.c.l.b16 %v19
  %v183 = vunpack.c.h.b16 %v19
  %v184 = vunpack.c.l.b16 %v20
  %v185 = vunpack.c.l.b16 %v21
  %v186 = vunpack.c.h.b16 %v21
  %v187 = vunpack.c.l.b16 %v22
  %v188 = vunpack.c.h.b16 %v22
  %v189 = vunpack.c.l.b16 %v23
  %v190 = vunpack.c.l.b16 %v24
  %v191 = vunpack.c.h.b16 %v24
  %v192 = vunpack.c.l.b16 %v25
  %v193 = vunpack.c.h.b16 %v25
  %v194 = vunpack.c.l.b16 %v26
  %v195 = vunpack.c.l.b16 %v27
  %v196 = vunpack.c.h.b16 %v27
  %v197 = vunpack.c.l.b16 %v28
  %v198 = vunpack.c.h.b16 %v28
  %v199 = vunpack.c.l.b16 %v29
  %v200 = vunpack.c.l.b16 %v30
  %v201 = vunpack.c.h.b16 %v30
  %v202 = vunpack.c.l.b16 %v31
  %v203 = vunpack.c.h.b16 %v31
  %v204 = vunpack.c.l.b16 %v32
  %v205 = vunpack.c.l.b16 %v33
  %v206 = vunpack.c.h.b16 %v33
  %v207 = vunpack.c.l.b16 %v34
  %v208 = vunpack.c.h.b16 %v34
  %v209 = vunpack.c.l.b16 %v35
  %v210 = vunpack.c.l.b16 %v36
  %v211 = vunpack.c.h.b16 %v36
  %v212 = vunpack.c.l.b16 %v37
  %v213 = vunpack.c.h.b16 %v37
  %v214 = vunpack.c.l.b16 %v38
  %v215 = vunpack.c.l.b16 %v39
  %v216 = vunpack.c.h.b16 %v39
  %v217 = vunpack.c.l.b16 %v40
  %v218 = vunpack.c.h.b16 %v40
  %v219 = vunpack.c.l.b16 %v41
  %v220 = vunpack.c.l.b16 %v42
  %v221 = vunpack.c.h.b16 %v42
  %v222 = vunpack.c.l.b16 %v43
  %v223 = vunpack.c.h.b16 %v43
  %v224 = vunpack.c.l.b16 %v44
  %v225 = vunpack.c.l.b16 %v45
  %v226 = vunpack.c.h.b16 %v45
  %v227 = vunpack.c.l.b16 %v46
  %v228 = vunpack.c.h.b16 %v46
  %v229 = vunpack.c.l.b16 %v47
  %v230 = vunpack.c.l.b16 %v48
  %v231 = vunpack.c.h.b16 %v48
  %v232 = vunpack.c.l.b16 %v49
  %v233 = vunpack.c.h.b16 %v49
  %v234 = vunpack.c.l.b16 %v50
  %v235 = vunpack.c.l.b16 %v51
  %v236 = vunpack.c.h.b16 %v51
  %v237 = vunpack.c.l.b16 %v52
  %v238 = vunpack.c.h.b16 %v52
  %v239 = vunpack.c.l.b16 %v53
  %v240 = vunpack.c.l.b16 %v54
  %v241 = vunpack.c.h.b16 %v54
  %v242 = vunpack.c.l.b16 %v55
  %v243 = vunpack.c.h.b16 %v55
  %v244 = vunpack.c.l.b16 %v56
  %v245 = vunpack.c.l.b16 %v57
  %v246 = vunpack.c.h.b16 %v57
  %v247 = vunpack.c.l.b16 %v58
  %v248 = vunpack.c.h.b16 %v58
  %v249 = vunpack.c.l.b16 %v59
  %v250 = vunpack.c.l.b16 %v60
  %v251 = vunpack.c.h.b16 %v60
  %v252 = vunpack.c.l.b16 %v61
  %v253 = vunpack.c.h.b16 %v61
  %v254 = vunpack.c.l.b16 %v62
  %v255 = vpack.c.b16 %v185, %v180
  %v256 = vpack.c.b16 %v186, %v181
  %v257 = vpack.c.b16 %v187, %v182
  %v258 = vpack.c.b16 %v188, %v183
  %v259 = vpack.c.b16 %v189, %v184
  %v260 = vpack.c.b16 %v195, %v190
  %v261 = vpack.c.b16 %v196, %v191
  %v262 = vpack.c.b16 %v197, %v192
  %v263 = vpack.c.b16 %v198, %v193
  %v264 = vpack.c.b16 %v199, %v194
  %v265 = vpack.c.b16 %v205, %v200
  %v266 = vpack.c.b16 %v206, %v201
  %v267 = vpack.c.b16 %v207, %v202
  %v268 = vpack.c.b16 %v208, %v203
  %v269 = vpack.c.b16 %v209, %v204
  %v270 = vpack.c.b16 %v215, %v210
  %v271 = vpack.c.b16 %v216, %v211
  %v272 = vpack.c.b16 %v217, %v212
  %v273 = vpack.c.b16 %v218, %v213
  %v274 = vpack.c.b16 %v219, %v214
  %v275 = vpack.c.b16 %v225, %v220
  %v276 = vpack.c.b16 %v226, %v221
  %v277 = vpack.c.b16 %v227, %v222
  %v278 = vpack.c.b16 %v228, %v223
  %v279 = vpack.c.b16 %v229, %v224
  %v280 = vpack.c.b16 %v235, %v230
  %v281 = vpack.c.b16 %v236, %v231
  %v282 = vpack.c.b16 %v237, %v232
  %v283 = vpack.c.b16 %v238, %v233
  %v284 = vpack.c.b16 %v239, %v234
  %v285 = vpack.c.b16 %v245, %v240
  %v286 = vpack.c.b16 %v246, %v241
  %v287 = vpack.c.b16 %v247, %v242
  %v288 = vpack.c.b16 %v248, %v243
  %v289 = vpack.c.b16 %v249, %v244
  %v290 = vpack.c.b16 %v250, %v250
  %v291 = vpack.c.b16 %v251, %v251
  %v292 = vpack.c.b16 %v252, %v252
  %v293 = vpack.c.b16 %v253, %v253
  %v294 = vpack.c.b16 %v254, %v254
  %v399 = vunpack.c.l.b16 %v63
  %v400 = vunpack.c.l.b16 %v64
  %v401 = vunpack.c.l.b16 %v65
  %v402 = vunpack.c.l.b16 %v66
  %v403 = vunpack.c.l.b16 %v67
  %v404 = vunpack.c.l.b16 %v68
  %v405 = vunpack.c.l.b16 %v69
  %v406 = vunpack.c.l.b16 %v70
  %v407 = vunpack.c.l.b16 %v71
  %v408 = vunpack.c.l.b16 %v72
  %v409 = vunpack.c.l.b16 %v73
  %v410 = vunpack.c.l.b16 %v74
  %v411 = vunpack.c.l.b16 %v75
  %v412 = vunpack.c.l.b16 %v76
  %v413 = vunpack.c.l.b16 %v77
  %v414 = vunpack.c.l.b16 %v78
  %v415 = vunpack.c.l.b16 %v79
  %v416 = vunpack.c.l.b16 %v80
  %v417 = vunpack.c.l.b16 %v81
  %v418 = vunpack.c.l.b16 %v82
  %v419 = vunpack.c.l.b16 %v83
  %v420 = vunpack.c.l.b16 %v84
  %v421 = vunpack.c.l.b16 %v85
  %v422 = vunpack.c.l.b16 %v86
  %v423 = vunpack.c.l.b16 %v87
  %v424 = vunpack.c.l.b16 %v88
  %v425 = vunpack.c.l.b16 %v89
  %v426 = vunpack.c.l.b16 %v90
  %v427 = vunpack.c.l.b16 %v91
  %v428 = vunpack.c.l.b16 %v92
  %v429 = vunpack.c.l.b16 %v93
  %v430 = vunpack.c.l.b16 %v94
  %v431 = vunpack.c.l.b16 %v95
  %v432 = vunpack.c.l.b16 %v96
  %v433 = vunpack.c.l.b16 %v97
  %v434 = vunpack.c.l.b16 %v98
  %v435 = vunpack.c.l.b16 %v99
  %v436 = vunpack.c.l.b16 %v100
  %v437 = vunpack.c.l.b16 %v101
  %v438 = vunpack.c.l.b16 %v102
  %v439 = vunpack.c.l.b16 %v103
  %v440 = vunpack.c.l.b16 %v104
  %v441 = vunpack.c.l.b16 %v105
  %v442 = vunpack.c.l.b16 %v106
  %v443 = vunpack.c.l.b16 %v107
  %v444 = vunpack.c.l.b16 %v108
  %v445 = vunpack.c.l.b16 %v109
  %v446 = vunpack.c.l.b16 %v110
  %v447 = vunpack.c.l.b16 %v111
  %v448 = vunpack.c.l.b16 %v112
  %v449 = vunpack.c.l.b16 %v113
  %v450 = vunpack.c.l.b16 %v114
  %v451 = vunpack.c.l.b16 %v115
  %v452 = vunpack.c.l.b16 %v116
  %v453 = vunpack.c.l.b16 %v117
  %v454 = vunpack.c.l.b16 %v118
  %v455 = vunpack.c.l.b16 %v119
  %v456 = vunpack.c.l.b16 %v120
  %v457 = vunpack.c.l.b16 %v121
  %v458 = vunpack.c.l.b16 %v122
  %v459 = vunpack.c.l.b16 %v123
  %v460 = vunpack.c.l.b16 %v124
  %v461 = vunpack.c.l.b16 %v125
  %v462 = vunpack.c.l.b16 %v126
  %v463 = vunpack.c.l.b16 %v127
  %v464 = vunpack.c.l.b16 %v128
  %v465 = vunpack.c.l.b16 %v129
  %v466 = vunpack.c.l.b16 %v130
  %v467 = vunpack.c.l.b16 %v131
  %v468 = vunpack.c.l.b16 %v132
  %v469 = vunpack.c.l.b16 %v133
  %v470 = vunpack.c.l.b16 %v134
  %v471 = vpack.c.b16 %v400, %v399
  %v472 = vpack.c.b16 %v402, %v401
  %v473 = vpack.c.b16 %v404, %v403
  %v474 = vpack.c.b16 %v406, %v405
  %v475 = vpack.c.b16 %v408, %v407
  %v476 = vpack.c.b16 %v410, %v409
  %v477 = vpack.c.b16 %v412, %v411
  %v478 = vpack.c.b16 %v414, %v413
  %v479 = vpack.c.b16 %v416, %v415
  %v480 = vpack.c.b16 %v418, %v417
  %v481 = vpack.c.b16 %v420, %v419
  %v482 = vpack.c.b16 %v422, %v421
  %v483 = vpack.c.b16 %v424, %v423
  %v484 = vpack.c.b16 %v426, %v425
  %v485 = vpack.c.b16 %v428, %v427
  %v486 = vpack.c.b16 %v430, %v429
  %v487 = vpack.c.b16 %v432, %v431
  %v488 = vpack.c.b16 %v434, %v433
  %v489 = vpack.c.b16 %v436, %v435
  %v490 = vpack.c.b16 %v438, %v437
  %v491 = vpack.c.b16 %v440, %v439
  %v492 = vpack.c.b16 %v442, %v441
  %v493 = vpack.c.b16 %v444, %v443
  %v494 = vpack.c.b16 %v446, %v445
  %v495 = vpack.c.b16 %v448, %v447
  %v496 = vpack.c.b16 %v450, %v449
  %v497 = vpack.c.b16 %v452, %v451
  %v498 = vpack.c.b16 %v454, %v453
  %v499 = vpack.c.b16 %v456, %v455
  %v500 = vpack.c.b16 %v458, %v457
  %v501 = vpack.c.b16 %v460, %v459
  %v502 = vpack.c.b16 %v462, %v461
  %v503 = vpack.c.b16 %v464, %v463
  %v504 = vpack.c.b16 %v466, %v465
  %v505 = vpack.c.b16 %v468, %v467
  %v506 = vpack.c.b16 %v470, %v469
  %vm543 = vcmask 523264
  %v545 = vsel %vm543, %v259, 0
  %v548 = vsel %vm543, %v264, 0
  %v551 = vsel %vm543, %v269, 0
  %v554 = vsel %vm543, %v274, 0
  %v557 = vsel %vm543, %v279, 0
  %v560 = vsel %vm543, %v284, 0
  %v563 = vsel %vm543, %v289, 0
  %v566 = vsel %vm543, %v294, 0
  %568 = vmatprep.subr.bf16.mxu0 0
  %569 = vmatpush1.bf16.msra.mxu0 %v478
  %570 = vmatprep.subr.bf16.mxu0 0
  %571 = vmatpush1.bf16.msra.mxu0 %v477
  %572 = vmatprep.subr.bf16.mxu0 0
  %573 = vmatpush1.bf16.msra.mxu0 %v476
  %574 = vmatprep.subr.bf16.mxu0 0
  %575 = vmatpush1.bf16.msra.mxu0 %v475
  %576 = vmatprep.subr.bf16.mxu0 0
  %577 = vmatpush1.bf16.msra.mxu0 %v474
  %578 = vmatprep.subr.bf16.mxu0 0
  %579 = vmatpush1.bf16.msra.mxu0 %v473
  %580 = vmatprep.subr.bf16.mxu0 0
  %581 = vmatpush1.bf16.msra.mxu0 %v472
  %582 = vmatprep.subr.bf16.mxu0 0
  %583 = vmatpush1.bf16.msra.mxu0 %v471
  %584 = vmatprep.subr.bf16.mxu0 0
  %585 = vmatpush2.bf16.msra.mxu0 %v486
  %586 = vmatprep.subr.bf16.mxu0 0
  %587 = vmatpush2.bf16.msra.mxu0 %v485
  %588 = vmatprep.subr.bf16.mxu0 0
  %589 = vmatpush2.bf16.msra.mxu0 %v484
  %590 = vmatprep.subr.bf16.mxu0 0
  %591 = vmatpush2.bf16.msra.mxu0 %v483
  %592 = vmatprep.subr.bf16.mxu0 0
  %593 = vmatpush2.bf16.msra.mxu0 %v482
  %594 = vmatprep.subr.bf16.mxu0 0
  %595 = vmatpush2.bf16.msra.mxu0 %v481
  %596 = vmatprep.subr.bf16.mxu0 0
  %597 = vmatpush2.bf16.msra.mxu0 %v480
  %598 = vmatprep.subr.bf16.mxu0 0
  %599 = vmatpush2.bf16.msra.mxu0 %v479
  %600 = vmatprep.mubr.bf16.mxu0 %v256
  %601 = vmatmul.mubr.bf16.gmra.mxu0 %v255
  %v602 = vpop.f32.mrf.mxu0
  %v603 = vadd.f32 0.0, %v602
  %v604 = vpop.f32.mrf.mxu0
  %v605 = vpop.f32.mrf.mxu0
  %v606 = vadd.f32 0.0, %v605
  %v607 = vpop.f32.mrf.mxu0
  %608 = vmatprep.mubr.bf16.mxu0 %v261
  %609 = vmatmul.mubr.bf16.gmra.mxu0 %v260
  %v610 = vpop.f32.mrf.mxu0
  %v611 = vadd.f32 0.0, %v610
  %v612 = vpop.f32.mrf.mxu0
  %v613 = vpop.f32.mrf.mxu0
  %v614 = vadd.f32 0.0, %v613
  %v615 = vpop.f32.mrf.mxu0
  %616 = vmatprep.mubr.bf16.mxu0 %v266
  %617 = vmatmul.mubr.bf16.gmra.mxu0 %v265
  %v618 = vpop.f32.mrf.mxu0
  %v619 = vadd.f32 0.0, %v618
  %v620 = vpop.f32.mrf.mxu0
  %v621 = vpop.f32.mrf.mxu0
  %v622 = vadd.f32 0.0, %v621
  %v623 = vpop.f32.mrf.mxu0
  %624 = vmatprep.mubr.bf16.mxu0 %v271
  %625 = vmatmul.mubr.bf16.gmra.mxu0 %v270
  %v626 = vpop.f32.mrf.mxu0
  %v627 = vadd.f32 0.0, %v626
  %v628 = vpop.f32.mrf.mxu0
  %v629 = vpop.f32.mrf.mxu0
  %v630 = vadd.f32 0.0, %v629
  %v631 = vpop.f32.mrf.mxu0
  %632 = vmatprep.mubr.bf16.mxu0 %v276
  %633 = vmatmul.mubr.bf16.gmra.mxu0 %v275
  %v634 = vpop.f32.mrf.mxu0
  %v635 = vadd.f32 0.0, %v634
  %v636 = vpop.f32.mrf.mxu0
  %v637 = vpop.f32.mrf.mxu0
  %v638 = vadd.f32 0.0, %v637
  %v639 = vpop.f32.mrf.mxu0
  %640 = vmatprep.mubr.bf16.mxu0 %v281
  %641 = vmatmul.mubr.bf16.gmra.mxu0 %v280
  %v642 = vpop.f32.mrf.mxu0
  %v643 = vadd.f32 0.0, %v642
  %v644 = vpop.f32.mrf.mxu0
  %v645 = vpop.f32.mrf.mxu0
  %v646 = vadd.f32 0.0, %v645
  %v647 = vpop.f32.mrf.mxu0
  %648 = vmatprep.mubr.bf16.mxu0 %v286
  %649 = vmatmul.mubr.bf16.gmra.mxu0 %v285
  %v650 = vpop.f32.mrf.mxu0
  %v651 = vadd.f32 0.0, %v650
  %v652 = vpop.f32.mrf.mxu0
  %v653 = vpop.f32.mrf.mxu0
  %v654 = vadd.f32 0.0, %v653
  %v655 = vpop.f32.mrf.mxu0
  %656 = vmatprep.mubr.bf16.mxu0 %v291
  %657 = vmatmul.mubr.bf16.gmra.mxu0 %v290
  %v658 = vpop.f32.mrf.mxu0
  %v659 = vadd.f32 0.0, %v658
  %v660 = vpop.f32.mrf.mxu0
  %v661 = vpop.f32.mrf.mxu0
  %v662 = vpop.f32.mrf.mxu0
  %663 = vdwg.mxu0
  %664 = vmatprep.subr.bf16.mxu0 0
  %665 = vmatpush1.bf16.msra.mxu0 %v494
  %666 = vmatprep.subr.bf16.mxu0 0
  %667 = vmatpush1.bf16.msra.mxu0 %v493
  %668 = vmatprep.subr.bf16.mxu0 0
  %669 = vmatpush1.bf16.msra.mxu0 %v492
  %670 = vmatprep.subr.bf16.mxu0 0
  %671 = vmatpush1.bf16.msra.mxu0 %v491
  %672 = vmatprep.subr.bf16.mxu0 0
  %673 = vmatpush1.bf16.msra.mxu0 %v490
  %674 = vmatprep.subr.bf16.mxu0 0
  %675 = vmatpush1.bf16.msra.mxu0 %v489
  %676 = vmatprep.subr.bf16.mxu0 0
  %677 = vmatpush1.bf16.msra.mxu0 %v488
  %678 = vmatprep.subr.bf16.mxu0 0
  %679 = vmatpush1.bf16.msra.mxu0 %v487
  %680 = vmatprep.subr.bf16.mxu0 0
  %681 = vmatpush2.bf16.msra.mxu0 %v502
  %682 = vmatprep.subr.bf16.mxu0 0
  %683 = vmatpush2.bf16.msra.mxu0 %v501
  %684 = vmatprep.subr.bf16.mxu0 0
  %685 = vmatpush2.bf16.msra.mxu0 %v500
  %686 = vmatprep.subr.bf16.mxu0 0
  %687 = vmatpush2.bf16.msra.mxu0 %v499
  %688 = vmatprep.subr.bf16.mxu0 0
  %689 = vmatpush2.bf16.msra.mxu0 %v498
  %690 = vmatprep.subr.bf16.mxu0 0
  %691 = vmatpush2.bf16.msra.mxu0 %v497
  %692 = vmatprep.subr.bf16.mxu0 0
  %693 = vmatpush2.bf16.msra.mxu0 %v496
  %694 = vmatprep.subr.bf16.mxu0 0
  %695 = vmatpush2.bf16.msra.mxu0 %v495
  %696 = vmatprep.mubr.bf16.mxu0 %v258
  %697 = vmatmul.mubr.bf16.gmra.mxu0 %v257
  %v698 = vpop.f32.mrf.mxu0
  %v699 = vadd.f32 %v603, %v698
  %v700 = vpop.f32.mrf.mxu0
  %v701 = vpop.f32.mrf.mxu0
  %v702 = vadd.f32 %v606, %v701
  %v703 = vpop.f32.mrf.mxu0
  %704 = vmatprep.mubr.bf16.mxu0 %v263
  %705 = vmatmul.mubr.bf16.gmra.mxu0 %v262
  %v706 = vpop.f32.mrf.mxu0
  %v707 = vadd.f32 %v611, %v706
  %v708 = vpop.f32.mrf.mxu0
  %v709 = vpop.f32.mrf.mxu0
  %v710 = vadd.f32 %v614, %v709
  %v711 = vpop.f32.mrf.mxu0
  %712 = vmatprep.mubr.bf16.mxu0 %v268
  %713 = vmatmul.mubr.bf16.gmra.mxu0 %v267
  %v714 = vpop.f32.mrf.mxu0
  %v715 = vadd.f32 %v619, %v714
  %v716 = vpop.f32.mrf.mxu0
  %v717 = vpop.f32.mrf.mxu0
  %v718 = vadd.f32 %v622, %v717
  %v719 = vpop.f32.mrf.mxu0
  %720 = vmatprep.mubr.bf16.mxu0 %v273
  %721 = vmatmul.mubr.bf16.gmra.mxu0 %v272
  %v722 = vpop.f32.mrf.mxu0
  %v723 = vadd.f32 %v627, %v722
  %v724 = vpop.f32.mrf.mxu0
  %v725 = vpop.f32.mrf.mxu0
  %v726 = vadd.f32 %v630, %v725
  %v727 = vpop.f32.mrf.mxu0
  %728 = vmatprep.mubr.bf16.mxu0 %v278
  %729 = vmatmul.mubr.bf16.gmra.mxu0 %v277
  %v730 = vpop.f32.mrf.mxu0
  %v731 = vadd.f32 %v635, %v730
  %v732 = vpop.f32.mrf.mxu0
  %v733 = vpop.f32.mrf.mxu0
  %v734 = vadd.f32 %v638, %v733
  %v735 = vpop.f32.mrf.mxu0
  %736 = vmatprep.mubr.bf16.mxu0 %v283
  %737 = vmatmul.mubr.bf16.gmra.mxu0 %v282
  %v738 = vpop.f32.mrf.mxu0
  %v739 = vadd.f32 %v643, %v738
  %v740 = vpop.f32.mrf.mxu0
  %v741 = vpop.f32.mrf.mxu0
  %v742 = vadd.f32 %v646, %v741
  %v743 = vpop.f32.mrf.mxu0
  %744 = vmatprep.mubr.bf16.mxu0 %v288
  %745 = vmatmul.mubr.bf16.gmra.mxu0 %v287
  %v746 = vpop.f32.mrf.mxu0
  %v747 = vadd.f32 %v651, %v746
  %v748 = vpop.f32.mrf.mxu0
  %v749 = vpop.f32.mrf.mxu0
  %v750 = vadd.f32 %v654, %v749
  %v751 = vpop.f32.mrf.mxu0
  %752 = vmatprep.mubr.bf16.mxu0 %v293
  %753 = vmatmul.mubr.bf16.gmra.mxu0 %v292
  %v754 = vpop.f32.mrf.mxu0
  %v755 = vadd.f32 %v659, %v754
  %v756 = vpop.f32.mrf.mxu0
  %v757 = vpop.f32.mrf.mxu0
  %v758 = vpop.f32.mrf.mxu0
  %759 = vdwg.mxu0
  %760 = vmatprep.subr.bf16.mxu0 0
  %761 = vmatpush1.bf16.msra.mxu0 0
  %762 = vmatprep.subr.bf16.mxu0 0
  %763 = vmatpush1.bf16.msra.mxu0 0
  %764 = vmatprep.subr.bf16.mxu0 0
  %765 = vmatpush1.bf16.msra.mxu0 0
  %766 = vmatprep.subr.bf16.mxu0 0
  %767 = vmatpush1.bf16.msra.mxu0 0
  %768 = vmatprep.subr.bf16.mxu0 0
  %769 = vmatpush1.bf16.msra.mxu0 %v506
  %770 = vmatprep.subr.bf16.mxu0 0
  %771 = vmatpush1.bf16.msra.mxu0 %v505
  %772 = vmatprep.subr.bf16.mxu0 0
  %773 = vmatpush1.bf16.msra.mxu0 %v504
  %774 = vmatprep.subr.bf16.mxu0 0
  %775 = vmatpush1.bf16.msra.mxu0 %v503
  %776 = vmatprep.subr.bf16.mxu0 0
  %777 = vmatpush2.bf16.msra.mxu0 0
  %778 = vmatprep.subr.bf16.mxu0 0
  %779 = vmatpush2.bf16.msra.mxu0 0
  %780 = vmatprep.subr.bf16.mxu0 0
  %781 = vmatpush2.bf16.msra.mxu0 0
  %782 = vmatprep.subr.bf16.mxu0 0
  %783 = vmatpush2.bf16.msra.mxu0 0
  %784 = vmatprep.subr.bf16.mxu0 0
  %785 = vmatpush2.bf16.msra.mxu0 0
  %786 = vmatprep.subr.bf16.mxu0 0
  %787 = vmatpush2.bf16.msra.mxu0 0
  %788 = vmatprep.subr.bf16.mxu0 0
  %789 = vmatpush2.bf16.msra.mxu0 0
  %790 = vmatprep.subr.bf16.mxu0 0
  %791 = vmatpush2.bf16.msra.mxu0 0
  %792 = vmatprep.mubr.bf16.mxu0 0
  %793 = vmatmul.mubr.bf16.gmra.mxu0 %v545
  %v794 = vpop.f32.mrf.mxu0
  %v795 = vadd.f32 %v699, %v794
  %v796 = vpop.f32.mrf.mxu0
  %v797 = vpop.f32.mrf.mxu0
  %v798 = vadd.f32 %v702, %v797
  %v799 = vpop.f32.mrf.mxu0
  %800 = vmatprep.mubr.bf16.mxu0 0
  %801 = vmatmul.mubr.bf16.gmra.mxu0 %v548
  %v802 = vpop.f32.mrf.mxu0
  %v803 = vadd.f32 %v707, %v802
  %v804 = vpop.f32.mrf.mxu0
  %v805 = vpop.f32.mrf.mxu0
  %v806 = vadd.f32 %v710, %v805
  %v807 = vpop.f32.mrf.mxu0
  %808 = vmatprep.mubr.bf16.mxu0 0
  %809 = vmatmul.mubr.bf16.gmra.mxu0 %v551
  %v810 = vpop.f32.mrf.mxu0
  %v811 = vadd.f32 %v715, %v810
  %v812 = vpop.f32.mrf.mxu0
  %v813 = vpop.f32.mrf.mxu0
  %v814 = vadd.f32 %v718, %v813
  %v815 = vpop.f32.mrf.mxu0
  %816 = vmatprep.mubr.bf16.mxu0 0
  %817 = vmatmul.mubr.bf16.gmra.mxu0 %v554
  %v818 = vpop.f32.mrf.mxu0
  %v819 = vadd.f32 %v723, %v818
  %v820 = vpop.f32.mrf.mxu0
  %v821 = vpop.f32.mrf.mxu0
  %v822 = vadd.f32 %v726, %v821
  %v823 = vpop.f32.mrf.mxu0
  %824 = vmatprep.mubr.bf16.mxu0 0
  %825 = vmatmul.mubr.bf16.gmra.mxu0 %v557
  %v826 = vpop.f32.mrf.mxu0
  %v827 = vadd.f32 %v731, %v826
  %v828 = vpop.f32.mrf.mxu0
  %v829 = vpop.f32.mrf.mxu0
  %v830 = vadd.f32 %v734, %v829
  %v831 = vpop.f32.mrf.mxu0
  %832 = vmatprep.mubr.bf16.mxu0 0
  %833 = vmatmul.mubr.bf16.gmra.mxu0 %v560
  %v834 = vpop.f32.mrf.mxu0
  %v835 = vadd.f32 %v739, %v834
  %v836 = vpop.f32.mrf.mxu0
  %v837 = vpop.f32.mrf.mxu0
  %v838 = vadd.f32 %v742, %v837
  %v839 = vpop.f32.mrf.mxu0
  %840 = vmatprep.mubr.bf16.mxu0 0
  %841 = vmatmul.mubr.bf16.gmra.mxu0 %v563
  %v842 = vpop.f32.mrf.mxu0
  %v843 = vadd.f32 %v747, %v842
  %v844 = vpop.f32.mrf.mxu0
  %v845 = vpop.f32.mrf.mxu0
  %v846 = vadd.f32 %v750, %v845
  %v847 = vpop.f32.mrf.mxu0
  %848 = vmatprep.mubr.bf16.mxu0 0
  %849 = vmatmul.mubr.bf16.gmra.mxu0 %v566
  %v850 = vpop.f32.mrf.mxu0
  %v851 = vadd.f32 %v755, %v850
  %v852 = vpop.f32.mrf.mxu0
  %v853 = vpop.f32.mrf.mxu0
  %v854 = vpop.f32.mrf.mxu0
  %855 = vdwg.mxu0
  %v856 = vld [vmem:[%s2] sm:$0x1]
  %v858 = vlaneseq
  %v859 = vshrl.u32 %v858, 7
  %v860 = vsub.s32 0, %v859
  %v861 = vrot.slane %v856, %v860
  %v863 = vmul.f32 %v795, %v861
  %v864 = vmul.f32 %v798, %v861
  %v865 = vmul.f32 %v803, %v861
  %v866 = vmul.f32 %v806, %v861
  %v867 = vmul.f32 %v811, %v861
  %v868 = vmul.f32 %v814, %v861
  %v869 = vmul.f32 %v819, %v861
  %v870 = vmul.f32 %v822, %v861
  %v871 = vmul.f32 %v827, %v861
  %v872 = vmul.f32 %v830, %v861
  %v873 = vmul.f32 %v835, %v861
  %v874 = vmul.f32 %v838, %v861
  %v875 = vmul.f32 %v843, %v861
  %v876 = vmul.f32 %v846, %v861
  %v877 = vmul.f32 %v851, %v861
  %v878 = vld [vmem:[%s3] sm:$0x1]
  %v880 = vlaneseq
  %v881 = vshrl.u32 %v880, 7
  %v882 = vsub.s32 0, %v881
  %v883 = vrot.slane %v878, %v882
  %v885 = vadd.f32 %v863, %v883
  %v886 = vadd.f32 %v864, %v883
  %v887 = vadd.f32 %v865, %v883
  %v888 = vadd.f32 %v866, %v883
  %v889 = vadd.f32 %v867, %v883
  %v890 = vadd.f32 %v868, %v883
  %v891 = vadd.f32 %v869, %v883
  %v892 = vadd.f32 %v870, %v883
  %v893 = vadd.f32 %v871, %v883
  %v894 = vadd.f32 %v872, %v883
  %v895 = vadd.f32 %v873, %v883
  %v896 = vadd.f32 %v874, %v883
  %v897 = vadd.f32 %v875, %v883
  %v898 = vadd.f32 %v876, %v883
  %v899 = vadd.f32 %v877, %v883
  %vm902 = vcmask 1043456
  %v903 = vrot.slane %v886, 4
  %v904 = vrot.slane %v887, 4
  %v905 = vsel %vm902, %v903, %v904
  %v908 = vmax.f32 %v885, %v905
  %v909 = vmax.f32 %v886, %v904
  %v910 = vmax.f32 %v908, %v888
  %v911 = vmax.f32 %v909, %v889
  %v914 = vrot.slane %v889, 4
  %v915 = vrot.slane %v890, 4
  %v916 = vsel %vm902, %v914, %v915
  %v919 = vmax.f32 %v910, %v916
  %v920 = vmax.f32 %v911, %v915
  %v921 = vmax.f32 %v919, %v891
  %v922 = vmax.f32 %v920, %v892
  %v925 = vrot.slane %v892, 4
  %v926 = vrot.slane %v893, 4
  %v927 = vsel %vm902, %v925, %v926
  %v930 = vmax.f32 %v921, %v927
  %v931 = vmax.f32 %v922, %v926
  %v932 = vmax.f32 %v930, %v894
  %v933 = vmax.f32 %v931, %v895
  %v936 = vrot.slane %v895, 4
  %v937 = vrot.slane %v896, 4
  %v938 = vsel %vm902, %v936, %v937
  %v941 = vmax.f32 %v932, %v938
  %v942 = vmax.f32 %v933, %v937
  %v943 = vmax.f32 %v941, %v897
  %v944 = vmax.f32 %v942, %v898
  %v947 = vrot.slane %v898, 4
  %v948 = vrot.slane %v899, 4
  %v949 = vsel %vm902, %v947, %v948
  %v952 = vmax.f32 %v943, %v949
  %v953 = vmax.f32 %v944, %v948
  %v954 = vmul.f32 %v952, 0.5
  %v955 = vmul.f32 %v953, 0.5
  %v956 = vtanh.pop %v954
  %v957 = vtanh.pop %v955
  %v958 = vmul.f32 %v952, 1.442695
  %v959 = vpow.pop %v958
  %v960 = vmul.f32 %v953, 1.442695
  %v961 = vpow.pop %v960
  %v962 = vadd.f32 %v959, 1.0
  %v963 = vadd.f32 %v961, 1.0
  %v964 = vmul.f32 %v956, %v962
  %v965 = vmul.f32 %v957, %v963
  %vm966 = vcmp.gt.f32.partialorder %v952, 0.0
  %vm967 = vcmp.gt.f32.partialorder %v953, 0.0
  %v968 = vsel %vm966, %v952, %v964
  %v969 = vsel %vm967, %v953, %v965
  %970 = vst.msk [vmem:[%s4] sm:$0xff] %vm543, %v968
  %vm971 = vcmask 519168
  %972 = vst.msk [vmem:[%s4 + $0x8] sm:$0xf] %vm971, %v969
  // Predicated region
  $region18: #{forward.8} parent=0 // pred_check
    _
  $region19: #{forward.8} parent=0 // pred_check_branch
    %974 = sbr.rel (0) target = $region21
  $region20: #{forward.8} parent=0 // pred_region
    _
  $region21: #{forward.8} parent=0 // pred_fallthru
    _
  // Predicated region
  $region22: #{forward.8} parent=0 // pred_check
    _
  $region23: #{forward.8} parent=0 // pred_check_branch
    %976 = sbr.rel (0) target = $region25
  $region24: #{forward.8} parent=0 // pred_region
    _
  $region25: #{forward.8} parent=0 // pred_fallthru
    _

// kernel: forward.5
$region0: #{forward.5}
  #allocation0 [shape = 'u32[]', space=smem, size = 0x4, offset = 0x4, fixed_abs, tag = 'smem constant byte address 0x4 - core index']
  #allocation1 [shape = 'u32[144,128]{1,0:T(1,128)}', space=vmem, size = 0x12000, scoped, tag = 'internal scratch']
  %s0 = inlined_call_operand.vmem [shape: f32[32,9], index: 0, kind: input, shape index: {}]
  %s1 = inlined_call_operand.vmem [shape: f32[64,288], index: 1, kind: input, shape index: {}]
  %s2 = inlined_call_operand.vmem [shape: f32[64,576], index: 2, kind: input, shape index: {}]
  %s3 = inlined_call_operand.vmem [shape: f32[128,384], index: 3, kind: input, shape index: {}]
  %s4 = inlined_call_operand.vmem [shape: f32[8,128], index: 4, kind: input, shape index: {}]
  %s5 = inlined_call_operand.hbm [shape: f32[1,1], index: 5, kind: output, shape index: {}]
  %s6 = sld [smem:[#allocation0]]
  $region30: #{forward.5} parent=0
    _
  %s8 = ssub.s32 1, %s6
  %s9 = scalar_select 0, %s8, %s6
  $region1: #{forward.5} parent=0
    #allocation2 [shape = 'u8[512]{0}', space=smem, size = 0x200, scoped, tag = 'output window, operand 0, single buffered']
    #allocation3 [shape = 's32[1]{0}', space=sflag, size = 0x4, scoped, tag = 'scoped memory for forward.5']
    %10 = vsyncpa [#allocation3], 0
    // Predicated region
    $region2: #{forward.5} parent=1 // pred_check
      _
    $region3: #{forward.5} parent=1 // pred_check_branch
      %12 = sbr.rel (0) target = $region5
    $region4: #{forward.5} parent=1 // pred_region
      _
    $region5: #{forward.5} parent=1 // pred_fallthru
      _
    // Predicated region
    $region6: #{forward.5} parent=1 // pred_check
      _
    $region7: #{forward.5} parent=1 // pred_check_branch
      %14 = sbr.rel (0) target = $region9
    $region8: #{forward.5} parent=1 // pred_region
      _
    $region9: #{forward.5} parent=1 // pred_fallthru
      _
    // Predicated region
    $region10: #{forward.5} parent=1 // pred_check
      _
    $region11: #{forward.5} parent=1 // pred_check_branch
      %16 = sbr.rel (0) target = $region13
    $region12: #{forward.5} parent=1 // pred_region
      _
    $region13: #{forward.5} parent=1 // pred_fallthru
      _
    // Predicated region
    $region14: #{forward.5} parent=1 // pred_check
      _
    $region15: #{forward.5} parent=1 // pred_check_branch
      %18 = sbr.rel (0) target = $region17
    $region16: #{forward.5} parent=1 // pred_region
      _
    $region17: #{forward.5} parent=1 // pred_fallthru
      _
    // Predicated region
    $region18: #{forward.5} parent=1 // pred_check
      _
    $region19: #{forward.5} parent=1 // pred_check_branch
      %20 = sbr.rel (0) target = $region21
    $region20: #{forward.5} parent=1 // pred_region
      _
    $region21: #{forward.5} parent=1 // pred_fallthru
      _
    %v21 = vld [vmem:[%s0] sm:$0xff]
    %v22 = vld [vmem:[%s0 + $0x8] sm:$0xff]
    %v23 = vld [vmem:[%s0 + $0x10] sm:$0xff]
    %v24 = vld [vmem:[%s0 + $0x18] sm:$0xff]
    %v25 = vmul.f32 %v21, %v21
    %v26 = vmul.f32 %v22, %v22
    %v27 = vmul.f32 %v23, %v23
    %v28 = vmul.f32 %v24, %v24
    %vm29 = vcmask 72704
    %v30 = vsel %vm29, %v25, 0.0
    %31 = vadd.xlane.f32.xlu0 %v30
    %v32 = vpop.xlane.xlu0 %31
    %v33 = vsel %vm29, %v26, 0.0
    %34 = vadd.xlane.f32.xlu0 %v33
    %v35 = vpop.xlane.xlu0 %34
    %v36 = vsel %vm29, %v27, 0.0
    %37 = vadd.xlane.f32.xlu0 %v36
    %v38 = vpop.xlane.xlu0 %37
    %v39 = vsel %vm29, %v28, 0.0
    %40 = vadd.xlane.f32.xlu0 %v39
    %v41 = vpop.xlane.xlu0 %40
    %v42 = vrsqrt.pop %v32
    %v43 = vmul.f32 %v32, %v42
    %vm44 = vcmp.eq.f32.partialorder %v32, inf
    %v45 = vsel %vm44, %v32, %v43
    %vm46 = vcmp.eq.f32.partialorder %v32, 0.0
    %v47 = vand.u32 %v32, 2147483648
    %v48 = vsel %vm46, %v47, %v45
    %v49 = vrsqrt.pop %v35
    %v50 = vmul.f32 %v35, %v49
    %vm51 = vcmp.eq.f32.partialorder %v35, inf
    %v52 = vsel %vm51, %v35, %v50
    %vm53 = vcmp.eq.f32.partialorder %v35, 0.0
    %v54 = vand.u32 %v35, 2147483648
    %v55 = vsel %vm53, %v54, %v52
    %v56 = vrsqrt.pop %v38
    %v57 = vmul.f32 %v38, %v56
    %vm58 = vcmp.eq.f32.partialorder %v38, inf
    %v59 = vsel %vm58, %v38, %v57
    %vm60 = vcmp.eq.f32.partialorder %v38, 0.0
    %v61 = vand.u32 %v38, 2147483648
    %v62 = vsel %vm60, %v61, %v59
    %v63 = vrsqrt.pop %v41
    %v64 = vmul.f32 %v41, %v63
    %vm65 = vcmp.eq.f32.partialorder %v41, inf
    %v66 = vsel %vm65, %v41, %v64
    %vm67 = vcmp.eq.f32.partialorder %v41, 0.0
    %v68 = vand.u32 %v41, 2147483648
    %v69 = vsel %vm67, %v68, %v66
    %v70 = vadd.f32 %v48, 1e-09
    %v71 = vadd.f32 %v55, 1e-09
    %v72 = vadd.f32 %v62, 1e-09
    %v73 = vadd.f32 %v69, 1e-09
    %v74 = vrcp.pop %v70
    %v75 = vmul.f32 %v21, %v74
    %v76 = vrcp.pop %v71
    %v77 = vmul.f32 %v22, %v76
    %v78 = vrcp.pop %v72
    %v79 = vmul.f32 %v23, %v78
    %v80 = vrcp.pop %v73
    %v81 = vmul.f32 %v24, %v80
    %v83 = vsel %vm29, %v75, 0
    %v86 = vsel %vm29, %v77, 0
    %v89 = vsel %vm29, %v79, 0
    %v92 = vsel %vm29, %v81, 0
    %94 = vmatprep.subr.mxu0 0.0
    %95 = vmatpush1.xpose.msra.mxu0 0.0
    %96 = vmatprep.subr.mxu0 0.0
    %97 = vmatpush1.xpose.msra.mxu0 0.0
    %98 = vmatprep.subr.mxu0 0.0
    %99 = vmatpush1.xpose.msra.mxu0 0.0
    %100 = vmatprep.subr.mxu0 0.0
    %101 = vmatpush1.xpose.msra.mxu0 0.0
    %102 = vmatprep.subr.mxu0 0.0
    %103 = vmatpush1.xpose.msra.mxu0 0.0
    %104 = vmatprep.subr.mxu0 0.0
    %105 = vmatpush1.xpose.msra.mxu0 0.0
    %106 = vmatprep.subr.mxu0 0.0
    %107 = vmatpush1.xpose.msra.mxu0 0.0
    %108 = vmatprep.subr.mxu0 0.0
    %109 = vmatpush1.xpose.msra.mxu0 0.0
    %110 = vmatprep.subr.mxu0 0.0
    %111 = vmatpush1.xpose.msra.mxu0 0.0
    %112 = vmatprep.subr.mxu0 0.0
    %113 = vmatpush1.xpose.msra.mxu0 0.0
    %114 = vmatprep.subr.mxu0 0.0
    %115 = vmatpush1.xpose.msra.mxu0 0.0
    %116 = vmatprep.subr.mxu0 0.0
    %117 = vmatpush1.xpose.msra.mxu0 0.0
    %118 = vmatprep.subr.mxu0 0.0
    %119 = vmatpush1.xpose.msra.mxu0 %v92
    %120 = vmatprep.subr.mxu0 0.0
    %121 = vmatpush1.xpose.msra.mxu0 %v89
    %122 = vmatprep.subr.mxu0 0.0
    %123 = vmatpush1.xpose.msra.mxu0 %v86
    %124 = vmatprep.subr.mxu0 0.0
    %125 = vmatpush1.xpose.msra.mxu0 %v83
    %126 = vmatprep.subr.mxu0 0.0
    %127 = vmatpush2.xpose.msra.mxu0 0.0
    %128 = vmatprep.subr.mxu0 0.0
    %129 = vmatpush2.xpose.msra.mxu0 0.0
    %130 = vmatprep.subr.mxu0 0.0
    %131 = vmatpush2.xpose.msra.mxu0 0.0
    %132 = vmatprep.subr.mxu0 0.0
    %133 = vmatpush2.xpose.msra.mxu0 0.0
    %134 = vmatprep.subr.mxu0 0.0
    %135 = vmatpush2.xpose.msra.mxu0 0.0
    %136 = vmatprep.subr.mxu0 0.0
    %137 = vmatpush2.xpose.msra.mxu0 0.0
    %138 = vmatprep.subr.mxu0 0.0
    %139 = vmatpush2.xpose.msra.mxu0 0.0
    %140 = vmatprep.subr.mxu0 0.0
    %141 = vmatpush2.xpose.msra.mxu0 0.0
    %142 = vmatprep.subr.mxu0 0.0
    %143 = vmatpush2.xpose.msra.mxu0 0.0
    %144 = vmatprep.subr.mxu0 0.0
    %145 = vmatpush2.xpose.msra.mxu0 0.0
    %146 = vmatprep.subr.mxu0 0.0
    %147 = vmatpush2.xpose.msra.mxu0 0.0
    %148 = vmatprep.subr.mxu0 0.0
    %149 = vmatpush2.xpose.msra.mxu0 0.0
    %150 = vmatprep.subr.mxu0 0.0
    %151 = vmatpush2.xpose.msra.mxu0 0.0
    %152 = vmatprep.subr.mxu0 0.0
    %153 = vmatpush2.xpose.msra.mxu0 0.0
    %154 = vmatprep.subr.mxu0 0.0
    %155 = vmatpush2.xpose.msra.mxu0 0.0
    %156 = vmatprep.subr.mxu0 0.0
    %157 = vmatpush2.xpose.msra.mxu0 0.0
    %158 = vmatprep.mubr.f32.mxu0 0.0
    %159 = vmatmul.mubr.f32.gmra.mxu0 %v83
    %v160 = vpop.f32.mrf.mxu0
    %v161 = vadd.f32 0.0, %v160
    %v162 = vpop.f32.mrf.mxu0
    %163 = vmatprep.mubr.f32.mxu0 0.0
    %164 = vmatmul.mubr.f32.gmra.mxu0 %v86
    %v165 = vpop.f32.mrf.mxu0
    %v166 = vadd.f32 0.0, %v165
    %v167 = vpop.f32.mrf.mxu0
    %168 = vmatprep.mubr.f32.mxu0 0.0
    %169 = vmatmul.mubr.f32.gmra.mxu0 %v89
    %v170 = vpop.f32.mrf.mxu0
    %v171 = vadd.f32 0.0, %v170
    %v172 = vpop.f32.mrf.mxu0
    %173 = vmatprep.mubr.f32.mxu0 0.0
    %174 = vmatmul.mubr.f32.gmra.mxu0 %v92
    %v175 = vpop.f32.mrf.mxu0
    %v176 = vadd.f32 0.0, %v175
    %v177 = vpop.f32.mrf.mxu0
    %178 = vdwg.mxu0
    %v179 = vand.u32 2147483647, %v161
    %v180 = vand.u32 2147483647, %v166
    %v181 = vand.u32 2147483647, %v171
    %v182 = vand.u32 2147483647, %v176
    %vm183 = vcmask 261120
    %v184 = vsel %vm183, %v179, 0.0
    %v185 = vsel %vm183, %v180, 0.0
    %v186 = vadd.f32 %v184, %v185
    %v187 = vsel %vm183, %v181, 0.0
    %v188 = vadd.f32 %v186, %v187
    %v189 = vsel %vm183, %v182, 0.0
    %v190 = vadd.f32 %v188, %v189
    %191 = vadd.xlane.f32.xlu0 %v190
    %v192 = vpop.xlane.xlu0 %191
    %v193 = vrot.slane %v192, 4
    %v194 = vadd.f32 %v192, %v193
    %v195 = vrot.slane %v194, 2
    %v196 = vadd.f32 %v194, %v195
    %v197 = vrot.slane %v196, 1
    %v198 = vadd.f32 %v196, %v197
    %s199 = vtos %v198
    %s200 = ssub.f32 %s199, 32.0
    %v201 = vrcp.pop 992.0
    %s202 = vtos %v201
    %s203 = smul.f32 %s200, %s202
    %s204 = sadd.f32 %s203, 0.0
    %v205 = vld [vmem:[%s1] sm:$0xff]
    %v206 = vld [vmem:[%s1 + $0x8] sm:$0xff]
    %v207 = vld [vmem:[%s1 + $0x10] sm:$0xff]
    %v208 = vld [vmem:[%s1 + $0x18] sm:$0xff]
    %v209 = vld [vmem:[%s1 + $0x20] sm:$0xff]
    %v210 = vld [vmem:[%s1 + $0x28] sm:$0xff]
    %v211 = vld [vmem:[%s1 + $0x30] sm:$0xff]
    %v212 = vld [vmem:[%s1 + $0x38] sm:$0xff]
    %v213 = vld [vmem:[%s1 + $0x40] sm:$0xff]
    %v214 = vld [vmem:[%s1 + $0x48] sm:$0xff]
    %v215 = vld [vmem:[%s1 + $0x50] sm:$0xff]
    %v216 = vld [vmem:[%s1 + $0x58] sm:$0xff]
    %v217 = vld [vmem:[%s1 + $0x60] sm:$0xff]
    %v218 = vld [vmem:[%s1 + $0x68] sm:$0xff]
    %v219 = vld [vmem:[%s1 + $0x70] sm:$0xff]
    %v220 = vld [vmem:[%s1 + $0x78] sm:$0xff]
    %v221 = vld [vmem:[%s1 + $0x80] sm:$0xff]
    %v222 = vld [vmem:[%s1 + $0x88] sm:$0xff]
    %v223 = vld [vmem:[%s1 + $0x90] sm:$0xff]
    %v224 = vld [vmem:[%s1 + $0x98] sm:$0xff]
    %v225 = vld [vmem:[%s1 + $0xa0] sm:$0xff]
    %v226 = vld [vmem:[%s1 + $0xa8] sm:$0xff]
    %v227 = vld [vmem:[%s1 + $0xb0] sm:$0xff]
    %v228 = vld [vmem:[%s1 + $0xb8] sm:$0xff]
    %v229 = vmul.f32 %v205, %v205
    %v230 = vmul.f32 %v206, %v206
    %v231 = vmul.f32 %v207, %v207
    %v232 = vmul.f32 %v208, %v208
    %v233 = vmul.f32 %v209, %v209
    %v234 = vmul.f32 %v210, %v210
    %v235 = vmul.f32 %v211, %v211
    %v236 = vmul.f32 %v212, %v212
    %v237 = vmul.f32 %v213, %v213
    %v238 = vmul.f32 %v214, %v214
    %v239 = vmul.f32 %v215, %v215
    %v240 = vmul.f32 %v216, %v216
    %v241 = vmul.f32 %v217, %v217
    %v242 = vmul.f32 %v218, %v218
    %v243 = vmul.f32 %v219, %v219
    %v244 = vmul.f32 %v220, %v220
    %v245 = vmul.f32 %v221, %v221
    %v246 = vmul.f32 %v222, %v222
    %v247 = vmul.f32 %v223, %v223
    %v248 = vmul.f32 %v224, %v224
    %v249 = vmul.f32 %v225, %v225
    %v250 = vmul.f32 %v226, %v226
    %v251 = vmul.f32 %v227, %v227
    %v252 = vmul.f32 %v228, %v228
    %v253 = vadd.f32 %v229, %v230
    %v254 = vsel %vm183, %v231, 0.0
    %v255 = vadd.f32 %v253, %v254
    %256 = vadd.xlane.f32.xlu0 %v255
    %v257 = vpop.xlane.xlu0 %256
    %v258 = vadd.f32 %v232, %v233
    %v259 = vsel %vm183, %v234, 0.0
    %v260 = vadd.f32 %v258, %v259
    %261 = vadd.xlane.f32.xlu0 %v260
    %v262 = vpop.xlane.xlu0 %261
    %v263 = vadd.f32 %v235, %v236
    %v264 = vsel %vm183, %v237, 0.0
    %v265 = vadd.f32 %v263, %v264
    %266 = vadd.xlane.f32.xlu0 %v265
    %v267 = vpop.xlane.xlu0 %266
    %v268 = vadd.f32 %v238, %v239
    %v269 = vsel %vm183, %v240, 0.0
    %v270 = vadd.f32 %v268, %v269
    %271 = vadd.xlane.f32.xlu0 %v270
    %v272 = vpop.xlane.xlu0 %271
    %v273 = vadd.f32 %v241, %v242
    %v274 = vsel %vm183, %v243, 0.0
    %v275 = vadd.f32 %v273, %v274
    %276 = vadd.xlane.f32.xlu0 %v275
    %v277 = vpop.xlane.xlu0 %276
    %v278 = vadd.f32 %v244, %v245
    %v279 = vsel %vm183, %v246, 0.0
    %v280 = vadd.f32 %v278, %v279
    %281 = vadd.xlane.f32.xlu0 %v280
    %v282 = vpop.xlane.xlu0 %281
    %v283 = vadd.f32 %v247, %v248
    %v284 = vsel %vm183, %v249, 0.0
    %v285 = vadd.f32 %v283, %v284
    %286 = vadd.xlane.f32.xlu0 %v285
    %v287 = vpop.xlane.xlu0 %286
    %v288 = vadd.f32 %v250, %v251
    %v289 = vsel %vm183, %v252, 0.0
    %v290 = vadd.f32 %v288, %v289
    %291 = vadd.xlane.f32.xlu0 %v290
    %v292 = vpop.xlane.xlu0 %291
    %v293 = vrsqrt.pop %v257
    %v294 = vmul.f32 %v257, %v293
    %vm295 = vcmp.eq.f32.partialorder %v257, inf
    %v296 = vsel %vm295, %v257, %v294
    %vm297 = vcmp.eq.f32.partialorder %v257, 0.0
    %v298 = vand.u32 %v257, 2147483648
    %v299 = vsel %vm297, %v298, %v296
    %v300 = vrsqrt.pop %v262
    %v301 = vmul.f32 %v262, %v300
    %vm302 = vcmp.eq.f32.partialorder %v262, inf
    %v303 = vsel %vm302, %v262, %v301
    %vm304 = vcmp.eq.f32.partialorder %v262, 0.0
    %v305 = vand.u32 %v262, 2147483648
    %v306 = vsel %vm304, %v305, %v303
    %v307 = vrsqrt.pop %v267
    %v308 = vmul.f32 %v267, %v307
    %vm309 = vcmp.eq.f32.partialorder %v267, inf
    %v310 = vsel %vm309, %v267, %v308
    %vm311 = vcmp.eq.f32.partialorder %v267, 0.0
    %v312 = vand.u32 %v267, 2147483648
    %v313 = vsel %vm311, %v312, %v310
    %v314 = vrsqrt.pop %v272
    %v315 = vmul.f32 %v272, %v314
    %vm316 = vcmp.eq.f32.partialorder %v272, inf
    %v317 = vsel %vm316, %v272, %v315
    %vm318 = vcmp.eq.f32.partialorder %v272, 0.0
    %v319 = vand.u32 %v272, 2147483648
    %v320 = vsel %vm318, %v319, %v317
    %v321 = vrsqrt.pop %v277
    %v322 = vmul.f32 %v277, %v321
    %vm323 = vcmp.eq.f32.partialorder %v277, inf
    %v324 = vsel %vm323, %v277, %v322
    %vm325 = vcmp.eq.f32.partialorder %v277, 0.0
    %v326 = vand.u32 %v277, 2147483648
    %v327 = vsel %vm325, %v326, %v324
    %v328 = vrsqrt.pop %v282
    %v329 = vmul.f32 %v282, %v328
    %vm330 = vcmp.eq.f32.partialorder %v282, inf
    %v331 = vsel %vm330, %v282, %v329
    %vm332 = vcmp.eq.f32.partialorder %v282, 0.0
    %v333 = vand.u32 %v282, 2147483648
    %v334 = vsel %vm332, %v333, %v331
    %v335 = vrsqrt.pop %v287
    %v336 = vmul.f32 %v287, %v335
    %vm337 = vcmp.eq.f32.partialorder %v287, inf
    %v338 = vsel %vm337, %v287, %v336
    %vm339 = vcmp.eq.f32.partialorder %v287, 0.0
    %v340 = vand.u32 %v287, 2147483648
    %v341 = vsel %vm339, %v340, %v338
    %v342 = vrsqrt.pop %v292
    %v343 = vmul.f32 %v292, %v342
    %vm344 = vcmp.eq.f32.partialorder %v292, inf
    %v345 = vsel %vm344, %v292, %v343
    %vm346 = vcmp.eq.f32.partialorder %v292, 0.0
    %v347 = vand.u32 %v292, 2147483648
    %v348 = vsel %vm346, %v347, %v345
    %v349 = vadd.f32 %v299, 1e-09
    %v350 = vadd.f32 %v306, 1e-09
    %v351 = vadd.f32 %v313, 1e-09
    %v352 = vadd.f32 %v320, 1e-09
    %v353 = vadd.f32 %v327, 1e-09
    %v354 = vadd.f32 %v334, 1e-09
    %v355 = vadd.f32 %v341, 1e-09
    %v356 = vadd.f32 %v348, 1e-09
    %v357 = vrcp.pop %v349
    %v358 = vmul.f32 %v205, %v357
    %v359 = vmul.f32 %v206, %v357
    %v360 = vmul.f32 %v207, %v357
    %v361 = vrcp.pop %v350
    %v362 = vmul.f32 %v208, %v361
    %v363 = vmul.f32 %v209, %v361
    %v364 = vmul.f32 %v210, %v361
    %v365 = vrcp.pop %v351
    %v366 = vmul.f32 %v211, %v365
    %v367 = vmul.f32 %v212, %v365
    %v368 = vmul.f32 %v213, %v365
    %v369 = vrcp.pop %v352
    %v370 = vmul.f32 %v214, %v369
    %v371 = vmul.f32 %v215, %v369
    %v372 = vmul.f32 %v216, %v369
    %v373 = vrcp.pop %v353
    %v374 = vmul.f32 %v217, %v373
    %v375 = vmul.f32 %v218, %v373
    %v376 = vmul.f32 %v219, %v373
    %v377 = vrcp.pop %v354
    %v378 = vmul.f32 %v220, %v377
    %v379 = vmul.f32 %v221, %v377
    %v380 = vmul.f32 %v222, %v377
    %v381 = vrcp.pop %v355
    %v382 = vmul.f32 %v223, %v381
    %v383 = vmul.f32 %v224, %v381
    %v384 = vmul.f32 %v225, %v381
    %v385 = vrcp.pop %v356
    %v386 = vmul.f32 %v226, %v385
    %v387 = vmul.f32 %v227, %v385
    %v388 = vmul.f32 %v228, %v385
    %v390 = vsel %vm183, %v360, 0
    %v393 = vsel %vm183, %v364, 0
    %v396 = vsel %vm183, %v368, 0
    %v399 = vsel %vm183, %v372, 0
    %v402 = vsel %vm183, %v376, 0
    %v405 = vsel %vm183, %v380, 0
    %v408 = vsel %vm183, %v384, 0
    %v411 = vsel %vm183, %v388, 0
    %413 = vmatprep.subr.mxu0 0.0
    %414 = vmatpush1.xpose.msra.mxu0 0.0
    %415 = vmatprep.subr.mxu0 0.0
    %416 = vmatpush1.xpose.msra.mxu0 0.0
    %417 = vmatprep.subr.mxu0 0.0
    %418 = vmatpush1.xpose.msra.mxu0 0.0
    %419 = vmatprep.subr.mxu0 0.0
    %420 = vmatpush1.xpose.msra.mxu0 0.0
    %421 = vmatprep.subr.mxu0 0.0
    %422 = vmatpush1.xpose.msra.mxu0 0.0
    %423 = vmatprep.subr.mxu0 0.0
    %424 = vmatpush1.xpose.msra.mxu0 0.0
    %425 = vmatprep.subr.mxu0 0.0
    %426 = vmatpush1.xpose.msra.mxu0 0.0
    %427 = vmatprep.subr.mxu0 0.0
    %428 = vmatpush1.xpose.msra.mxu0 0.0
    %429 = vmatprep.subr.mxu0 %v387
    %430 = vmatpush1.xpose.msra.mxu0 %v386
    %431 = vmatprep.subr.mxu0 %v383
    %432 = vmatpush1.xpose.msra.mxu0 %v382
    %433 = vmatprep.subr.mxu0 %v379
    %434 = vmatpush1.xpose.msra.mxu0 %v378
    %435 = vmatprep.subr.mxu0 %v375
    %436 = vmatpush1.xpose.msra.mxu0 %v374
    %437 = vmatprep.subr.mxu0 %v371
    %438 = vmatpush1.xpose.msra.mxu0 %v370
    %439 = vmatprep.subr.mxu0 %v367
    %440 = vmatpush1.xpose.msra.mxu0 %v366
    %441 = vmatprep.subr.mxu0 %v363
    %442 = vmatpush1.xpose.msra.mxu0 %v362
    %443 = vmatprep.subr.mxu0 %v359
    %444 = vmatpush1.xpose.msra.mxu0 %v358
    %445 = vmatprep.subr.mxu0 0.0
    %446 = vmatpush2.xpose.msra.mxu0 0.0
    %447 = vmatprep.subr.mxu0 0.0
    %448 = vmatpush2.xpose.msra.mxu0 0.0
    %449 = vmatprep.subr.mxu0 0.0
    %450 = vmatpush2.xpose.msra.mxu0 0.0
    %451 = vmatprep.subr.mxu0 0.0
    %452 = vmatpush2.xpose.msra.mxu0 0.0
    %453 = vmatprep.subr.mxu0 0.0
    %454 = vmatpush2.xpose.msra.mxu0 0.0
    %455 = vmatprep.subr.mxu0 0.0
    %456 = vmatpush2.xpose.msra.mxu0 0.0
    %457 = vmatprep.subr.mxu0 0.0
    %458 = vmatpush2.xpose.msra.mxu0 0.0
    %459 = vmatprep.subr.mxu0 0.0
    %460 = vmatpush2.xpose.msra.mxu0 0.0
    %461 = vmatprep.subr.mxu0 0.0
    %462 = vmatpush2.xpose.msra.mxu0 0.0
    %463 = vmatprep.subr.mxu0 0.0
    %464 = vmatpush2.xpose.msra.mxu0 0.0
    %465 = vmatprep.subr.mxu0 0.0
    %466 = vmatpush2.xpose.msra.mxu0 0.0
    %467 = vmatprep.subr.mxu0 0.0
    %468 = vmatpush2.xpose.msra.mxu0 0.0
    %469 = vmatprep.subr.mxu0 0.0
    %470 = vmatpush2.xpose.msra.mxu0 0.0
    %471 = vmatprep.subr.mxu0 0.0
    %472 = vmatpush2.xpose.msra.mxu0 0.0
    %473 = vmatprep.subr.mxu0 0.0
    %474 = vmatpush2.xpose.msra.mxu0 0.0
    %475 = vmatprep.subr.mxu0 0.0
    %476 = vmatpush2.xpose.msra.mxu0 0.0
    %477 = vmatprep.mubr.f32.mxu0 %v359
    %478 = vmatmul.mubr.f32.gmra.mxu0 %v358
    %v479 = vpop.f32.mrf.mxu0
    %v480 = vadd.f32 0.0, %v479
    %v481 = vpop.f32.mrf.mxu0
    %482 = vmatprep.mubr.f32.mxu0 %v363
    %483 = vmatmul.mubr.f32.gmra.mxu0 %v362
    %v484 = vpop.f32.mrf.mxu0
    %v485 = vadd.f32 0.0, %v484
    %v486 = vpop.f32.mrf.mxu0
    %487 = vmatprep.mubr.f32.mxu0 %v367
    %488 = vmatmul.mubr.f32.gmra.mxu0 %v366
    %v489 = vpop.f32.mrf.mxu0
    %v490 = vadd.f32 0.0, %v489
    %v491 = vpop.f32.mrf.mxu0
    %492 = vmatprep.mubr.f32.mxu0 %v371
    %493 = vmatmul.mubr.f32.gmra.mxu0 %v370
    %v494 = vpop.f32.mrf.mxu0
    %v495 = vadd.f32 0.0, %v494
    %v496 = vpop.f32.mrf.mxu0
    %497 = vmatprep.mubr.f32.mxu0 %v375
    %498 = vmatmul.mubr.f32.gmra.mxu0 %v374
    %v499 = vpop.f32.mrf.mxu0
    %v500 = vadd.f32 0.0, %v499
    %v501 = vpop.f32.mrf.mxu0
    %502 = vmatprep.mubr.f32.mxu0 %v379
    %503 = vmatmul.mubr.f32.gmra.mxu0 %v378
    %v504 = vpop.f32.mrf.mxu0
    %v505 = vadd.f32 0.0, %v504
    %v506 = vpop.f32.mrf.mxu0
    %507 = vmatprep.mubr.f32.mxu0 %v383
    %508 = vmatmul.mubr.f32.gmra.mxu0 %v382
    %v509 = vpop.f32.mrf.mxu0
    %v510 = vadd.f32 0.0, %v509
    %v511 = vpop.f32.mrf.mxu0
    %512 = vmatprep.mubr.f32.mxu0 %v387
    %513 = vmatmul.mubr.f32.gmra.mxu0 %v386
    %v514 = vpop.f32.mrf.mxu0
    %v515 = vadd.f32 0.0, %v514
    %v516 = vpop.f32.mrf.mxu0
    %517 = vdwg.mxu0
    %518 = vmatprep.subr.mxu0 0.0
    %519 = vmatpush1.xpose.msra.mxu0 0.0
    %520 = vmatprep.subr.mxu0 0.0
    %521 = vmatpush1.xpose.msra.mxu0 0.0
    %522 = vmatprep.subr.mxu0 0.0
    %523 = vmatpush1.xpose.msra.mxu0 0.0
    %524 = vmatprep.subr.mxu0 0.0
    %525 = vmatpush1.xpose.msra.mxu0 0.0
    %526 = vmatprep.subr.mxu0 0.0
    %527 = vmatpush1.xpose.msra.mxu0 0.0
    %528 = vmatprep.subr.mxu0 0.0
    %529 = vmatpush1.xpose.msra.mxu0 0.0
    %530 = vmatprep.subr.mxu0 0.0
    %531 = vmatpush1.xpose.msra.mxu0 0.0
    %532 = vmatprep.subr.mxu0 0.0
    %533 = vmatpush1.xpose.msra.mxu0 0.0
    %534 = vmatprep.subr.mxu0 0.0
    %535 = vmatpush1.xpose.msra.mxu0 %v411
    %536 = vmatprep.subr.mxu0 0.0
    %537 = vmatpush1.xpose.msra.mxu0 %v408
    %538 = vmatprep.subr.mxu0 0.0
    %539 = vmatpush1.xpose.msra.mxu0 %v405
    %540 = vmatprep.subr.mxu0 0.0
    %541 = vmatpush1.xpose.msra.mxu0 %v402
    %542 = vmatprep.subr.mxu0 0.0
    %543 = vmatpush1.xpose.msra.mxu0 %v399
    %544 = vmatprep.subr.mxu0 0.0
    %545 = vmatpush1.xpose.msra.mxu0 %v396
    %546 = vmatprep.subr.mxu0 0.0
    %547 = vmatpush1.xpose.msra.mxu0 %v393
    %548 = vmatprep.subr.mxu0 0.0
    %549 = vmatpush1.xpose.msra.mxu0 %v390
    %550 = vmatprep.subr.mxu0 0.0
    %551 = vmatpush2.xpose.msra.mxu0 0.0
    %552 = vmatprep.subr.mxu0 0.0
    %553 = vmatpush2.xpose.msra.mxu0 0.0
    %554 = vmatprep.subr.mxu0 0.0
    %555 = vmatpush2.xpose.msra.mxu0 0.0
    %556 = vmatprep.subr.mxu0 0.0
    %557 = vmatpush2.xpose.msra.mxu0 0.0
    %558 = vmatprep.subr.mxu0 0.0
    %559 = vmatpush2.xpose.msra.mxu0 0.0
    %560 = vmatprep.subr.mxu0 0.0
    %561 = vmatpush2.xpose.msra.mxu0 0.0
    %562 = vmatprep.subr.mxu0 0.0
    %563 = vmatpush2.xpose.msra.mxu0 0.0
    %564 = vmatprep.subr.mxu0 0.0
    %565 = vmatpush2.xpose.msra.mxu0 0.0
    %566 = vmatprep.subr.mxu0 0.0
    %567 = vmatpush2.xpose.msra.mxu0 0.0
    %568 = vmatprep.subr.mxu0 0.0
    %569 = vmatpush2.xpose.msra.mxu0 0.0
    %570 = vmatprep.subr.mxu0 0.0
    %571 = vmatpush2.xpose.msra.mxu0 0.0
    %572 = vmatprep.subr.mxu0 0.0
    %573 = vmatpush2.xpose.msra.mxu0 0.0
    %574 = vmatprep.subr.mxu0 0.0
    %575 = vmatpush2.xpose.msra.mxu0 0.0
    %576 = vmatprep.subr.mxu0 0.0
    %577 = vmatpush2.xpose.msra.mxu0 0.0
    %578 = vmatprep.subr.mxu0 0.0
    %579 = vmatpush2.xpose.msra.mxu0 0.0
    %580 = vmatprep.subr.mxu0 0.0
    %581 = vmatpush2.xpose.msra.mxu0 0.0
    %582 = vmatprep.mubr.f32.mxu0 0.0
    %583 = vmatmul.mubr.f32.gmra.mxu0 %v390
    %v584 = vpop.f32.mrf.mxu0
    %v585 = vadd.f32 %v480, %v584
    %v586 = vpop.f32.mrf.mxu0
    %587 = vmatprep.mubr.f32.mxu0 0.0
    %588 = vmatmul.mubr.f32.gmra.mxu0 %v393
    %v589 = vpop.f32.mrf.mxu0
    %v590 = vadd.f32 %v485, %v589
    %v591 = vpop.f32.mrf.mxu0
    %592 = vmatprep.mubr.f32.mxu0 0.0
    %593 = vmatmul.mubr.f32.gmra.mxu0 %v396
    %v594 = vpop.f32.mrf.mxu0
    %v595 = vadd.f32 %v490, %v594
    %v596 = vpop.f32.mrf.mxu0
    %597 = vmatprep.mubr.f32.mxu0 0.0
    %598 = vmatmul.mubr.f32.gmra.mxu0 %v399
    %v599 = vpop.f32.mrf.mxu0
    %v600 = vadd.f32 %v495, %v599
    %v601 = vpop.f32.mrf.mxu0
    %602 = vmatprep.mubr.f32.mxu0 0.0
    %603 = vmatmul.mubr.f32.gmra.mxu0 %v402
    %v604 = vpop.f32.mrf.mxu0
    %v605 = vadd.f32 %v500, %v604
    %v606 = vpop.f32.mrf.mxu0
    %607 = vmatprep.mubr.f32.mxu0 0.0
    %608 = vmatmul.mubr.f32.gmra.mxu0 %v405
    %v609 = vpop.f32.mrf.mxu0
    %v610 = vadd.f32 %v505, %v609
    %v611 = vpop.f32.mrf.mxu0
    %612 = vmatprep.mubr.f32.mxu0 0.0
    %613 = vmatmul.mubr.f32.gmra.mxu0 %v408
    %v614 = vpop.f32.mrf.mxu0
    %v615 = vadd.f32 %v510, %v614
    %v616 = vpop.f32.mrf.mxu0
    %617 = vmatprep.mubr.f32.mxu0 0.0
    %618 = vmatmul.mubr.f32.gmra.mxu0 %v411
    %v619 = vpop.f32.mrf.mxu0
    %v620 = vadd.f32 %v515, %v619
    %v621 = vpop.f32.mrf.mxu0
    %622 = vdwg.mxu0
    %v623 = vand.u32 2147483647, %v585
    %v624 = vand.u32 2147483647, %v590
    %v625 = vand.u32 2147483647, %v595
    %v626 = vand.u32 2147483647, %v600
    %v627 = vand.u32 2147483647, %v605
    %v628 = vand.u32 2147483647, %v610
    %v629 = vand.u32 2147483647, %v615
    %v630 = vand.u32 2147483647, %v620
    %vm631 = vcmask 523264
    %v632 = vsel %vm631, %v623, 0.0
    %v633 = vsel %vm631, %v624, 0.0
    %v634 = vadd.f32 %v632, %v633
    %v635 = vsel %vm631, %v625, 0.0
    %v636 = vadd.f32 %v634, %v635
    %v637 = vsel %vm631, %v626, 0.0
    %v638 = vadd.f32 %v636, %v637
    %v639 = vsel %vm631, %v627, 0.0
    %v640 = vadd.f32 %v638, %v639
    %v641 = vsel %vm631, %v628, 0.0
    %v642 = vadd.f32 %v640, %v641
    %v643 = vsel %vm631, %v629, 0.0
    %v644 = vadd.f32 %v642, %v643
    %v645 = vsel %vm631, %v630, 0.0
    %v646 = vadd.f32 %v644, %v645
    %647 = vadd.xlane.f32.xlu0 %v646
    %v648 = vpop.xlane.xlu0 %647
    %v649 = vrot.slane %v648, 4
    %v650 = vadd.f32 %v648, %v649
    %v651 = vrot.slane %v650, 2
    %v652 = vadd.f32 %v650, %v651
    %v653 = vrot.slane %v652, 1
    %v654 = vadd.f32 %v652, %v653
    %s655 = vtos %v654
    %s656 = ssub.f32 %s655, 64.0
    %v657 = vrcp.pop 4032.0
    %s658 = vtos %v657
    %s659 = smul.f32 %s656, %s658
    %s660 = sadd.f32 %s204, %s659
    %v661 = vld [vmem:[%s2] sm:$0xff]
    %v662 = vld [vmem:[%s2 + $0x8] sm:$0xff]
    %v663 = vld [vmem:[%s2 + $0x10] sm:$0xff]
    %v664 = vld [vmem:[%s2 + $0x18] sm:$0xff]
    %v665 = vld [vmem:[%s2 + $0x20] sm:$0xff]
    %v666 = vld [vmem:[%s2 + $0x28] sm:$0xff]
    %v667 = vld [vmem:[%s2 + $0x30] sm:$0xff]
    %v668 = vld [vmem:[%s2 + $0x38] sm:$0xff]
    %v669 = vld [vmem:[%s2 + $0x40] sm:$0xff]
    %v670 = vld [vmem:[%s2 + $0x48] sm:$0xff]
    %v671 = vld [vmem:[%s2 + $0x50] sm:$0xff]
    %v672 = vld [vmem:[%s2 + $0x58] sm:$0xff]
    %v673 = vld [vmem:[%s2 + $0x60] sm:$0xff]
    %v674 = vld [vmem:[%s2 + $0x68] sm:$0xff]
    %v675 = vld [vmem:[%s2 + $0x70] sm:$0xff]
    %v676 = vld [vmem:[%s2 + $0x78] sm:$0xff]
    %v677 = vld [vmem:[%s2 + $0x80] sm:$0xff]
    %v678 = vld [vmem:[%s2 + $0x88] sm:$0xff]
    %v679 = vld [vmem:[%s2 + $0x90] sm:$0xff]
    %v680 = vld [vmem:[%s2 + $0x98] sm:$0xff]
    %v681 = vld [vmem:[%s2 + $0xa0] sm:$0xff]
    %v682 = vld [vmem:[%s2 + $0xa8] sm:$0xff]
    %v683 = vld [vmem:[%s2 + $0xb0] sm:$0xff]
    %v684 = vld [vmem:[%s2 + $0xb8] sm:$0xff]
    %v685 = vld [vmem:[%s2 + $0xc0] sm:$0xff]
    %v686 = vld [vmem:[%s2 + $0xc8] sm:$0xff]
    %v687 = vld [vmem:[%s2 + $0xd0] sm:$0xff]
    %v688 = vld [vmem:[%s2 + $0xd8] sm:$0xff]
    %v689 = vld [vmem:[%s2 + $0xe0] sm:$0xff]
    %v690 = vld [vmem:[%s2 + $0xe8] sm:$0xff]
    %v691 = vld [vmem:[%s2 + $0xf0] sm:$0xff]
    %v692 = vld [vmem:[%s2 + $0xf8] sm:$0xff]
    %v693 = vld [vmem:[%s2 + $0x100] sm:$0xff]
    %v694 = vld [vmem:[%s2 + $0x108] sm:$0xff]
    %v695 = vld [vmem:[%s2 + $0x110] sm:$0xff]
    %v696 = vld [vmem:[%s2 + $0x118] sm:$0xff]
    %v697 = vld [vmem:[%s2 + $0x120] sm:$0xff]
    %v698 = vld [vmem:[%s2 + $0x128] sm:$0xff]
    %v699 = vld [vmem:[%s2 + $0x130] sm:$0xff]
    %v700 = vld [vmem:[%s2 + $0x138] sm:$0xff]
    %v701 = vmul.f32 %v661, %v661
    %v702 = vmul.f32 %v662, %v662
    %v703 = vmul.f32 %v663, %v663
    %v704 = vmul.f32 %v664, %v664
    %v705 = vmul.f32 %v665, %v665
    %v706 = vmul.f32 %v666, %v666
    %v707 = vmul.f32 %v667, %v667
    %v708 = vmul.f32 %v668, %v668
    %v709 = vmul.f32 %v669, %v669
    %v710 = vmul.f32 %v670, %v670
    %v711 = vmul.f32 %v671, %v671
    %v712 = vmul.f32 %v672, %v672
    %v713 = vmul.f32 %v673, %v673
    %v714 = vmul.f32 %v674, %v674
    %v715 = vmul.f32 %v675, %v675
    %v716 = vmul.f32 %v676, %v676
    %v717 = vmul.f32 %v677, %v677
    %v718 = vmul.f32 %v678, %v678
    %v719 = vmul.f32 %v679, %v679
    %v720 = vmul.f32 %v680, %v680
    %v721 = vmul.f32 %v681, %v681
    %v722 = vmul.f32 %v682, %v682
    %v723 = vmul.f32 %v683, %v683
    %v724 = vmul.f32 %v684, %v684
    %v725 = vmul.f32 %v685, %v685
    %v726 = vmul.f32 %v686, %v686
    %v727 = vmul.f32 %v687, %v687
    %v728 = vmul.f32 %v688, %v688
    %v729 = vmul.f32 %v689, %v689
    %v730 = vmul.f32 %v690, %v690
    %v731 = vmul.f32 %v691, %v691
    %v732 = vmul.f32 %v692, %v692
    %v733 = vmul.f32 %v693, %v693
    %v734 = vmul.f32 %v694, %v694
    %v735 = vmul.f32 %v695, %v695
    %v736 = vmul.f32 %v696, %v696
    %v737 = vmul.f32 %v697, %v697
    %v738 = vmul.f32 %v698, %v698
    %v739 = vmul.f32 %v699, %v699
    %v740 = vmul.f32 %v700, %v700
    %v741 = vadd.f32 %v701, %v702
    %v742 = vadd.f32 %v741, %v703
    %v743 = vadd.f32 %v742, %v704
    %v744 = vsel %vm631, %v705, 0.0
    %v745 = vadd.f32 %v743, %v744
    %746 = vadd.xlane.f32.xlu0 %v745
    %v747 = vpop.xlane.xlu0 %746
    %v748 = vadd.f32 %v706, %v707
    %v749 = vadd.f32 %v748, %v708
    %v750 = vadd.f32 %v749, %v709
    %v751 = vsel %vm631, %v710, 0.0
    %v752 = vadd.f32 %v750, %v751
    %753 = vadd.xlane.f32.xlu0 %v752
    %v754 = vpop.xlane.xlu0 %753
    %v755 = vadd.f32 %v711, %v712
    %v756 = vadd.f32 %v755, %v713
    %v757 = vadd.f32 %v756, %v714
    %v758 = vsel %vm631, %v715, 0.0
    %v759 = vadd.f32 %v757, %v758
    %760 = vadd.xlane.f32.xlu0 %v759
    %v761 = vpop.xlane.xlu0 %760
    %v762 = vadd.f32 %v716, %v717
    %v763 = vadd.f32 %v762, %v718
    %v764 = vadd.f32 %v763, %v719
    %v765 = vsel %vm631, %v720, 0.0
    %v766 = vadd.f32 %v764, %v765
    %767 = vadd.xlane.f32.xlu0 %v766
    %v768 = vpop.xlane.xlu0 %767
    %v769 = vadd.f32 %v721, %v722
    %v770 = vadd.f32 %v769, %v723
    %v771 = vadd.f32 %v770, %v724
    %v772 = vsel %vm631, %v725, 0.0
    %v773 = vadd.f32 %v771, %v772
    %774 = vadd.xlane.f32.xlu0 %v773
    %v775 = vpop.xlane.xlu0 %774
    %v776 = vadd.f32 %v726, %v727
    %v777 = vadd.f32 %v776, %v728
    %v778 = vadd.f32 %v777, %v729
    %v779 = vsel %vm631, %v730, 0.0
    %v780 = vadd.f32 %v778, %v779
    %781 = vadd.xlane.f32.xlu0 %v780
    %v782 = vpop.xlane.xlu0 %781
    %v783 = vadd.f32 %v731, %v732
    %v784 = vadd.f32 %v783, %v733
    %v785 = vadd.f32 %v784, %v734
    %v786 = vsel %vm631, %v735, 0.0
    %v787 = vadd.f32 %v785, %v786
    %788 = vadd.xlane.f32.xlu0 %v787
    %v789 = vpop.xlane.xlu0 %788
    %v790 = vadd.f32 %v736, %v737
    %v791 = vadd.f32 %v790, %v738
    %v792 = vadd.f32 %v791, %v739
    %v793 = vsel %vm631, %v740, 0.0
    %v794 = vadd.f32 %v792, %v793
    %795 = vadd.xlane.f32.xlu0 %v794
    %v796 = vpop.xlane.xlu0 %795
    %v797 = vrsqrt.pop %v747
    %v798 = vmul.f32 %v747, %v797
    %vm799 = vcmp.eq.f32.partialorder %v747, inf
    %v800 = vsel %vm799, %v747, %v798
    %vm801 = vcmp.eq.f32.partialorder %v747, 0.0
    %v802 = vand.u32 %v747, 2147483648
    %v803 = vsel %vm801, %v802, %v800
    %v804 = vrsqrt.pop %v754
    %v805 = vmul.f32 %v754, %v804
    %vm806 = vcmp.eq.f32.partialorder %v754, inf
    %v807 = vsel %vm806, %v754, %v805
    %vm808 = vcmp.eq.f32.partialorder %v754, 0.0
    %v809 = vand.u32 %v754, 2147483648
    %v810 = vsel %vm808, %v809, %v807
    %v811 = vrsqrt.pop %v761
    %v812 = vmul.f32 %v761, %v811
    %vm813 = vcmp.eq.f32.partialorder %v761, inf
    %v814 = vsel %vm813, %v761, %v812
    %vm815 = vcmp.eq.f32.partialorder %v761, 0.0
    %v816 = vand.u32 %v761, 2147483648
    %v817 = vsel %vm815, %v816, %v814
    %v818 = vrsqrt.pop %v768
    %v819 = vmul.f32 %v768, %v818
    %vm820 = vcmp.eq.f32.partialorder %v768, inf
    %v821 = vsel %vm820, %v768, %v819
    %vm822 = vcmp.eq.f32.partialorder %v768, 0.0
    %v823 = vand.u32 %v768, 2147483648
    %v824 = vsel %vm822, %v823, %v821
    %v825 = vrsqrt.pop %v775
    %v826 = vmul.f32 %v775, %v825
    %vm827 = vcmp.eq.f32.partialorder %v775, inf
    %v828 = vsel %vm827, %v775, %v826
    %vm829 = vcmp.eq.f32.partialorder %v775, 0.0
    %v830 = vand.u32 %v775, 2147483648
    %v831 = vsel %vm829, %v830, %v828
    %v832 = vrsqrt.pop %v782
    %v833 = vmul.f32 %v782, %v832
    %vm834 = vcmp.eq.f32.partialorder %v782, inf
    %v835 = vsel %vm834, %v782, %v833
    %vm836 = vcmp.eq.f32.partialorder %v782, 0.0
    %v837 = vand.u32 %v782, 2147483648
    %v838 = vsel %vm836, %v837, %v835
    %v839 = vrsqrt.pop %v789
    %v840 = vmul.f32 %v789, %v839
    %vm841 = vcmp.eq.f32.partialorder %v789, inf
    %v842 = vsel %vm841, %v789, %v840
    %vm843 = vcmp.eq.f32.partialorder %v789, 0.0
    %v844 = vand.u32 %v789, 2147483648
    %v845 = vsel %vm843, %v844, %v842
    %v846 = vrsqrt.pop %v796
    %v847 = vmul.f32 %v796, %v846
    %vm848 = vcmp.eq.f32.partialorder %v796, inf
    %v849 = vsel %vm848, %v796, %v847
    %vm850 = vcmp.eq.f32.partialorder %v796, 0.0
    %v851 = vand.u32 %v796, 2147483648
    %v852 = vsel %vm850, %v851, %v849
    %v853 = vadd.f32 %v803, 1e-09
    %v854 = vadd.f32 %v810, 1e-09
    %v855 = vadd.f32 %v817, 1e-09
    %v856 = vadd.f32 %v824, 1e-09
    %v857 = vadd.f32 %v831, 1e-09
    %v858 = vadd.f32 %v838, 1e-09
    %v859 = vadd.f32 %v845, 1e-09
    %v860 = vadd.f32 %v852, 1e-09
    %v861 = vrcp.pop %v853
    %v862 = vmul.f32 %v661, %v861
    %v863 = vmul.f32 %v662, %v861
    %v864 = vmul.f32 %v663, %v861
    %v865 = vmul.f32 %v664, %v861
    %v866 = vmul.f32 %v665, %v861
    %v867 = vrcp.pop %v854
    %v868 = vmul.f32 %v666, %v867
    %v869 = vmul.f32 %v667, %v867
    %v870 = vmul.f32 %v668, %v867
    %v871 = vmul.f32 %v669, %v867
    %v872 = vmul.f32 %v670, %v867
    %v873 = vrcp.pop %v855
    %v874 = vmul.f32 %v671, %v873
    %v875 = vmul.f32 %v672, %v873
    %v876 = vmul.f32 %v673, %v873
    %v877 = vmul.f32 %v674, %v873
    %v878 = vmul.f32 %v675, %v873
    %v879 = vrcp.pop %v856
    %v880 = vmul.f32 %v676, %v879
    %v881 = vmul.f32 %v677, %v879
    %v882 = vmul.f32 %v678, %v879
    %v883 = vmul.f32 %v679, %v879
    %v884 = vmul.f32 %v680, %v879
    %v885 = vrcp.pop %v857
    %v886 = vmul.f32 %v681, %v885
    %v887 = vmul.f32 %v682, %v885
    %v888 = vmul.f32 %v683, %v885
    %v889 = vmul.f32 %v684, %v885
    %v890 = vmul.f32 %v685, %v885
    %v891 = vrcp.pop %v858
    %v892 = vmul.f32 %v686, %v891
    %v893 = vmul.f32 %v687, %v891
    %v894 = vmul.f32 %v688, %v891
    %v895 = vmul.f32 %v689, %v891
    %v896 = vmul.f32 %v690, %v891
    %v897 = vrcp.pop %v859
    %v898 = vmul.f32 %v691, %v897
    %v899 = vmul.f32 %v692, %v897
    %v900 = vmul.f32 %v693, %v897
    %v901 = vmul.f32 %v694, %v897
    %v902 = vmul.f32 %v695, %v897
    %v903 = vrcp.pop %v860
    %v904 = vmul.f32 %v696, %v903
    %v905 = vmul.f32 %v697, %v903
    %v906 = vmul.f32 %v698, %v903
    %v907 = vmul.f32 %v699, %v903
    %v908 = vmul.f32 %v700, %v903
    %v910 = vsel %vm631, %v866, 0
    %v913 = vsel %vm631, %v872, 0
    %v916 = vsel %vm631, %v878, 0
    %v919 = vsel %vm631, %v884, 0
    %v922 = vsel %vm631, %v890, 0
    %v925 = vsel %vm631, %v896, 0
    %v928 = vsel %vm631, %v902, 0
    %v931 = vsel %vm631, %v908, 0
    %933 = vmatprep.subr.mxu0 0.0
    %934 = vmatpush1.xpose.msra.mxu0 0.0
    %935 = vmatprep.subr.mxu0 0.0
    %936 = vmatpush1.xpose.msra.mxu0 0.0
    %937 = vmatprep.subr.mxu0 0.0
    %938 = vmatpush1.xpose.msra.mxu0 0.0
    %939 = vmatprep.subr.mxu0 0.0
    %940 = vmatpush1.xpose.msra.mxu0 0.0
    %941 = vmatprep.subr.mxu0 0.0
    %942 = vmatpush1.xpose.msra.mxu0 0.0
    %943 = vmatprep.subr.mxu0 0.0
    %944 = vmatpush1.xpose.msra.mxu0 0.0
    %945 = vmatprep.subr.mxu0 0.0
    %946 = vmatpush1.xpose.msra.mxu0 0.0
    %947 = vmatprep.subr.mxu0 0.0
    %948 = vmatpush1.xpose.msra.mxu0 0.0
    %949 = vmatprep.subr.mxu0 %v905
    %950 = vmatpush1.xpose.msra.mxu0 %v904
    %951 = vmatprep.subr.mxu0 %v899
    %952 = vmatpush1.xpose.msra.mxu0 %v898
    %953 = vmatprep.subr.mxu0 %v893
    %954 = vmatpush1.xpose.msra.mxu0 %v892
    %955 = vmatprep.subr.mxu0 %v887
    %956 = vmatpush1.xpose.msra.mxu0 %v886
    %957 = vmatprep.subr.mxu0 %v881
    %958 = vmatpush1.xpose.msra.mxu0 %v880
    %959 = vmatprep.subr.mxu0 %v875
    %960 = vmatpush1.xpose.msra.mxu0 %v874
    %961 = vmatprep.subr.mxu0 %v869
    %962 = vmatpush1.xpose.msra.mxu0 %v868
    %963 = vmatprep.subr.mxu0 %v863
    %964 = vmatpush1.xpose.msra.mxu0 %v862
    %965 = vmatprep.subr.mxu0 0.0
    %966 = vmatpush2.xpose.msra.mxu0 0.0
    %967 = vmatprep.subr.mxu0 0.0
    %968 = vmatpush2.xpose.msra.mxu0 0.0
    %969 = vmatprep.subr.mxu0 0.0
    %970 = vmatpush2.xpose.msra.mxu0 0.0
    %971 = vmatprep.subr.mxu0 0.0
    %972 = vmatpush2.xpose.msra.mxu0 0.0
    %973 = vmatprep.subr.mxu0 0.0
    %974 = vmatpush2.xpose.msra.mxu0 0.0
    %975 = vmatprep.subr.mxu0 0.0
    %976 = vmatpush2.xpose.msra.mxu0 0.0
    %977 = vmatprep.subr.mxu0 0.0
    %978 = vmatpush2.xpose.msra.mxu0 0.0
    %979 = vmatprep.subr.mxu0 0.0
    %980 = vmatpush2.xpose.msra.mxu0 0.0
    %981 = vmatprep.subr.mxu0 0.0
    %982 = vmatpush2.xpose.msra.mxu0 0.0
    %983 = vmatprep.subr.mxu0 0.0
    %984 = vmatpush2.xpose.msra.mxu0 0.0
    %985 = vmatprep.subr.mxu0 0.0
    %986 = vmatpush2.xpose.msra.mxu0 0.0
    %987 = vmatprep.subr.mxu0 0.0
    %988 = vmatpush2.xpose.msra.mxu0 0.0
    %989 = vmatprep.subr.mxu0 0.0
    %990 = vmatpush2.xpose.msra.mxu0 0.0
    %991 = vmatprep.subr.mxu0 0.0
    %992 = vmatpush2.xpose.msra.mxu0 0.0
    %993 = vmatprep.subr.mxu0 0.0
    %994 = vmatpush2.xpose.msra.mxu0 0.0
    %995 = vmatprep.subr.mxu0 0.0
    %996 = vmatpush2.xpose.msra.mxu0 0.0
    %997 = vmatprep.mubr.f32.mxu0 %v863
    %998 = vmatmul.mubr.f32.gmra.mxu0 %v862
    %v999 = vpop.f32.mrf.mxu0
    %v1000 = vadd.f32 0.0, %v999
    %v1001 = vpop.f32.mrf.mxu0
    %1002 = vmatprep.mubr.f32.mxu0 %v869
    %1003 = vmatmul.mubr.f32.gmra.mxu0 %v868
    %v1004 = vpop.f32.mrf.mxu0
    %v1005 = vadd.f32 0.0, %v1004
    %v1006 = vpop.f32.mrf.mxu0
    %1007 = vmatprep.mubr.f32.mxu0 %v875
    %1008 = vmatmul.mubr.f32.gmra.mxu0 %v874
    %v1009 = vpop.f32.mrf.mxu0
    %v1010 = vadd.f32 0.0, %v1009
    %v1011 = vpop.f32.mrf.mxu0
    %1012 = vmatprep.mubr.f32.mxu0 %v881
    %1013 = vmatmul.mubr.f32.gmra.mxu0 %v880
    %v1014 = vpop.f32.mrf.mxu0
    %v1015 = vadd.f32 0.0, %v1014
    %v1016 = vpop.f32.mrf.mxu0
    %1017 = vmatprep.mubr.f32.mxu0 %v887
    %1018 = vmatmul.mubr.f32.gmra.mxu0 %v886
    %v1019 = vpop.f32.mrf.mxu0
    %v1020 = vadd.f32 0.0, %v1019
    %v1021 = vpop.f32.mrf.mxu0
    %1022 = vmatprep.mubr.f32.mxu0 %v893
    %1023 = vmatmul.mubr.f32.gmra.mxu0 %v892
    %v1024 = vpop.f32.mrf.mxu0
    %v1025 = vadd.f32 0.0, %v1024
    %v1026 = vpop.f32.mrf.mxu0
    %1027 = vmatprep.mubr.f32.mxu0 %v899
    %1028 = vmatmul.mubr.f32.gmra.mxu0 %v898
    %v1029 = vpop.f32.mrf.mxu0
    %v1030 = vadd.f32 0.0, %v1029
    %v1031 = vpop.f32.mrf.mxu0
    %1032 = vmatprep.mubr.f32.mxu0 %v905
    %1033 = vmatmul.mubr.f32.gmra.mxu0 %v904
    %v1034 = vpop.f32.mrf.mxu0
    %v1035 = vadd.f32 0.0, %v1034
    %v1036 = vpop.f32.mrf.mxu0
    %1037 = vdwg.mxu0
    %1038 = vmatprep.subr.mxu0 0.0
    %1039 = vmatpush1.xpose.msra.mxu0 0.0
    %1040 = vmatprep.subr.mxu0 0.0
    %1041 = vmatpush1.xpose.msra.mxu0 0.0
    %1042 = vmatprep.subr.mxu0 0.0
    %1043 = vmatpush1.xpose.msra.mxu0 0.0
    %1044 = vmatprep.subr.mxu0 0.0
    %1045 = vmatpush1.xpose.msra.mxu0 0.0
    %1046 = vmatprep.subr.mxu0 0.0
    %1047 = vmatpush1.xpose.msra.mxu0 0.0
    %1048 = vmatprep.subr.mxu0 0.0
    %1049 = vmatpush1.xpose.msra.mxu0 0.0
    %1050 = vmatprep.subr.mxu0 0.0
    %1051 = vmatpush1.xpose.msra.mxu0 0.0
    %1052 = vmatprep.subr.mxu0 0.0
    %1053 = vmatpush1.xpose.msra.mxu0 0.0
    %1054 = vmatprep.subr.mxu0 %v907
    %1055 = vmatpush1.xpose.msra.mxu0 %v906
    %1056 = vmatprep.subr.mxu0 %v901
    %1057 = vmatpush1.xpose.msra.mxu0 %v900
    %1058 = vmatprep.subr.mxu0 %v895
    %1059 = vmatpush1.xpose.msra.mxu0 %v894
    %1060 = vmatprep.subr.mxu0 %v889
    %1061 = vmatpush1.xpose.msra.mxu0 %v888
    %1062 = vmatprep.subr.mxu0 %v883
    %1063 = vmatpush1.xpose.msra.mxu0 %v882
    %1064 = vmatprep.subr.mxu0 %v877
    %1065 = vmatpush1.xpose.msra.mxu0 %v876
    %1066 = vmatprep.subr.mxu0 %v871
    %1067 = vmatpush1.xpose.msra.mxu0 %v870
    %1068 = vmatprep.subr.mxu0 %v865
    %1069 = vmatpush1.xpose.msra.mxu0 %v864
    %1070 = vmatprep.subr.mxu0 0.0
    %1071 = vmatpush2.xpose.msra.mxu0 0.0
    %1072 = vmatprep.subr.mxu0 0.0
    %1073 = vmatpush2.xpose.msra.mxu0 0.0
    %1074 = vmatprep.subr.mxu0 0.0
    %1075 = vmatpush2.xpose.msra.mxu0 0.0
    %1076 = vmatprep.subr.mxu0 0.0
    %1077 = vmatpush2.xpose.msra.mxu0 0.0
    %1078 = vmatprep.subr.mxu0 0.0
    %1079 = vmatpush2.xpose.msra.mxu0 0.0
    %1080 = vmatprep.subr.mxu0 0.0
    %1081 = vmatpush2.xpose.msra.mxu0 0.0
    %1082 = vmatprep.subr.mxu0 0.0
    %1083 = vmatpush2.xpose.msra.mxu0 0.0
    %1084 = vmatprep.subr.mxu0 0.0
    %1085 = vmatpush2.xpose.msra.mxu0 0.0
    %1086 = vmatprep.subr.mxu0 0.0
    %1087 = vmatpush2.xpose.msra.mxu0 0.0
    %1088 = vmatprep.subr.mxu0 0.0
    %1089 = vmatpush2.xpose.msra.mxu0 0.0
    %1090 = vmatprep.subr.mxu0 0.0
    %1091 = vmatpush2.xpose.msra.mxu0 0.0
    %1092 = vmatprep.subr.mxu0 0.0
    %1093 = vmatpush2.xpose.msra.mxu0 0.0
    %1094 = vmatprep.subr.mxu0 0.0
    %1095 = vmatpush2.xpose.msra.mxu0 0.0
    %1096 = vmatprep.subr.mxu0 0.0
    %1097 = vmatpush2.xpose.msra.mxu0 0.0
    %1098 = vmatprep.subr.mxu0 0.0
    %1099 = vmatpush2.xpose.msra.mxu0 0.0
    %1100 = vmatprep.subr.mxu0 0.0
    %1101 = vmatpush2.xpose.msra.mxu0 0.0
    %1102 = vmatprep.mubr.f32.mxu0 %v865
    %1103 = vmatmul.mubr.f32.gmra.mxu0 %v864
    %v1104 = vpop.f32.mrf.mxu0
    %v1105 = vadd.f32 %v1000, %v1104
    %v1106 = vpop.f32.mrf.mxu0
    %1107 = vmatprep.mubr.f32.mxu0 %v871
    %1108 = vmatmul.mubr.f32.gmra.mxu0 %v870
    %v1109 = vpop.f32.mrf.mxu0
    %v1110 = vadd.f32 %v1005, %v1109
    %v1111 = vpop.f32.mrf.mxu0
    %1112 = vmatprep.mubr.f32.mxu0 %v877
    %1113 = vmatmul.mubr.f32.gmra.mxu0 %v876
    %v1114 = vpop.f32.mrf.mxu0
    %v1115 = vadd.f32 %v1010, %v1114
    %v1116 = vpop.f32.mrf.mxu0
    %1117 = vmatprep.mubr.f32.mxu0 %v883
    %1118 = vmatmul.mubr.f32.gmra.mxu0 %v882
    %v1119 = vpop.f32.mrf.mxu0
    %v1120 = vadd.f32 %v1015, %v1119
    %v1121 = vpop.f32.mrf.mxu0
    %1122 = vmatprep.mubr.f32.mxu0 %v889
    %1123 = vmatmul.mubr.f32.gmra.mxu0 %v888
    %v1124 = vpop.f32.mrf.mxu0
    %v1125 = vadd.f32 %v1020, %v1124
    %v1126 = vpop.f32.mrf.mxu0
    %1127 = vmatprep.mubr.f32.mxu0 %v895
    %1128 = vmatmul.mubr.f32.gmra.mxu0 %v894
    %v1129 = vpop.f32.mrf.mxu0
    %v1130 = vadd.f32 %v1025, %v1129
    %v1131 = vpop.f32.mrf.mxu0
    %1132 = vmatprep.mubr.f32.mxu0 %v901
    %1133 = vmatmul.mubr.f32.gmra.mxu0 %v900
    %v1134 = vpop.f32.mrf.mxu0
    %v1135 = vadd.f32 %v1030, %v1134
    %v1136 = vpop.f32.mrf.mxu0
    %1137 = vmatprep.mubr.f32.mxu0 %v907
    %1138 = vmatmul.mubr.f32.gmra.mxu0 %v906
    %v1139 = vpop.f32.mrf.mxu0
    %v1140 = vadd.f32 %v1035, %v1139
    %v1141 = vpop.f32.mrf.mxu0
    %1142 = vdwg.mxu0
    %1143 = vmatprep.subr.mxu0 0.0
    %1144 = vmatpush1.xpose.msra.mxu0 0.0
    %1145 = vmatprep.subr.mxu0 0.0
    %1146 = vmatpush1.xpose.msra.mxu0 0.0
    %1147 = vmatprep.subr.mxu0 0.0
    %1148 = vmatpush1.xpose.msra.mxu0 0.0
    %1149 = vmatprep.subr.mxu0 0.0
    %1150 = vmatpush1.xpose.msra.mxu0 0.0
    %1151 = vmatprep.subr.mxu0 0.0
    %1152 = vmatpush1.xpose.msra.mxu0 0.0
    %1153 = vmatprep.subr.mxu0 0.0
    %1154 = vmatpush1.xpose.msra.mxu0 0.0
    %1155 = vmatprep.subr.mxu0 0.0
    %1156 = vmatpush1.xpose.msra.mxu0 0.0
    %1157 = vmatprep.subr.mxu0 0.0
    %1158 = vmatpush1.xpose.msra.mxu0 0.0
    %1159 = vmatprep.subr.mxu0 0.0
    %1160 = vmatpush1.xpose.msra.mxu0 %v931
    %1161 = vmatprep.subr.mxu0 0.0
    %1162 = vmatpush1.xpose.msra.mxu0 %v928
    %1163 = vmatprep.subr.mxu0 0.0
    %1164 = vmatpush1.xpose.msra.mxu0 %v925
    %1165 = vmatprep.subr.mxu0 0.0
    %1166 = vmatpush1.xpose.msra.mxu0 %v922
    %1167 = vmatprep.subr.mxu0 0.0
    %1168 = vmatpush1.xpose.msra.mxu0 %v919
    %1169 = vmatprep.subr.mxu0 0.0
    %1170 = vmatpush1.xpose.msra.mxu0 %v916
    %1171 = vmatprep.subr.mxu0 0.0
    %1172 = vmatpush1.xpose.msra.mxu0 %v913
    %1173 = vmatprep.subr.mxu0 0.0
    %1174 = vmatpush1.xpose.msra.mxu0 %v910
    %1175 = vmatprep.subr.mxu0 0.0
    %1176 = vmatpush2.xpose.msra.mxu0 0.0
    %1177 = vmatprep.subr.mxu0 0.0
    %1178 = vmatpush2.xpose.msra.mxu0 0.0
    %1179 = vmatprep.subr.mxu0 0.0
    %1180 = vmatpush2.xpose.msra.mxu0 0.0
    %1181 = vmatprep.subr.mxu0 0.0
    %1182 = vmatpush2.xpose.msra.mxu0 0.0
    %1183 = vmatprep.subr.mxu0 0.0
    %1184 = vmatpush2.xpose.msra.mxu0 0.0
    %1185 = vmatprep.subr.mxu0 0.0
    %1186 = vmatpush2.xpose.msra.mxu0 0.0
    %1187 = vmatprep.subr.mxu0 0.0
    %1188 = vmatpush2.xpose.msra.mxu0 0.0
    %1189 = vmatprep.subr.mxu0 0.0
    %1190 = vmatpush2.xpose.msra.mxu0 0.0
    %1191 = vmatprep.subr.mxu0 0.0
    %1192 = vmatpush2.xpose.msra.mxu0 0.0
    %1193 = vmatprep.subr.mxu0 0.0
    %1194 = vmatpush2.xpose.msra.mxu0 0.0
    %1195 = vmatprep.subr.mxu0 0.0
    %1196 = vmatpush2.xpose.msra.mxu0 0.0
    %1197 = vmatprep.subr.mxu0 0.0
    %1198 = vmatpush2.xpose.msra.mxu0 0.0
    %1199 = vmatprep.subr.mxu0 0.0
    %1200 = vmatpush2.xpose.msra.mxu0 0.0
    %1201 = vmatprep.subr.mxu0 0.0
    %1202 = vmatpush2.xpose.msra.mxu0 0.0
    %1203 = vmatprep.subr.mxu0 0.0
    %1204 = vmatpush2.xpose.msra.mxu0 0.0
    %1205 = vmatprep.subr.mxu0 0.0
    %1206 = vmatpush2.xpose.msra.mxu0 0.0
    %1207 = vmatprep.mubr.f32.mxu0 0.0
    %1208 = vmatmul.mubr.f32.gmra.mxu0 %v910
    %v1209 = vpop.f32.mrf.mxu0
    %v1210 = vadd.f32 %v1105, %v1209
    %v1211 = vpop.f32.mrf.mxu0
    %1212 = vmatprep.mubr.f32.mxu0 0.0
    %1213 = vmatmul.mubr.f32.gmra.mxu0 %v913
    %v1214 = vpop.f32.mrf.mxu0
    %v1215 = vadd.f32 %v1110, %v1214
    %v1216 = vpop.f32.mrf.mxu0
    %1217 = vmatprep.mubr.f32.mxu0 0.0
    %1218 = vmatmul.mubr.f32.gmra.mxu0 %v916
    %v1219 = vpop.f32.mrf.mxu0
    %v1220 = vadd.f32 %v1115, %v1219
    %v1221 = vpop.f32.mrf.mxu0
    %1222 = vmatprep.mubr.f32.mxu0 0.0
    %1223 = vmatmul.mubr.f32.gmra.mxu0 %v919
    %v1224 = vpop.f32.mrf.mxu0
    %v1225 = vadd.f32 %v1120, %v1224
    %v1226 = vpop.f32.mrf.mxu0
    %1227 = vmatprep.mubr.f32.mxu0 0.0
    %1228 = vmatmul.mubr.f32.gmra.mxu0 %v922
    %v1229 = vpop.f32.mrf.mxu0
    %v1230 = vadd.f32 %v1125, %v1229
    %v1231 = vpop.f32.mrf.mxu0
    %1232 = vmatprep.mubr.f32.mxu0 0.0
    %1233 = vmatmul.mubr.f32.gmra.mxu0 %v925
    %v1234 = vpop.f32.mrf.mxu0
    %v1235 = vadd.f32 %v1130, %v1234
    %v1236 = vpop.f32.mrf.mxu0
    %1237 = vmatprep.mubr.f32.mxu0 0.0
    %1238 = vmatmul.mubr.f32.gmra.mxu0 %v928
    %v1239 = vpop.f32.mrf.mxu0
    %v1240 = vadd.f32 %v1135, %v1239
    %v1241 = vpop.f32.mrf.mxu0
    %1242 = vmatprep.mubr.f32.mxu0 0.0
    %1243 = vmatmul.mubr.f32.gmra.mxu0 %v931
    %v1244 = vpop.f32.mrf.mxu0
    %v1245 = vadd.f32 %v1140, %v1244
    %v1246 = vpop.f32.mrf.mxu0
    %1247 = vdwg.mxu0
    %v1248 = vand.u32 2147483647, %v1210
    %v1249 = vand.u32 2147483647, %v1215
    %v1250 = vand.u32 2147483647, %v1220
    %v1251 = vand.u32 2147483647, %v1225
    %v1252 = vand.u32 2147483647, %v1230
    %v1253 = vand.u32 2147483647, %v1235
    %v1254 = vand.u32 2147483647, %v1240
    %v1255 = vand.u32 2147483647, %v1245
    %v1256 = vsel %vm631, %v1248, 0.0
    %v1257 = vsel %vm631, %v1249, 0.0
    %v1258 = vadd.f32 %v1256, %v1257
    %v1259 = vsel %vm631, %v1250, 0.0
    %v1260 = vadd.f32 %v1258, %v1259
    %v1261 = vsel %vm631, %v1251, 0.0
    %v1262 = vadd.f32 %v1260, %v1261
    %v1263 = vsel %vm631, %v1252, 0.0
    %v1264 = vadd.f32 %v1262, %v1263
    %v1265 = vsel %vm631, %v1253, 0.0
    %v1266 = vadd.f32 %v1264, %v1265
    %v1267 = vsel %vm631, %v1254, 0.0
    %v1268 = vadd.f32 %v1266, %v1267
    %v1269 = vsel %vm631, %v1255, 0.0
    %v1270 = vadd.f32 %v1268, %v1269
    %1271 = vadd.xlane.f32.xlu0 %v1270
    %v1272 = vpop.xlane.xlu0 %1271
    %v1273 = vrot.slane %v1272, 4
    %v1274 = vadd.f32 %v1272, %v1273
    %v1275 = vrot.slane %v1274, 2
    %v1276 = vadd.f32 %v1274, %v1275
    %v1277 = vrot.slane %v1276, 1
    %v1278 = vadd.f32 %v1276, %v1277
    %s1279 = vtos %v1278
    %s1280 = ssub.f32 %s1279, 64.0
    %v1281 = vrcp.pop 4032.0
    %s1282 = vtos %v1281
    %s1283 = smul.f32 %s1280, %s1282
    %s1284 = sadd.f32 %s660, %s1283
    %v1285 = vld [vmem:[%s3] sm:$0xff]
    %v1286 = vld [vmem:[%s3 + $0x8] sm:$0xff]
    %v1287 = vld [vmem:[%s3 + $0x10] sm:$0xff]
    %v1288 = vld [vmem:[%s3 + $0x18] sm:$0xff]
    %v1289 = vld [vmem:[%s3 + $0x20] sm:$0xff]
    %v1290 = vld [vmem:[%s3 + $0x28] sm:$0xff]
    %v1291 = vld [vmem:[%s3 + $0x30] sm:$0xff]
    %v1292 = vld [vmem:[%s3 + $0x38] sm:$0xff]
    %v1293 = vld [vmem:[%s3 + $0x40] sm:$0xff]
    %v1294 = vld [vmem:[%s3 + $0x48] sm:$0xff]
    %v1295 = vld [vmem:[%s3 + $0x50] sm:$0xff]
    %v1296 = vld [vmem:[%s3 + $0x58] sm:$0xff]
    %v1297 = vld [vmem:[%s3 + $0x60] sm:$0xff]
    %v1298 = vld [vmem:[%s3 + $0x68] sm:$0xff]
    %v1299 = vld [vmem:[%s3 + $0x70] sm:$0xff]
    %v1300 = vld [vmem:[%s3 + $0x78] sm:$0xff]
    %v1301 = vld [vmem:[%s3 + $0x80] sm:$0xff]
    %v1302 = vld [vmem:[%s3 + $0x88] sm:$0xff]
    %v1303 = vld [vmem:[%s3 + $0x90] sm:$0xff]
    %v1304 = vld [vmem:[%s3 + $0x98] sm:$0xff]
    %v1305 = vld [vmem:[%s3 + $0xa0] sm:$0xff]
    %v1306 = vld [vmem:[%s3 + $0xa8] sm:$0xff]
    %v1307 = vld [vmem:[%s3 + $0xb0] sm:$0xff]
    %v1308 = vld [vmem:[%s3 + $0xb8] sm:$0xff]
    %v1309 = vld [vmem:[%s3 + $0xc0] sm:$0xff]
    %v1310 = vld [vmem:[%s3 + $0xc8] sm:$0xff]
    %v1311 = vld [vmem:[%s3 + $0xd0] sm:$0xff]
    %v1312 = vld [vmem:[%s3 + $0xd8] sm:$0xff]
    %v1313 = vld [vmem:[%s3 + $0xe0] sm:$0xff]
    %v1314 = vld [vmem:[%s3 + $0xe8] sm:$0xff]
    %v1315 = vld [vmem:[%s3 + $0xf0] sm:$0xff]
    %v1316 = vld [vmem:[%s3 + $0xf8] sm:$0xff]
    %v1317 = vld [vmem:[%s3 + $0x100] sm:$0xff]
    %v1318 = vld [vmem:[%s3 + $0x108] sm:$0xff]
    %v1319 = vld [vmem:[%s3 + $0x110] sm:$0xff]
    %v1320 = vld [vmem:[%s3 + $0x118] sm:$0xff]
    %v1321 = vld [vmem:[%s3 + $0x120] sm:$0xff]
    %v1322 = vld [vmem:[%s3 + $0x128] sm:$0xff]
    %v1323 = vld [vmem:[%s3 + $0x130] sm:$0xff]
    %v1324 = vld [vmem:[%s3 + $0x138] sm:$0xff]
    %v1325 = vld [vmem:[%s3 + $0x140] sm:$0xff]
    %v1326 = vld [vmem:[%s3 + $0x148] sm:$0xff]
    %v1327 = vld [vmem:[%s3 + $0x150] sm:$0xff]
    %v1328 = vld [vmem:[%s3 + $0x158] sm:$0xff]
    %v1329 = vld [vmem:[%s3 + $0x160] sm:$0xff]
    %v1330 = vld [vmem:[%s3 + $0x168] sm:$0xff]
    %v1331 = vld [vmem:[%s3 + $0x170] sm:$0xff]
    %v1332 = vld [vmem:[%s3 + $0x178] sm:$0xff]
    %v1333 = vmul.f32 %v1285, %v1285
    %v1334 = vmul.f32 %v1286, %v1286
    %v1335 = vmul.f32 %v1287, %v1287
    %v1336 = vmul.f32 %v1288, %v1288
    %v1337 = vmul.f32 %v1289, %v1289
    %v1338 = vmul.f32 %v1290, %v1290
    %v1339 = vmul.f32 %v1291, %v1291
    %v1340 = vmul.f32 %v1292, %v1292
    %v1341 = vmul.f32 %v1293, %v1293
    %v1342 = vmul.f32 %v1294, %v1294
    %v1343 = vmul.f32 %v1295, %v1295
    %v1344 = vmul.f32 %v1296, %v1296
    %v1345 = vmul.f32 %v1297, %v1297
    %v1346 = vmul.f32 %v1298, %v1298
    %v1347 = vmul.f32 %v1299, %v1299
    %v1348 = vmul.f32 %v1300, %v1300
    %v1349 = vmul.f32 %v1301, %v1301
    %v1350 = vmul.f32 %v1302, %v1302
    %v1351 = vmul.f32 %v1303, %v1303
    %v1352 = vmul.f32 %v1304, %v1304
    %v1353 = vmul.f32 %v1305, %v1305
    %v1354 = vmul.f32 %v1306, %v1306
    %v1355 = vmul.f32 %v1307, %v1307
    %v1356 = vmul.f32 %v1308, %v1308
    %v1357 = vmul.f32 %v1309, %v1309
    %v1358 = vmul.f32 %v1310, %v1310
    %v1359 = vmul.f32 %v1311, %v1311
    %v1360 = vmul.f32 %v1312, %v1312
    %v1361 = vmul.f32 %v1313, %v1313
    %v1362 = vmul.f32 %v1314, %v1314
    %v1363 = vmul.f32 %v1315, %v1315
    %v1364 = vmul.f32 %v1316, %v1316
    %v1365 = vmul.f32 %v1317, %v1317
    %v1366 = vmul.f32 %v1318, %v1318
    %v1367 = vmul.f32 %v1319, %v1319
    %v1368 = vmul.f32 %v1320, %v1320
    %v1369 = vmul.f32 %v1321, %v1321
    %v1370 = vmul.f32 %v1322, %v1322
    %v1371 = vmul.f32 %v1323, %v1323
    %v1372 = vmul.f32 %v1324, %v1324
    %v1373 = vmul.f32 %v1325, %v1325
    %v1374 = vmul.f32 %v1326, %v1326
    %v1375 = vmul.f32 %v1327, %v1327
    %v1376 = vmul.f32 %v1328, %v1328
    %v1377 = vmul.f32 %v1329, %v1329
    %v1378 = vmul.f32 %v1330, %v1330
    %v1379 = vmul.f32 %v1331, %v1331
    %v1380 = vmul.f32 %v1332, %v1332
    %v1381 = vadd.f32 %v1333, %v1334
    %v1382 = vadd.f32 %v1381, %v1335
    %1383 = vadd.xlane.f32.xlu0 %v1382
    %v1384 = vpop.xlane.xlu0 %1383
    %v1385 = vadd.f32 %v1336, %v1337
    %v1386 = vadd.f32 %v1385, %v1338
    %1387 = vadd.xlane.f32.xlu0 %v1386
    %v1388 = vpop.xlane.xlu0 %1387
    %v1389 = vadd.f32 %v1339, %v1340
    %v1390 = vadd.f32 %v1389, %v1341
    %1391 = vadd.xlane.f32.xlu0 %v1390
    %v1392 = vpop.xlane.xlu0 %1391
    %v1393 = vadd.f32 %v1342, %v1343
    %v1394 = vadd.f32 %v1393, %v1344
    %1395 = vadd.xlane.f32.xlu0 %v1394
    %v1396 = vpop.xlane.xlu0 %1395
    %v1397 = vadd.f32 %v1345, %v1346
    %v1398 = vadd.f32 %v1397, %v1347
    %1399 = vadd.xlane.f32.xlu0 %v1398
    %v1400 = vpop.xlane.xlu0 %1399
    %v1401 = vadd.f32 %v1348, %v1349
    %v1402 = vadd.f32 %v1401, %v1350
    %1403 = vadd.xlane.f32.xlu0 %v1402
    %v1404 = vpop.xlane.xlu0 %1403
    %v1405 = vadd.f32 %v1351, %v1352
    %v1406 = vadd.f32 %v1405, %v1353
    %1407 = vadd.xlane.f32.xlu0 %v1406
    %v1408 = vpop.xlane.xlu0 %1407
    %v1409 = vadd.f32 %v1354, %v1355
    %v1410 = vadd.f32 %v1409, %v1356
    %1411 = vadd.xlane.f32.xlu0 %v1410
    %v1412 = vpop.xlane.xlu0 %1411
    %v1413 = vadd.f32 %v1357, %v1358
    %v1414 = vadd.f32 %v1413, %v1359
    %1415 = vadd.xlane.f32.xlu0 %v1414
    %v1416 = vpop.xlane.xlu0 %1415
    %v1417 = vadd.f32 %v1360, %v1361
    %v1418 = vadd.f32 %v1417, %v1362
    %1419 = vadd.xlane.f32.xlu0 %v1418
    %v1420 = vpop.xlane.xlu0 %1419
    %v1421 = vadd.f32 %v1363, %v1364
    %v1422 = vadd.f32 %v1421, %v1365
    %1423 = vadd.xlane.f32.xlu0 %v1422
    %v1424 = vpop.xlane.xlu0 %1423
    %v1425 = vadd.f32 %v1366, %v1367
    %v1426 = vadd.f32 %v1425, %v1368
    %1427 = vadd.xlane.f32.xlu0 %v1426
    %v1428 = vpop.xlane.xlu0 %1427
    %v1429 = vadd.f32 %v1369, %v1370
    %v1430 = vadd.f32 %v1429, %v1371
    %1431 = vadd.xlane.f32.xlu0 %v1430
    %v1432 = vpop.xlane.xlu0 %1431
    %v1433 = vadd.f32 %v1372, %v1373
    %v1434 = vadd.f32 %v1433, %v1374
    %1435 = vadd.xlane.f32.xlu0 %v1434
    %v1436 = vpop.xlane.xlu0 %1435
    %v1437 = vadd.f32 %v1375, %v1376
    %v1438 = vadd.f32 %v1437, %v1377
    %1439 = vadd.xlane.f32.xlu0 %v1438
    %v1440 = vpop.xlane.xlu0 %1439
    %v1441 = vadd.f32 %v1378, %v1379
    %v1442 = vadd.f32 %v1441, %v1380
    %1443 = vadd.xlane.f32.xlu0 %v1442
    %v1444 = vpop.xlane.xlu0 %1443
    %v1445 = vrsqrt.pop %v1384
    %v1446 = vmul.f32 %v1384, %v1445
    %vm1447 = vcmp.eq.f32.partialorder %v1384, inf
    %v1448 = vsel %vm1447, %v1384, %v1446
    %vm1449 = vcmp.eq.f32.partialorder %v1384, 0.0
    %v1450 = vand.u32 %v1384, 2147483648
    %v1451 = vsel %vm1449, %v1450, %v1448
    %v1452 = vrsqrt.pop %v1388
    %v1453 = vmul.f32 %v1388, %v1452
    %vm1454 = vcmp.eq.f32.partialorder %v1388, inf
    %v1455 = vsel %vm1454, %v1388, %v1453
    %vm1456 = vcmp.eq.f32.partialorder %v1388, 0.0
    %v1457 = vand.u32 %v1388, 2147483648
    %v1458 = vsel %vm1456, %v1457, %v1455
    %v1459 = vrsqrt.pop %v1392
    %v1460 = vmul.f32 %v1392, %v1459
    %vm1461 = vcmp.eq.f32.partialorder %v1392, inf
    %v1462 = vsel %vm1461, %v1392, %v1460
    %vm1463 = vcmp.eq.f32.partialorder %v1392, 0.0
    %v1464 = vand.u32 %v1392, 2147483648
    %v1465 = vsel %vm1463, %v1464, %v1462
    %v1466 = vrsqrt.pop %v1396
    %v1467 = vmul.f32 %v1396, %v1466
    %vm1468 = vcmp.eq.f32.partialorder %v1396, inf
    %v1469 = vsel %vm1468, %v1396, %v1467
    %vm1470 = vcmp.eq.f32.partialorder %v1396, 0.0
    %v1471 = vand.u32 %v1396, 2147483648
    %v1472 = vsel %vm1470, %v1471, %v1469
    %v1473 = vrsqrt.pop %v1400
    %v1474 = vmul.f32 %v1400, %v1473
    %vm1475 = vcmp.eq.f32.partialorder %v1400, inf
    %v1476 = vsel %vm1475, %v1400, %v1474
    %vm1477 = vcmp.eq.f32.partialorder %v1400, 0.0
    %v1478 = vand.u32 %v1400, 2147483648
    %v1479 = vsel %vm1477, %v1478, %v1476
    %v1480 = vrsqrt.pop %v1404
    %v1481 = vmul.f32 %v1404, %v1480
    %vm1482 = vcmp.eq.f32.partialorder %v1404, inf
    %v1483 = vsel %vm1482, %v1404, %v1481
    %vm1484 = vcmp.eq.f32.partialorder %v1404, 0.0
    %v1485 = vand.u32 %v1404, 2147483648
    %v1486 = vsel %vm1484, %v1485, %v1483
    %v1487 = vrsqrt.pop %v1408
    %v1488 = vmul.f32 %v1408, %v1487
    %vm1489 = vcmp.eq.f32.partialorder %v1408, inf
    %v1490 = vsel %vm1489, %v1408, %v1488
    %vm1491 = vcmp.eq.f32.partialorder %v1408, 0.0
    %v1492 = vand.u32 %v1408, 2147483648
    %v1493 = vsel %vm1491, %v1492, %v1490
    %v1494 = vrsqrt.pop %v1412
    %v1495 = vmul.f32 %v1412, %v1494
    %vm1496 = vcmp.eq.f32.partialorder %v1412, inf
    %v1497 = vsel %vm1496, %v1412, %v1495
    %vm1498 = vcmp.eq.f32.partialorder %v1412, 0.0
    %v1499 = vand.u32 %v1412, 2147483648
    %v1500 = vsel %vm1498, %v1499, %v1497
    %v1501 = vrsqrt.pop %v1416
    %v1502 = vmul.f32 %v1416, %v1501
    %vm1503 = vcmp.eq.f32.partialorder %v1416, inf
    %v1504 = vsel %vm1503, %v1416, %v1502
    %vm1505 = vcmp.eq.f32.partialorder %v1416, 0.0
    %v1506 = vand.u32 %v1416, 2147483648
    %v1507 = vsel %vm1505, %v1506, %v1504
    %v1508 = vrsqrt.pop %v1420
    %v1509 = vmul.f32 %v1420, %v1508
    %vm1510 = vcmp.eq.f32.partialorder %v1420, inf
    %v1511 = vsel %vm1510, %v1420, %v1509
    %vm1512 = vcmp.eq.f32.partialorder %v1420, 0.0
    %v1513 = vand.u32 %v1420, 2147483648
    %v1514 = vsel %vm1512, %v1513, %v1511
    %v1515 = vrsqrt.pop %v1424
    %v1516 = vmul.f32 %v1424, %v1515
    %vm1517 = vcmp.eq.f32.partialorder %v1424, inf
    %v1518 = vsel %vm1517, %v1424, %v1516
    %vm1519 = vcmp.eq.f32.partialorder %v1424, 0.0
    %v1520 = vand.u32 %v1424, 2147483648
    %v1521 = vsel %vm1519, %v1520, %v1518
    %v1522 = vrsqrt.pop %v1428
    %v1523 = vmul.f32 %v1428, %v1522
    %vm1524 = vcmp.eq.f32.partialorder %v1428, inf
    %v1525 = vsel %vm1524, %v1428, %v1523
    %vm1526 = vcmp.eq.f32.partialorder %v1428, 0.0
    %v1527 = vand.u32 %v1428, 2147483648
    %v1528 = vsel %vm1526, %v1527, %v1525
    %v1529 = vrsqrt.pop %v1432
    %v1530 = vmul.f32 %v1432, %v1529
    %vm1531 = vcmp.eq.f32.partialorder %v1432, inf
    %v1532 = vsel %vm1531, %v1432, %v1530
    %vm1533 = vcmp.eq.f32.partialorder %v1432, 0.0
    %v1534 = vand.u32 %v1432, 2147483648
    %v1535 = vsel %vm1533, %v1534, %v1532
    %v1536 = vrsqrt.pop %v1436
    %v1537 = vmul.f32 %v1436, %v1536
    %vm1538 = vcmp.eq.f32.partialorder %v1436, inf
    %v1539 = vsel %vm1538, %v1436, %v1537
    %vm1540 = vcmp.eq.f32.partialorder %v1436, 0.0
    %v1541 = vand.u32 %v1436, 2147483648
    %v1542 = vsel %vm1540, %v1541, %v1539
    %v1543 = vrsqrt.pop %v1440
    %v1544 = vmul.f32 %v1440, %v1543
    %vm1545 = vcmp.eq.f32.partialorder %v1440, inf
    %v1546 = vsel %vm1545, %v1440, %v1544
    %vm1547 = vcmp.eq.f32.partialorder %v1440, 0.0
    %v1548 = vand.u32 %v1440, 2147483648
    %v1549 = vsel %vm1547, %v1548, %v1546
    %v1550 = vrsqrt.pop %v1444
    %v1551 = vmul.f32 %v1444, %v1550
    %vm1552 = vcmp.eq.f32.partialorder %v1444, inf
    %v1553 = vsel %vm1552, %v1444, %v1551
    %vm1554 = vcmp.eq.f32.partialorder %v1444, 0.0
    %v1555 = vand.u32 %v1444, 2147483648
    %v1556 = vsel %vm1554, %v1555, %v1553
    %v1557 = vadd.f32 %v1451, 1e-09
    %v1558 = vadd.f32 %v1458, 1e-09
    %v1559 = vadd.f32 %v1465, 1e-09
    %v1560 = vadd.f32 %v1472, 1e-09
    %v1561 = vadd.f32 %v1479, 1e-09
    %v1562 = vadd.f32 %v1486, 1e-09
    %v1563 = vadd.f32 %v1493, 1e-09
    %v1564 = vadd.f32 %v1500, 1e-09
    %v1565 = vadd.f32 %v1507, 1e-09
    %v1566 = vadd.f32 %v1514, 1e-09
    %v1567 = vadd.f32 %v1521, 1e-09
    %v1568 = vadd.f32 %v1528, 1e-09
    %v1569 = vadd.f32 %v1535, 1e-09
    %v1570 = vadd.f32 %v1542, 1e-09
    %v1571 = vadd.f32 %v1549, 1e-09
    %v1572 = vadd.f32 %v1556, 1e-09
    %v1573 = vrcp.pop %v1557
    %v1574 = vmul.f32 %v1285, %v1573
    %v1575 = vmul.f32 %v1286, %v1573
    %v1576 = vmul.f32 %v1287, %v1573
    %v1577 = vrcp.pop %v1558
    %v1578 = vmul.f32 %v1288, %v1577
    %v1579 = vmul.f32 %v1289, %v1577
    %v1580 = vmul.f32 %v1290, %v1577
    %v1581 = vrcp.pop %v1559
    %v1582 = vmul.f32 %v1291, %v1581
    %v1583 = vmul.f32 %v1292, %v1581
    %v1584 = vmul.f32 %v1293, %v1581
    %v1585 = vrcp.pop %v1560
    %v1586 = vmul.f32 %v1294, %v1585
    %v1587 = vmul.f32 %v1295, %v1585
    %v1588 = vmul.f32 %v1296, %v1585
    %v1589 = vrcp.pop %v1561
    %v1590 = vmul.f32 %v1297, %v1589
    %v1591 = vmul.f32 %v1298, %v1589
    %v1592 = vmul.f32 %v1299, %v1589
    %v1593 = vrcp.pop %v1562
    %v1594 = vmul.f32 %v1300, %v1593
    %v1595 = vmul.f32 %v1301, %v1593
    %v1596 = vmul.f32 %v1302, %v1593
    %v1597 = vrcp.pop %v1563
    %v1598 = vmul.f32 %v1303, %v1597
    %v1599 = vmul.f32 %v1304, %v1597
    %v1600 = vmul.f32 %v1305, %v1597
    %v1601 = vrcp.pop %v1564
    %v1602 = vmul.f32 %v1306, %v1601
    %v1603 = vmul.f32 %v1307, %v1601
    %v1604 = vmul.f32 %v1308, %v1601
    %v1605 = vrcp.pop %v1565
    %v1606 = vmul.f32 %v1309, %v1605
    %v1607 = vmul.f32 %v1310, %v1605
    %v1608 = vmul.f32 %v1311, %v1605
    %v1609 = vrcp.pop %v1566
    %v1610 = vmul.f32 %v1312, %v1609
    %v1611 = vmul.f32 %v1313, %v1609
    %v1612 = vmul.f32 %v1314, %v1609
    %v1613 = vrcp.pop %v1567
    %v1614 = vmul.f32 %v1315, %v1613
    %v1615 = vmul.f32 %v1316, %v1613
    %v1616 = vmul.f32 %v1317, %v1613
    %v1617 = vrcp.pop %v1568
    %v1618 = vmul.f32 %v1318, %v1617
    %v1619 = vmul.f32 %v1319, %v1617
    %v1620 = vmul.f32 %v1320, %v1617
    %v1621 = vrcp.pop %v1569
    %v1622 = vmul.f32 %v1321, %v1621
    %v1623 = vmul.f32 %v1322, %v1621
    %v1624 = vmul.f32 %v1323, %v1621
    %v1625 = vrcp.pop %v1570
    %v1626 = vmul.f32 %v1324, %v1625
    %v1627 = vmul.f32 %v1325, %v1625
    %v1628 = vmul.f32 %v1326, %v1625
    %v1629 = vrcp.pop %v1571
    %v1630 = vmul.f32 %v1327, %v1629
    %v1631 = vmul.f32 %v1328, %v1629
    %v1632 = vmul.f32 %v1329, %v1629
    %v1633 = vrcp.pop %v1572
    %v1634 = vmul.f32 %v1330, %v1633
    %v1635 = vmul.f32 %v1331, %v1633
    %v1636 = vmul.f32 %v1332, %v1633
    %1637 = vmatprep.subr.mxu0 %v1635
    %1638 = vmatpush1.xpose.msra.mxu0 %v1634
    %1639 = vmatprep.subr.mxu0 %v1631
    %1640 = vmatpush1.xpose.msra.mxu0 %v1630
    %1641 = vmatprep.subr.mxu0 %v1627
    %1642 = vmatpush1.xpose.msra.mxu0 %v1626
    %1643 = vmatprep.subr.mxu0 %v1623
    %1644 = vmatpush1.xpose.msra.mxu0 %v1622
    %1645 = vmatprep.subr.mxu0 %v1619
    %1646 = vmatpush1.xpose.msra.mxu0 %v1618
    %1647 = vmatprep.subr.mxu0 %v1615
    %1648 = vmatpush1.xpose.msra.mxu0 %v1614
    %1649 = vmatprep.subr.mxu0 %v1611
    %1650 = vmatpush1.xpose.msra.mxu0 %v1610
    %1651 = vmatprep.subr.mxu0 %v1607
    %1652 = vmatpush1.xpose.msra.mxu0 %v1606
    %1653 = vmatprep.subr.mxu0 %v1603
    %1654 = vmatpush1.xpose.msra.mxu0 %v1602
    %1655 = vmatprep.subr.mxu0 %v1599
    %1656 = vmatpush1.xpose.msra.mxu0 %v1598
    %1657 = vmatprep.subr.mxu0 %v1595
    %1658 = vmatpush1.xpose.msra.mxu0 %v1594
    %1659 = vmatprep.subr.mxu0 %v1591
    %1660 = vmatpush1.xpose.msra.mxu0 %v1590
    %1661 = vmatprep.subr.mxu0 %v1587
    %1662 = vmatpush1.xpose.msra.mxu0 %v1586
    %1663 = vmatprep.subr.mxu0 %v1583
    %1664 = vmatpush1.xpose.msra.mxu0 %v1582
    %1665 = vmatprep.subr.mxu0 %v1579
    %1666 = vmatpush1.xpose.msra.mxu0 %v1578
    %1667 = vmatprep.subr.mxu0 %v1575
    %1668 = vmatpush1.xpose.msra.mxu0 %v1574
    %1669 = vmatprep.subr.mxu0 0.0
    %1670 = vmatpush2.xpose.msra.mxu0 0.0
    %1671 = vmatprep.subr.mxu0 0.0
    %1672 = vmatpush2.xpose.msra.mxu0 0.0
    %1673 = vmatprep.subr.mxu0 0.0
    %1674 = vmatpush2.xpose.msra.mxu0 0.0
    %1675 = vmatprep.subr.mxu0 0.0
    %1676 = vmatpush2.xpose.msra.mxu0 0.0
    %1677 = vmatprep.subr.mxu0 0.0
    %1678 = vmatpush2.xpose.msra.mxu0 0.0
    %1679 = vmatprep.subr.mxu0 0.0
    %1680 = vmatpush2.xpose.msra.mxu0 0.0
    %1681 = vmatprep.subr.mxu0 0.0
    %1682 = vmatpush2.xpose.msra.mxu0 0.0
    %1683 = vmatprep.subr.mxu0 0.0
    %1684 = vmatpush2.xpose.msra.mxu0 0.0
    %1685 = vmatprep.subr.mxu0 0.0
    %1686 = vmatpush2.xpose.msra.mxu0 0.0
    %1687 = vmatprep.subr.mxu0 0.0
    %1688 = vmatpush2.xpose.msra.mxu0 0.0
    %1689 = vmatprep.subr.mxu0 0.0
    %1690 = vmatpush2.xpose.msra.mxu0 0.0
    %1691 = vmatprep.subr.mxu0 0.0
    %1692 = vmatpush2.xpose.msra.mxu0 0.0
    %1693 = vmatprep.subr.mxu0 0.0
    %1694 = vmatpush2.xpose.msra.mxu0 0.0
    %1695 = vmatprep.subr.mxu0 0.0
    %1696 = vmatpush2.xpose.msra.mxu0 0.0
    %1697 = vmatprep.subr.mxu0 0.0
    %1698 = vmatpush2.xpose.msra.mxu0 0.0
    %1699 = vmatprep.subr.mxu0 0.0
    %1700 = vmatpush2.xpose.msra.mxu0 0.0
    %1701 = vmatprep.mubr.f32.mxu0 %v1575
    %1702 = vmatmul.mubr.f32.gmra.mxu0 %v1574
    %v1703 = vpop.f32.mrf.mxu0
    %v1704 = vadd.f32 0.0, %v1703
    %v1705 = vpop.f32.mrf.mxu0
    %1706 = vmatprep.mubr.f32.mxu0 %v1579
    %1707 = vmatmul.mubr.f32.gmra.mxu0 %v1578
    %v1708 = vpop.f32.mrf.mxu0
    %v1709 = vadd.f32 0.0, %v1708
    %v1710 = vpop.f32.mrf.mxu0
    %1711 = vmatprep.mubr.f32.mxu0 %v1583
    %1712 = vmatmul.mubr.f32.gmra.mxu0 %v1582
    %v1713 = vpop.f32.mrf.mxu0
    %v1714 = vadd.f32 0.0, %v1713
    %v1715 = vpop.f32.mrf.mxu0
    %1716 = vmatprep.mubr.f32.mxu0 %v1587
    %1717 = vmatmul.mubr.f32.gmra.mxu0 %v1586
    %v1718 = vpop.f32.mrf.mxu0
    %v1719 = vadd.f32 0.0, %v1718
    %v1720 = vpop.f32.mrf.mxu0
    %1721 = vmatprep.mubr.f32.mxu0 %v1591
    %1722 = vmatmul.mubr.f32.gmra.mxu0 %v1590
    %v1723 = vpop.f32.mrf.mxu0
    %v1724 = vadd.f32 0.0, %v1723
    %v1725 = vpop.f32.mrf.mxu0
    %1726 = vmatprep.mubr.f32.mxu0 %v1595
    %1727 = vmatmul.mubr.f32.gmra.mxu0 %v1594
    %v1728 = vpop.f32.mrf.mxu0
    %v1729 = vadd.f32 0.0, %v1728
    %v1730 = vpop.f32.mrf.mxu0
    %1731 = vmatprep.mubr.f32.mxu0 %v1599
    %1732 = vmatmul.mubr.f32.gmra.mxu0 %v1598
    %v1733 = vpop.f32.mrf.mxu0
    %v1734 = vadd.f32 0.0, %v1733
    %v1735 = vpop.f32.mrf.mxu0
    %1736 = vmatprep.mubr.f32.mxu0 %v1603
    %1737 = vmatmul.mubr.f32.gmra.mxu0 %v1602
    %v1738 = vpop.f32.mrf.mxu0
    %v1739 = vadd.f32 0.0, %v1738
    %v1740 = vpop.f32.mrf.mxu0
    %1741 = vmatprep.mubr.f32.mxu0 %v1607
    %1742 = vmatmul.mubr.f32.gmra.mxu0 %v1606
    %v1743 = vpop.f32.mrf.mxu0
    %v1744 = vadd.f32 0.0, %v1743
    %v1745 = vpop.f32.mrf.mxu0
    %1746 = vmatprep.mubr.f32.mxu0 %v1611
    %1747 = vmatmul.mubr.f32.gmra.mxu0 %v1610
    %v1748 = vpop.f32.mrf.mxu0
    %v1749 = vadd.f32 0.0, %v1748
    %v1750 = vpop.f32.mrf.mxu0
    %1751 = vmatprep.mubr.f32.mxu0 %v1615
    %1752 = vmatmul.mubr.f32.gmra.mxu0 %v1614
    %v1753 = vpop.f32.mrf.mxu0
    %v1754 = vadd.f32 0.0, %v1753
    %v1755 = vpop.f32.mrf.mxu0
    %1756 = vmatprep.mubr.f32.mxu0 %v1619
    %1757 = vmatmul.mubr.f32.gmra.mxu0 %v1618
    %v1758 = vpop.f32.mrf.mxu0
    %v1759 = vadd.f32 0.0, %v1758
    %v1760 = vpop.f32.mrf.mxu0
    %1761 = vmatprep.mubr.f32.mxu0 %v1623
    %1762 = vmatmul.mubr.f32.gmra.mxu0 %v1622
    %v1763 = vpop.f32.mrf.mxu0
    %v1764 = vadd.f32 0.0, %v1763
    %v1765 = vpop.f32.mrf.mxu0
    %1766 = vmatprep.mubr.f32.mxu0 %v1627
    %1767 = vmatmul.mubr.f32.gmra.mxu0 %v1626
    %v1768 = vpop.f32.mrf.mxu0
    %v1769 = vadd.f32 0.0, %v1768
    %v1770 = vpop.f32.mrf.mxu0
    %1771 = vmatprep.mubr.f32.mxu0 %v1631
    %1772 = vmatmul.mubr.f32.gmra.mxu0 %v1630
    %v1773 = vpop.f32.mrf.mxu0
    %v1774 = vadd.f32 0.0, %v1773
    %v1775 = vpop.f32.mrf.mxu0
    %1776 = vmatprep.mubr.f32.mxu0 %v1635
    %1777 = vmatmul.mubr.f32.gmra.mxu0 %v1634
    %v1778 = vpop.f32.mrf.mxu0
    %v1779 = vadd.f32 0.0, %v1778
    %v1780 = vpop.f32.mrf.mxu0
    %1781 = vdwg.mxu0
    %1782 = vmatprep.subr.mxu0 0.0
    %1783 = vmatpush1.xpose.msra.mxu0 %v1636
    %1784 = vmatprep.subr.mxu0 0.0
    %1785 = vmatpush1.xpose.msra.mxu0 %v1632
    %1786 = vmatprep.subr.mxu0 0.0
    %1787 = vmatpush1.xpose.msra.mxu0 %v1628
    %1788 = vmatprep.subr.mxu0 0.0
    %1789 = vmatpush1.xpose.msra.mxu0 %v1624
    %1790 = vmatprep.subr.mxu0 0.0
    %1791 = vmatpush1.xpose.msra.mxu0 %v1620
    %1792 = vmatprep.subr.mxu0 0.0
    %1793 = vmatpush1.xpose.msra.mxu0 %v1616
    %1794 = vmatprep.subr.mxu0 0.0
    %1795 = vmatpush1.xpose.msra.mxu0 %v1612
    %1796 = vmatprep.subr.mxu0 0.0
    %1797 = vmatpush1.xpose.msra.mxu0 %v1608
    %1798 = vmatprep.subr.mxu0 0.0
    %1799 = vmatpush1.xpose.msra.mxu0 %v1604
    %1800 = vmatprep.subr.mxu0 0.0
    %1801 = vmatpush1.xpose.msra.mxu0 %v1600
    %1802 = vmatprep.subr.mxu0 0.0
    %1803 = vmatpush1.xpose.msra.mxu0 %v1596
    %1804 = vmatprep.subr.mxu0 0.0
    %1805 = vmatpush1.xpose.msra.mxu0 %v1592
    %1806 = vmatprep.subr.mxu0 0.0
    %1807 = vmatpush1.xpose.msra.mxu0 %v1588
    %1808 = vmatprep.subr.mxu0 0.0
    %1809 = vmatpush1.xpose.msra.mxu0 %v1584
    %1810 = vmatprep.subr.mxu0 0.0
    %1811 = vmatpush1.xpose.msra.mxu0 %v1580
    %1812 = vmatprep.subr.mxu0 0.0
    %1813 = vmatpush1.xpose.msra.mxu0 %v1576
    %1814 = vmatprep.subr.mxu0 0.0
    %1815 = vmatpush2.xpose.msra.mxu0 0.0
    %1816 = vmatprep.subr.mxu0 0.0
    %1817 = vmatpush2.xpose.msra.mxu0 0.0
    %1818 = vmatprep.subr.mxu0 0.0
    %1819 = vmatpush2.xpose.msra.mxu0 0.0
    %1820 = vmatprep.subr.mxu0 0.0
    %1821 = vmatpush2.xpose.msra.mxu0 0.0
    %1822 = vmatprep.subr.mxu0 0.0
    %1823 = vmatpush2.xpose.msra.mxu0 0.0
    %1824 = vmatprep.subr.mxu0 0.0
    %1825 = vmatpush2.xpose.msra.mxu0 0.0
    %1826 = vmatprep.subr.mxu0 0.0
    %1827 = vmatpush2.xpose.msra.mxu0 0.0
    %1828 = vmatprep.subr.mxu0 0.0
    %1829 = vmatpush2.xpose.msra.mxu0 0.0
    %1830 = vmatprep.subr.mxu0 0.0
    %1831 = vmatpush2.xpose.msra.mxu0 0.0
    %1832 = vmatprep.subr.mxu0 0.0
    %1833 = vmatpush2.xpose.msra.mxu0 0.0
    %1834 = vmatprep.subr.mxu0 0.0
    %1835 = vmatpush2.xpose.msra.mxu0 0.0
    %1836 = vmatprep.subr.mxu0 0.0
    %1837 = vmatpush2.xpose.msra.mxu0 0.0
    %1838 = vmatprep.subr.mxu0 0.0
    %1839 = vmatpush2.xpose.msra.mxu0 0.0
    %1840 = vmatprep.subr.mxu0 0.0
    %1841 = vmatpush2.xpose.msra.mxu0 0.0
    %1842 = vmatprep.subr.mxu0 0.0
    %1843 = vmatpush2.xpose.msra.mxu0 0.0
    %1844 = vmatprep.subr.mxu0 0.0
    %1845 = vmatpush2.xpose.msra.mxu0 0.0
    %1846 = vmatprep.mubr.f32.mxu0 0.0
    %1847 = vmatmul.mubr.f32.gmra.mxu0 %v1576
    %v1848 = vpop.f32.mrf.mxu0
    %v1849 = vadd.f32 %v1704, %v1848
    %v1850 = vpop.f32.mrf.mxu0
    %1851 = vmatprep.mubr.f32.mxu0 0.0
    %1852 = vmatmul.mubr.f32.gmra.mxu0 %v1580
    %v1853 = vpop.f32.mrf.mxu0
    %v1854 = vadd.f32 %v1709, %v1853
    %v1855 = vpop.f32.mrf.mxu0
    %1856 = vmatprep.mubr.f32.mxu0 0.0
    %1857 = vmatmul.mubr.f32.gmra.mxu0 %v1584
    %v1858 = vpop.f32.mrf.mxu0
    %v1859 = vadd.f32 %v1714, %v1858
    %v1860 = vpop.f32.mrf.mxu0
    %1861 = vmatprep.mubr.f32.mxu0 0.0
    %1862 = vmatmul.mubr.f32.gmra.mxu0 %v1588
    %v1863 = vpop.f32.mrf.mxu0
    %v1864 = vadd.f32 %v1719, %v1863
    %v1865 = vpop.f32.mrf.mxu0
    %1866 = vmatprep.mubr.f32.mxu0 0.0
    %1867 = vmatmul.mubr.f32.gmra.mxu0 %v1592
    %v1868 = vpop.f32.mrf.mxu0
    %v1869 = vadd.f32 %v1724, %v1868
    %v1870 = vpop.f32.mrf.mxu0
    %1871 = vmatprep.mubr.f32.mxu0 0.0
    %1872 = vmatmul.mubr.f32.gmra.mxu0 %v1596
    %v1873 = vpop.f32.mrf.mxu0
    %v1874 = vadd.f32 %v1729, %v1873
    %v1875 = vpop.f32.mrf.mxu0
    %1876 = vmatprep.mubr.f32.mxu0 0.0
    %1877 = vmatmul.mubr.f32.gmra.mxu0 %v1600
    %v1878 = vpop.f32.mrf.mxu0
    %v1879 = vadd.f32 %v1734, %v1878
    %v1880 = vpop.f32.mrf.mxu0
    %1881 = vmatprep.mubr.f32.mxu0 0.0
    %1882 = vmatmul.mubr.f32.gmra.mxu0 %v1604
    %v1883 = vpop.f32.mrf.mxu0
    %v1884 = vadd.f32 %v1739, %v1883
    %v1885 = vpop.f32.mrf.mxu0
    %1886 = vmatprep.mubr.f32.mxu0 0.0
    %1887 = vmatmul.mubr.f32.gmra.mxu0 %v1608
    %v1888 = vpop.f32.mrf.mxu0
    %v1889 = vadd.f32 %v1744, %v1888
    %v1890 = vpop.f32.mrf.mxu0
    %1891 = vmatprep.mubr.f32.mxu0 0.0
    %1892 = vmatmul.mubr.f32.gmra.mxu0 %v1612
    %v1893 = vpop.f32.mrf.mxu0
    %v1894 = vadd.f32 %v1749, %v1893
    %v1895 = vpop.f32.mrf.mxu0
    %1896 = vmatprep.mubr.f32.mxu0 0.0
    %1897 = vmatmul.mubr.f32.gmra.mxu0 %v1616
    %v1898 = vpop.f32.mrf.mxu0
    %v1899 = vadd.f32 %v1754, %v1898
    %v1900 = vpop.f32.mrf.mxu0
    %1901 = vmatprep.mubr.f32.mxu0 0.0
    %1902 = vmatmul.mubr.f32.gmra.mxu0 %v1620
    %v1903 = vpop.f32.mrf.mxu0
    %v1904 = vadd.f32 %v1759, %v1903
    %v1905 = vpop.f32.mrf.mxu0
    %1906 = vmatprep.mubr.f32.mxu0 0.0
    %1907 = vmatmul.mubr.f32.gmra.mxu0 %v1624
    %v1908 = vpop.f32.mrf.mxu0
    %v1909 = vadd.f32 %v1764, %v1908
    %v1910 = vpop.f32.mrf.mxu0
    %1911 = vmatprep.mubr.f32.mxu0 0.0
    %1912 = vmatmul.mubr.f32.gmra.mxu0 %v1628
    %v1913 = vpop.f32.mrf.mxu0
    %v1914 = vadd.f32 %v1769, %v1913
    %v1915 = vpop.f32.mrf.mxu0
    %1916 = vmatprep.mubr.f32.mxu0 0.0
    %1917 = vmatmul.mubr.f32.gmra.mxu0 %v1632
    %v1918 = vpop.f32.mrf.mxu0
    %v1919 = vadd.f32 %v1774, %v1918
    %v1920 = vpop.f32.mrf.mxu0
    %1921 = vmatprep.mubr.f32.mxu0 0.0
    %1922 = vmatmul.mubr.f32.gmra.mxu0 %v1636
    %v1923 = vpop.f32.mrf.mxu0
    %v1924 = vadd.f32 %v1779, %v1923
    %v1925 = vpop.f32.mrf.mxu0
    %1926 = vdwg.mxu0
    %v1927 = vand.u32 2147483647, %v1849
    %v1928 = vand.u32 2147483647, %v1854
    %v1929 = vand.u32 2147483647, %v1859
    %v1930 = vand.u32 2147483647, %v1864
    %v1931 = vand.u32 2147483647, %v1869
    %v1932 = vand.u32 2147483647, %v1874
    %v1933 = vand.u32 2147483647, %v1879
    %v1934 = vand.u32 2147483647, %v1884
    %v1935 = vand.u32 2147483647, %v1889
    %v1936 = vand.u32 2147483647, %v1894
    %v1937 = vand.u32 2147483647, %v1899
    %v1938 = vand.u32 2147483647, %v1904
    %v1939 = vand.u32 2147483647, %v1909
    %v1940 = vand.u32 2147483647, %v1914
    %v1941 = vand.u32 2147483647, %v1919
    %v1942 = vand.u32 2147483647, %v1924
    %v1943 = vadd.f32 %v1927, %v1928
    %v1944 = vadd.f32 %v1943, %v1929
    %v1945 = vadd.f32 %v1944, %v1930
    %v1946 = vadd.f32 %v1945, %v1931
    %v1947 = vadd.f32 %v1946, %v1932
    %v1948 = vadd.f32 %v1947, %v1933
    %v1949 = vadd.f32 %v1948, %v1934
    %v1950 = vadd.f32 %v1949, %v1935
    %v1951 = vadd.f32 %v1950, %v1936
    %v1952 = vadd.f32 %v1951, %v1937
    %v1953 = vadd.f32 %v1952, %v1938
    %v1954 = vadd.f32 %v1953, %v1939
    %v1955 = vadd.f32 %v1954, %v1940
    %v1956 = vadd.f32 %v1955, %v1941
    %v1957 = vadd.f32 %v1956, %v1942
    %1958 = vadd.xlane.f32.xlu0 %v1957
    %v1959 = vpop.xlane.xlu0 %1958
    %v1960 = vrot.slane %v1959, 4
    %v1961 = vadd.f32 %v1959, %v1960
    %v1962 = vrot.slane %v1961, 2
    %v1963 = vadd.f32 %v1961, %v1962
    %v1964 = vrot.slane %v1963, 1
    %v1965 = vadd.f32 %v1963, %v1964
    %s1966 = vtos %v1965
    %s1967 = ssub.f32 %s1966, 128.0
    %v1968 = vrcp.pop 16256.0
    %s1969 = vtos %v1968
    %s1970 = smul.f32 %s1967, %s1969
    %s1971 = sadd.f32 %s1284, %s1970
    %v1972 = vld [vmem:[%s4] sm:$0xff]
    %v1973 = vmul.f32 %v1972, %v1972
    %1974 = vadd.xlane.f32.xlu0 %v1973
    %v1975 = vpop.xlane.xlu0 %1974
    %v1976 = vrsqrt.pop %v1975
    %v1977 = vmul.f32 %v1975, %v1976
    %vm1978 = vcmp.eq.f32.partialorder %v1975, inf
    %v1979 = vsel %vm1978, %v1975, %v1977
    %vm1980 = vcmp.eq.f32.partialorder %v1975, 0.0
    %v1981 = vand.u32 %v1975, 2147483648
    %v1982 = vsel %vm1980, %v1981, %v1979
    %v1983 = vadd.f32 %v1982, 1e-09
    %v1984 = vrcp.pop %v1983
    %v1985 = vmul.f32 %v1972, %v1984
    %1986 = vmatprep.subr.mxu0 0.0
    %1987 = vmatpush1.xpose.msra.mxu0 0.0
    %1988 = vmatprep.subr.mxu0 0.0
    %1989 = vmatpush1.xpose.msra.mxu0 0.0
    %1990 = vmatprep.subr.mxu0 0.0
    %1991 = vmatpush1.xpose.msra.mxu0 0.0
    %1992 = vmatprep.subr.mxu0 0.0
    %1993 = vmatpush1.xpose.msra.mxu0 0.0
    %1994 = vmatprep.subr.mxu0 0.0
    %1995 = vmatpush1.xpose.msra.mxu0 0.0
    %1996 = vmatprep.subr.mxu0 0.0
    %1997 = vmatpush1.xpose.msra.mxu0 0.0
    %1998 = vmatprep.subr.mxu0 0.0
    %1999 = vmatpush1.xpose.msra.mxu0 0.0
    %2000 = vmatprep.subr.mxu0 0.0
    %2001 = vmatpush1.xpose.msra.mxu0 0.0
    %2002 = vmatprep.subr.mxu0 0.0
    %2003 = vmatpush1.xpose.msra.mxu0 0.0
    %2004 = vmatprep.subr.mxu0 0.0
    %2005 = vmatpush1.xpose.msra.mxu0 0.0
    %2006 = vmatprep.subr.mxu0 0.0
    %2007 = vmatpush1.xpose.msra.mxu0 0.0
    %2008 = vmatprep.subr.mxu0 0.0
    %2009 = vmatpush1.xpose.msra.mxu0 0.0
    %2010 = vmatprep.subr.mxu0 0.0
    %2011 = vmatpush1.xpose.msra.mxu0 0.0
    %2012 = vmatprep.subr.mxu0 0.0
    %2013 = vmatpush1.xpose.msra.mxu0 0.0
    %2014 = vmatprep.subr.mxu0 0.0
    %2015 = vmatpush1.xpose.msra.mxu0 0.0
    %2016 = vmatprep.subr.mxu0 0.0
    %2017 = vmatpush1.xpose.msra.mxu0 %v1985
    %2018 = vmatprep.subr.mxu0 0.0
    %2019 = vmatpush2.xpose.msra.mxu0 0.0
    %2020 = vmatprep.subr.mxu0 0.0
    %2021 = vmatpush2.xpose.msra.mxu0 0.0
    %2022 = vmatprep.subr.mxu0 0.0
    %2023 = vmatpush2.xpose.msra.mxu0 0.0
    %2024 = vmatprep.subr.mxu0 0.0
    %2025 = vmatpush2.xpose.msra.mxu0 0.0
    %2026 = vmatprep.subr.mxu0 0.0
    %2027 = vmatpush2.xpose.msra.mxu0 0.0
    %2028 = vmatprep.subr.mxu0 0.0
    %2029 = vmatpush2.xpose.msra.mxu0 0.0
    %2030 = vmatprep.subr.mxu0 0.0
    %2031 = vmatpush2.xpose.msra.mxu0 0.0
    %2032 = vmatprep.subr.mxu0 0.0
    %2033 = vmatpush2.xpose.msra.mxu0 0.0
    %2034 = vmatprep.subr.mxu0 0.0
    %2035 = vmatpush2.xpose.msra.mxu0 0.0
    %2036 = vmatprep.subr.mxu0 0.0
    %2037 = vmatpush2.xpose.msra.mxu0 0.0
    %2038 = vmatprep.subr.mxu0 0.0
    %2039 = vmatpush2.xpose.msra.mxu0 0.0
    %2040 = vmatprep.subr.mxu0 0.0
    %2041 = vmatpush2.xpose.msra.mxu0 0.0
    %2042 = vmatprep.subr.mxu0 0.0
    %2043 = vmatpush2.xpose.msra.mxu0 0.0
    %2044 = vmatprep.subr.mxu0 0.0
    %2045 = vmatpush2.xpose.msra.mxu0 0.0
    %2046 = vmatprep.subr.mxu0 0.0
    %2047 = vmatpush2.xpose.msra.mxu0 0.0
    %2048 = vmatprep.subr.mxu0 0.0
    %2049 = vmatpush2.xpose.msra.mxu0 0.0
    %2050 = vmatprep.mubr.f32.mxu0 0.0
    %2051 = vmatmul.mubr.f32.gmra.mxu0 %v1985
    %v2052 = vpop.f32.mrf.mxu0
    %v2053 = vadd.f32 0.0, %v2052
    %v2054 = vpop.f32.mrf.mxu0
    %2055 = vdwg.mxu0
    %v2056 = vand.u32 2147483647, %v2053
    %vm2057 = vcmask 64512
    %v2058 = vsel %vm2057, %v2056, 0.0
    %2059 = vadd.xlane.f32.xlu0 %v2058
    %v2060 = vpop.xlane.xlu0 %2059
    %v2061 = vrot.slane %v2060, 4
    %v2062 = vadd.f32 %v2060, %v2061
    %v2063 = vrot.slane %v2062, 2
    %v2064 = vadd.f32 %v2062, %v2063
    %v2065 = vrot.slane %v2064, 1
    %v2066 = vadd.f32 %v2064, %v2065
    %s2067 = vtos %v2066
    %s2068 = ssub.f32 %s2067, 8.0
    %v2069 = vrcp.pop 56.0
    %s2070 = vtos %v2069
    %s2071 = smul.f32 %s2068, %s2070
    %s2072 = sadd.f32 %s1971, %s2071
    %v2073 = vrcp.pop 5.0
    %s2074 = vtos %v2073
    %s2075 = smul.f32 %s2072, %s2074
    %s2076 = scalar_lea.smem [#allocation2], 0
    %2077 = sst [smem:[%s2076]] %s2075
    // Predicated region
    $region22: #{forward.5} parent=1 // pred_check
      _
    $region23: #{forward.5} parent=1 // pred_check_branch
      %2079 = sbr.rel (0) target = $region25
    $region24: #{forward.5} parent=1 // pred_region
      %s2081 = ssub.s32 16, 16
      %2082 = vsyncadd [#allocation3], %s2081
      %2085 = dma.smem_to_hbm [#allocation2], 16, %s5, [#allocation3]
    $region25: #{forward.5} parent=1 // pred_fallthru
      _
    // Predicated region
    $region26: #{forward.5} parent=1 // pred_check
      _
    $region27: #{forward.5} parent=1 // pred_check_branch
      %2087 = sbr.rel (0) target = $region29
    $region28: #{forward.5} parent=1 // pred_region
      %2088 = dma.done [#allocation3], 16
    $region29: #{forward.5} parent=1 // pred_fallthru
      _
    %2089 = sfence
    %2090 = vsyncpa [#allocation3], 1

</llo_original>
